<compile_context>
chip_gen: v5e
topology: v5e:2x2
jax: 0.10.0
libtpu: 0.0.40
codegen_flags: <defaults>
</compile_context>

<pallas_src>
import numpy as np

import jax
import jax.numpy as jnp
from jax.experimental import pallas as pl
from jax.experimental.pallas import tpu as pltpu

NEG_SLOPE = 0.2
F32 = jnp.float32


# ----------------------------------------------------------------------------
# Fused forward-pass kernel (one grid step == one batch element)
# ----------------------------------------------------------------------------
def _autoencoder_kernel(
    x_ref,
    s_full_ref, s_half_ref, s_quarter_ref, s_eighth_ref,     # conv shift mats
    p_full_ref, p_half_ref, p_quarter_ref,                   # maxpool select mats
    u_eighth_ref, u_quarter_ref, u_half_ref,                 # upsample mats
    fa_ref, fat_ref, fmask_ref,                              # flatten helpers
    we1_ref, be1_ref, we2_ref, be2_ref, we3_ref, be3_ref,    # encoder convs
    wl1_ref, bl1_ref, wl2_ref, bl2_ref,                      # linear encoder
    wl3_ref, bl3_ref, wl4_ref, bl4_ref,                      # linear decoder
    wd1_ref, bd1_ref, wd2_ref, bd2_ref, wd3_ref, bd3_ref,    # decoder convs
    o_ref,
):
    def leaky(v):
        return jnp.maximum(v, NEG_SLOPE * v)

    def conv3x3(x, w_ref, b_ref, s_ref, act):
        # x: (Cin, HW);  w_ref: (9, Cout, Cin);  s_ref: (9, HW, HW); b: (Cout, 1)
        cout = w_ref.shape[1]
        hw = x.shape[1]
        y = jnp.zeros((cout, hw), F32)
        for t in range(9):                                   # in-kernel im2col
            xs = jnp.dot(x, s_ref[t], preferred_element_type=F32)
            y = y + jnp.dot(w_ref[t], xs, preferred_element_type=F32)
        y = y + b_ref[...]
        return leaky(y) if act else y

    def maxpool2x2(x, p_ref):
        # x: (C, HW) -> (C, HW/4) via 4 gather-matmuls + elementwise max
        g0 = jnp.dot(x, p_ref[0], preferred_element_type=F32)
        g1 = jnp.dot(x, p_ref[1], preferred_element_type=F32)
        g2 = jnp.dot(x, p_ref[2], preferred_element_type=F32)
        g3 = jnp.dot(x, p_ref[3], preferred_element_type=F32)
        return jnp.maximum(jnp.maximum(g0, g1), jnp.maximum(g2, g3))

    def upsample2x(x, u_ref):
        return jnp.dot(x, u_ref[...], preferred_element_type=F32)

    x = x_ref[0].astype(F32)                                  # (2, H*W)

    # ---- conv encoder -------------------------------------------------------
    x = conv3x3(x, we1_ref, be1_ref, s_full_ref, True)        # (8,  HW)
    x = maxpool2x2(x, p_full_ref)                             # (8,  HW/4)
    x = conv3x3(x, we2_ref, be2_ref, s_half_ref, True)        # (16, HW/4)
    x = maxpool2x2(x, p_half_ref)                             # (16, HW/16)
    x = conv3x3(x, we3_ref, be3_ref, s_quarter_ref, True)     # (32, HW/16)
    x = maxpool2x2(x, p_quarter_ref)                          # (32, fh*fw)

    # ---- flatten to torch NCHW order: v[0, c*fh*fw + p] = x[c, p] -----------
    z = jnp.dot(x, fa_ref[...], preferred_element_type=F32) * fmask_ref[...]
    v = jnp.sum(z, axis=0, keepdims=True)                     # (1, flat)

    # ---- linear encoder / decoder ------------------------------------------
    v = leaky(jnp.dot(v, wl1_ref[...], preferred_element_type=F32) + bl1_ref[...])
    v = jnp.dot(v, wl2_ref[...], preferred_element_type=F32) + bl2_ref[...]
    v = leaky(jnp.dot(v, wl3_ref[...], preferred_element_type=F32) + bl3_ref[...])
    v = jnp.dot(v, wl4_ref[...], preferred_element_type=F32) + bl4_ref[...]

    # ---- unflatten (torch view(B, 32, fh, fw)) ------------------------------
    xb = v * fmask_ref[...]                                   # (32, flat)
    x = jnp.dot(xb, fat_ref[...], preferred_element_type=F32)  # (32, fh*fw)

    # ---- conv decoder (ConvTranspose2d == same-conv w/ converted weights) ---
    x = conv3x3(x, wd1_ref, bd1_ref, s_eighth_ref, True)      # (16, fh*fw)
    x = upsample2x(x, u_eighth_ref)                           # (16, HW/16)
    x = conv3x3(x, wd2_ref, bd2_ref, s_quarter_ref, True)     # (8,  HW/16)
    x = upsample2x(x, u_quarter_ref)                          # (8,  HW/4)
    x = conv3x3(x, wd3_ref, bd3_ref, s_half_ref, False)       # (2,  HW/4)
    x = upsample2x(x, u_half_ref)                             # (2,  HW)

    o_ref[0] = x.astype(o_ref.dtype)


# ----------------------------------------------------------------------------
# Host-side constant builders (0/1 selection matrices, built once at init)
# ----------------------------------------------------------------------------
def _shift_mats(h, w):
    hw = h * w
    s = np.zeros((9, hw, hw), np.float32)
    for dy in range(3):
        for dx in range(3):
            t = dy * 3 + dx
            for r in range(h):
                for c in range(w):
                    rr, cc = r + dy - 1, c + dx - 1
                    if 0 <= rr < h and 0 <= cc < w:
                        s[t, rr * w + cc, r * w + c] = 1.0
    return s


def _pool_mats(h, w):
    ho, wo = h // 2, w // 2
    p = np.zeros((4, h * w, ho * wo), np.float32)
    for i, (oy, ox) in enumerate(((0, 0), (0, 1), (1, 0), (1, 1))):
        for qh in range(ho):
            for qw in range(wo):
                p[i, (2 * qh + oy) * w + (2 * qw + ox), qh * wo + qw] = 1.0
    return p


def _upsample_mat(h, w):
    ho, wo = 2 * h, 2 * w
    u = np.zeros((h * w, ho * wo), np.float32)
    for qh in range(ho):
        for qw in range(wo):
            u[(qh // 2) * w + (qw // 2), qh * wo + qw] = 1.0
    return u


def make_constants(H, W):
    assert H % 8 == 0 and W % 8 == 0, "spatial dims must be divisible by 8"
    fh, fw = H // 8, W // 8
    fhw, flat = fh * fw, 32 * fh * fw
    fa = np.zeros((fhw, flat), np.float32)       # fa[p, j]    = [p == j % fhw]
    fmask = np.zeros((32, flat), np.float32)     # fmask[c, j] = [c == j // fhw]
    for j in range(flat):
        fa[j % fhw, j] = 1.0
        fmask[j // fhw, j] = 1.0
    consts = {
        "s_full": _shift_mats(H, W),
        "s_half": _shift_mats(H // 2, W // 2),
        "s_quarter": _shift_mats(H // 4, W // 4),
        "s_eighth": _shift_mats(H // 8, W // 8),
        "p_full": _pool_mats(H, W),
        "p_half": _pool_mats(H // 2, W // 2),
        "p_quarter": _pool_mats(H // 4, W // 4),
        "u_eighth": _upsample_mat(H // 8, W // 8),
        "u_quarter": _upsample_mat(H // 4, W // 4),
        "u_half": _upsample_mat(H // 2, W // 2),
        "fa": fa,
        "fat": fa.T.copy(),
        "fmask": fmask,
    }
    return {k: jnp.asarray(v) for k, v in consts.items()}


# ----------------------------------------------------------------------------
# Parameters (PyTorch-style init; ConvTranspose2d converted to equivalent conv)
# ----------------------------------------------------------------------------
def init_params(key, num_samples, num_chirps):
    fh, fw = num_samples // 8, num_chirps // 8
    flat = 32 * fh * fw
    keys = iter(jax.random.split(key, 24))

    def u(shape, bound):
        return jax.random.uniform(next(keys), shape, F32, -bound, bound)

    raw = {}
    # Encoder Conv2d(cin, cout, 3, padding=1): weight OIHW, bound 1/sqrt(cin*9)
    for name, cin, cout in (("e1", 2, 8), ("e2", 8, 16), ("e3", 16, 32)):
        b = 1.0 / (cin * 9.0) ** 0.5
        raw[name + "_w"] = u((cout, cin, 3, 3), b)
        raw[name + "_b"] = u((cout,), b)
    # Linear(fin, fout): weight stored as (fin, fout), bound 1/sqrt(fin)
    for name, fin, fout in (("l1", flat, 256), ("l2", 256, 128),
                            ("l3", 128, 256), ("l4", 256, flat)):
        b = 1.0 / float(fin) ** 0.5
        raw[name + "_w"] = u((fin, fout), b)
        raw[name + "_b"] = u((fout,), b)
    # Decoder ConvTranspose2d(cin, cout, 3, padding=1): torch weight (cin,cout,3,3),
    # bound 1/sqrt(cout*9).  Stride-1/pad-1 ConvTranspose == same-conv with the
    # spatially flipped, channel-swapped kernel -> convert once here to OIHW.
    for name, cin, cout in (("d1", 32, 16), ("d2", 16, 8), ("d3", 8, 2)):
        b = 1.0 / (cout * 9.0) ** 0.5
        wt = u((cin, cout, 3, 3), b)
        raw[name + "_w"] = jnp.transpose(wt[:, :, ::-1, ::-1], (1, 0, 2, 3))
        raw[name + "_b"] = u((cout,), b)
    return raw, fh, fw, flat


def pack_kernel_params(raw):
    """Repack weights into the per-tap / row-vector layouts the kernel consumes."""
    kp = {}
    for name in ("e1", "e2", "e3", "d1", "d2", "d3"):
        w = raw[name + "_w"]                                  # (cout, cin, 3, 3)
        cout, cin = w.shape[0], w.shape[1]
        kp[name + "_w"] = jnp.transpose(w, (2, 3, 0, 1)).reshape(9, cout, cin)
        kp[name + "_b"] = raw[name + "_b"].reshape(cout, 1)
    for name in ("l1", "l2", "l3", "l4"):
        kp[name + "_w"] = raw[name + "_w"]
        kp[name + "_b"] = raw[name + "_b"].reshape(1, -1)
    return kp


# ----------------------------------------------------------------------------
# Public forward pass (single fused pallas_call)
# ----------------------------------------------------------------------------
def radar_hybrid_autoencoder(kp, consts, x_nchw):
    B, C, H, W = x_nchw.shape
    HW = H * W
    x = x_nchw.reshape(B, C, HW)                              # (C, HW) layout

    inputs = [
        x,
        consts["s_full"], consts["s_half"], consts["s_quarter"], consts["s_eighth"],
        consts["p_full"], consts["p_half"], consts["p_quarter"],
        consts["u_eighth"], consts["u_quarter"], consts["u_half"],
        consts["fa"], consts["fat"], consts["fmask"],
        kp["e1_w"], kp["e1_b"], kp["e2_w"], kp["e2_b"], kp["e3_w"], kp["e3_b"],
        kp["l1_w"], kp["l1_b"], kp["l2_w"], kp["l2_b"],
        kp["l3_w"], kp["l3_b"], kp["l4_w"], kp["l4_b"],
        kp["d1_w"], kp["d1_b"], kp["d2_w"], kp["d2_b"], kp["d3_w"], kp["d3_b"],
    ]

    def full_spec(a):
        # whole array resident in VMEM; same block for every grid step
        return pl.BlockSpec(a.shape, lambda b, _n=a.ndim: (0,) * _n)

    in_specs = [pl.BlockSpec((1, C, HW), lambda b: (b, 0, 0))]
    in_specs += [full_spec(a) for a in inputs[1:]]

    out = pl.pallas_call(
        _autoencoder_kernel,
        out_shape=jax.ShapeDtypeStruct((B, 2, HW), F32),
        grid=(B,),
        in_specs=in_specs,
        out_specs=pl.BlockSpec((1, 2, HW), lambda b: (b, 0, 0)),
        compiler_params=pltpu.CompilerParams(
            dimension_semantics=("parallel",),                # v7x: one sample/TC
            vmem_limit_bytes=48 * 1024 * 1024,
        ),
    )(*inputs)
    return out.reshape(B, 2, H, W)


# ----------------------------------------------------------------------------
# Plain-JAX reference (same math, XLA ops) for a correctness check
# ----------------------------------------------------------------------------
def reference_forward(raw, x):
    hp = jax.lax.Precision.HIGHEST

    def conv(h, w, b, act):
        y = jax.lax.conv_general_dilated(
            h, w, window_strides=(1, 1), padding="SAME",
            dimension_numbers=("NCHW", "OIHW", "NCHW"), precision=hp)
        y = y + b.reshape(1, -1, 1, 1)
        return jnp.maximum(y, NEG_SLOPE * y) if act else y

    def pool(h):
        return jax.lax.reduce_window(h, -jnp.inf, jax.lax.max,
                                     (1, 1, 2, 2), (1, 1, 2, 2), "VALID")

    def up(h):
        return jnp.repeat(jnp.repeat(h, 2, axis=2), 2, axis=3)

    def lin(v, w, b, act):
        y = jnp.dot(v, w, precision=hp) + b
        return jnp.maximum(y, NEG_SLOPE * y) if act else y

    B = x.shape[0]
    h = pool(conv(x, raw["e1_w"], raw["e1_b"], True))
    h = pool(conv(h, raw["e2_w"], raw["e2_b"], True))
    h = pool(conv(h, raw["e3_w"], raw["e3_b"], True))
    fh, fw = h.shape[2], h.shape[3]
    v = h.reshape(B, -1)
    v = lin(v, raw["l1_w"], raw["l1_b"], True)
    v = lin(v, raw["l2_w"], raw["l2_b"], False)
    v = lin(v, raw["l3_w"], raw["l3_b"], True)
    v = lin(v, raw["l4_w"], raw["l4_b"], False)
    h = v.reshape(B, 32, fh, fw)
    h = up(conv(h, raw["d1_w"], raw["d1_b"], True))
    h = up(conv(h, raw["d2_w"], raw["d2_b"], True))
    h = up(conv(h, raw["d3_w"], raw["d3_b"], False))
    return h


if __name__ == "__main__":
    # Small shapes consistent with the module (num_samples = num_chirps = 16).
    num_samples, num_chirps, batch = 16, 16, 2
    key = jax.random.PRNGKey(0)
    pkey, xkey = jax.random.split(key)

    raw, fh, fw, flat = init_params(pkey, num_samples, num_chirps)
    kp = pack_kernel_params(raw)
    consts = make_constants(num_samples, num_chirps)

    x = jax.random.normal(xkey, (batch, 2, num_samples, num_chirps), F32)

    fwd = jax.jit(radar_hybrid_autoencoder)
    y = fwd(kp, consts, x)
    jax.block_until_ready(y)

    assert y.shape == (batch, 2, num_samples, num_chirps), y.shape
    assert y.dtype == F32
    assert bool(jnp.all(jnp.isfinite(y)))

    # Numerical check against the plain-JAX reference of the same module.
    y_ref = jax.jit(reference_forward)(raw, x)
    jax.block_until_ready(y_ref)
    assert bool(jnp.allclose(y, y_ref, atol=1e-2, rtol=1e-2)), \
        float(jnp.max(jnp.abs(y - y_ref)))

    print("KERNEL_OK")
</pallas_src>

<mosaic_0001>
module attributes {stable_mosaic.version = 11 : i64} {
  func.func @_autoencoder_kernel(%arg0: i32, %arg1: memref<1x2x256xf32, #tpu.memory_space<vmem>>, %arg2: memref<9x256x256xf32, #tpu.memory_space<vmem>>, %arg3: memref<9x64x64xf32, #tpu.memory_space<vmem>>, %arg4: memref<9x16x16xf32, #tpu.memory_space<vmem>>, %arg5: memref<9x4x4xf32, #tpu.memory_space<vmem>>, %arg6: memref<4x256x64xf32, #tpu.memory_space<vmem>>, %arg7: memref<4x64x16xf32, #tpu.memory_space<vmem>>, %arg8: memref<4x16x4xf32, #tpu.memory_space<vmem>>, %arg9: memref<4x16xf32, #tpu.memory_space<vmem>>, %arg10: memref<16x64xf32, #tpu.memory_space<vmem>>, %arg11: memref<64x256xf32, #tpu.memory_space<vmem>>, %arg12: memref<4x128xf32, #tpu.memory_space<vmem>>, %arg13: memref<128x4xf32, #tpu.memory_space<vmem>>, %arg14: memref<32x128xf32, #tpu.memory_space<vmem>>, %arg15: memref<9x8x2xf32, #tpu.memory_space<vmem>>, %arg16: memref<8x1xf32, #tpu.memory_space<vmem>>, %arg17: memref<9x16x8xf32, #tpu.memory_space<vmem>>, %arg18: memref<16x1xf32, #tpu.memory_space<vmem>>, %arg19: memref<9x32x16xf32, #tpu.memory_space<vmem>>, %arg20: memref<32x1xf32, #tpu.memory_space<vmem>>, %arg21: memref<128x256xf32, #tpu.memory_space<vmem>>, %arg22: memref<1x256xf32, #tpu.memory_space<vmem>>, %arg23: memref<256x128xf32, #tpu.memory_space<vmem>>, %arg24: memref<1x128xf32, #tpu.memory_space<vmem>>, %arg25: memref<128x256xf32, #tpu.memory_space<vmem>>, %arg26: memref<1x256xf32, #tpu.memory_space<vmem>>, %arg27: memref<256x128xf32, #tpu.memory_space<vmem>>, %arg28: memref<1x128xf32, #tpu.memory_space<vmem>>, %arg29: memref<9x16x32xf32, #tpu.memory_space<vmem>>, %arg30: memref<16x1xf32, #tpu.memory_space<vmem>>, %arg31: memref<9x8x16xf32, #tpu.memory_space<vmem>>, %arg32: memref<8x1xf32, #tpu.memory_space<vmem>>, %arg33: memref<9x2x8xf32, #tpu.memory_space<vmem>>, %arg34: memref<2x1xf32, #tpu.memory_space<vmem>>, %arg35: memref<1x2x256xf32, #tpu.memory_space<vmem>>) attributes {dimension_semantics = [#tpu.dimension_semantics<parallel>], iteration_bounds = array<i64: 2>, scalar_prefetch = 0 : i64, scratch_operands = 0 : i64, tpu.core_type = #tpu.core_type<tc>, window_params = [{transform_indices = @transform_0, window_bounds = array<i64: 1, 2, 256>}, {pipeline_mode = #tpu.pipeline_mode<synchronous>, transform_indices = @transform_1, window_bounds = array<i64: 9, 256, 256>}, {pipeline_mode = #tpu.pipeline_mode<synchronous>, transform_indices = @transform_2, window_bounds = array<i64: 9, 64, 64>}, {pipeline_mode = #tpu.pipeline_mode<synchronous>, transform_indices = @transform_3, window_bounds = array<i64: 9, 16, 16>}, {pipeline_mode = #tpu.pipeline_mode<synchronous>, transform_indices = @transform_4, window_bounds = array<i64: 9, 4, 4>}, {pipeline_mode = #tpu.pipeline_mode<synchronous>, transform_indices = @transform_5, window_bounds = array<i64: 4, 256, 64>}, {pipeline_mode = #tpu.pipeline_mode<synchronous>, transform_indices = @transform_6, window_bounds = array<i64: 4, 64, 16>}, {pipeline_mode = #tpu.pipeline_mode<synchronous>, transform_indices = @transform_7, window_bounds = array<i64: 4, 16, 4>}, {pipeline_mode = #tpu.pipeline_mode<synchronous>, transform_indices = @transform_8, window_bounds = array<i64: 4, 16>}, {pipeline_mode = #tpu.pipeline_mode<synchronous>, transform_indices = @transform_9, window_bounds = array<i64: 16, 64>}, {pipeline_mode = #tpu.pipeline_mode<synchronous>, transform_indices = @transform_10, window_bounds = array<i64: 64, 256>}, {pipeline_mode = #tpu.pipeline_mode<synchronous>, transform_indices = @transform_11, window_bounds = array<i64: 4, 128>}, {pipeline_mode = #tpu.pipeline_mode<synchronous>, transform_indices = @transform_12, window_bounds = array<i64: 128, 4>}, {pipeline_mode = #tpu.pipeline_mode<synchronous>, transform_indices = @transform_13, window_bounds = array<i64: 32, 128>}, {pipeline_mode = #tpu.pipeline_mode<synchronous>, transform_indices = @transform_14, window_bounds = array<i64: 9, 8, 2>}, {pipeline_mode = #tpu.pipeline_mode<synchronous>, transform_indices = @transform_15, window_bounds = array<i64: 8, 1>}, {pipeline_mode = #tpu.pipeline_mode<synchronous>, transform_indices = @transform_16, window_bounds = array<i64: 9, 16, 8>}, {pipeline_mode = #tpu.pipeline_mode<synchronous>, transform_indices = @transform_17, window_bounds = array<i64: 16, 1>}, {pipeline_mode = #tpu.pipeline_mode<synchronous>, transform_indices = @transform_18, window_bounds = array<i64: 9, 32, 16>}, {pipeline_mode = #tpu.pipeline_mode<synchronous>, transform_indices = @transform_19, window_bounds = array<i64: 32, 1>}, {pipeline_mode = #tpu.pipeline_mode<synchronous>, transform_indices = @transform_20, window_bounds = array<i64: 128, 256>}, {pipeline_mode = #tpu.pipeline_mode<synchronous>, transform_indices = @transform_21, window_bounds = array<i64: 1, 256>}, {pipeline_mode = #tpu.pipeline_mode<synchronous>, transform_indices = @transform_22, window_bounds = array<i64: 256, 128>}, {pipeline_mode = #tpu.pipeline_mode<synchronous>, transform_indices = @transform_23, window_bounds = array<i64: 1, 128>}, {pipeline_mode = #tpu.pipeline_mode<synchronous>, transform_indices = @transform_24, window_bounds = array<i64: 128, 256>}, {pipeline_mode = #tpu.pipeline_mode<synchronous>, transform_indices = @transform_25, window_bounds = array<i64: 1, 256>}, {pipeline_mode = #tpu.pipeline_mode<synchronous>, transform_indices = @transform_26, window_bounds = array<i64: 256, 128>}, {pipeline_mode = #tpu.pipeline_mode<synchronous>, transform_indices = @transform_27, window_bounds = array<i64: 1, 128>}, {pipeline_mode = #tpu.pipeline_mode<synchronous>, transform_indices = @transform_28, window_bounds = array<i64: 9, 16, 32>}, {pipeline_mode = #tpu.pipeline_mode<synchronous>, transform_indices = @transform_29, window_bounds = array<i64: 16, 1>}, {pipeline_mode = #tpu.pipeline_mode<synchronous>, transform_indices = @transform_30, window_bounds = array<i64: 9, 8, 16>}, {pipeline_mode = #tpu.pipeline_mode<synchronous>, transform_indices = @transform_31, window_bounds = array<i64: 8, 1>}, {pipeline_mode = #tpu.pipeline_mode<synchronous>, transform_indices = @transform_32, window_bounds = array<i64: 9, 2, 8>}, {pipeline_mode = #tpu.pipeline_mode<synchronous>, transform_indices = @transform_33, window_bounds = array<i64: 2, 1>}, {transform_indices = @transform_34, window_bounds = array<i64: 1, 2, 256>}]} {
    %c0 = arith.constant 0 : index
    %c0_0 = arith.constant 0 : index
    %c0_1 = arith.constant 0 : index
    %0 = vector.load %arg1[%c0, %c0_0, %c0_1] : memref<1x2x256xf32, #tpu.memory_space<vmem>>, vector<1x2x256xf32>
    %1 = vector.shape_cast %0 : vector<1x2x256xf32> to vector<2x256xf32>
    %cst = arith.constant 0.000000e+00 : f32
    %2 = vector.broadcast %cst : f32 to vector<8x256xf32>
    %c0_2 = arith.constant 0 : index
    %c0_3 = arith.constant 0 : index
    %c0_4 = arith.constant 0 : index
    %3 = vector.load %arg2[%c0_2, %c0_3, %c0_4] : memref<9x256x256xf32, #tpu.memory_space<vmem>>, vector<1x256x256xf32>
    %4 = vector.shape_cast %3 : vector<1x256x256xf32> to vector<256x256xf32>
    %cst_5 = arith.constant dense<0.000000e+00> : vector<2x256xf32>
    %5 = tpu.matmul %1, %4, %cst_5 {dimension_numbers = #tpu.dot_dimension_numbers<[1], [0], [0], [1], [0, 0, 1, 1], [], []>} : vector<2x256xf32>, vector<256x256xf32>, vector<2x256xf32> -> vector<2x256xf32>
    %c0_6 = arith.constant 0 : index
    %c0_7 = arith.constant 0 : index
    %c0_8 = arith.constant 0 : index
    %6 = vector.load %arg15[%c0_6, %c0_7, %c0_8] : memref<9x8x2xf32, #tpu.memory_space<vmem>>, vector<1x8x2xf32>
    %7 = vector.shape_cast %6 : vector<1x8x2xf32> to vector<8x2xf32>
    %cst_9 = arith.constant dense<0.000000e+00> : vector<8x256xf32>
    %8 = tpu.matmul %7, %5, %cst_9 {dimension_numbers = #tpu.dot_dimension_numbers<[1], [0], [0], [1], [0, 0, 1, 1], [], []>} : vector<8x2xf32>, vector<2x256xf32>, vector<8x256xf32> -> vector<8x256xf32>
    %9 = arith.addf %2, %8 : vector<8x256xf32>
    %c1 = arith.constant 1 : index
    %c0_10 = arith.constant 0 : index
    %c0_11 = arith.constant 0 : index
    %10 = vector.load %arg2[%c1, %c0_10, %c0_11] : memref<9x256x256xf32, #tpu.memory_space<vmem>>, vector<1x256x256xf32>
    %11 = vector.shape_cast %10 : vector<1x256x256xf32> to vector<256x256xf32>
    %cst_12 = arith.constant dense<0.000000e+00> : vector<2x256xf32>
    %12 = tpu.matmul %1, %11, %cst_12 {dimension_numbers = #tpu.dot_dimension_numbers<[1], [0], [0], [1], [0, 0, 1, 1], [], []>} : vector<2x256xf32>, vector<256x256xf32>, vector<2x256xf32> -> vector<2x256xf32>
    %c1_13 = arith.constant 1 : index
    %c0_14 = arith.constant 0 : index
    %c0_15 = arith.constant 0 : index
    %13 = vector.load %arg15[%c1_13, %c0_14, %c0_15] : memref<9x8x2xf32, #tpu.memory_space<vmem>>, vector<1x8x2xf32>
    %14 = vector.shape_cast %13 : vector<1x8x2xf32> to vector<8x2xf32>
    %cst_16 = arith.constant dense<0.000000e+00> : vector<8x256xf32>
    %15 = tpu.matmul %14, %12, %cst_16 {dimension_numbers = #tpu.dot_dimension_numbers<[1], [0], [0], [1], [0, 0, 1, 1], [], []>} : vector<8x2xf32>, vector<2x256xf32>, vector<8x256xf32> -> vector<8x256xf32>
    %16 = arith.addf %9, %15 : vector<8x256xf32>
    %c2 = arith.constant 2 : index
    %c0_17 = arith.constant 0 : index
    %c0_18 = arith.constant 0 : index
    %17 = vector.load %arg2[%c2, %c0_17, %c0_18] : memref<9x256x256xf32, #tpu.memory_space<vmem>>, vector<1x256x256xf32>
    %18 = vector.shape_cast %17 : vector<1x256x256xf32> to vector<256x256xf32>
    %cst_19 = arith.constant dense<0.000000e+00> : vector<2x256xf32>
    %19 = tpu.matmul %1, %18, %cst_19 {dimension_numbers = #tpu.dot_dimension_numbers<[1], [0], [0], [1], [0, 0, 1, 1], [], []>} : vector<2x256xf32>, vector<256x256xf32>, vector<2x256xf32> -> vector<2x256xf32>
    %c2_20 = arith.constant 2 : index
    %c0_21 = arith.constant 0 : index
    %c0_22 = arith.constant 0 : index
    %20 = vector.load %arg15[%c2_20, %c0_21, %c0_22] : memref<9x8x2xf32, #tpu.memory_space<vmem>>, vector<1x8x2xf32>
    %21 = vector.shape_cast %20 : vector<1x8x2xf32> to vector<8x2xf32>
    %cst_23 = arith.constant dense<0.000000e+00> : vector<8x256xf32>
    %22 = tpu.matmul %21, %19, %cst_23 {dimension_numbers = #tpu.dot_dimension_numbers<[1], [0], [0], [1], [0, 0, 1, 1], [], []>} : vector<8x2xf32>, vector<2x256xf32>, vector<8x256xf32> -> vector<8x256xf32>
    %23 = arith.addf %16, %22 : vector<8x256xf32>
    %c3 = arith.constant 3 : index
    %c0_24 = arith.constant 0 : index
    %c0_25 = arith.constant 0 : index
    %24 = vector.load %arg2[%c3, %c0_24, %c0_25] : memref<9x256x256xf32, #tpu.memory_space<vmem>>, vector<1x256x256xf32>
    %25 = vector.shape_cast %24 : vector<1x256x256xf32> to vector<256x256xf32>
    %cst_26 = arith.constant dense<0.000000e+00> : vector<2x256xf32>
    %26 = tpu.matmul %1, %25, %cst_26 {dimension_numbers = #tpu.dot_dimension_numbers<[1], [0], [0], [1], [0, 0, 1, 1], [], []>} : vector<2x256xf32>, vector<256x256xf32>, vector<2x256xf32> -> vector<2x256xf32>
    %c3_27 = arith.constant 3 : index
    %c0_28 = arith.constant 0 : index
    %c0_29 = arith.constant 0 : index
    %27 = vector.load %arg15[%c3_27, %c0_28, %c0_29] : memref<9x8x2xf32, #tpu.memory_space<vmem>>, vector<1x8x2xf32>
    %28 = vector.shape_cast %27 : vector<1x8x2xf32> to vector<8x2xf32>
    %cst_30 = arith.constant dense<0.000000e+00> : vector<8x256xf32>
    %29 = tpu.matmul %28, %26, %cst_30 {dimension_numbers = #tpu.dot_dimension_numbers<[1], [0], [0], [1], [0, 0, 1, 1], [], []>} : vector<8x2xf32>, vector<2x256xf32>, vector<8x256xf32> -> vector<8x256xf32>
    %30 = arith.addf %23, %29 : vector<8x256xf32>
    %c4 = arith.constant 4 : index
    %c0_31 = arith.constant 0 : index
    %c0_32 = arith.constant 0 : index
    %31 = vector.load %arg2[%c4, %c0_31, %c0_32] : memref<9x256x256xf32, #tpu.memory_space<vmem>>, vector<1x256x256xf32>
    %32 = vector.shape_cast %31 : vector<1x256x256xf32> to vector<256x256xf32>
    %cst_33 = arith.constant dense<0.000000e+00> : vector<2x256xf32>
    %33 = tpu.matmul %1, %32, %cst_33 {dimension_numbers = #tpu.dot_dimension_numbers<[1], [0], [0], [1], [0, 0, 1, 1], [], []>} : vector<2x256xf32>, vector<256x256xf32>, vector<2x256xf32> -> vector<2x256xf32>
    %c4_34 = arith.constant 4 : index
    %c0_35 = arith.constant 0 : index
    %c0_36 = arith.constant 0 : index
    %34 = vector.load %arg15[%c4_34, %c0_35, %c0_36] : memref<9x8x2xf32, #tpu.memory_space<vmem>>, vector<1x8x2xf32>
    %35 = vector.shape_cast %34 : vector<1x8x2xf32> to vector<8x2xf32>
    %cst_37 = arith.constant dense<0.000000e+00> : vector<8x256xf32>
    %36 = tpu.matmul %35, %33, %cst_37 {dimension_numbers = #tpu.dot_dimension_numbers<[1], [0], [0], [1], [0, 0, 1, 1], [], []>} : vector<8x2xf32>, vector<2x256xf32>, vector<8x256xf32> -> vector<8x256xf32>
    %37 = arith.addf %30, %36 : vector<8x256xf32>
    %c5 = arith.constant 5 : index
    %c0_38 = arith.constant 0 : index
    %c0_39 = arith.constant 0 : index
    %38 = vector.load %arg2[%c5, %c0_38, %c0_39] : memref<9x256x256xf32, #tpu.memory_space<vmem>>, vector<1x256x256xf32>
    %39 = vector.shape_cast %38 : vector<1x256x256xf32> to vector<256x256xf32>
    %cst_40 = arith.constant dense<0.000000e+00> : vector<2x256xf32>
    %40 = tpu.matmul %1, %39, %cst_40 {dimension_numbers = #tpu.dot_dimension_numbers<[1], [0], [0], [1], [0, 0, 1, 1], [], []>} : vector<2x256xf32>, vector<256x256xf32>, vector<2x256xf32> -> vector<2x256xf32>
    %c5_41 = arith.constant 5 : index
    %c0_42 = arith.constant 0 : index
    %c0_43 = arith.constant 0 : index
    %41 = vector.load %arg15[%c5_41, %c0_42, %c0_43] : memref<9x8x2xf32, #tpu.memory_space<vmem>>, vector<1x8x2xf32>
    %42 = vector.shape_cast %41 : vector<1x8x2xf32> to vector<8x2xf32>
    %cst_44 = arith.constant dense<0.000000e+00> : vector<8x256xf32>
    %43 = tpu.matmul %42, %40, %cst_44 {dimension_numbers = #tpu.dot_dimension_numbers<[1], [0], [0], [1], [0, 0, 1, 1], [], []>} : vector<8x2xf32>, vector<2x256xf32>, vector<8x256xf32> -> vector<8x256xf32>
    %44 = arith.addf %37, %43 : vector<8x256xf32>
    %c6 = arith.constant 6 : index
    %c0_45 = arith.constant 0 : index
    %c0_46 = arith.constant 0 : index
    %45 = vector.load %arg2[%c6, %c0_45, %c0_46] : memref<9x256x256xf32, #tpu.memory_space<vmem>>, vector<1x256x256xf32>
    %46 = vector.shape_cast %45 : vector<1x256x256xf32> to vector<256x256xf32>
    %cst_47 = arith.constant dense<0.000000e+00> : vector<2x256xf32>
    %47 = tpu.matmul %1, %46, %cst_47 {dimension_numbers = #tpu.dot_dimension_numbers<[1], [0], [0], [1], [0, 0, 1, 1], [], []>} : vector<2x256xf32>, vector<256x256xf32>, vector<2x256xf32> -> vector<2x256xf32>
    %c6_48 = arith.constant 6 : index
    %c0_49 = arith.constant 0 : index
    %c0_50 = arith.constant 0 : index
    %48 = vector.load %arg15[%c6_48, %c0_49, %c0_50] : memref<9x8x2xf32, #tpu.memory_space<vmem>>, vector<1x8x2xf32>
    %49 = vector.shape_cast %48 : vector<1x8x2xf32> to vector<8x2xf32>
    %cst_51 = arith.constant dense<0.000000e+00> : vector<8x256xf32>
    %50 = tpu.matmul %49, %47, %cst_51 {dimension_numbers = #tpu.dot_dimension_numbers<[1], [0], [0], [1], [0, 0, 1, 1], [], []>} : vector<8x2xf32>, vector<2x256xf32>, vector<8x256xf32> -> vector<8x256xf32>
    %51 = arith.addf %44, %50 : vector<8x256xf32>
    %c7 = arith.constant 7 : index
    %c0_52 = arith.constant 0 : index
    %c0_53 = arith.constant 0 : index
    %52 = vector.load %arg2[%c7, %c0_52, %c0_53] : memref<9x256x256xf32, #tpu.memory_space<vmem>>, vector<1x256x256xf32>
    %53 = vector.shape_cast %52 : vector<1x256x256xf32> to vector<256x256xf32>
    %cst_54 = arith.constant dense<0.000000e+00> : vector<2x256xf32>
    %54 = tpu.matmul %1, %53, %cst_54 {dimension_numbers = #tpu.dot_dimension_numbers<[1], [0], [0], [1], [0, 0, 1, 1], [], []>} : vector<2x256xf32>, vector<256x256xf32>, vector<2x256xf32> -> vector<2x256xf32>
    %c7_55 = arith.constant 7 : index
    %c0_56 = arith.constant 0 : index
    %c0_57 = arith.constant 0 : index
    %55 = vector.load %arg15[%c7_55, %c0_56, %c0_57] : memref<9x8x2xf32, #tpu.memory_space<vmem>>, vector<1x8x2xf32>
    %56 = vector.shape_cast %55 : vector<1x8x2xf32> to vector<8x2xf32>
    %cst_58 = arith.constant dense<0.000000e+00> : vector<8x256xf32>
    %57 = tpu.matmul %56, %54, %cst_58 {dimension_numbers = #tpu.dot_dimension_numbers<[1], [0], [0], [1], [0, 0, 1, 1], [], []>} : vector<8x2xf32>, vector<2x256xf32>, vector<8x256xf32> -> vector<8x256xf32>
    %58 = arith.addf %51, %57 : vector<8x256xf32>
    %c8 = arith.constant 8 : index
    %c0_59 = arith.constant 0 : index
    %c0_60 = arith.constant 0 : index
    %59 = vector.load %arg2[%c8, %c0_59, %c0_60] : memref<9x256x256xf32, #tpu.memory_space<vmem>>, vector<1x256x256xf32>
    %60 = vector.shape_cast %59 : vector<1x256x256xf32> to vector<256x256xf32>
    %cst_61 = arith.constant dense<0.000000e+00> : vector<2x256xf32>
    %61 = tpu.matmul %1, %60, %cst_61 {dimension_numbers = #tpu.dot_dimension_numbers<[1], [0], [0], [1], [0, 0, 1, 1], [], []>} : vector<2x256xf32>, vector<256x256xf32>, vector<2x256xf32> -> vector<2x256xf32>
    %c8_62 = arith.constant 8 : index
    %c0_63 = arith.constant 0 : index
    %c0_64 = arith.constant 0 : index
    %62 = vector.load %arg15[%c8_62, %c0_63, %c0_64] : memref<9x8x2xf32, #tpu.memory_space<vmem>>, vector<1x8x2xf32>
    %63 = vector.shape_cast %62 : vector<1x8x2xf32> to vector<8x2xf32>
    %cst_65 = arith.constant dense<0.000000e+00> : vector<8x256xf32>
    %64 = tpu.matmul %63, %61, %cst_65 {dimension_numbers = #tpu.dot_dimension_numbers<[1], [0], [0], [1], [0, 0, 1, 1], [], []>} : vector<8x2xf32>, vector<2x256xf32>, vector<8x256xf32> -> vector<8x256xf32>
    %65 = arith.addf %58, %64 : vector<8x256xf32>
    %c0_66 = arith.constant 0 : index
    %c0_67 = arith.constant 0 : index
    %66 = vector.load %arg16[%c0_66, %c0_67] : memref<8x1xf32, #tpu.memory_space<vmem>>, vector<8x1xf32>
    %67 = vector.broadcast %66 : vector<8x1xf32> to vector<8x256xf32>
    %68 = arith.addf %65, %67 : vector<8x256xf32>
    %cst_68 = arith.constant 2.000000e-01 : f32
    %69 = vector.broadcast %cst_68 : f32 to vector<8x256xf32>
    %70 = arith.mulf %69, %68 : vector<8x256xf32>
    %71 = arith.maximumf %68, %70 : vector<8x256xf32>
    %c0_69 = arith.constant 0 : index
    %c0_70 = arith.constant 0 : index
    %c0_71 = arith.constant 0 : index
    %72 = vector.load %arg6[%c0_69, %c0_70, %c0_71] : memref<4x256x64xf32, #tpu.memory_space<vmem>>, vector<1x256x64xf32>
    %73 = vector.shape_cast %72 : vector<1x256x64xf32> to vector<256x64xf32>
    %cst_72 = arith.constant dense<0.000000e+00> : vector<8x64xf32>
    %74 = tpu.matmul %71, %73, %cst_72 {dimension_numbers = #tpu.dot_dimension_numbers<[1], [0], [0], [1], [0, 0, 1, 1], [], []>} : vector<8x256xf32>, vector<256x64xf32>, vector<8x64xf32> -> vector<8x64xf32>
    %c1_73 = arith.constant 1 : index
    %c0_74 = arith.constant 0 : index
    %c0_75 = arith.constant 0 : index
    %75 = vector.load %arg6[%c1_73, %c0_74, %c0_75] : memref<4x256x64xf32, #tpu.memory_space<vmem>>, vector<1x256x64xf32>
    %76 = vector.shape_cast %75 : vector<1x256x64xf32> to vector<256x64xf32>
    %cst_76 = arith.constant dense<0.000000e+00> : vector<8x64xf32>
    %77 = tpu.matmul %71, %76, %cst_76 {dimension_numbers = #tpu.dot_dimension_numbers<[1], [0], [0], [1], [0, 0, 1, 1], [], []>} : vector<8x256xf32>, vector<256x64xf32>, vector<8x64xf32> -> vector<8x64xf32>
    %c2_77 = arith.constant 2 : index
    %c0_78 = arith.constant 0 : index
    %c0_79 = arith.constant 0 : index
    %78 = vector.load %arg6[%c2_77, %c0_78, %c0_79] : memref<4x256x64xf32, #tpu.memory_space<vmem>>, vector<1x256x64xf32>
    %79 = vector.shape_cast %78 : vector<1x256x64xf32> to vector<256x64xf32>
    %cst_80 = arith.constant dense<0.000000e+00> : vector<8x64xf32>
    %80 = tpu.matmul %71, %79, %cst_80 {dimension_numbers = #tpu.dot_dimension_numbers<[1], [0], [0], [1], [0, 0, 1, 1], [], []>} : vector<8x256xf32>, vector<256x64xf32>, vector<8x64xf32> -> vector<8x64xf32>
    %c3_81 = arith.constant 3 : index
    %c0_82 = arith.constant 0 : index
    %c0_83 = arith.constant 0 : index
    %81 = vector.load %arg6[%c3_81, %c0_82, %c0_83] : memref<4x256x64xf32, #tpu.memory_space<vmem>>, vector<1x256x64xf32>
    %82 = vector.shape_cast %81 : vector<1x256x64xf32> to vector<256x64xf32>
    %cst_84 = arith.constant dense<0.000000e+00> : vector<8x64xf32>
    %83 = tpu.matmul %71, %82, %cst_84 {dimension_numbers = #tpu.dot_dimension_numbers<[1], [0], [0], [1], [0, 0, 1, 1], [], []>} : vector<8x256xf32>, vector<256x64xf32>, vector<8x64xf32> -> vector<8x64xf32>
    %84 = arith.maximumf %74, %77 : vector<8x64xf32>
    %85 = arith.maximumf %80, %83 : vector<8x64xf32>
    %86 = arith.maximumf %84, %85 : vector<8x64xf32>
    %cst_85 = arith.constant 0.000000e+00 : f32
    %87 = vector.broadcast %cst_85 : f32 to vector<16x64xf32>
    %c0_86 = arith.constant 0 : index
    %c0_87 = arith.constant 0 : index
    %c0_88 = arith.constant 0 : index
    %88 = vector.load %arg3[%c0_86, %c0_87, %c0_88] : memref<9x64x64xf32, #tpu.memory_space<vmem>>, vector<1x64x64xf32>
    %89 = vector.shape_cast %88 : vector<1x64x64xf32> to vector<64x64xf32>
    %cst_89 = arith.constant dense<0.000000e+00> : vector<8x64xf32>
    %90 = tpu.matmul %86, %89, %cst_89 {dimension_numbers = #tpu.dot_dimension_numbers<[1], [0], [0], [1], [0, 0, 1, 1], [], []>} : vector<8x64xf32>, vector<64x64xf32>, vector<8x64xf32> -> vector<8x64xf32>
    %c0_90 = arith.constant 0 : index
    %c0_91 = arith.constant 0 : index
    %c0_92 = arith.constant 0 : index
    %91 = vector.load %arg17[%c0_90, %c0_91, %c0_92] : memref<9x16x8xf32, #tpu.memory_space<vmem>>, vector<1x16x8xf32>
    %92 = vector.shape_cast %91 : vector<1x16x8xf32> to vector<16x8xf32>
    %cst_93 = arith.constant dense<0.000000e+00> : vector<16x64xf32>
    %93 = tpu.matmul %92, %90, %cst_93 {dimension_numbers = #tpu.dot_dimension_numbers<[1], [0], [0], [1], [0, 0, 1, 1], [], []>} : vector<16x8xf32>, vector<8x64xf32>, vector<16x64xf32> -> vector<16x64xf32>
    %94 = arith.addf %87, %93 : vector<16x64xf32>
    %c1_94 = arith.constant 1 : index
    %c0_95 = arith.constant 0 : index
    %c0_96 = arith.constant 0 : index
    %95 = vector.load %arg3[%c1_94, %c0_95, %c0_96] : memref<9x64x64xf32, #tpu.memory_space<vmem>>, vector<1x64x64xf32>
    %96 = vector.shape_cast %95 : vector<1x64x64xf32> to vector<64x64xf32>
    %cst_97 = arith.constant dense<0.000000e+00> : vector<8x64xf32>
    %97 = tpu.matmul %86, %96, %cst_97 {dimension_numbers = #tpu.dot_dimension_numbers<[1], [0], [0], [1], [0, 0, 1, 1], [], []>} : vector<8x64xf32>, vector<64x64xf32>, vector<8x64xf32> -> vector<8x64xf32>
    %c1_98 = arith.constant 1 : index
    %c0_99 = arith.constant 0 : index
    %c0_100 = arith.constant 0 : index
    %98 = vector.load %arg17[%c1_98, %c0_99, %c0_100] : memref<9x16x8xf32, #tpu.memory_space<vmem>>, vector<1x16x8xf32>
    %99 = vector.shape_cast %98 : vector<1x16x8xf32> to vector<16x8xf32>
    %cst_101 = arith.constant dense<0.000000e+00> : vector<16x64xf32>
    %100 = tpu.matmul %99, %97, %cst_101 {dimension_numbers = #tpu.dot_dimension_numbers<[1], [0], [0], [1], [0, 0, 1, 1], [], []>} : vector<16x8xf32>, vector<8x64xf32>, vector<16x64xf32> -> vector<16x64xf32>
    %101 = arith.addf %94, %100 : vector<16x64xf32>
    %c2_102 = arith.constant 2 : index
    %c0_103 = arith.constant 0 : index
    %c0_104 = arith.constant 0 : index
    %102 = vector.load %arg3[%c2_102, %c0_103, %c0_104] : memref<9x64x64xf32, #tpu.memory_space<vmem>>, vector<1x64x64xf32>
    %103 = vector.shape_cast %102 : vector<1x64x64xf32> to vector<64x64xf32>
    %cst_105 = arith.constant dense<0.000000e+00> : vector<8x64xf32>
    %104 = tpu.matmul %86, %103, %cst_105 {dimension_numbers = #tpu.dot_dimension_numbers<[1], [0], [0], [1], [0, 0, 1, 1], [], []>} : vector<8x64xf32>, vector<64x64xf32>, vector<8x64xf32> -> vector<8x64xf32>
    %c2_106 = arith.constant 2 : index
    %c0_107 = arith.constant 0 : index
    %c0_108 = arith.constant 0 : index
    %105 = vector.load %arg17[%c2_106, %c0_107, %c0_108] : memref<9x16x8xf32, #tpu.memory_space<vmem>>, vector<1x16x8xf32>
    %106 = vector.shape_cast %105 : vector<1x16x8xf32> to vector<16x8xf32>
    %cst_109 = arith.constant dense<0.000000e+00> : vector<16x64xf32>
    %107 = tpu.matmul %106, %104, %cst_109 {dimension_numbers = #tpu.dot_dimension_numbers<[1], [0], [0], [1], [0, 0, 1, 1], [], []>} : vector<16x8xf32>, vector<8x64xf32>, vector<16x64xf32> -> vector<16x64xf32>
    %108 = arith.addf %101, %107 : vector<16x64xf32>
    %c3_110 = arith.constant 3 : index
    %c0_111 = arith.constant 0 : index
    %c0_112 = arith.constant 0 : index
    %109 = vector.load %arg3[%c3_110, %c0_111, %c0_112] : memref<9x64x64xf32, #tpu.memory_space<vmem>>, vector<1x64x64xf32>
    %110 = vector.shape_cast %109 : vector<1x64x64xf32> to vector<64x64xf32>
    %cst_113 = arith.constant dense<0.000000e+00> : vector<8x64xf32>
    %111 = tpu.matmul %86, %110, %cst_113 {dimension_numbers = #tpu.dot_dimension_numbers<[1], [0], [0], [1], [0, 0, 1, 1], [], []>} : vector<8x64xf32>, vector<64x64xf32>, vector<8x64xf32> -> vector<8x64xf32>
    %c3_114 = arith.constant 3 : index
    %c0_115 = arith.constant 0 : index
    %c0_116 = arith.constant 0 : index
    %112 = vector.load %arg17[%c3_114, %c0_115, %c0_116] : memref<9x16x8xf32, #tpu.memory_space<vmem>>, vector<1x16x8xf32>
    %113 = vector.shape_cast %112 : vector<1x16x8xf32> to vector<16x8xf32>
    %cst_117 = arith.constant dense<0.000000e+00> : vector<16x64xf32>
    %114 = tpu.matmul %113, %111, %cst_117 {dimension_numbers = #tpu.dot_dimension_numbers<[1], [0], [0], [1], [0, 0, 1, 1], [], []>} : vector<16x8xf32>, vector<8x64xf32>, vector<16x64xf32> -> vector<16x64xf32>
    %115 = arith.addf %108, %114 : vector<16x64xf32>
    %c4_118 = arith.constant 4 : index
    %c0_119 = arith.constant 0 : index
    %c0_120 = arith.constant 0 : index
    %116 = vector.load %arg3[%c4_118, %c0_119, %c0_120] : memref<9x64x64xf32, #tpu.memory_space<vmem>>, vector<1x64x64xf32>
    %117 = vector.shape_cast %116 : vector<1x64x64xf32> to vector<64x64xf32>
    %cst_121 = arith.constant dense<0.000000e+00> : vector<8x64xf32>
    %118 = tpu.matmul %86, %117, %cst_121 {dimension_numbers = #tpu.dot_dimension_numbers<[1], [0], [0], [1], [0, 0, 1, 1], [], []>} : vector<8x64xf32>, vector<64x64xf32>, vector<8x64xf32> -> vector<8x64xf32>
    %c4_122 = arith.constant 4 : index
    %c0_123 = arith.constant 0 : index
    %c0_124 = arith.constant 0 : index
    %119 = vector.load %arg17[%c4_122, %c0_123, %c0_124] : memref<9x16x8xf32, #tpu.memory_space<vmem>>, vector<1x16x8xf32>
    %120 = vector.shape_cast %119 : vector<1x16x8xf32> to vector<16x8xf32>
    %cst_125 = arith.constant dense<0.000000e+00> : vector<16x64xf32>
    %121 = tpu.matmul %120, %118, %cst_125 {dimension_numbers = #tpu.dot_dimension_numbers<[1], [0], [0], [1], [0, 0, 1, 1], [], []>} : vector<16x8xf32>, vector<8x64xf32>, vector<16x64xf32> -> vector<16x64xf32>
    %122 = arith.addf %115, %121 : vector<16x64xf32>
    %c5_126 = arith.constant 5 : index
    %c0_127 = arith.constant 0 : index
    %c0_128 = arith.constant 0 : index
    %123 = vector.load %arg3[%c5_126, %c0_127, %c0_128] : memref<9x64x64xf32, #tpu.memory_space<vmem>>, vector<1x64x64xf32>
    %124 = vector.shape_cast %123 : vector<1x64x64xf32> to vector<64x64xf32>
    %cst_129 = arith.constant dense<0.000000e+00> : vector<8x64xf32>
    %125 = tpu.matmul %86, %124, %cst_129 {dimension_numbers = #tpu.dot_dimension_numbers<[1], [0], [0], [1], [0, 0, 1, 1], [], []>} : vector<8x64xf32>, vector<64x64xf32>, vector<8x64xf32> -> vector<8x64xf32>
    %c5_130 = arith.constant 5 : index
    %c0_131 = arith.constant 0 : index
    %c0_132 = arith.constant 0 : index
    %126 = vector.load %arg17[%c5_130, %c0_131, %c0_132] : memref<9x16x8xf32, #tpu.memory_space<vmem>>, vector<1x16x8xf32>
    %127 = vector.shape_cast %126 : vector<1x16x8xf32> to vector<16x8xf32>
    %cst_133 = arith.constant dense<0.000000e+00> : vector<16x64xf32>
    %128 = tpu.matmul %127, %125, %cst_133 {dimension_numbers = #tpu.dot_dimension_numbers<[1], [0], [0], [1], [0, 0, 1, 1], [], []>} : vector<16x8xf32>, vector<8x64xf32>, vector<16x64xf32> -> vector<16x64xf32>
    %129 = arith.addf %122, %128 : vector<16x64xf32>
    %c6_134 = arith.constant 6 : index
    %c0_135 = arith.constant 0 : index
    %c0_136 = arith.constant 0 : index
    %130 = vector.load %arg3[%c6_134, %c0_135, %c0_136] : memref<9x64x64xf32, #tpu.memory_space<vmem>>, vector<1x64x64xf32>
    %131 = vector.shape_cast %130 : vector<1x64x64xf32> to vector<64x64xf32>
    %cst_137 = arith.constant dense<0.000000e+00> : vector<8x64xf32>
    %132 = tpu.matmul %86, %131, %cst_137 {dimension_numbers = #tpu.dot_dimension_numbers<[1], [0], [0], [1], [0, 0, 1, 1], [], []>} : vector<8x64xf32>, vector<64x64xf32>, vector<8x64xf32> -> vector<8x64xf32>
    %c6_138 = arith.constant 6 : index
    %c0_139 = arith.constant 0 : index
    %c0_140 = arith.constant 0 : index
    %133 = vector.load %arg17[%c6_138, %c0_139, %c0_140] : memref<9x16x8xf32, #tpu.memory_space<vmem>>, vector<1x16x8xf32>
    %134 = vector.shape_cast %133 : vector<1x16x8xf32> to vector<16x8xf32>
    %cst_141 = arith.constant dense<0.000000e+00> : vector<16x64xf32>
    %135 = tpu.matmul %134, %132, %cst_141 {dimension_numbers = #tpu.dot_dimension_numbers<[1], [0], [0], [1], [0, 0, 1, 1], [], []>} : vector<16x8xf32>, vector<8x64xf32>, vector<16x64xf32> -> vector<16x64xf32>
    %136 = arith.addf %129, %135 : vector<16x64xf32>
    %c7_142 = arith.constant 7 : index
    %c0_143 = arith.constant 0 : index
    %c0_144 = arith.constant 0 : index
    %137 = vector.load %arg3[%c7_142, %c0_143, %c0_144] : memref<9x64x64xf32, #tpu.memory_space<vmem>>, vector<1x64x64xf32>
    %138 = vector.shape_cast %137 : vector<1x64x64xf32> to vector<64x64xf32>
    %cst_145 = arith.constant dense<0.000000e+00> : vector<8x64xf32>
    %139 = tpu.matmul %86, %138, %cst_145 {dimension_numbers = #tpu.dot_dimension_numbers<[1], [0], [0], [1], [0, 0, 1, 1], [], []>} : vector<8x64xf32>, vector<64x64xf32>, vector<8x64xf32> -> vector<8x64xf32>
    %c7_146 = arith.constant 7 : index
    %c0_147 = arith.constant 0 : index
    %c0_148 = arith.constant 0 : index
    %140 = vector.load %arg17[%c7_146, %c0_147, %c0_148] : memref<9x16x8xf32, #tpu.memory_space<vmem>>, vector<1x16x8xf32>
    %141 = vector.shape_cast %140 : vector<1x16x8xf32> to vector<16x8xf32>
    %cst_149 = arith.constant dense<0.000000e+00> : vector<16x64xf32>
    %142 = tpu.matmul %141, %139, %cst_149 {dimension_numbers = #tpu.dot_dimension_numbers<[1], [0], [0], [1], [0, 0, 1, 1], [], []>} : vector<16x8xf32>, vector<8x64xf32>, vector<16x64xf32> -> vector<16x64xf32>
    %143 = arith.addf %136, %142 : vector<16x64xf32>
    %c8_150 = arith.constant 8 : index
    %c0_151 = arith.constant 0 : index
    %c0_152 = arith.constant 0 : index
    %144 = vector.load %arg3[%c8_150, %c0_151, %c0_152] : memref<9x64x64xf32, #tpu.memory_space<vmem>>, vector<1x64x64xf32>
    %145 = vector.shape_cast %144 : vector<1x64x64xf32> to vector<64x64xf32>
    %cst_153 = arith.constant dense<0.000000e+00> : vector<8x64xf32>
    %146 = tpu.matmul %86, %145, %cst_153 {dimension_numbers = #tpu.dot_dimension_numbers<[1], [0], [0], [1], [0, 0, 1, 1], [], []>} : vector<8x64xf32>, vector<64x64xf32>, vector<8x64xf32> -> vector<8x64xf32>
    %c8_154 = arith.constant 8 : index
    %c0_155 = arith.constant 0 : index
    %c0_156 = arith.constant 0 : index
    %147 = vector.load %arg17[%c8_154, %c0_155, %c0_156] : memref<9x16x8xf32, #tpu.memory_space<vmem>>, vector<1x16x8xf32>
    %148 = vector.shape_cast %147 : vector<1x16x8xf32> to vector<16x8xf32>
    %cst_157 = arith.constant dense<0.000000e+00> : vector<16x64xf32>
    %149 = tpu.matmul %148, %146, %cst_157 {dimension_numbers = #tpu.dot_dimension_numbers<[1], [0], [0], [1], [0, 0, 1, 1], [], []>} : vector<16x8xf32>, vector<8x64xf32>, vector<16x64xf32> -> vector<16x64xf32>
    %150 = arith.addf %143, %149 : vector<16x64xf32>
    %c0_158 = arith.constant 0 : index
    %c0_159 = arith.constant 0 : index
    %151 = vector.load %arg18[%c0_158, %c0_159] : memref<16x1xf32, #tpu.memory_space<vmem>>, vector<16x1xf32>
    %152 = vector.broadcast %151 : vector<16x1xf32> to vector<16x64xf32>
    %153 = arith.addf %150, %152 : vector<16x64xf32>
    %cst_160 = arith.constant 2.000000e-01 : f32
    %154 = vector.broadcast %cst_160 : f32 to vector<16x64xf32>
    %155 = arith.mulf %154, %153 : vector<16x64xf32>
    %156 = arith.maximumf %153, %155 : vector<16x64xf32>
    %c0_161 = arith.constant 0 : index
    %c0_162 = arith.constant 0 : index
    %c0_163 = arith.constant 0 : index
    %157 = vector.load %arg7[%c0_161, %c0_162, %c0_163] : memref<4x64x16xf32, #tpu.memory_space<vmem>>, vector<1x64x16xf32>
    %158 = vector.shape_cast %157 : vector<1x64x16xf32> to vector<64x16xf32>
    %cst_164 = arith.constant dense<0.000000e+00> : vector<16x16xf32>
    %159 = tpu.matmul %156, %158, %cst_164 {dimension_numbers = #tpu.dot_dimension_numbers<[1], [0], [0], [1], [0, 0, 1, 1], [], []>} : vector<16x64xf32>, vector<64x16xf32>, vector<16x16xf32> -> vector<16x16xf32>
    %c1_165 = arith.constant 1 : index
    %c0_166 = arith.constant 0 : index
    %c0_167 = arith.constant 0 : index
    %160 = vector.load %arg7[%c1_165, %c0_166, %c0_167] : memref<4x64x16xf32, #tpu.memory_space<vmem>>, vector<1x64x16xf32>
    %161 = vector.shape_cast %160 : vector<1x64x16xf32> to vector<64x16xf32>
    %cst_168 = arith.constant dense<0.000000e+00> : vector<16x16xf32>
    %162 = tpu.matmul %156, %161, %cst_168 {dimension_numbers = #tpu.dot_dimension_numbers<[1], [0], [0], [1], [0, 0, 1, 1], [], []>} : vector<16x64xf32>, vector<64x16xf32>, vector<16x16xf32> -> vector<16x16xf32>
    %c2_169 = arith.constant 2 : index
    %c0_170 = arith.constant 0 : index
    %c0_171 = arith.constant 0 : index
    %163 = vector.load %arg7[%c2_169, %c0_170, %c0_171] : memref<4x64x16xf32, #tpu.memory_space<vmem>>, vector<1x64x16xf32>
    %164 = vector.shape_cast %163 : vector<1x64x16xf32> to vector<64x16xf32>
    %cst_172 = arith.constant dense<0.000000e+00> : vector<16x16xf32>
    %165 = tpu.matmul %156, %164, %cst_172 {dimension_numbers = #tpu.dot_dimension_numbers<[1], [0], [0], [1], [0, 0, 1, 1], [], []>} : vector<16x64xf32>, vector<64x16xf32>, vector<16x16xf32> -> vector<16x16xf32>
    %c3_173 = arith.constant 3 : index
    %c0_174 = arith.constant 0 : index
    %c0_175 = arith.constant 0 : index
    %166 = vector.load %arg7[%c3_173, %c0_174, %c0_175] : memref<4x64x16xf32, #tpu.memory_space<vmem>>, vector<1x64x16xf32>
    %167 = vector.shape_cast %166 : vector<1x64x16xf32> to vector<64x16xf32>
    %cst_176 = arith.constant dense<0.000000e+00> : vector<16x16xf32>
    %168 = tpu.matmul %156, %167, %cst_176 {dimension_numbers = #tpu.dot_dimension_numbers<[1], [0], [0], [1], [0, 0, 1, 1], [], []>} : vector<16x64xf32>, vector<64x16xf32>, vector<16x16xf32> -> vector<16x16xf32>
    %169 = arith.maximumf %159, %162 : vector<16x16xf32>
    %170 = arith.maximumf %165, %168 : vector<16x16xf32>
    %171 = arith.maximumf %169, %170 : vector<16x16xf32>
    %cst_177 = arith.constant 0.000000e+00 : f32
    %172 = vector.broadcast %cst_177 : f32 to vector<32x16xf32>
    %c0_178 = arith.constant 0 : index
    %c0_179 = arith.constant 0 : index
    %c0_180 = arith.constant 0 : index
    %173 = vector.load %arg4[%c0_178, %c0_179, %c0_180] : memref<9x16x16xf32, #tpu.memory_space<vmem>>, vector<1x16x16xf32>
    %174 = vector.shape_cast %173 : vector<1x16x16xf32> to vector<16x16xf32>
    %cst_181 = arith.constant dense<0.000000e+00> : vector<16x16xf32>
    %175 = tpu.matmul %171, %174, %cst_181 {dimension_numbers = #tpu.dot_dimension_numbers<[1], [0], [0], [1], [0, 0, 1, 1], [], []>} : vector<16x16xf32>, vector<16x16xf32>, vector<16x16xf32> -> vector<16x16xf32>
    %c0_182 = arith.constant 0 : index
    %c0_183 = arith.constant 0 : index
    %c0_184 = arith.constant 0 : index
    %176 = vector.load %arg19[%c0_182, %c0_183, %c0_184] : memref<9x32x16xf32, #tpu.memory_space<vmem>>, vector<1x32x16xf32>
    %177 = vector.shape_cast %176 : vector<1x32x16xf32> to vector<32x16xf32>
    %cst_185 = arith.constant dense<0.000000e+00> : vector<32x16xf32>
    %178 = tpu.matmul %177, %175, %cst_185 {dimension_numbers = #tpu.dot_dimension_numbers<[1], [0], [0], [1], [0, 0, 1, 1], [], []>} : vector<32x16xf32>, vector<16x16xf32>, vector<32x16xf32> -> vector<32x16xf32>
    %179 = arith.addf %172, %178 : vector<32x16xf32>
    %c1_186 = arith.constant 1 : index
    %c0_187 = arith.constant 0 : index
    %c0_188 = arith.constant 0 : index
    %180 = vector.load %arg4[%c1_186, %c0_187, %c0_188] : memref<9x16x16xf32, #tpu.memory_space<vmem>>, vector<1x16x16xf32>
    %181 = vector.shape_cast %180 : vector<1x16x16xf32> to vector<16x16xf32>
    %cst_189 = arith.constant dense<0.000000e+00> : vector<16x16xf32>
    %182 = tpu.matmul %171, %181, %cst_189 {dimension_numbers = #tpu.dot_dimension_numbers<[1], [0], [0], [1], [0, 0, 1, 1], [], []>} : vector<16x16xf32>, vector<16x16xf32>, vector<16x16xf32> -> vector<16x16xf32>
    %c1_190 = arith.constant 1 : index
    %c0_191 = arith.constant 0 : index
    %c0_192 = arith.constant 0 : index
    %183 = vector.load %arg19[%c1_190, %c0_191, %c0_192] : memref<9x32x16xf32, #tpu.memory_space<vmem>>, vector<1x32x16xf32>
    %184 = vector.shape_cast %183 : vector<1x32x16xf32> to vector<32x16xf32>
    %cst_193 = arith.constant dense<0.000000e+00> : vector<32x16xf32>
    %185 = tpu.matmul %184, %182, %cst_193 {dimension_numbers = #tpu.dot_dimension_numbers<[1], [0], [0], [1], [0, 0, 1, 1], [], []>} : vector<32x16xf32>, vector<16x16xf32>, vector<32x16xf32> -> vector<32x16xf32>
    %186 = arith.addf %179, %185 : vector<32x16xf32>
    %c2_194 = arith.constant 2 : index
    %c0_195 = arith.constant 0 : index
    %c0_196 = arith.constant 0 : index
    %187 = vector.load %arg4[%c2_194, %c0_195, %c0_196] : memref<9x16x16xf32, #tpu.memory_space<vmem>>, vector<1x16x16xf32>
    %188 = vector.shape_cast %187 : vector<1x16x16xf32> to vector<16x16xf32>
    %cst_197 = arith.constant dense<0.000000e+00> : vector<16x16xf32>
    %189 = tpu.matmul %171, %188, %cst_197 {dimension_numbers = #tpu.dot_dimension_numbers<[1], [0], [0], [1], [0, 0, 1, 1], [], []>} : vector<16x16xf32>, vector<16x16xf32>, vector<16x16xf32> -> vector<16x16xf32>
    %c2_198 = arith.constant 2 : index
    %c0_199 = arith.constant 0 : index
    %c0_200 = arith.constant 0 : index
    %190 = vector.load %arg19[%c2_198, %c0_199, %c0_200] : memref<9x32x16xf32, #tpu.memory_space<vmem>>, vector<1x32x16xf32>
    %191 = vector.shape_cast %190 : vector<1x32x16xf32> to vector<32x16xf32>
    %cst_201 = arith.constant dense<0.000000e+00> : vector<32x16xf32>
    %192 = tpu.matmul %191, %189, %cst_201 {dimension_numbers = #tpu.dot_dimension_numbers<[1], [0], [0], [1], [0, 0, 1, 1], [], []>} : vector<32x16xf32>, vector<16x16xf32>, vector<32x16xf32> -> vector<32x16xf32>
    %193 = arith.addf %186, %192 : vector<32x16xf32>
    %c3_202 = arith.constant 3 : index
    %c0_203 = arith.constant 0 : index
    %c0_204 = arith.constant 0 : index
    %194 = vector.load %arg4[%c3_202, %c0_203, %c0_204] : memref<9x16x16xf32, #tpu.memory_space<vmem>>, vector<1x16x16xf32>
    %195 = vector.shape_cast %194 : vector<1x16x16xf32> to vector<16x16xf32>
    %cst_205 = arith.constant dense<0.000000e+00> : vector<16x16xf32>
    %196 = tpu.matmul %171, %195, %cst_205 {dimension_numbers = #tpu.dot_dimension_numbers<[1], [0], [0], [1], [0, 0, 1, 1], [], []>} : vector<16x16xf32>, vector<16x16xf32>, vector<16x16xf32> -> vector<16x16xf32>
    %c3_206 = arith.constant 3 : index
    %c0_207 = arith.constant 0 : index
    %c0_208 = arith.constant 0 : index
    %197 = vector.load %arg19[%c3_206, %c0_207, %c0_208] : memref<9x32x16xf32, #tpu.memory_space<vmem>>, vector<1x32x16xf32>
    %198 = vector.shape_cast %197 : vector<1x32x16xf32> to vector<32x16xf32>
    %cst_209 = arith.constant dense<0.000000e+00> : vector<32x16xf32>
    %199 = tpu.matmul %198, %196, %cst_209 {dimension_numbers = #tpu.dot_dimension_numbers<[1], [0], [0], [1], [0, 0, 1, 1], [], []>} : vector<32x16xf32>, vector<16x16xf32>, vector<32x16xf32> -> vector<32x16xf32>
    %200 = arith.addf %193, %199 : vector<32x16xf32>
    %c4_210 = arith.constant 4 : index
    %c0_211 = arith.constant 0 : index
    %c0_212 = arith.constant 0 : index
    %201 = vector.load %arg4[%c4_210, %c0_211, %c0_212] : memref<9x16x16xf32, #tpu.memory_space<vmem>>, vector<1x16x16xf32>
    %202 = vector.shape_cast %201 : vector<1x16x16xf32> to vector<16x16xf32>
    %cst_213 = arith.constant dense<0.000000e+00> : vector<16x16xf32>
    %203 = tpu.matmul %171, %202, %cst_213 {dimension_numbers = #tpu.dot_dimension_numbers<[1], [0], [0], [1], [0, 0, 1, 1], [], []>} : vector<16x16xf32>, vector<16x16xf32>, vector<16x16xf32> -> vector<16x16xf32>
    %c4_214 = arith.constant 4 : index
    %c0_215 = arith.constant 0 : index
    %c0_216 = arith.constant 0 : index
    %204 = vector.load %arg19[%c4_214, %c0_215, %c0_216] : memref<9x32x16xf32, #tpu.memory_space<vmem>>, vector<1x32x16xf32>
    %205 = vector.shape_cast %204 : vector<1x32x16xf32> to vector<32x16xf32>
    %cst_217 = arith.constant dense<0.000000e+00> : vector<32x16xf32>
    %206 = tpu.matmul %205, %203, %cst_217 {dimension_numbers = #tpu.dot_dimension_numbers<[1], [0], [0], [1], [0, 0, 1, 1], [], []>} : vector<32x16xf32>, vector<16x16xf32>, vector<32x16xf32> -> vector<32x16xf32>
    %207 = arith.addf %200, %206 : vector<32x16xf32>
    %c5_218 = arith.constant 5 : index
    %c0_219 = arith.constant 0 : index
    %c0_220 = arith.constant 0 : index
    %208 = vector.load %arg4[%c5_218, %c0_219, %c0_220] : memref<9x16x16xf32, #tpu.memory_space<vmem>>, vector<1x16x16xf32>
    %209 = vector.shape_cast %208 : vector<1x16x16xf32> to vector<16x16xf32>
    %cst_221 = arith.constant dense<0.000000e+00> : vector<16x16xf32>
    %210 = tpu.matmul %171, %209, %cst_221 {dimension_numbers = #tpu.dot_dimension_numbers<[1], [0], [0], [1], [0, 0, 1, 1], [], []>} : vector<16x16xf32>, vector<16x16xf32>, vector<16x16xf32> -> vector<16x16xf32>
    %c5_222 = arith.constant 5 : index
    %c0_223 = arith.constant 0 : index
    %c0_224 = arith.constant 0 : index
    %211 = vector.load %arg19[%c5_222, %c0_223, %c0_224] : memref<9x32x16xf32, #tpu.memory_space<vmem>>, vector<1x32x16xf32>
    %212 = vector.shape_cast %211 : vector<1x32x16xf32> to vector<32x16xf32>
    %cst_225 = arith.constant dense<0.000000e+00> : vector<32x16xf32>
    %213 = tpu.matmul %212, %210, %cst_225 {dimension_numbers = #tpu.dot_dimension_numbers<[1], [0], [0], [1], [0, 0, 1, 1], [], []>} : vector<32x16xf32>, vector<16x16xf32>, vector<32x16xf32> -> vector<32x16xf32>
    %214 = arith.addf %207, %213 : vector<32x16xf32>
    %c6_226 = arith.constant 6 : index
    %c0_227 = arith.constant 0 : index
    %c0_228 = arith.constant 0 : index
    %215 = vector.load %arg4[%c6_226, %c0_227, %c0_228] : memref<9x16x16xf32, #tpu.memory_space<vmem>>, vector<1x16x16xf32>
    %216 = vector.shape_cast %215 : vector<1x16x16xf32> to vector<16x16xf32>
    %cst_229 = arith.constant dense<0.000000e+00> : vector<16x16xf32>
    %217 = tpu.matmul %171, %216, %cst_229 {dimension_numbers = #tpu.dot_dimension_numbers<[1], [0], [0], [1], [0, 0, 1, 1], [], []>} : vector<16x16xf32>, vector<16x16xf32>, vector<16x16xf32> -> vector<16x16xf32>
    %c6_230 = arith.constant 6 : index
    %c0_231 = arith.constant 0 : index
    %c0_232 = arith.constant 0 : index
    %218 = vector.load %arg19[%c6_230, %c0_231, %c0_232] : memref<9x32x16xf32, #tpu.memory_space<vmem>>, vector<1x32x16xf32>
    %219 = vector.shape_cast %218 : vector<1x32x16xf32> to vector<32x16xf32>
    %cst_233 = arith.constant dense<0.000000e+00> : vector<32x16xf32>
    %220 = tpu.matmul %219, %217, %cst_233 {dimension_numbers = #tpu.dot_dimension_numbers<[1], [0], [0], [1], [0, 0, 1, 1], [], []>} : vector<32x16xf32>, vector<16x16xf32>, vector<32x16xf32> -> vector<32x16xf32>
    %221 = arith.addf %214, %220 : vector<32x16xf32>
    %c7_234 = arith.constant 7 : index
    %c0_235 = arith.constant 0 : index
    %c0_236 = arith.constant 0 : index
    %222 = vector.load %arg4[%c7_234, %c0_235, %c0_236] : memref<9x16x16xf32, #tpu.memory_space<vmem>>, vector<1x16x16xf32>
    %223 = vector.shape_cast %222 : vector<1x16x16xf32> to vector<16x16xf32>
    %cst_237 = arith.constant dense<0.000000e+00> : vector<16x16xf32>
    %224 = tpu.matmul %171, %223, %cst_237 {dimension_numbers = #tpu.dot_dimension_numbers<[1], [0], [0], [1], [0, 0, 1, 1], [], []>} : vector<16x16xf32>, vector<16x16xf32>, vector<16x16xf32> -> vector<16x16xf32>
    %c7_238 = arith.constant 7 : index
    %c0_239 = arith.constant 0 : index
    %c0_240 = arith.constant 0 : index
    %225 = vector.load %arg19[%c7_238, %c0_239, %c0_240] : memref<9x32x16xf32, #tpu.memory_space<vmem>>, vector<1x32x16xf32>
    %226 = vector.shape_cast %225 : vector<1x32x16xf32> to vector<32x16xf32>
    %cst_241 = arith.constant dense<0.000000e+00> : vector<32x16xf32>
    %227 = tpu.matmul %226, %224, %cst_241 {dimension_numbers = #tpu.dot_dimension_numbers<[1], [0], [0], [1], [0, 0, 1, 1], [], []>} : vector<32x16xf32>, vector<16x16xf32>, vector<32x16xf32> -> vector<32x16xf32>
    %228 = arith.addf %221, %227 : vector<32x16xf32>
    %c8_242 = arith.constant 8 : index
    %c0_243 = arith.constant 0 : index
    %c0_244 = arith.constant 0 : index
    %229 = vector.load %arg4[%c8_242, %c0_243, %c0_244] : memref<9x16x16xf32, #tpu.memory_space<vmem>>, vector<1x16x16xf32>
    %230 = vector.shape_cast %229 : vector<1x16x16xf32> to vector<16x16xf32>
    %cst_245 = arith.constant dense<0.000000e+00> : vector<16x16xf32>
    %231 = tpu.matmul %171, %230, %cst_245 {dimension_numbers = #tpu.dot_dimension_numbers<[1], [0], [0], [1], [0, 0, 1, 1], [], []>} : vector<16x16xf32>, vector<16x16xf32>, vector<16x16xf32> -> vector<16x16xf32>
    %c8_246 = arith.constant 8 : index
    %c0_247 = arith.constant 0 : index
    %c0_248 = arith.constant 0 : index
    %232 = vector.load %arg19[%c8_246, %c0_247, %c0_248] : memref<9x32x16xf32, #tpu.memory_space<vmem>>, vector<1x32x16xf32>
    %233 = vector.shape_cast %232 : vector<1x32x16xf32> to vector<32x16xf32>
    %cst_249 = arith.constant dense<0.000000e+00> : vector<32x16xf32>
    %234 = tpu.matmul %233, %231, %cst_249 {dimension_numbers = #tpu.dot_dimension_numbers<[1], [0], [0], [1], [0, 0, 1, 1], [], []>} : vector<32x16xf32>, vector<16x16xf32>, vector<32x16xf32> -> vector<32x16xf32>
    %235 = arith.addf %228, %234 : vector<32x16xf32>
    %c0_250 = arith.constant 0 : index
    %c0_251 = arith.constant 0 : index
    %236 = vector.load %arg20[%c0_250, %c0_251] : memref<32x1xf32, #tpu.memory_space<vmem>>, vector<32x1xf32>
    %237 = vector.broadcast %236 : vector<32x1xf32> to vector<32x16xf32>
    %238 = arith.addf %235, %237 : vector<32x16xf32>
    %cst_252 = arith.constant 2.000000e-01 : f32
    %239 = vector.broadcast %cst_252 : f32 to vector<32x16xf32>
    %240 = arith.mulf %239, %238 : vector<32x16xf32>
    %241 = arith.maximumf %238, %240 : vector<32x16xf32>
    %c0_253 = arith.constant 0 : index
    %c0_254 = arith.constant 0 : index
    %c0_255 = arith.constant 0 : index
    %242 = vector.load %arg8[%c0_253, %c0_254, %c0_255] : memref<4x16x4xf32, #tpu.memory_space<vmem>>, vector<1x16x4xf32>
    %243 = vector.shape_cast %242 : vector<1x16x4xf32> to vector<16x4xf32>
    %cst_256 = arith.constant dense<0.000000e+00> : vector<32x4xf32>
    %244 = tpu.matmul %241, %243, %cst_256 {dimension_numbers = #tpu.dot_dimension_numbers<[1], [0], [0], [1], [0, 0, 1, 1], [], []>} : vector<32x16xf32>, vector<16x4xf32>, vector<32x4xf32> -> vector<32x4xf32>
    %c1_257 = arith.constant 1 : index
    %c0_258 = arith.constant 0 : index
    %c0_259 = arith.constant 0 : index
    %245 = vector.load %arg8[%c1_257, %c0_258, %c0_259] : memref<4x16x4xf32, #tpu.memory_space<vmem>>, vector<1x16x4xf32>
    %246 = vector.shape_cast %245 : vector<1x16x4xf32> to vector<16x4xf32>
    %cst_260 = arith.constant dense<0.000000e+00> : vector<32x4xf32>
    %247 = tpu.matmul %241, %246, %cst_260 {dimension_numbers = #tpu.dot_dimension_numbers<[1], [0], [0], [1], [0, 0, 1, 1], [], []>} : vector<32x16xf32>, vector<16x4xf32>, vector<32x4xf32> -> vector<32x4xf32>
    %c2_261 = arith.constant 2 : index
    %c0_262 = arith.constant 0 : index
    %c0_263 = arith.constant 0 : index
    %248 = vector.load %arg8[%c2_261, %c0_262, %c0_263] : memref<4x16x4xf32, #tpu.memory_space<vmem>>, vector<1x16x4xf32>
    %249 = vector.shape_cast %248 : vector<1x16x4xf32> to vector<16x4xf32>
    %cst_264 = arith.constant dense<0.000000e+00> : vector<32x4xf32>
    %250 = tpu.matmul %241, %249, %cst_264 {dimension_numbers = #tpu.dot_dimension_numbers<[1], [0], [0], [1], [0, 0, 1, 1], [], []>} : vector<32x16xf32>, vector<16x4xf32>, vector<32x4xf32> -> vector<32x4xf32>
    %c3_265 = arith.constant 3 : index
    %c0_266 = arith.constant 0 : index
    %c0_267 = arith.constant 0 : index
    %251 = vector.load %arg8[%c3_265, %c0_266, %c0_267] : memref<4x16x4xf32, #tpu.memory_space<vmem>>, vector<1x16x4xf32>
    %252 = vector.shape_cast %251 : vector<1x16x4xf32> to vector<16x4xf32>
    %cst_268 = arith.constant dense<0.000000e+00> : vector<32x4xf32>
    %253 = tpu.matmul %241, %252, %cst_268 {dimension_numbers = #tpu.dot_dimension_numbers<[1], [0], [0], [1], [0, 0, 1, 1], [], []>} : vector<32x16xf32>, vector<16x4xf32>, vector<32x4xf32> -> vector<32x4xf32>
    %254 = arith.maximumf %244, %247 : vector<32x4xf32>
    %255 = arith.maximumf %250, %253 : vector<32x4xf32>
    %256 = arith.maximumf %254, %255 : vector<32x4xf32>
    %c0_269 = arith.constant 0 : index
    %c0_270 = arith.constant 0 : index
    %257 = vector.load %arg12[%c0_269, %c0_270] : memref<4x128xf32, #tpu.memory_space<vmem>>, vector<4x128xf32>
    %cst_271 = arith.constant dense<0.000000e+00> : vector<32x128xf32>
    %258 = tpu.matmul %256, %257, %cst_271 {dimension_numbers = #tpu.dot_dimension_numbers<[1], [0], [0], [1], [0, 0, 1, 1], [], []>} : vector<32x4xf32>, vector<4x128xf32>, vector<32x128xf32> -> vector<32x128xf32>
    %c0_272 = arith.constant 0 : index
    %c0_273 = arith.constant 0 : index
    %259 = vector.load %arg14[%c0_272, %c0_273] : memref<32x128xf32, #tpu.memory_space<vmem>>, vector<32x128xf32>
    %260 = arith.mulf %258, %259 : vector<32x128xf32>
    %cst_274 = arith.constant dense<0.000000e+00> : vector<128xf32>
    %261 = vector.multi_reduction <add>, %260, %cst_274 [0] : vector<32x128xf32> to vector<128xf32>
    %262 = vector.shape_cast %261 : vector<128xf32> to vector<1x128xf32>
    %c0_275 = arith.constant 0 : index
    %c0_276 = arith.constant 0 : index
    %263 = vector.load %arg21[%c0_275, %c0_276] : memref<128x256xf32, #tpu.memory_space<vmem>>, vector<128x256xf32>
    %cst_277 = arith.constant dense<0.000000e+00> : vector<1x256xf32>
    %264 = tpu.matmul %262, %263, %cst_277 {dimension_numbers = #tpu.dot_dimension_numbers<[1], [0], [0], [1], [0, 0, 1, 1], [], []>} : vector<1x128xf32>, vector<128x256xf32>, vector<1x256xf32> -> vector<1x256xf32>
    %c0_278 = arith.constant 0 : index
    %c0_279 = arith.constant 0 : index
    %265 = vector.load %arg22[%c0_278, %c0_279] : memref<1x256xf32, #tpu.memory_space<vmem>>, vector<1x256xf32>
    %266 = arith.addf %264, %265 : vector<1x256xf32>
    %cst_280 = arith.constant 2.000000e-01 : f32
    %267 = vector.broadcast %cst_280 : f32 to vector<1x256xf32>
    %268 = arith.mulf %267, %266 : vector<1x256xf32>
    %269 = arith.maximumf %266, %268 : vector<1x256xf32>
    %c0_281 = arith.constant 0 : index
    %c0_282 = arith.constant 0 : index
    %270 = vector.load %arg23[%c0_281, %c0_282] : memref<256x128xf32, #tpu.memory_space<vmem>>, vector<256x128xf32>
    %cst_283 = arith.constant dense<0.000000e+00> : vector<1x128xf32>
    %271 = tpu.matmul %269, %270, %cst_283 {dimension_numbers = #tpu.dot_dimension_numbers<[1], [0], [0], [1], [0, 0, 1, 1], [], []>} : vector<1x256xf32>, vector<256x128xf32>, vector<1x128xf32> -> vector<1x128xf32>
    %c0_284 = arith.constant 0 : index
    %c0_285 = arith.constant 0 : index
    %272 = vector.load %arg24[%c0_284, %c0_285] : memref<1x128xf32, #tpu.memory_space<vmem>>, vector<1x128xf32>
    %273 = arith.addf %271, %272 : vector<1x128xf32>
    %c0_286 = arith.constant 0 : index
    %c0_287 = arith.constant 0 : index
    %274 = vector.load %arg25[%c0_286, %c0_287] : memref<128x256xf32, #tpu.memory_space<vmem>>, vector<128x256xf32>
    %cst_288 = arith.constant dense<0.000000e+00> : vector<1x256xf32>
    %275 = tpu.matmul %273, %274, %cst_288 {dimension_numbers = #tpu.dot_dimension_numbers<[1], [0], [0], [1], [0, 0, 1, 1], [], []>} : vector<1x128xf32>, vector<128x256xf32>, vector<1x256xf32> -> vector<1x256xf32>
    %c0_289 = arith.constant 0 : index
    %c0_290 = arith.constant 0 : index
    %276 = vector.load %arg26[%c0_289, %c0_290] : memref<1x256xf32, #tpu.memory_space<vmem>>, vector<1x256xf32>
    %277 = arith.addf %275, %276 : vector<1x256xf32>
    %cst_291 = arith.constant 2.000000e-01 : f32
    %278 = vector.broadcast %cst_291 : f32 to vector<1x256xf32>
    %279 = arith.mulf %278, %277 : vector<1x256xf32>
    %280 = arith.maximumf %277, %279 : vector<1x256xf32>
    %c0_292 = arith.constant 0 : index
    %c0_293 = arith.constant 0 : index
    %281 = vector.load %arg27[%c0_292, %c0_293] : memref<256x128xf32, #tpu.memory_space<vmem>>, vector<256x128xf32>
    %cst_294 = arith.constant dense<0.000000e+00> : vector<1x128xf32>
    %282 = tpu.matmul %280, %281, %cst_294 {dimension_numbers = #tpu.dot_dimension_numbers<[1], [0], [0], [1], [0, 0, 1, 1], [], []>} : vector<1x256xf32>, vector<256x128xf32>, vector<1x128xf32> -> vector<1x128xf32>
    %c0_295 = arith.constant 0 : index
    %c0_296 = arith.constant 0 : index
    %283 = vector.load %arg28[%c0_295, %c0_296] : memref<1x128xf32, #tpu.memory_space<vmem>>, vector<1x128xf32>
    %284 = arith.addf %282, %283 : vector<1x128xf32>
    %c0_297 = arith.constant 0 : index
    %c0_298 = arith.constant 0 : index
    %285 = vector.load %arg14[%c0_297, %c0_298] : memref<32x128xf32, #tpu.memory_space<vmem>>, vector<32x128xf32>
    %286 = vector.broadcast %284 : vector<1x128xf32> to vector<32x128xf32>
    %287 = arith.mulf %286, %285 : vector<32x128xf32>
    %c0_299 = arith.constant 0 : index
    %c0_300 = arith.constant 0 : index
    %288 = vector.load %arg13[%c0_299, %c0_300] : memref<128x4xf32, #tpu.memory_space<vmem>>, vector<128x4xf32>
    %cst_301 = arith.constant dense<0.000000e+00> : vector<32x4xf32>
    %289 = tpu.matmul %287, %288, %cst_301 {dimension_numbers = #tpu.dot_dimension_numbers<[1], [0], [0], [1], [0, 0, 1, 1], [], []>} : vector<32x128xf32>, vector<128x4xf32>, vector<32x4xf32> -> vector<32x4xf32>
    %cst_302 = arith.constant 0.000000e+00 : f32
    %290 = vector.broadcast %cst_302 : f32 to vector<16x4xf32>
    %c0_303 = arith.constant 0 : index
    %c0_304 = arith.constant 0 : index
    %c0_305 = arith.constant 0 : index
    %291 = vector.load %arg5[%c0_303, %c0_304, %c0_305] : memref<9x4x4xf32, #tpu.memory_space<vmem>>, vector<1x4x4xf32>
    %292 = vector.shape_cast %291 : vector<1x4x4xf32> to vector<4x4xf32>
    %cst_306 = arith.constant dense<0.000000e+00> : vector<32x4xf32>
    %293 = tpu.matmul %289, %292, %cst_306 {dimension_numbers = #tpu.dot_dimension_numbers<[1], [0], [0], [1], [0, 0, 1, 1], [], []>} : vector<32x4xf32>, vector<4x4xf32>, vector<32x4xf32> -> vector<32x4xf32>
    %c0_307 = arith.constant 0 : index
    %c0_308 = arith.constant 0 : index
    %c0_309 = arith.constant 0 : index
    %294 = vector.load %arg29[%c0_307, %c0_308, %c0_309] : memref<9x16x32xf32, #tpu.memory_space<vmem>>, vector<1x16x32xf32>
    %295 = vector.shape_cast %294 : vector<1x16x32xf32> to vector<16x32xf32>
    %cst_310 = arith.constant dense<0.000000e+00> : vector<16x4xf32>
    %296 = tpu.matmul %295, %293, %cst_310 {dimension_numbers = #tpu.dot_dimension_numbers<[1], [0], [0], [1], [0, 0, 1, 1], [], []>} : vector<16x32xf32>, vector<32x4xf32>, vector<16x4xf32> -> vector<16x4xf32>
    %297 = arith.addf %290, %296 : vector<16x4xf32>
    %c1_311 = arith.constant 1 : index
    %c0_312 = arith.constant 0 : index
    %c0_313 = arith.constant 0 : index
    %298 = vector.load %arg5[%c1_311, %c0_312, %c0_313] : memref<9x4x4xf32, #tpu.memory_space<vmem>>, vector<1x4x4xf32>
    %299 = vector.shape_cast %298 : vector<1x4x4xf32> to vector<4x4xf32>
    %cst_314 = arith.constant dense<0.000000e+00> : vector<32x4xf32>
    %300 = tpu.matmul %289, %299, %cst_314 {dimension_numbers = #tpu.dot_dimension_numbers<[1], [0], [0], [1], [0, 0, 1, 1], [], []>} : vector<32x4xf32>, vector<4x4xf32>, vector<32x4xf32> -> vector<32x4xf32>
    %c1_315 = arith.constant 1 : index
    %c0_316 = arith.constant 0 : index
    %c0_317 = arith.constant 0 : index
    %301 = vector.load %arg29[%c1_315, %c0_316, %c0_317] : memref<9x16x32xf32, #tpu.memory_space<vmem>>, vector<1x16x32xf32>
    %302 = vector.shape_cast %301 : vector<1x16x32xf32> to vector<16x32xf32>
    %cst_318 = arith.constant dense<0.000000e+00> : vector<16x4xf32>
    %303 = tpu.matmul %302, %300, %cst_318 {dimension_numbers = #tpu.dot_dimension_numbers<[1], [0], [0], [1], [0, 0, 1, 1], [], []>} : vector<16x32xf32>, vector<32x4xf32>, vector<16x4xf32> -> vector<16x4xf32>
    %304 = arith.addf %297, %303 : vector<16x4xf32>
    %c2_319 = arith.constant 2 : index
    %c0_320 = arith.constant 0 : index
    %c0_321 = arith.constant 0 : index
    %305 = vector.load %arg5[%c2_319, %c0_320, %c0_321] : memref<9x4x4xf32, #tpu.memory_space<vmem>>, vector<1x4x4xf32>
    %306 = vector.shape_cast %305 : vector<1x4x4xf32> to vector<4x4xf32>
    %cst_322 = arith.constant dense<0.000000e+00> : vector<32x4xf32>
    %307 = tpu.matmul %289, %306, %cst_322 {dimension_numbers = #tpu.dot_dimension_numbers<[1], [0], [0], [1], [0, 0, 1, 1], [], []>} : vector<32x4xf32>, vector<4x4xf32>, vector<32x4xf32> -> vector<32x4xf32>
    %c2_323 = arith.constant 2 : index
    %c0_324 = arith.constant 0 : index
    %c0_325 = arith.constant 0 : index
    %308 = vector.load %arg29[%c2_323, %c0_324, %c0_325] : memref<9x16x32xf32, #tpu.memory_space<vmem>>, vector<1x16x32xf32>
    %309 = vector.shape_cast %308 : vector<1x16x32xf32> to vector<16x32xf32>
    %cst_326 = arith.constant dense<0.000000e+00> : vector<16x4xf32>
    %310 = tpu.matmul %309, %307, %cst_326 {dimension_numbers = #tpu.dot_dimension_numbers<[1], [0], [0], [1], [0, 0, 1, 1], [], []>} : vector<16x32xf32>, vector<32x4xf32>, vector<16x4xf32> -> vector<16x4xf32>
    %311 = arith.addf %304, %310 : vector<16x4xf32>
    %c3_327 = arith.constant 3 : index
    %c0_328 = arith.constant 0 : index
    %c0_329 = arith.constant 0 : index
    %312 = vector.load %arg5[%c3_327, %c0_328, %c0_329] : memref<9x4x4xf32, #tpu.memory_space<vmem>>, vector<1x4x4xf32>
    %313 = vector.shape_cast %312 : vector<1x4x4xf32> to vector<4x4xf32>
    %cst_330 = arith.constant dense<0.000000e+00> : vector<32x4xf32>
    %314 = tpu.matmul %289, %313, %cst_330 {dimension_numbers = #tpu.dot_dimension_numbers<[1], [0], [0], [1], [0, 0, 1, 1], [], []>} : vector<32x4xf32>, vector<4x4xf32>, vector<32x4xf32> -> vector<32x4xf32>
    %c3_331 = arith.constant 3 : index
    %c0_332 = arith.constant 0 : index
    %c0_333 = arith.constant 0 : index
    %315 = vector.load %arg29[%c3_331, %c0_332, %c0_333] : memref<9x16x32xf32, #tpu.memory_space<vmem>>, vector<1x16x32xf32>
    %316 = vector.shape_cast %315 : vector<1x16x32xf32> to vector<16x32xf32>
    %cst_334 = arith.constant dense<0.000000e+00> : vector<16x4xf32>
    %317 = tpu.matmul %316, %314, %cst_334 {dimension_numbers = #tpu.dot_dimension_numbers<[1], [0], [0], [1], [0, 0, 1, 1], [], []>} : vector<16x32xf32>, vector<32x4xf32>, vector<16x4xf32> -> vector<16x4xf32>
    %318 = arith.addf %311, %317 : vector<16x4xf32>
    %c4_335 = arith.constant 4 : index
    %c0_336 = arith.constant 0 : index
    %c0_337 = arith.constant 0 : index
    %319 = vector.load %arg5[%c4_335, %c0_336, %c0_337] : memref<9x4x4xf32, #tpu.memory_space<vmem>>, vector<1x4x4xf32>
    %320 = vector.shape_cast %319 : vector<1x4x4xf32> to vector<4x4xf32>
    %cst_338 = arith.constant dense<0.000000e+00> : vector<32x4xf32>
    %321 = tpu.matmul %289, %320, %cst_338 {dimension_numbers = #tpu.dot_dimension_numbers<[1], [0], [0], [1], [0, 0, 1, 1], [], []>} : vector<32x4xf32>, vector<4x4xf32>, vector<32x4xf32> -> vector<32x4xf32>
    %c4_339 = arith.constant 4 : index
    %c0_340 = arith.constant 0 : index
    %c0_341 = arith.constant 0 : index
    %322 = vector.load %arg29[%c4_339, %c0_340, %c0_341] : memref<9x16x32xf32, #tpu.memory_space<vmem>>, vector<1x16x32xf32>
    %323 = vector.shape_cast %322 : vector<1x16x32xf32> to vector<16x32xf32>
    %cst_342 = arith.constant dense<0.000000e+00> : vector<16x4xf32>
    %324 = tpu.matmul %323, %321, %cst_342 {dimension_numbers = #tpu.dot_dimension_numbers<[1], [0], [0], [1], [0, 0, 1, 1], [], []>} : vector<16x32xf32>, vector<32x4xf32>, vector<16x4xf32> -> vector<16x4xf32>
    %325 = arith.addf %318, %324 : vector<16x4xf32>
    %c5_343 = arith.constant 5 : index
    %c0_344 = arith.constant 0 : index
    %c0_345 = arith.constant 0 : index
    %326 = vector.load %arg5[%c5_343, %c0_344, %c0_345] : memref<9x4x4xf32, #tpu.memory_space<vmem>>, vector<1x4x4xf32>
    %327 = vector.shape_cast %326 : vector<1x4x4xf32> to vector<4x4xf32>
    %cst_346 = arith.constant dense<0.000000e+00> : vector<32x4xf32>
    %328 = tpu.matmul %289, %327, %cst_346 {dimension_numbers = #tpu.dot_dimension_numbers<[1], [0], [0], [1], [0, 0, 1, 1], [], []>} : vector<32x4xf32>, vector<4x4xf32>, vector<32x4xf32> -> vector<32x4xf32>
    %c5_347 = arith.constant 5 : index
    %c0_348 = arith.constant 0 : index
    %c0_349 = arith.constant 0 : index
    %329 = vector.load %arg29[%c5_347, %c0_348, %c0_349] : memref<9x16x32xf32, #tpu.memory_space<vmem>>, vector<1x16x32xf32>
    %330 = vector.shape_cast %329 : vector<1x16x32xf32> to vector<16x32xf32>
    %cst_350 = arith.constant dense<0.000000e+00> : vector<16x4xf32>
    %331 = tpu.matmul %330, %328, %cst_350 {dimension_numbers = #tpu.dot_dimension_numbers<[1], [0], [0], [1], [0, 0, 1, 1], [], []>} : vector<16x32xf32>, vector<32x4xf32>, vector<16x4xf32> -> vector<16x4xf32>
    %332 = arith.addf %325, %331 : vector<16x4xf32>
    %c6_351 = arith.constant 6 : index
    %c0_352 = arith.constant 0 : index
    %c0_353 = arith.constant 0 : index
    %333 = vector.load %arg5[%c6_351, %c0_352, %c0_353] : memref<9x4x4xf32, #tpu.memory_space<vmem>>, vector<1x4x4xf32>
    %334 = vector.shape_cast %333 : vector<1x4x4xf32> to vector<4x4xf32>
    %cst_354 = arith.constant dense<0.000000e+00> : vector<32x4xf32>
    %335 = tpu.matmul %289, %334, %cst_354 {dimension_numbers = #tpu.dot_dimension_numbers<[1], [0], [0], [1], [0, 0, 1, 1], [], []>} : vector<32x4xf32>, vector<4x4xf32>, vector<32x4xf32> -> vector<32x4xf32>
    %c6_355 = arith.constant 6 : index
    %c0_356 = arith.constant 0 : index
    %c0_357 = arith.constant 0 : index
    %336 = vector.load %arg29[%c6_355, %c0_356, %c0_357] : memref<9x16x32xf32, #tpu.memory_space<vmem>>, vector<1x16x32xf32>
    %337 = vector.shape_cast %336 : vector<1x16x32xf32> to vector<16x32xf32>
    %cst_358 = arith.constant dense<0.000000e+00> : vector<16x4xf32>
    %338 = tpu.matmul %337, %335, %cst_358 {dimension_numbers = #tpu.dot_dimension_numbers<[1], [0], [0], [1], [0, 0, 1, 1], [], []>} : vector<16x32xf32>, vector<32x4xf32>, vector<16x4xf32> -> vector<16x4xf32>
    %339 = arith.addf %332, %338 : vector<16x4xf32>
    %c7_359 = arith.constant 7 : index
    %c0_360 = arith.constant 0 : index
    %c0_361 = arith.constant 0 : index
    %340 = vector.load %arg5[%c7_359, %c0_360, %c0_361] : memref<9x4x4xf32, #tpu.memory_space<vmem>>, vector<1x4x4xf32>
    %341 = vector.shape_cast %340 : vector<1x4x4xf32> to vector<4x4xf32>
    %cst_362 = arith.constant dense<0.000000e+00> : vector<32x4xf32>
    %342 = tpu.matmul %289, %341, %cst_362 {dimension_numbers = #tpu.dot_dimension_numbers<[1], [0], [0], [1], [0, 0, 1, 1], [], []>} : vector<32x4xf32>, vector<4x4xf32>, vector<32x4xf32> -> vector<32x4xf32>
    %c7_363 = arith.constant 7 : index
    %c0_364 = arith.constant 0 : index
    %c0_365 = arith.constant 0 : index
    %343 = vector.load %arg29[%c7_363, %c0_364, %c0_365] : memref<9x16x32xf32, #tpu.memory_space<vmem>>, vector<1x16x32xf32>
    %344 = vector.shape_cast %343 : vector<1x16x32xf32> to vector<16x32xf32>
    %cst_366 = arith.constant dense<0.000000e+00> : vector<16x4xf32>
    %345 = tpu.matmul %344, %342, %cst_366 {dimension_numbers = #tpu.dot_dimension_numbers<[1], [0], [0], [1], [0, 0, 1, 1], [], []>} : vector<16x32xf32>, vector<32x4xf32>, vector<16x4xf32> -> vector<16x4xf32>
    %346 = arith.addf %339, %345 : vector<16x4xf32>
    %c8_367 = arith.constant 8 : index
    %c0_368 = arith.constant 0 : index
    %c0_369 = arith.constant 0 : index
    %347 = vector.load %arg5[%c8_367, %c0_368, %c0_369] : memref<9x4x4xf32, #tpu.memory_space<vmem>>, vector<1x4x4xf32>
    %348 = vector.shape_cast %347 : vector<1x4x4xf32> to vector<4x4xf32>
    %cst_370 = arith.constant dense<0.000000e+00> : vector<32x4xf32>
    %349 = tpu.matmul %289, %348, %cst_370 {dimension_numbers = #tpu.dot_dimension_numbers<[1], [0], [0], [1], [0, 0, 1, 1], [], []>} : vector<32x4xf32>, vector<4x4xf32>, vector<32x4xf32> -> vector<32x4xf32>
    %c8_371 = arith.constant 8 : index
    %c0_372 = arith.constant 0 : index
    %c0_373 = arith.constant 0 : index
    %350 = vector.load %arg29[%c8_371, %c0_372, %c0_373] : memref<9x16x32xf32, #tpu.memory_space<vmem>>, vector<1x16x32xf32>
    %351 = vector.shape_cast %350 : vector<1x16x32xf32> to vector<16x32xf32>
    %cst_374 = arith.constant dense<0.000000e+00> : vector<16x4xf32>
    %352 = tpu.matmul %351, %349, %cst_374 {dimension_numbers = #tpu.dot_dimension_numbers<[1], [0], [0], [1], [0, 0, 1, 1], [], []>} : vector<16x32xf32>, vector<32x4xf32>, vector<16x4xf32> -> vector<16x4xf32>
    %353 = arith.addf %346, %352 : vector<16x4xf32>
    %c0_375 = arith.constant 0 : index
    %c0_376 = arith.constant 0 : index
    %354 = vector.load %arg30[%c0_375, %c0_376] : memref<16x1xf32, #tpu.memory_space<vmem>>, vector<16x1xf32>
    %355 = vector.broadcast %354 : vector<16x1xf32> to vector<16x4xf32>
    %356 = arith.addf %353, %355 : vector<16x4xf32>
    %cst_377 = arith.constant 2.000000e-01 : f32
    %357 = vector.broadcast %cst_377 : f32 to vector<16x4xf32>
    %358 = arith.mulf %357, %356 : vector<16x4xf32>
    %359 = arith.maximumf %356, %358 : vector<16x4xf32>
    %c0_378 = arith.constant 0 : index
    %c0_379 = arith.constant 0 : index
    %360 = vector.load %arg9[%c0_378, %c0_379] : memref<4x16xf32, #tpu.memory_space<vmem>>, vector<4x16xf32>
    %cst_380 = arith.constant dense<0.000000e+00> : vector<16x16xf32>
    %361 = tpu.matmul %359, %360, %cst_380 {dimension_numbers = #tpu.dot_dimension_numbers<[1], [0], [0], [1], [0, 0, 1, 1], [], []>} : vector<16x4xf32>, vector<4x16xf32>, vector<16x16xf32> -> vector<16x16xf32>
    %cst_381 = arith.constant 0.000000e+00 : f32
    %362 = vector.broadcast %cst_381 : f32 to vector<8x16xf32>
    %c0_382 = arith.constant 0 : index
    %c0_383 = arith.constant 0 : index
    %c0_384 = arith.constant 0 : index
    %363 = vector.load %arg4[%c0_382, %c0_383, %c0_384] : memref<9x16x16xf32, #tpu.memory_space<vmem>>, vector<1x16x16xf32>
    %364 = vector.shape_cast %363 : vector<1x16x16xf32> to vector<16x16xf32>
    %cst_385 = arith.constant dense<0.000000e+00> : vector<16x16xf32>
    %365 = tpu.matmul %361, %364, %cst_385 {dimension_numbers = #tpu.dot_dimension_numbers<[1], [0], [0], [1], [0, 0, 1, 1], [], []>} : vector<16x16xf32>, vector<16x16xf32>, vector<16x16xf32> -> vector<16x16xf32>
    %c0_386 = arith.constant 0 : index
    %c0_387 = arith.constant 0 : index
    %c0_388 = arith.constant 0 : index
    %366 = vector.load %arg31[%c0_386, %c0_387, %c0_388] : memref<9x8x16xf32, #tpu.memory_space<vmem>>, vector<1x8x16xf32>
    %367 = vector.shape_cast %366 : vector<1x8x16xf32> to vector<8x16xf32>
    %cst_389 = arith.constant dense<0.000000e+00> : vector<8x16xf32>
    %368 = tpu.matmul %367, %365, %cst_389 {dimension_numbers = #tpu.dot_dimension_numbers<[1], [0], [0], [1], [0, 0, 1, 1], [], []>} : vector<8x16xf32>, vector<16x16xf32>, vector<8x16xf32> -> vector<8x16xf32>
    %369 = arith.addf %362, %368 : vector<8x16xf32>
    %c1_390 = arith.constant 1 : index
    %c0_391 = arith.constant 0 : index
    %c0_392 = arith.constant 0 : index
    %370 = vector.load %arg4[%c1_390, %c0_391, %c0_392] : memref<9x16x16xf32, #tpu.memory_space<vmem>>, vector<1x16x16xf32>
    %371 = vector.shape_cast %370 : vector<1x16x16xf32> to vector<16x16xf32>
    %cst_393 = arith.constant dense<0.000000e+00> : vector<16x16xf32>
    %372 = tpu.matmul %361, %371, %cst_393 {dimension_numbers = #tpu.dot_dimension_numbers<[1], [0], [0], [1], [0, 0, 1, 1], [], []>} : vector<16x16xf32>, vector<16x16xf32>, vector<16x16xf32> -> vector<16x16xf32>
    %c1_394 = arith.constant 1 : index
    %c0_395 = arith.constant 0 : index
    %c0_396 = arith.constant 0 : index
    %373 = vector.load %arg31[%c1_394, %c0_395, %c0_396] : memref<9x8x16xf32, #tpu.memory_space<vmem>>, vector<1x8x16xf32>
    %374 = vector.shape_cast %373 : vector<1x8x16xf32> to vector<8x16xf32>
    %cst_397 = arith.constant dense<0.000000e+00> : vector<8x16xf32>
    %375 = tpu.matmul %374, %372, %cst_397 {dimension_numbers = #tpu.dot_dimension_numbers<[1], [0], [0], [1], [0, 0, 1, 1], [], []>} : vector<8x16xf32>, vector<16x16xf32>, vector<8x16xf32> -> vector<8x16xf32>
    %376 = arith.addf %369, %375 : vector<8x16xf32>
    %c2_398 = arith.constant 2 : index
    %c0_399 = arith.constant 0 : index
    %c0_400 = arith.constant 0 : index
    %377 = vector.load %arg4[%c2_398, %c0_399, %c0_400] : memref<9x16x16xf32, #tpu.memory_space<vmem>>, vector<1x16x16xf32>
    %378 = vector.shape_cast %377 : vector<1x16x16xf32> to vector<16x16xf32>
    %cst_401 = arith.constant dense<0.000000e+00> : vector<16x16xf32>
    %379 = tpu.matmul %361, %378, %cst_401 {dimension_numbers = #tpu.dot_dimension_numbers<[1], [0], [0], [1], [0, 0, 1, 1], [], []>} : vector<16x16xf32>, vector<16x16xf32>, vector<16x16xf32> -> vector<16x16xf32>
    %c2_402 = arith.constant 2 : index
    %c0_403 = arith.constant 0 : index
    %c0_404 = arith.constant 0 : index
    %380 = vector.load %arg31[%c2_402, %c0_403, %c0_404] : memref<9x8x16xf32, #tpu.memory_space<vmem>>, vector<1x8x16xf32>
    %381 = vector.shape_cast %380 : vector<1x8x16xf32> to vector<8x16xf32>
    %cst_405 = arith.constant dense<0.000000e+00> : vector<8x16xf32>
    %382 = tpu.matmul %381, %379, %cst_405 {dimension_numbers = #tpu.dot_dimension_numbers<[1], [0], [0], [1], [0, 0, 1, 1], [], []>} : vector<8x16xf32>, vector<16x16xf32>, vector<8x16xf32> -> vector<8x16xf32>
    %383 = arith.addf %376, %382 : vector<8x16xf32>
    %c3_406 = arith.constant 3 : index
    %c0_407 = arith.constant 0 : index
    %c0_408 = arith.constant 0 : index
    %384 = vector.load %arg4[%c3_406, %c0_407, %c0_408] : memref<9x16x16xf32, #tpu.memory_space<vmem>>, vector<1x16x16xf32>
    %385 = vector.shape_cast %384 : vector<1x16x16xf32> to vector<16x16xf32>
    %cst_409 = arith.constant dense<0.000000e+00> : vector<16x16xf32>
    %386 = tpu.matmul %361, %385, %cst_409 {dimension_numbers = #tpu.dot_dimension_numbers<[1], [0], [0], [1], [0, 0, 1, 1], [], []>} : vector<16x16xf32>, vector<16x16xf32>, vector<16x16xf32> -> vector<16x16xf32>
    %c3_410 = arith.constant 3 : index
    %c0_411 = arith.constant 0 : index
    %c0_412 = arith.constant 0 : index
    %387 = vector.load %arg31[%c3_410, %c0_411, %c0_412] : memref<9x8x16xf32, #tpu.memory_space<vmem>>, vector<1x8x16xf32>
    %388 = vector.shape_cast %387 : vector<1x8x16xf32> to vector<8x16xf32>
    %cst_413 = arith.constant dense<0.000000e+00> : vector<8x16xf32>
    %389 = tpu.matmul %388, %386, %cst_413 {dimension_numbers = #tpu.dot_dimension_numbers<[1], [0], [0], [1], [0, 0, 1, 1], [], []>} : vector<8x16xf32>, vector<16x16xf32>, vector<8x16xf32> -> vector<8x16xf32>
    %390 = arith.addf %383, %389 : vector<8x16xf32>
    %c4_414 = arith.constant 4 : index
    %c0_415 = arith.constant 0 : index
    %c0_416 = arith.constant 0 : index
    %391 = vector.load %arg4[%c4_414, %c0_415, %c0_416] : memref<9x16x16xf32, #tpu.memory_space<vmem>>, vector<1x16x16xf32>
    %392 = vector.shape_cast %391 : vector<1x16x16xf32> to vector<16x16xf32>
    %cst_417 = arith.constant dense<0.000000e+00> : vector<16x16xf32>
    %393 = tpu.matmul %361, %392, %cst_417 {dimension_numbers = #tpu.dot_dimension_numbers<[1], [0], [0], [1], [0, 0, 1, 1], [], []>} : vector<16x16xf32>, vector<16x16xf32>, vector<16x16xf32> -> vector<16x16xf32>
    %c4_418 = arith.constant 4 : index
    %c0_419 = arith.constant 0 : index
    %c0_420 = arith.constant 0 : index
    %394 = vector.load %arg31[%c4_418, %c0_419, %c0_420] : memref<9x8x16xf32, #tpu.memory_space<vmem>>, vector<1x8x16xf32>
    %395 = vector.shape_cast %394 : vector<1x8x16xf32> to vector<8x16xf32>
    %cst_421 = arith.constant dense<0.000000e+00> : vector<8x16xf32>
    %396 = tpu.matmul %395, %393, %cst_421 {dimension_numbers = #tpu.dot_dimension_numbers<[1], [0], [0], [1], [0, 0, 1, 1], [], []>} : vector<8x16xf32>, vector<16x16xf32>, vector<8x16xf32> -> vector<8x16xf32>
    %397 = arith.addf %390, %396 : vector<8x16xf32>
    %c5_422 = arith.constant 5 : index
    %c0_423 = arith.constant 0 : index
    %c0_424 = arith.constant 0 : index
    %398 = vector.load %arg4[%c5_422, %c0_423, %c0_424] : memref<9x16x16xf32, #tpu.memory_space<vmem>>, vector<1x16x16xf32>
    %399 = vector.shape_cast %398 : vector<1x16x16xf32> to vector<16x16xf32>
    %cst_425 = arith.constant dense<0.000000e+00> : vector<16x16xf32>
    %400 = tpu.matmul %361, %399, %cst_425 {dimension_numbers = #tpu.dot_dimension_numbers<[1], [0], [0], [1], [0, 0, 1, 1], [], []>} : vector<16x16xf32>, vector<16x16xf32>, vector<16x16xf32> -> vector<16x16xf32>
    %c5_426 = arith.constant 5 : index
    %c0_427 = arith.constant 0 : index
    %c0_428 = arith.constant 0 : index
    %401 = vector.load %arg31[%c5_426, %c0_427, %c0_428] : memref<9x8x16xf32, #tpu.memory_space<vmem>>, vector<1x8x16xf32>
    %402 = vector.shape_cast %401 : vector<1x8x16xf32> to vector<8x16xf32>
    %cst_429 = arith.constant dense<0.000000e+00> : vector<8x16xf32>
    %403 = tpu.matmul %402, %400, %cst_429 {dimension_numbers = #tpu.dot_dimension_numbers<[1], [0], [0], [1], [0, 0, 1, 1], [], []>} : vector<8x16xf32>, vector<16x16xf32>, vector<8x16xf32> -> vector<8x16xf32>
    %404 = arith.addf %397, %403 : vector<8x16xf32>
    %c6_430 = arith.constant 6 : index
    %c0_431 = arith.constant 0 : index
    %c0_432 = arith.constant 0 : index
    %405 = vector.load %arg4[%c6_430, %c0_431, %c0_432] : memref<9x16x16xf32, #tpu.memory_space<vmem>>, vector<1x16x16xf32>
    %406 = vector.shape_cast %405 : vector<1x16x16xf32> to vector<16x16xf32>
    %cst_433 = arith.constant dense<0.000000e+00> : vector<16x16xf32>
    %407 = tpu.matmul %361, %406, %cst_433 {dimension_numbers = #tpu.dot_dimension_numbers<[1], [0], [0], [1], [0, 0, 1, 1], [], []>} : vector<16x16xf32>, vector<16x16xf32>, vector<16x16xf32> -> vector<16x16xf32>
    %c6_434 = arith.constant 6 : index
    %c0_435 = arith.constant 0 : index
    %c0_436 = arith.constant 0 : index
    %408 = vector.load %arg31[%c6_434, %c0_435, %c0_436] : memref<9x8x16xf32, #tpu.memory_space<vmem>>, vector<1x8x16xf32>
    %409 = vector.shape_cast %408 : vector<1x8x16xf32> to vector<8x16xf32>
    %cst_437 = arith.constant dense<0.000000e+00> : vector<8x16xf32>
    %410 = tpu.matmul %409, %407, %cst_437 {dimension_numbers = #tpu.dot_dimension_numbers<[1], [0], [0], [1], [0, 0, 1, 1], [], []>} : vector<8x16xf32>, vector<16x16xf32>, vector<8x16xf32> -> vector<8x16xf32>
    %411 = arith.addf %404, %410 : vector<8x16xf32>
    %c7_438 = arith.constant 7 : index
    %c0_439 = arith.constant 0 : index
    %c0_440 = arith.constant 0 : index
    %412 = vector.load %arg4[%c7_438, %c0_439, %c0_440] : memref<9x16x16xf32, #tpu.memory_space<vmem>>, vector<1x16x16xf32>
    %413 = vector.shape_cast %412 : vector<1x16x16xf32> to vector<16x16xf32>
    %cst_441 = arith.constant dense<0.000000e+00> : vector<16x16xf32>
    %414 = tpu.matmul %361, %413, %cst_441 {dimension_numbers = #tpu.dot_dimension_numbers<[1], [0], [0], [1], [0, 0, 1, 1], [], []>} : vector<16x16xf32>, vector<16x16xf32>, vector<16x16xf32> -> vector<16x16xf32>
    %c7_442 = arith.constant 7 : index
    %c0_443 = arith.constant 0 : index
    %c0_444 = arith.constant 0 : index
    %415 = vector.load %arg31[%c7_442, %c0_443, %c0_444] : memref<9x8x16xf32, #tpu.memory_space<vmem>>, vector<1x8x16xf32>
    %416 = vector.shape_cast %415 : vector<1x8x16xf32> to vector<8x16xf32>
    %cst_445 = arith.constant dense<0.000000e+00> : vector<8x16xf32>
    %417 = tpu.matmul %416, %414, %cst_445 {dimension_numbers = #tpu.dot_dimension_numbers<[1], [0], [0], [1], [0, 0, 1, 1], [], []>} : vector<8x16xf32>, vector<16x16xf32>, vector<8x16xf32> -> vector<8x16xf32>
    %418 = arith.addf %411, %417 : vector<8x16xf32>
    %c8_446 = arith.constant 8 : index
    %c0_447 = arith.constant 0 : index
    %c0_448 = arith.constant 0 : index
    %419 = vector.load %arg4[%c8_446, %c0_447, %c0_448] : memref<9x16x16xf32, #tpu.memory_space<vmem>>, vector<1x16x16xf32>
    %420 = vector.shape_cast %419 : vector<1x16x16xf32> to vector<16x16xf32>
    %cst_449 = arith.constant dense<0.000000e+00> : vector<16x16xf32>
    %421 = tpu.matmul %361, %420, %cst_449 {dimension_numbers = #tpu.dot_dimension_numbers<[1], [0], [0], [1], [0, 0, 1, 1], [], []>} : vector<16x16xf32>, vector<16x16xf32>, vector<16x16xf32> -> vector<16x16xf32>
    %c8_450 = arith.constant 8 : index
    %c0_451 = arith.constant 0 : index
    %c0_452 = arith.constant 0 : index
    %422 = vector.load %arg31[%c8_450, %c0_451, %c0_452] : memref<9x8x16xf32, #tpu.memory_space<vmem>>, vector<1x8x16xf32>
    %423 = vector.shape_cast %422 : vector<1x8x16xf32> to vector<8x16xf32>
    %cst_453 = arith.constant dense<0.000000e+00> : vector<8x16xf32>
    %424 = tpu.matmul %423, %421, %cst_453 {dimension_numbers = #tpu.dot_dimension_numbers<[1], [0], [0], [1], [0, 0, 1, 1], [], []>} : vector<8x16xf32>, vector<16x16xf32>, vector<8x16xf32> -> vector<8x16xf32>
    %425 = arith.addf %418, %424 : vector<8x16xf32>
    %c0_454 = arith.constant 0 : index
    %c0_455 = arith.constant 0 : index
    %426 = vector.load %arg32[%c0_454, %c0_455] : memref<8x1xf32, #tpu.memory_space<vmem>>, vector<8x1xf32>
    %427 = vector.broadcast %426 : vector<8x1xf32> to vector<8x16xf32>
    %428 = arith.addf %425, %427 : vector<8x16xf32>
    %cst_456 = arith.constant 2.000000e-01 : f32
    %429 = vector.broadcast %cst_456 : f32 to vector<8x16xf32>
    %430 = arith.mulf %429, %428 : vector<8x16xf32>
    %431 = arith.maximumf %428, %430 : vector<8x16xf32>
    %c0_457 = arith.constant 0 : index
    %c0_458 = arith.constant 0 : index
    %432 = vector.load %arg10[%c0_457, %c0_458] : memref<16x64xf32, #tpu.memory_space<vmem>>, vector<16x64xf32>
    %cst_459 = arith.constant dense<0.000000e+00> : vector<8x64xf32>
    %433 = tpu.matmul %431, %432, %cst_459 {dimension_numbers = #tpu.dot_dimension_numbers<[1], [0], [0], [1], [0, 0, 1, 1], [], []>} : vector<8x16xf32>, vector<16x64xf32>, vector<8x64xf32> -> vector<8x64xf32>
    %cst_460 = arith.constant 0.000000e+00 : f32
    %434 = vector.broadcast %cst_460 : f32 to vector<2x64xf32>
    %c0_461 = arith.constant 0 : index
    %c0_462 = arith.constant 0 : index
    %c0_463 = arith.constant 0 : index
    %435 = vector.load %arg3[%c0_461, %c0_462, %c0_463] : memref<9x64x64xf32, #tpu.memory_space<vmem>>, vector<1x64x64xf32>
    %436 = vector.shape_cast %435 : vector<1x64x64xf32> to vector<64x64xf32>
    %cst_464 = arith.constant dense<0.000000e+00> : vector<8x64xf32>
    %437 = tpu.matmul %433, %436, %cst_464 {dimension_numbers = #tpu.dot_dimension_numbers<[1], [0], [0], [1], [0, 0, 1, 1], [], []>} : vector<8x64xf32>, vector<64x64xf32>, vector<8x64xf32> -> vector<8x64xf32>
    %c0_465 = arith.constant 0 : index
    %c0_466 = arith.constant 0 : index
    %c0_467 = arith.constant 0 : index
    %438 = vector.load %arg33[%c0_465, %c0_466, %c0_467] : memref<9x2x8xf32, #tpu.memory_space<vmem>>, vector<1x2x8xf32>
    %439 = vector.shape_cast %438 : vector<1x2x8xf32> to vector<2x8xf32>
    %cst_468 = arith.constant dense<0.000000e+00> : vector<2x64xf32>
    %440 = tpu.matmul %439, %437, %cst_468 {dimension_numbers = #tpu.dot_dimension_numbers<[1], [0], [0], [1], [0, 0, 1, 1], [], []>} : vector<2x8xf32>, vector<8x64xf32>, vector<2x64xf32> -> vector<2x64xf32>
    %441 = arith.addf %434, %440 : vector<2x64xf32>
    %c1_469 = arith.constant 1 : index
    %c0_470 = arith.constant 0 : index
    %c0_471 = arith.constant 0 : index
    %442 = vector.load %arg3[%c1_469, %c0_470, %c0_471] : memref<9x64x64xf32, #tpu.memory_space<vmem>>, vector<1x64x64xf32>
    %443 = vector.shape_cast %442 : vector<1x64x64xf32> to vector<64x64xf32>
    %cst_472 = arith.constant dense<0.000000e+00> : vector<8x64xf32>
    %444 = tpu.matmul %433, %443, %cst_472 {dimension_numbers = #tpu.dot_dimension_numbers<[1], [0], [0], [1], [0, 0, 1, 1], [], []>} : vector<8x64xf32>, vector<64x64xf32>, vector<8x64xf32> -> vector<8x64xf32>
    %c1_473 = arith.constant 1 : index
    %c0_474 = arith.constant 0 : index
    %c0_475 = arith.constant 0 : index
    %445 = vector.load %arg33[%c1_473, %c0_474, %c0_475] : memref<9x2x8xf32, #tpu.memory_space<vmem>>, vector<1x2x8xf32>
    %446 = vector.shape_cast %445 : vector<1x2x8xf32> to vector<2x8xf32>
    %cst_476 = arith.constant dense<0.000000e+00> : vector<2x64xf32>
    %447 = tpu.matmul %446, %444, %cst_476 {dimension_numbers = #tpu.dot_dimension_numbers<[1], [0], [0], [1], [0, 0, 1, 1], [], []>} : vector<2x8xf32>, vector<8x64xf32>, vector<2x64xf32> -> vector<2x64xf32>
    %448 = arith.addf %441, %447 : vector<2x64xf32>
    %c2_477 = arith.constant 2 : index
    %c0_478 = arith.constant 0 : index
    %c0_479 = arith.constant 0 : index
    %449 = vector.load %arg3[%c2_477, %c0_478, %c0_479] : memref<9x64x64xf32, #tpu.memory_space<vmem>>, vector<1x64x64xf32>
    %450 = vector.shape_cast %449 : vector<1x64x64xf32> to vector<64x64xf32>
    %cst_480 = arith.constant dense<0.000000e+00> : vector<8x64xf32>
    %451 = tpu.matmul %433, %450, %cst_480 {dimension_numbers = #tpu.dot_dimension_numbers<[1], [0], [0], [1], [0, 0, 1, 1], [], []>} : vector<8x64xf32>, vector<64x64xf32>, vector<8x64xf32> -> vector<8x64xf32>
    %c2_481 = arith.constant 2 : index
    %c0_482 = arith.constant 0 : index
    %c0_483 = arith.constant 0 : index
    %452 = vector.load %arg33[%c2_481, %c0_482, %c0_483] : memref<9x2x8xf32, #tpu.memory_space<vmem>>, vector<1x2x8xf32>
    %453 = vector.shape_cast %452 : vector<1x2x8xf32> to vector<2x8xf32>
    %cst_484 = arith.constant dense<0.000000e+00> : vector<2x64xf32>
    %454 = tpu.matmul %453, %451, %cst_484 {dimension_numbers = #tpu.dot_dimension_numbers<[1], [0], [0], [1], [0, 0, 1, 1], [], []>} : vector<2x8xf32>, vector<8x64xf32>, vector<2x64xf32> -> vector<2x64xf32>
    %455 = arith.addf %448, %454 : vector<2x64xf32>
    %c3_485 = arith.constant 3 : index
    %c0_486 = arith.constant 0 : index
    %c0_487 = arith.constant 0 : index
    %456 = vector.load %arg3[%c3_485, %c0_486, %c0_487] : memref<9x64x64xf32, #tpu.memory_space<vmem>>, vector<1x64x64xf32>
    %457 = vector.shape_cast %456 : vector<1x64x64xf32> to vector<64x64xf32>
    %cst_488 = arith.constant dense<0.000000e+00> : vector<8x64xf32>
    %458 = tpu.matmul %433, %457, %cst_488 {dimension_numbers = #tpu.dot_dimension_numbers<[1], [0], [0], [1], [0, 0, 1, 1], [], []>} : vector<8x64xf32>, vector<64x64xf32>, vector<8x64xf32> -> vector<8x64xf32>
    %c3_489 = arith.constant 3 : index
    %c0_490 = arith.constant 0 : index
    %c0_491 = arith.constant 0 : index
    %459 = vector.load %arg33[%c3_489, %c0_490, %c0_491] : memref<9x2x8xf32, #tpu.memory_space<vmem>>, vector<1x2x8xf32>
    %460 = vector.shape_cast %459 : vector<1x2x8xf32> to vector<2x8xf32>
    %cst_492 = arith.constant dense<0.000000e+00> : vector<2x64xf32>
    %461 = tpu.matmul %460, %458, %cst_492 {dimension_numbers = #tpu.dot_dimension_numbers<[1], [0], [0], [1], [0, 0, 1, 1], [], []>} : vector<2x8xf32>, vector<8x64xf32>, vector<2x64xf32> -> vector<2x64xf32>
    %462 = arith.addf %455, %461 : vector<2x64xf32>
    %c4_493 = arith.constant 4 : index
    %c0_494 = arith.constant 0 : index
    %c0_495 = arith.constant 0 : index
    %463 = vector.load %arg3[%c4_493, %c0_494, %c0_495] : memref<9x64x64xf32, #tpu.memory_space<vmem>>, vector<1x64x64xf32>
    %464 = vector.shape_cast %463 : vector<1x64x64xf32> to vector<64x64xf32>
    %cst_496 = arith.constant dense<0.000000e+00> : vector<8x64xf32>
    %465 = tpu.matmul %433, %464, %cst_496 {dimension_numbers = #tpu.dot_dimension_numbers<[1], [0], [0], [1], [0, 0, 1, 1], [], []>} : vector<8x64xf32>, vector<64x64xf32>, vector<8x64xf32> -> vector<8x64xf32>
    %c4_497 = arith.constant 4 : index
    %c0_498 = arith.constant 0 : index
    %c0_499 = arith.constant 0 : index
    %466 = vector.load %arg33[%c4_497, %c0_498, %c0_499] : memref<9x2x8xf32, #tpu.memory_space<vmem>>, vector<1x2x8xf32>
    %467 = vector.shape_cast %466 : vector<1x2x8xf32> to vector<2x8xf32>
    %cst_500 = arith.constant dense<0.000000e+00> : vector<2x64xf32>
    %468 = tpu.matmul %467, %465, %cst_500 {dimension_numbers = #tpu.dot_dimension_numbers<[1], [0], [0], [1], [0, 0, 1, 1], [], []>} : vector<2x8xf32>, vector<8x64xf32>, vector<2x64xf32> -> vector<2x64xf32>
    %469 = arith.addf %462, %468 : vector<2x64xf32>
    %c5_501 = arith.constant 5 : index
    %c0_502 = arith.constant 0 : index
    %c0_503 = arith.constant 0 : index
    %470 = vector.load %arg3[%c5_501, %c0_502, %c0_503] : memref<9x64x64xf32, #tpu.memory_space<vmem>>, vector<1x64x64xf32>
    %471 = vector.shape_cast %470 : vector<1x64x64xf32> to vector<64x64xf32>
    %cst_504 = arith.constant dense<0.000000e+00> : vector<8x64xf32>
    %472 = tpu.matmul %433, %471, %cst_504 {dimension_numbers = #tpu.dot_dimension_numbers<[1], [0], [0], [1], [0, 0, 1, 1], [], []>} : vector<8x64xf32>, vector<64x64xf32>, vector<8x64xf32> -> vector<8x64xf32>
    %c5_505 = arith.constant 5 : index
    %c0_506 = arith.constant 0 : index
    %c0_507 = arith.constant 0 : index
    %473 = vector.load %arg33[%c5_505, %c0_506, %c0_507] : memref<9x2x8xf32, #tpu.memory_space<vmem>>, vector<1x2x8xf32>
    %474 = vector.shape_cast %473 : vector<1x2x8xf32> to vector<2x8xf32>
    %cst_508 = arith.constant dense<0.000000e+00> : vector<2x64xf32>
    %475 = tpu.matmul %474, %472, %cst_508 {dimension_numbers = #tpu.dot_dimension_numbers<[1], [0], [0], [1], [0, 0, 1, 1], [], []>} : vector<2x8xf32>, vector<8x64xf32>, vector<2x64xf32> -> vector<2x64xf32>
    %476 = arith.addf %469, %475 : vector<2x64xf32>
    %c6_509 = arith.constant 6 : index
    %c0_510 = arith.constant 0 : index
    %c0_511 = arith.constant 0 : index
    %477 = vector.load %arg3[%c6_509, %c0_510, %c0_511] : memref<9x64x64xf32, #tpu.memory_space<vmem>>, vector<1x64x64xf32>
    %478 = vector.shape_cast %477 : vector<1x64x64xf32> to vector<64x64xf32>
    %cst_512 = arith.constant dense<0.000000e+00> : vector<8x64xf32>
    %479 = tpu.matmul %433, %478, %cst_512 {dimension_numbers = #tpu.dot_dimension_numbers<[1], [0], [0], [1], [0, 0, 1, 1], [], []>} : vector<8x64xf32>, vector<64x64xf32>, vector<8x64xf32> -> vector<8x64xf32>
    %c6_513 = arith.constant 6 : index
    %c0_514 = arith.constant 0 : index
    %c0_515 = arith.constant 0 : index
    %480 = vector.load %arg33[%c6_513, %c0_514, %c0_515] : memref<9x2x8xf32, #tpu.memory_space<vmem>>, vector<1x2x8xf32>
    %481 = vector.shape_cast %480 : vector<1x2x8xf32> to vector<2x8xf32>
    %cst_516 = arith.constant dense<0.000000e+00> : vector<2x64xf32>
    %482 = tpu.matmul %481, %479, %cst_516 {dimension_numbers = #tpu.dot_dimension_numbers<[1], [0], [0], [1], [0, 0, 1, 1], [], []>} : vector<2x8xf32>, vector<8x64xf32>, vector<2x64xf32> -> vector<2x64xf32>
    %483 = arith.addf %476, %482 : vector<2x64xf32>
    %c7_517 = arith.constant 7 : index
    %c0_518 = arith.constant 0 : index
    %c0_519 = arith.constant 0 : index
    %484 = vector.load %arg3[%c7_517, %c0_518, %c0_519] : memref<9x64x64xf32, #tpu.memory_space<vmem>>, vector<1x64x64xf32>
    %485 = vector.shape_cast %484 : vector<1x64x64xf32> to vector<64x64xf32>
    %cst_520 = arith.constant dense<0.000000e+00> : vector<8x64xf32>
    %486 = tpu.matmul %433, %485, %cst_520 {dimension_numbers = #tpu.dot_dimension_numbers<[1], [0], [0], [1], [0, 0, 1, 1], [], []>} : vector<8x64xf32>, vector<64x64xf32>, vector<8x64xf32> -> vector<8x64xf32>
    %c7_521 = arith.constant 7 : index
    %c0_522 = arith.constant 0 : index
    %c0_523 = arith.constant 0 : index
    %487 = vector.load %arg33[%c7_521, %c0_522, %c0_523] : memref<9x2x8xf32, #tpu.memory_space<vmem>>, vector<1x2x8xf32>
    %488 = vector.shape_cast %487 : vector<1x2x8xf32> to vector<2x8xf32>
    %cst_524 = arith.constant dense<0.000000e+00> : vector<2x64xf32>
    %489 = tpu.matmul %488, %486, %cst_524 {dimension_numbers = #tpu.dot_dimension_numbers<[1], [0], [0], [1], [0, 0, 1, 1], [], []>} : vector<2x8xf32>, vector<8x64xf32>, vector<2x64xf32> -> vector<2x64xf32>
    %490 = arith.addf %483, %489 : vector<2x64xf32>
    %c8_525 = arith.constant 8 : index
    %c0_526 = arith.constant 0 : index
    %c0_527 = arith.constant 0 : index
    %491 = vector.load %arg3[%c8_525, %c0_526, %c0_527] : memref<9x64x64xf32, #tpu.memory_space<vmem>>, vector<1x64x64xf32>
    %492 = vector.shape_cast %491 : vector<1x64x64xf32> to vector<64x64xf32>
    %cst_528 = arith.constant dense<0.000000e+00> : vector<8x64xf32>
    %493 = tpu.matmul %433, %492, %cst_528 {dimension_numbers = #tpu.dot_dimension_numbers<[1], [0], [0], [1], [0, 0, 1, 1], [], []>} : vector<8x64xf32>, vector<64x64xf32>, vector<8x64xf32> -> vector<8x64xf32>
    %c8_529 = arith.constant 8 : index
    %c0_530 = arith.constant 0 : index
    %c0_531 = arith.constant 0 : index
    %494 = vector.load %arg33[%c8_529, %c0_530, %c0_531] : memref<9x2x8xf32, #tpu.memory_space<vmem>>, vector<1x2x8xf32>
    %495 = vector.shape_cast %494 : vector<1x2x8xf32> to vector<2x8xf32>
    %cst_532 = arith.constant dense<0.000000e+00> : vector<2x64xf32>
    %496 = tpu.matmul %495, %493, %cst_532 {dimension_numbers = #tpu.dot_dimension_numbers<[1], [0], [0], [1], [0, 0, 1, 1], [], []>} : vector<2x8xf32>, vector<8x64xf32>, vector<2x64xf32> -> vector<2x64xf32>
    %497 = arith.addf %490, %496 : vector<2x64xf32>
    %c0_533 = arith.constant 0 : index
    %c0_534 = arith.constant 0 : index
    %498 = vector.load %arg34[%c0_533, %c0_534] : memref<2x1xf32, #tpu.memory_space<vmem>>, vector<2x1xf32>
    %499 = vector.broadcast %498 : vector<2x1xf32> to vector<2x64xf32>
    %500 = arith.addf %497, %499 : vector<2x64xf32>
    %c0_535 = arith.constant 0 : index
    %c0_536 = arith.constant 0 : index
    %501 = vector.load %arg11[%c0_535, %c0_536] : memref<64x256xf32, #tpu.memory_space<vmem>>, vector<64x256xf32>
    %cst_537 = arith.constant dense<0.000000e+00> : vector<2x256xf32>
    %502 = tpu.matmul %500, %501, %cst_537 {dimension_numbers = #tpu.dot_dimension_numbers<[1], [0], [0], [1], [0, 0, 1, 1], [], []>} : vector<2x64xf32>, vector<64x256xf32>, vector<2x256xf32> -> vector<2x256xf32>
    %c0_538 = arith.constant 0 : index
    %c0_539 = arith.constant 0 : index
    %c0_540 = arith.constant 0 : index
    %503 = vector.load %arg35[%c0_538, %c0_539, %c0_540] : memref<1x2x256xf32, #tpu.memory_space<vmem>>, vector<1x2x256xf32>
    %504 = vector.shape_cast %503 : vector<1x2x256xf32> to vector<2x256xf32>
    %505 = vector.shape_cast %502 : vector<2x256xf32> to vector<1x2x256xf32>
    tpu.vector_store %arg35[%c0_538, %c0_539, %c0_540], %505 {strides = array<i32>} : memref<1x2x256xf32, #tpu.memory_space<vmem>>, vector<1x2x256xf32>,
    return
  }
  func.func @transform_0(%arg0: i32) -> (i32, i32, i32) {
    %c0_i32 = arith.constant 0 : i32
    %c0_i32_0 = arith.constant 0 : i32
    %c0_i32_1 = arith.constant 0 : i32
    return %arg0, %c0_i32, %c0_i32_0 : i32, i32, i32
  }
  func.func @transform_1(%arg0: i32) -> (i32, i32, i32) {
    %c0_i32 = arith.constant 0 : i32
    %c0_i32_0 = arith.constant 0 : i32
    %c0_i32_1 = arith.constant 0 : i32
    %c0_i32_2 = arith.constant 0 : i32
    return %c0_i32, %c0_i32_0, %c0_i32_1 : i32, i32, i32
  }
  func.func @transform_2(%arg0: i32) -> (i32, i32, i32) {
    %c0_i32 = arith.constant 0 : i32
    %c0_i32_0 = arith.constant 0 : i32
    %c0_i32_1 = arith.constant 0 : i32
    %c0_i32_2 = arith.constant 0 : i32
    return %c0_i32, %c0_i32_0, %c0_i32_1 : i32, i32, i32
  }
  func.func @transform_3(%arg0: i32) -> (i32, i32, i32) {
    %c0_i32 = arith.constant 0 : i32
    %c0_i32_0 = arith.constant 0 : i32
    %c0_i32_1 = arith.constant 0 : i32
    %c0_i32_2 = arith.constant 0 : i32
    return %c0_i32, %c0_i32_0, %c0_i32_1 : i32, i32, i32
  }
  func.func @transform_4(%arg0: i32) -> (i32, i32, i32) {
    %c0_i32 = arith.constant 0 : i32
    %c0_i32_0 = arith.constant 0 : i32
    %c0_i32_1 = arith.constant 0 : i32
    %c0_i32_2 = arith.constant 0 : i32
    return %c0_i32, %c0_i32_0, %c0_i32_1 : i32, i32, i32
  }
  func.func @transform_5(%arg0: i32) -> (i32, i32, i32) {
    %c0_i32 = arith.constant 0 : i32
    %c0_i32_0 = arith.constant 0 : i32
    %c0_i32_1 = arith.constant 0 : i32
    %c0_i32_2 = arith.constant 0 : i32
    return %c0_i32, %c0_i32_0, %c0_i32_1 : i32, i32, i32
  }
  func.func @transform_6(%arg0: i32) -> (i32, i32, i32) {
    %c0_i32 = arith.constant 0 : i32
    %c0_i32_0 = arith.constant 0 : i32
    %c0_i32_1 = arith.constant 0 : i32
    %c0_i32_2 = arith.constant 0 : i32
    return %c0_i32, %c0_i32_0, %c0_i32_1 : i32, i32, i32
  }
  func.func @transform_7(%arg0: i32) -> (i32, i32, i32) {
    %c0_i32 = arith.constant 0 : i32
    %c0_i32_0 = arith.constant 0 : i32
    %c0_i32_1 = arith.constant 0 : i32
    %c0_i32_2 = arith.constant 0 : i32
    return %c0_i32, %c0_i32_0, %c0_i32_1 : i32, i32, i32
  }
  func.func @transform_8(%arg0: i32) -> (i32, i32) {
    %c0_i32 = arith.constant 0 : i32
    %c0_i32_0 = arith.constant 0 : i32
    %c0_i32_1 = arith.constant 0 : i32
    return %c0_i32, %c0_i32_0 : i32, i32
  }
  func.func @transform_9(%arg0: i32) -> (i32, i32) {
    %c0_i32 = arith.constant 0 : i32
    %c0_i32_0 = arith.constant 0 : i32
    %c0_i32_1 = arith.constant 0 : i32
    return %c0_i32, %c0_i32_0 : i32, i32
  }
  func.func @transform_10(%arg0: i32) -> (i32, i32) {
    %c0_i32 = arith.constant 0 : i32
    %c0_i32_0 = arith.constant 0 : i32
    %c0_i32_1 = arith.constant 0 : i32
    return %c0_i32, %c0_i32_0 : i32, i32
  }
  func.func @transform_11(%arg0: i32) -> (i32, i32) {
    %c0_i32 = arith.constant 0 : i32
    %c0_i32_0 = arith.constant 0 : i32
    %c0_i32_1 = arith.constant 0 : i32
    return %c0_i32, %c0_i32_0 : i32, i32
  }
  func.func @transform_12(%arg0: i32) -> (i32, i32) {
    %c0_i32 = arith.constant 0 : i32
    %c0_i32_0 = arith.constant 0 : i32
    %c0_i32_1 = arith.constant 0 : i32
    return %c0_i32, %c0_i32_0 : i32, i32
  }
  func.func @transform_13(%arg0: i32) -> (i32, i32) {
    %c0_i32 = arith.constant 0 : i32
    %c0_i32_0 = arith.constant 0 : i32
    %c0_i32_1 = arith.constant 0 : i32
    return %c0_i32, %c0_i32_0 : i32, i32
  }
  func.func @transform_14(%arg0: i32) -> (i32, i32, i32) {
    %c0_i32 = arith.constant 0 : i32
    %c0_i32_0 = arith.constant 0 : i32
    %c0_i32_1 = arith.constant 0 : i32
    %c0_i32_2 = arith.constant 0 : i32
    return %c0_i32, %c0_i32_0, %c0_i32_1 : i32, i32, i32
  }
  func.func @transform_15(%arg0: i32) -> (i32, i32) {
    %c0_i32 = arith.constant 0 : i32
    %c0_i32_0 = arith.constant 0 : i32
    %c0_i32_1 = arith.constant 0 : i32
    return %c0_i32, %c0_i32_0 : i32, i32
  }
  func.func @transform_16(%arg0: i32) -> (i32, i32, i32) {
    %c0_i32 = arith.constant 0 : i32
    %c0_i32_0 = arith.constant 0 : i32
    %c0_i32_1 = arith.constant 0 : i32
    %c0_i32_2 = arith.constant 0 : i32
    return %c0_i32, %c0_i32_0, %c0_i32_1 : i32, i32, i32
  }
  func.func @transform_17(%arg0: i32) -> (i32, i32) {
    %c0_i32 = arith.constant 0 : i32
    %c0_i32_0 = arith.constant 0 : i32
    %c0_i32_1 = arith.constant 0 : i32
    return %c0_i32, %c0_i32_0 : i32, i32
  }
  func.func @transform_18(%arg0: i32) -> (i32, i32, i32) {
    %c0_i32 = arith.constant 0 : i32
    %c0_i32_0 = arith.constant 0 : i32
    %c0_i32_1 = arith.constant 0 : i32
    %c0_i32_2 = arith.constant 0 : i32
    return %c0_i32, %c0_i32_0, %c0_i32_1 : i32, i32, i32
  }
  func.func @transform_19(%arg0: i32) -> (i32, i32) {
    %c0_i32 = arith.constant 0 : i32
    %c0_i32_0 = arith.constant 0 : i32
    %c0_i32_1 = arith.constant 0 : i32
    return %c0_i32, %c0_i32_0 : i32, i32
  }
  func.func @transform_20(%arg0: i32) -> (i32, i32) {
    %c0_i32 = arith.constant 0 : i32
    %c0_i32_0 = arith.constant 0 : i32
    %c0_i32_1 = arith.constant 0 : i32
    return %c0_i32, %c0_i32_0 : i32, i32
  }
  func.func @transform_21(%arg0: i32) -> (i32, i32) {
    %c0_i32 = arith.constant 0 : i32
    %c0_i32_0 = arith.constant 0 : i32
    %c0_i32_1 = arith.constant 0 : i32
    return %c0_i32, %c0_i32_0 : i32, i32
  }
  func.func @transform_22(%arg0: i32) -> (i32, i32) {
    %c0_i32 = arith.constant 0 : i32
    %c0_i32_0 = arith.constant 0 : i32
    %c0_i32_1 = arith.constant 0 : i32
    return %c0_i32, %c0_i32_0 : i32, i32
  }
  func.func @transform_23(%arg0: i32) -> (i32, i32) {
    %c0_i32 = arith.constant 0 : i32
    %c0_i32_0 = arith.constant 0 : i32
    %c0_i32_1 = arith.constant 0 : i32
    return %c0_i32, %c0_i32_0 : i32, i32
  }
  func.func @transform_24(%arg0: i32) -> (i32, i32) {
    %c0_i32 = arith.constant 0 : i32
    %c0_i32_0 = arith.constant 0 : i32
    %c0_i32_1 = arith.constant 0 : i32
    return %c0_i32, %c0_i32_0 : i32, i32
  }
  func.func @transform_25(%arg0: i32) -> (i32, i32) {
    %c0_i32 = arith.constant 0 : i32
    %c0_i32_0 = arith.constant 0 : i32
    %c0_i32_1 = arith.constant 0 : i32
    return %c0_i32, %c0_i32_0 : i32, i32
  }
  func.func @transform_26(%arg0: i32) -> (i32, i32) {
    %c0_i32 = arith.constant 0 : i32
    %c0_i32_0 = arith.constant 0 : i32
    %c0_i32_1 = arith.constant 0 : i32
    return %c0_i32, %c0_i32_0 : i32, i32
  }
  func.func @transform_27(%arg0: i32) -> (i32, i32) {
    %c0_i32 = arith.constant 0 : i32
    %c0_i32_0 = arith.constant 0 : i32
    %c0_i32_1 = arith.constant 0 : i32
    return %c0_i32, %c0_i32_0 : i32, i32
  }
  func.func @transform_28(%arg0: i32) -> (i32, i32, i32) {
    %c0_i32 = arith.constant 0 : i32
    %c0_i32_0 = arith.constant 0 : i32
    %c0_i32_1 = arith.constant 0 : i32
    %c0_i32_2 = arith.constant 0 : i32
    return %c0_i32, %c0_i32_0, %c0_i32_1 : i32, i32, i32
  }
  func.func @transform_29(%arg0: i32) -> (i32, i32) {
    %c0_i32 = arith.constant 0 : i32
    %c0_i32_0 = arith.constant 0 : i32
    %c0_i32_1 = arith.constant 0 : i32
    return %c0_i32, %c0_i32_0 : i32, i32
  }
  func.func @transform_30(%arg0: i32) -> (i32, i32, i32) {
    %c0_i32 = arith.constant 0 : i32
    %c0_i32_0 = arith.constant 0 : i32
    %c0_i32_1 = arith.constant 0 : i32
    %c0_i32_2 = arith.constant 0 : i32
    return %c0_i32, %c0_i32_0, %c0_i32_1 : i32, i32, i32
  }
  func.func @transform_31(%arg0: i32) -> (i32, i32) {
    %c0_i32 = arith.constant 0 : i32
    %c0_i32_0 = arith.constant 0 : i32
    %c0_i32_1 = arith.constant 0 : i32
    return %c0_i32, %c0_i32_0 : i32, i32
  }
  func.func @transform_32(%arg0: i32) -> (i32, i32, i32) {
    %c0_i32 = arith.constant 0 : i32
    %c0_i32_0 = arith.constant 0 : i32
    %c0_i32_1 = arith.constant 0 : i32
    %c0_i32_2 = arith.constant 0 : i32
    return %c0_i32, %c0_i32_0, %c0_i32_1 : i32, i32, i32
  }
  func.func @transform_33(%arg0: i32) -> (i32, i32) {
    %c0_i32 = arith.constant 0 : i32
    %c0_i32_0 = arith.constant 0 : i32
    %c0_i32_1 = arith.constant 0 : i32
    return %c0_i32, %c0_i32_0 : i32, i32
  }
  func.func @transform_34(%arg0: i32) -> (i32, i32, i32) {
    %c0_i32 = arith.constant 0 : i32
    %c0_i32_0 = arith.constant 0 : i32
    %c0_i32_1 = arith.constant 0 : i32
    return %arg0, %c0_i32, %c0_i32_0 : i32, i32, i32
  }
}

</mosaic_0001>

<llo_original>
// kernel: radar_hybrid_autoencoder.1
$region0: #{radar_hybrid_autoencoder.1}
  #allocation0 [shape = 'u32[]', space=smem, size = 0x4, offset = 0x4, fixed_abs, tag = 'smem constant byte address 0x4 - core index']
  #allocation1 [shape = 'u32[72,128]{1,0:T(1,128)}', space=vmem, size = 0x9000, scoped, tag = 'internal scratch']
  %s0 = inlined_call_operand.smem [shape: u32[35], index: -1, kind: input, shape index: {}]
  %s1 = sld [smem:[%s0]]
  %s2 = scalar_lea.smem %s0, 1
  %s3 = sld [smem:[%s2]]
  %s4 = scalar_lea.smem %s0, 2
  %s5 = sld [smem:[%s4]]
  %s6 = scalar_lea.smem %s0, 3
  %s7 = sld [smem:[%s6]]
  %s8 = scalar_lea.smem %s0, 4
  %s9 = sld [smem:[%s8]]
  %s10 = scalar_lea.smem %s0, 5
  %s11 = sld [smem:[%s10]]
  %s12 = scalar_lea.smem %s0, 6
  %s13 = sld [smem:[%s12]]
  %s14 = scalar_lea.smem %s0, 7
  %s15 = sld [smem:[%s14]]
  %s16 = scalar_lea.smem %s0, 8
  %s17 = sld [smem:[%s16]]
  %s18 = scalar_lea.smem %s0, 9
  %s19 = sld [smem:[%s18]]
  %s20 = scalar_lea.smem %s0, 10
  %s21 = sld [smem:[%s20]]
  %s22 = scalar_lea.smem %s0, 11
  %s23 = sld [smem:[%s22]]
  %s24 = scalar_lea.smem %s0, 12
  %s25 = sld [smem:[%s24]]
  %s26 = scalar_lea.smem %s0, 13
  %s27 = sld [smem:[%s26]]
  %s28 = scalar_lea.smem %s0, 14
  %s29 = sld [smem:[%s28]]
  %s30 = scalar_lea.smem %s0, 15
  %s31 = sld [smem:[%s30]]
  %s32 = scalar_lea.smem %s0, 16
  %s33 = sld [smem:[%s32]]
  %s34 = scalar_lea.smem %s0, 17
  %s35 = sld [smem:[%s34]]
  %s36 = scalar_lea.smem %s0, 18
  %s37 = sld [smem:[%s36]]
  %s38 = scalar_lea.smem %s0, 19
  %s39 = sld [smem:[%s38]]
  %s40 = scalar_lea.smem %s0, 20
  %s41 = sld [smem:[%s40]]
  %s42 = scalar_lea.smem %s0, 21
  %s43 = sld [smem:[%s42]]
  %s44 = scalar_lea.smem %s0, 22
  %s45 = sld [smem:[%s44]]
  %s46 = scalar_lea.smem %s0, 23
  %s47 = sld [smem:[%s46]]
  %s48 = scalar_lea.smem %s0, 24
  %s49 = sld [smem:[%s48]]
  %s50 = scalar_lea.smem %s0, 25
  %s51 = sld [smem:[%s50]]
  %s52 = scalar_lea.smem %s0, 26
  %s53 = sld [smem:[%s52]]
  %s54 = scalar_lea.smem %s0, 27
  %s55 = sld [smem:[%s54]]
  %s56 = scalar_lea.smem %s0, 28
  %s57 = sld [smem:[%s56]]
  %s58 = scalar_lea.smem %s0, 29
  %s59 = sld [smem:[%s58]]
  %s60 = scalar_lea.smem %s0, 30
  %s61 = sld [smem:[%s60]]
  %s62 = scalar_lea.smem %s0, 31
  %s63 = sld [smem:[%s62]]
  %s64 = scalar_lea.smem %s0, 32
  %s65 = sld [smem:[%s64]]
  %s66 = scalar_lea.smem %s0, 33
  %s67 = sld [smem:[%s66]]
  %s68 = scalar_lea.smem %s0, 34
  %s69 = sld [smem:[%s68]]
  %s70 = sld [smem:[#allocation0]]
  $region241: #{radar_hybrid_autoencoder.1} parent=0
    _
  %s72 = ssub.s32 1, %s70
  %s73 = scalar_select 0, %s72, %s70
  $region1: #{radar_hybrid_autoencoder.1} parent=0
    #allocation2 [shape = 'u8[2359296]{0}', space=vmem, size = 0x240000, scoped, tag = 'input window, operand 1, single buffered']
    #allocation3 [shape = 's32[2]{0}', space=sflag, size = 0x8, scoped, tag = 'scoped memory for radar_hybrid_autoencoder.1']
    #allocation4 [shape = 'u8[294912]{0}', space=vmem, size = 0x48000, scoped, tag = 'input window, operand 2, single buffered']
    #allocation5 [shape = 's32[1]{0}', space=sflag, size = 0x4, scoped, tag = 'scoped memory for radar_hybrid_autoencoder.1']
    #allocation6 [shape = 'u8[73728]{0}', space=vmem, size = 0x12000, scoped, tag = 'input window, operand 3, single buffered']
    #allocation7 [shape = 'u8[2048]{0}', space=vmem, size = 0x800, scoped, tag = 'input window, operand 8, single buffered']
    #allocation8 [shape = 's32[1]{0}', space=sflag, size = 0x4, scoped, tag = 'scoped memory for radar_hybrid_autoencoder.1']
    #allocation9 [shape = 'u8[8192]{0}', space=vmem, size = 0x2000, scoped, tag = 'input window, operand 9, single buffered']
    #allocation10 [shape = 'u8[65536]{0}', space=vmem, size = 0x10000, scoped, tag = 'input window, operand 10, single buffered']
    #allocation11 [shape = 's32[1]{0}', space=sflag, size = 0x4, scoped, tag = 'scoped memory for radar_hybrid_autoencoder.1']
    #allocation12 [shape = 'u8[2048]{0}', space=vmem, size = 0x800, scoped, tag = 'input window, operand 11, single buffered']
    #allocation13 [shape = 'u8[16384]{0}', space=vmem, size = 0x4000, scoped, tag = 'input window, operand 13, single buffered']
    #allocation14 [shape = 's32[1]{0}', space=sflag, size = 0x4, scoped, tag = 'scoped memory for radar_hybrid_autoencoder.1']
    #allocation15 [shape = 'u8[131072]{0}', space=vmem, size = 0x20000, scoped, tag = 'input window, operand 20, single buffered']
    #allocation16 [shape = 'u8[1024]{0}', space=vmem, size = 0x400, scoped, tag = 'input window, operand 21, single buffered']
    #allocation17 [shape = 's32[1]{0}', space=sflag, size = 0x4, scoped, tag = 'scoped memory for radar_hybrid_autoencoder.1']
    #allocation18 [shape = 'u8[131072]{0}', space=vmem, size = 0x20000, scoped, tag = 'input window, operand 22, single buffered']
    #allocation19 [shape = 'u8[512]{0}', space=vmem, size = 0x400, scoped, tag = 'input window, operand 23, single buffered']
    #allocation20 [shape = 's32[1]{0}', space=sflag, size = 0x4, scoped, tag = 'scoped memory for radar_hybrid_autoencoder.1']
    #allocation21 [shape = 'u8[131072]{0}', space=vmem, size = 0x20000, scoped, tag = 'input window, operand 24, single buffered']
    #allocation22 [shape = 'u8[1024]{0}', space=vmem, size = 0x400, scoped, tag = 'input window, operand 25, single buffered']
    #allocation23 [shape = 's32[1]{0}', space=sflag, size = 0x4, scoped, tag = 'scoped memory for radar_hybrid_autoencoder.1']
    #allocation24 [shape = 'u8[131072]{0}', space=vmem, size = 0x20000, scoped, tag = 'input window, operand 26, single buffered']
    #allocation25 [shape = 'u8[512]{0}', space=vmem, size = 0x400, scoped, tag = 'input window, operand 27, single buffered']
    #allocation26 [shape = 's32[1]{0}', space=sflag, size = 0x4, scoped, tag = 'scoped memory for radar_hybrid_autoencoder.1']
    #allocation27 [shape = 'u8[73728]{0}', space=vmem, size = 0x12000, scoped, tag = 'input window, operand 28, single buffered']
    #allocation28 [shape = 'u8[36864]{0}', space=vmem, size = 0x9000, scoped, tag = 'input window, operand 30, single buffered']
    #allocation29 [shape = 's32[1]{0}', space=sflag, size = 0x4, scoped, tag = 'scoped memory for radar_hybrid_autoencoder.1']
    %74 = vsyncpa [#allocation3], 0
    %75 = vsyncpa [#allocation5], 0
    %76 = vsyncpa [#allocation8], 0
    %77 = vsyncpa [#allocation11], 0
    %78 = vsyncpa [#allocation14], 0
    %79 = vsyncpa [#allocation17], 0
    %80 = vsyncpa [#allocation20], 0
    %81 = vsyncpa [#allocation23], 0
    %82 = vsyncpa [#allocation26], 0
    %83 = vsyncpa [#allocation29], 0
    loop: start=0, step=1, limit=4
    $region2: #{radar_hybrid_autoencoder.1} parent=1 // loop_pre_header
      _
    $region3: #{radar_hybrid_autoencoder.1} parent=1 // loop_header
      %s85 = sphi 0, %s89
      %p86 = scmp.ge.s32.totalorder %s85, 4
      %s95 = sphi 0, %s97
      %s98 = sphi 0, %s95
      %s99 = sphi 0, %s98
      %s115 = sphi 0, %s99
      %s119 = sphi 0, %s119
      %s121 = sphi 0, %s119
      %s122 = sphi 0, %s121
      %s136 = sphi 0, %s122
      %s140 = sphi 0, %s140
      %s142 = sphi 0, %s140
      %s143 = sphi 0, %s142
      %s157 = sphi 0, %s143
      %s161 = sphi 0, %s161
      %s163 = sphi 0, %s161
      %s164 = sphi 0, %s163
      %s178 = sphi 0, %s164
      %s182 = sphi 0, %s182
      %s184 = sphi 0, %s182
      %s185 = sphi 0, %s184
      %s199 = sphi 0, %s185
      %s203 = sphi 0, %s203
      %s205 = sphi 0, %s203
      %s206 = sphi 0, %s205
      %s220 = sphi 0, %s206
      %s224 = sphi 0, %s224
      %s226 = sphi 0, %s224
      %s227 = sphi 0, %s226
      %s241 = sphi 0, %s227
      %s245 = sphi 0, %s245
      %s247 = sphi 0, %s245
      %s248 = sphi 0, %s247
      %s262 = sphi 0, %s248
      %s266 = sphi 0, %s266
      %s268 = sphi 0, %s266
      %s269 = sphi 0, %s268
      %s283 = sphi 0, %s269
      %s287 = sphi 0, %s287
      %s289 = sphi 0, %s287
      %s290 = sphi 0, %s289
      %s304 = sphi 0, %s290
      %s308 = sphi 0, %s308
      %s310 = sphi 0, %s308
      %s311 = sphi 0, %s310
      %s325 = sphi 0, %s311
      %s329 = sphi 0, %s329
      %s331 = sphi 0, %s329
      %s332 = sphi 0, %s331
      %s346 = sphi 0, %s332
      %s350 = sphi 0, %s350
      %s352 = sphi 0, %s350
      %s353 = sphi 0, %s352
      %s367 = sphi 0, %s353
      %s371 = sphi 0, %s371
      %s373 = sphi 0, %s371
      %s374 = sphi 0, %s373
      %s388 = sphi 0, %s374
      %s392 = sphi 0, %s392
      %s394 = sphi 0, %s392
      %s395 = sphi 0, %s394
      %s409 = sphi 0, %s395
      %s413 = sphi 0, %s413
      %s415 = sphi 0, %s413
      %s416 = sphi 0, %s415
      %s430 = sphi 0, %s416
      %s434 = sphi 0, %s434
      %s436 = sphi 0, %s434
      %s437 = sphi 0, %s436
      %s451 = sphi 0, %s437
      %s455 = sphi 0, %s455
      %s457 = sphi 0, %s455
      %s458 = sphi 0, %s457
      %s472 = sphi 0, %s458
      %s476 = sphi 0, %s476
      %s478 = sphi 0, %s476
      %s479 = sphi 0, %s478
      %s493 = sphi 0, %s479
      %s497 = sphi 0, %s497
      %s499 = sphi 0, %s497
      %s500 = sphi 0, %s499
      %s514 = sphi 0, %s500
      %s518 = sphi 0, %s518
      %s520 = sphi 0, %s518
      %s521 = sphi 0, %s520
      %s535 = sphi 0, %s521
      %s539 = sphi 0, %s539
      %s541 = sphi 0, %s539
      %s542 = sphi 0, %s541
      %s556 = sphi 0, %s542
      %s560 = sphi 0, %s560
      %s562 = sphi 0, %s560
      %s563 = sphi 0, %s562
      %s577 = sphi 0, %s563
      %s581 = sphi 0, %s581
      %s583 = sphi 0, %s581
      %s584 = sphi 0, %s583
      %s598 = sphi 0, %s584
      %s602 = sphi 0, %s602
      %s604 = sphi 0, %s602
      %s605 = sphi 0, %s604
      %s619 = sphi 0, %s605
      %s623 = sphi 0, %s623
      %s625 = sphi 0, %s623
      %s626 = sphi 0, %s625
      %s640 = sphi 0, %s626
      %s644 = sphi 0, %s644
      %s646 = sphi 0, %s644
      %s647 = sphi 0, %s646
      %s661 = sphi 0, %s647
      %s665 = sphi 0, %s665
      %s667 = sphi 0, %s665
      %s668 = sphi 0, %s667
      %s682 = sphi 0, %s668
      %s686 = sphi 0, %s686
      %s688 = sphi 0, %s686
      %s689 = sphi 0, %s688
      %s703 = sphi 0, %s689
      %s707 = sphi 0, %s707
      %s709 = sphi 0, %s707
      %s710 = sphi 0, %s709
      %s724 = sphi 0, %s710
      %s728 = sphi 0, %s728
      %s730 = sphi 0, %s728
      %s731 = sphi 0, %s730
      %s745 = sphi 0, %s731
      %s749 = sphi 0, %s749
      %s751 = sphi 0, %s749
      %s752 = sphi 0, %s751
      %s766 = sphi 0, %s752
      %s770 = sphi 0, %s770
      %s772 = sphi 0, %s770
      %s773 = sphi 0, %s772
      %s787 = sphi 0, %s773
      %s791 = sphi 0, %s791
      %s793 = sphi 0, %s791
      %s794 = sphi 0, %s793
      %s808 = sphi 0, %s794
      %s814 = sphi 0, %s816
      %s817 = sphi 0, %s814
      %s818 = sphi 0, %s817
      %s834 = sphi 0, %s818
    $region4: #{radar_hybrid_autoencoder.1} parent=1 // loop_header_branch
      %88 = sbr.rel (%p86) target = $region8
    $region5: #{radar_hybrid_autoencoder.1} parent=1 // loop_body
      %s90 = ssub.s32 %s85, 1
      %s91 = ssub.s32 %s85, 2
      %s92 = sadd.s32 %s85, 1
      %s93 = ssub.s32 %s85, %s92
      %p94 = scmp.eq.s32.totalorder %s93, 0
      %s96 = sadd.s32 %s95, 1
      %s97 = scalar_select %p94, %s95, %s96
      %p100 = pneg %p94
      %p101 = scmp.eq.s32.totalorder %s85, 1
      %p102 = por %p100, %p101
      %p103 = scmp.ne.s32.totalorder %s95, %s98
      %p104 = scmp.eq.s32.totalorder %s85, 0
      %p105 = por %p103, %p104
      %p106 = scmp.ne.s32.totalorder %s95, %s98
      %p107 = scmp.eq.s32.totalorder %s90, 1
      %p108 = por %p106, %p107
      %p109 = scmp.ne.s32.totalorder %s98, %s99
      %p110 = scmp.eq.s32.totalorder %s90, 0
      %p111 = por %p109, %p110
      %p112 = scmp.ne.s32.totalorder %s98, %s99
      %p113 = scmp.eq.s32.totalorder %s91, 1
      %p114 = por %p112, %p113
      %p116 = scmp.ne.s32.totalorder %s99, %s115
      %p117 = scmp.eq.s32.totalorder %s91, 0
      %p118 = por %p116, %p117
      %s120 = sadd.s32 %s119, 1
      %p123 = scmp.eq.s32.totalorder %s85, 1
      %p124 = scmp.ne.s32.totalorder %s119, %s121
      %p125 = scmp.eq.s32.totalorder %s85, 0
      %p126 = por %p124, %p125
      %p127 = scmp.ne.s32.totalorder %s119, %s121
      %p128 = scmp.eq.s32.totalorder %s90, 1
      %p129 = por %p127, %p128
      %p130 = scmp.ne.s32.totalorder %s121, %s122
      %p131 = scmp.eq.s32.totalorder %s90, 0
      %p132 = por %p130, %p131
      %p133 = scmp.ne.s32.totalorder %s121, %s122
      %p134 = scmp.eq.s32.totalorder %s91, 1
      %p135 = por %p133, %p134
      %p137 = scmp.ne.s32.totalorder %s122, %s136
      %p138 = scmp.eq.s32.totalorder %s91, 0
      %p139 = por %p137, %p138
      %s141 = sadd.s32 %s140, 1
      %p144 = scmp.eq.s32.totalorder %s85, 1
      %p145 = scmp.ne.s32.totalorder %s140, %s142
      %p146 = scmp.eq.s32.totalorder %s85, 0
      %p147 = por %p145, %p146
      %p148 = scmp.ne.s32.totalorder %s140, %s142
      %p149 = scmp.eq.s32.totalorder %s90, 1
      %p150 = por %p148, %p149
      %p151 = scmp.ne.s32.totalorder %s142, %s143
      %p152 = scmp.eq.s32.totalorder %s90, 0
      %p153 = por %p151, %p152
      %p154 = scmp.ne.s32.totalorder %s142, %s143
      %p155 = scmp.eq.s32.totalorder %s91, 1
      %p156 = por %p154, %p155
      %p158 = scmp.ne.s32.totalorder %s143, %s157
      %p159 = scmp.eq.s32.totalorder %s91, 0
      %p160 = por %p158, %p159
      %s162 = sadd.s32 %s161, 1
      %p165 = scmp.eq.s32.totalorder %s85, 1
      %p166 = scmp.ne.s32.totalorder %s161, %s163
      %p167 = scmp.eq.s32.totalorder %s85, 0
      %p168 = por %p166, %p167
      %p169 = scmp.ne.s32.totalorder %s161, %s163
      %p170 = scmp.eq.s32.totalorder %s90, 1
      %p171 = por %p169, %p170
      %p172 = scmp.ne.s32.totalorder %s163, %s164
      %p173 = scmp.eq.s32.totalorder %s90, 0
      %p174 = por %p172, %p173
      %p175 = scmp.ne.s32.totalorder %s163, %s164
      %p176 = scmp.eq.s32.totalorder %s91, 1
      %p177 = por %p175, %p176
      %p179 = scmp.ne.s32.totalorder %s164, %s178
      %p180 = scmp.eq.s32.totalorder %s91, 0
      %p181 = por %p179, %p180
      %s183 = sadd.s32 %s182, 1
      %p186 = scmp.eq.s32.totalorder %s85, 1
      %p187 = scmp.ne.s32.totalorder %s182, %s184
      %p188 = scmp.eq.s32.totalorder %s85, 0
      %p189 = por %p187, %p188
      %p190 = scmp.ne.s32.totalorder %s182, %s184
      %p191 = scmp.eq.s32.totalorder %s90, 1
      %p192 = por %p190, %p191
      %p193 = scmp.ne.s32.totalorder %s184, %s185
      %p194 = scmp.eq.s32.totalorder %s90, 0
      %p195 = por %p193, %p194
      %p196 = scmp.ne.s32.totalorder %s184, %s185
      %p197 = scmp.eq.s32.totalorder %s91, 1
      %p198 = por %p196, %p197
      %p200 = scmp.ne.s32.totalorder %s185, %s199
      %p201 = scmp.eq.s32.totalorder %s91, 0
      %p202 = por %p200, %p201
      %s204 = sadd.s32 %s203, 1
      %p207 = scmp.eq.s32.totalorder %s85, 1
      %p208 = scmp.ne.s32.totalorder %s203, %s205
      %p209 = scmp.eq.s32.totalorder %s85, 0
      %p210 = por %p208, %p209
      %p211 = scmp.ne.s32.totalorder %s203, %s205
      %p212 = scmp.eq.s32.totalorder %s90, 1
      %p213 = por %p211, %p212
      %p214 = scmp.ne.s32.totalorder %s205, %s206
      %p215 = scmp.eq.s32.totalorder %s90, 0
      %p216 = por %p214, %p215
      %p217 = scmp.ne.s32.totalorder %s205, %s206
      %p218 = scmp.eq.s32.totalorder %s91, 1
      %p219 = por %p217, %p218
      %p221 = scmp.ne.s32.totalorder %s206, %s220
      %p222 = scmp.eq.s32.totalorder %s91, 0
      %p223 = por %p221, %p222
      %s225 = sadd.s32 %s224, 1
      %p228 = scmp.eq.s32.totalorder %s85, 1
      %p229 = scmp.ne.s32.totalorder %s224, %s226
      %p230 = scmp.eq.s32.totalorder %s85, 0
      %p231 = por %p229, %p230
      %p232 = scmp.ne.s32.totalorder %s224, %s226
      %p233 = scmp.eq.s32.totalorder %s90, 1
      %p234 = por %p232, %p233
      %p235 = scmp.ne.s32.totalorder %s226, %s227
      %p236 = scmp.eq.s32.totalorder %s90, 0
      %p237 = por %p235, %p236
      %p238 = scmp.ne.s32.totalorder %s226, %s227
      %p239 = scmp.eq.s32.totalorder %s91, 1
      %p240 = por %p238, %p239
      %p242 = scmp.ne.s32.totalorder %s227, %s241
      %p243 = scmp.eq.s32.totalorder %s91, 0
      %p244 = por %p242, %p243
      %s246 = sadd.s32 %s245, 1
      %p249 = scmp.eq.s32.totalorder %s85, 1
      %p250 = scmp.ne.s32.totalorder %s245, %s247
      %p251 = scmp.eq.s32.totalorder %s85, 0
      %p252 = por %p250, %p251
      %p253 = scmp.ne.s32.totalorder %s245, %s247
      %p254 = scmp.eq.s32.totalorder %s90, 1
      %p255 = por %p253, %p254
      %p256 = scmp.ne.s32.totalorder %s247, %s248
      %p257 = scmp.eq.s32.totalorder %s90, 0
      %p258 = por %p256, %p257
      %p259 = scmp.ne.s32.totalorder %s247, %s248
      %p260 = scmp.eq.s32.totalorder %s91, 1
      %p261 = por %p259, %p260
      %p263 = scmp.ne.s32.totalorder %s248, %s262
      %p264 = scmp.eq.s32.totalorder %s91, 0
      %p265 = por %p263, %p264
      %s267 = sadd.s32 %s266, 1
      %p270 = scmp.eq.s32.totalorder %s85, 1
      %p271 = scmp.ne.s32.totalorder %s266, %s268
      %p272 = scmp.eq.s32.totalorder %s85, 0
      %p273 = por %p271, %p272
      %p274 = scmp.ne.s32.totalorder %s266, %s268
      %p275 = scmp.eq.s32.totalorder %s90, 1
      %p276 = por %p274, %p275
      %p277 = scmp.ne.s32.totalorder %s268, %s269
      %p278 = scmp.eq.s32.totalorder %s90, 0
      %p279 = por %p277, %p278
      %p280 = scmp.ne.s32.totalorder %s268, %s269
      %p281 = scmp.eq.s32.totalorder %s91, 1
      %p282 = por %p280, %p281
      %p284 = scmp.ne.s32.totalorder %s269, %s283
      %p285 = scmp.eq.s32.totalorder %s91, 0
      %p286 = por %p284, %p285
      %s288 = sadd.s32 %s287, 1
      %p291 = scmp.eq.s32.totalorder %s85, 1
      %p292 = scmp.ne.s32.totalorder %s287, %s289
      %p293 = scmp.eq.s32.totalorder %s85, 0
      %p294 = por %p292, %p293
      %p295 = scmp.ne.s32.totalorder %s287, %s289
      %p296 = scmp.eq.s32.totalorder %s90, 1
      %p297 = por %p295, %p296
      %p298 = scmp.ne.s32.totalorder %s289, %s290
      %p299 = scmp.eq.s32.totalorder %s90, 0
      %p300 = por %p298, %p299
      %p301 = scmp.ne.s32.totalorder %s289, %s290
      %p302 = scmp.eq.s32.totalorder %s91, 1
      %p303 = por %p301, %p302
      %p305 = scmp.ne.s32.totalorder %s290, %s304
      %p306 = scmp.eq.s32.totalorder %s91, 0
      %p307 = por %p305, %p306
      %s309 = sadd.s32 %s308, 1
      %p312 = scmp.eq.s32.totalorder %s85, 1
      %p313 = scmp.ne.s32.totalorder %s308, %s310
      %p314 = scmp.eq.s32.totalorder %s85, 0
      %p315 = por %p313, %p314
      %p316 = scmp.ne.s32.totalorder %s308, %s310
      %p317 = scmp.eq.s32.totalorder %s90, 1
      %p318 = por %p316, %p317
      %p319 = scmp.ne.s32.totalorder %s310, %s311
      %p320 = scmp.eq.s32.totalorder %s90, 0
      %p321 = por %p319, %p320
      %p322 = scmp.ne.s32.totalorder %s310, %s311
      %p323 = scmp.eq.s32.totalorder %s91, 1
      %p324 = por %p322, %p323
      %p326 = scmp.ne.s32.totalorder %s311, %s325
      %p327 = scmp.eq.s32.totalorder %s91, 0
      %p328 = por %p326, %p327
      %s330 = sadd.s32 %s329, 1
      %p333 = scmp.eq.s32.totalorder %s85, 1
      %p334 = scmp.ne.s32.totalorder %s329, %s331
      %p335 = scmp.eq.s32.totalorder %s85, 0
      %p336 = por %p334, %p335
      %p337 = scmp.ne.s32.totalorder %s329, %s331
      %p338 = scmp.eq.s32.totalorder %s90, 1
      %p339 = por %p337, %p338
      %p340 = scmp.ne.s32.totalorder %s331, %s332
      %p341 = scmp.eq.s32.totalorder %s90, 0
      %p342 = por %p340, %p341
      %p343 = scmp.ne.s32.totalorder %s331, %s332
      %p344 = scmp.eq.s32.totalorder %s91, 1
      %p345 = por %p343, %p344
      %p347 = scmp.ne.s32.totalorder %s332, %s346
      %p348 = scmp.eq.s32.totalorder %s91, 0
      %p349 = por %p347, %p348
      %s351 = sadd.s32 %s350, 1
      %p354 = scmp.eq.s32.totalorder %s85, 1
      %p355 = scmp.ne.s32.totalorder %s350, %s352
      %p356 = scmp.eq.s32.totalorder %s85, 0
      %p357 = por %p355, %p356
      %p358 = scmp.ne.s32.totalorder %s350, %s352
      %p359 = scmp.eq.s32.totalorder %s90, 1
      %p360 = por %p358, %p359
      %p361 = scmp.ne.s32.totalorder %s352, %s353
      %p362 = scmp.eq.s32.totalorder %s90, 0
      %p363 = por %p361, %p362
      %p364 = scmp.ne.s32.totalorder %s352, %s353
      %p365 = scmp.eq.s32.totalorder %s91, 1
      %p366 = por %p364, %p365
      %p368 = scmp.ne.s32.totalorder %s353, %s367
      %p369 = scmp.eq.s32.totalorder %s91, 0
      %p370 = por %p368, %p369
      %s372 = sadd.s32 %s371, 1
      %p375 = scmp.eq.s32.totalorder %s85, 1
      %p376 = scmp.ne.s32.totalorder %s371, %s373
      %p377 = scmp.eq.s32.totalorder %s85, 0
      %p378 = por %p376, %p377
      %p379 = scmp.ne.s32.totalorder %s371, %s373
      %p380 = scmp.eq.s32.totalorder %s90, 1
      %p381 = por %p379, %p380
      %p382 = scmp.ne.s32.totalorder %s373, %s374
      %p383 = scmp.eq.s32.totalorder %s90, 0
      %p384 = por %p382, %p383
      %p385 = scmp.ne.s32.totalorder %s373, %s374
      %p386 = scmp.eq.s32.totalorder %s91, 1
      %p387 = por %p385, %p386
      %p389 = scmp.ne.s32.totalorder %s374, %s388
      %p390 = scmp.eq.s32.totalorder %s91, 0
      %p391 = por %p389, %p390
      %s393 = sadd.s32 %s392, 1
      %p396 = scmp.eq.s32.totalorder %s85, 1
      %p397 = scmp.ne.s32.totalorder %s392, %s394
      %p398 = scmp.eq.s32.totalorder %s85, 0
      %p399 = por %p397, %p398
      %p400 = scmp.ne.s32.totalorder %s392, %s394
      %p401 = scmp.eq.s32.totalorder %s90, 1
      %p402 = por %p400, %p401
      %p403 = scmp.ne.s32.totalorder %s394, %s395
      %p404 = scmp.eq.s32.totalorder %s90, 0
      %p405 = por %p403, %p404
      %p406 = scmp.ne.s32.totalorder %s394, %s395
      %p407 = scmp.eq.s32.totalorder %s91, 1
      %p408 = por %p406, %p407
      %p410 = scmp.ne.s32.totalorder %s395, %s409
      %p411 = scmp.eq.s32.totalorder %s91, 0
      %p412 = por %p410, %p411
      %s414 = sadd.s32 %s413, 1
      %p417 = scmp.eq.s32.totalorder %s85, 1
      %p418 = scmp.ne.s32.totalorder %s413, %s415
      %p419 = scmp.eq.s32.totalorder %s85, 0
      %p420 = por %p418, %p419
      %p421 = scmp.ne.s32.totalorder %s413, %s415
      %p422 = scmp.eq.s32.totalorder %s90, 1
      %p423 = por %p421, %p422
      %p424 = scmp.ne.s32.totalorder %s415, %s416
      %p425 = scmp.eq.s32.totalorder %s90, 0
      %p426 = por %p424, %p425
      %p427 = scmp.ne.s32.totalorder %s415, %s416
      %p428 = scmp.eq.s32.totalorder %s91, 1
      %p429 = por %p427, %p428
      %p431 = scmp.ne.s32.totalorder %s416, %s430
      %p432 = scmp.eq.s32.totalorder %s91, 0
      %p433 = por %p431, %p432
      %s435 = sadd.s32 %s434, 1
      %p438 = scmp.eq.s32.totalorder %s85, 1
      %p439 = scmp.ne.s32.totalorder %s434, %s436
      %p440 = scmp.eq.s32.totalorder %s85, 0
      %p441 = por %p439, %p440
      %p442 = scmp.ne.s32.totalorder %s434, %s436
      %p443 = scmp.eq.s32.totalorder %s90, 1
      %p444 = por %p442, %p443
      %p445 = scmp.ne.s32.totalorder %s436, %s437
      %p446 = scmp.eq.s32.totalorder %s90, 0
      %p447 = por %p445, %p446
      %p448 = scmp.ne.s32.totalorder %s436, %s437
      %p449 = scmp.eq.s32.totalorder %s91, 1
      %p450 = por %p448, %p449
      %p452 = scmp.ne.s32.totalorder %s437, %s451
      %p453 = scmp.eq.s32.totalorder %s91, 0
      %p454 = por %p452, %p453
      %s456 = sadd.s32 %s455, 1
      %p459 = scmp.eq.s32.totalorder %s85, 1
      %p460 = scmp.ne.s32.totalorder %s455, %s457
      %p461 = scmp.eq.s32.totalorder %s85, 0
      %p462 = por %p460, %p461
      %p463 = scmp.ne.s32.totalorder %s455, %s457
      %p464 = scmp.eq.s32.totalorder %s90, 1
      %p465 = por %p463, %p464
      %p466 = scmp.ne.s32.totalorder %s457, %s458
      %p467 = scmp.eq.s32.totalorder %s90, 0
      %p468 = por %p466, %p467
      %p469 = scmp.ne.s32.totalorder %s457, %s458
      %p470 = scmp.eq.s32.totalorder %s91, 1
      %p471 = por %p469, %p470
      %p473 = scmp.ne.s32.totalorder %s458, %s472
      %p474 = scmp.eq.s32.totalorder %s91, 0
      %p475 = por %p473, %p474
      %s477 = sadd.s32 %s476, 1
      %p480 = scmp.eq.s32.totalorder %s85, 1
      %p481 = scmp.ne.s32.totalorder %s476, %s478
      %p482 = scmp.eq.s32.totalorder %s85, 0
      %p483 = por %p481, %p482
      %p484 = scmp.ne.s32.totalorder %s476, %s478
      %p485 = scmp.eq.s32.totalorder %s90, 1
      %p486 = por %p484, %p485
      %p487 = scmp.ne.s32.totalorder %s478, %s479
      %p488 = scmp.eq.s32.totalorder %s90, 0
      %p489 = por %p487, %p488
      %p490 = scmp.ne.s32.totalorder %s478, %s479
      %p491 = scmp.eq.s32.totalorder %s91, 1
      %p492 = por %p490, %p491
      %p494 = scmp.ne.s32.totalorder %s479, %s493
      %p495 = scmp.eq.s32.totalorder %s91, 0
      %p496 = por %p494, %p495
      %s498 = sadd.s32 %s497, 1
      %p501 = scmp.eq.s32.totalorder %s85, 1
      %p502 = scmp.ne.s32.totalorder %s497, %s499
      %p503 = scmp.eq.s32.totalorder %s85, 0
      %p504 = por %p502, %p503
      %p505 = scmp.ne.s32.totalorder %s497, %s499
      %p506 = scmp.eq.s32.totalorder %s90, 1
      %p507 = por %p505, %p506
      %p508 = scmp.ne.s32.totalorder %s499, %s500
      %p509 = scmp.eq.s32.totalorder %s90, 0
      %p510 = por %p508, %p509
      %p511 = scmp.ne.s32.totalorder %s499, %s500
      %p512 = scmp.eq.s32.totalorder %s91, 1
      %p513 = por %p511, %p512
      %p515 = scmp.ne.s32.totalorder %s500, %s514
      %p516 = scmp.eq.s32.totalorder %s91, 0
      %p517 = por %p515, %p516
      %s519 = sadd.s32 %s518, 1
      %p522 = scmp.eq.s32.totalorder %s85, 1
      %p523 = scmp.ne.s32.totalorder %s518, %s520
      %p524 = scmp.eq.s32.totalorder %s85, 0
      %p525 = por %p523, %p524
      %p526 = scmp.ne.s32.totalorder %s518, %s520
      %p527 = scmp.eq.s32.totalorder %s90, 1
      %p528 = por %p526, %p527
      %p529 = scmp.ne.s32.totalorder %s520, %s521
      %p530 = scmp.eq.s32.totalorder %s90, 0
      %p531 = por %p529, %p530
      %p532 = scmp.ne.s32.totalorder %s520, %s521
      %p533 = scmp.eq.s32.totalorder %s91, 1
      %p534 = por %p532, %p533
      %p536 = scmp.ne.s32.totalorder %s521, %s535
      %p537 = scmp.eq.s32.totalorder %s91, 0
      %p538 = por %p536, %p537
      %s540 = sadd.s32 %s539, 1
      %p543 = scmp.eq.s32.totalorder %s85, 1
      %p544 = scmp.ne.s32.totalorder %s539, %s541
      %p545 = scmp.eq.s32.totalorder %s85, 0
      %p546 = por %p544, %p545
      %p547 = scmp.ne.s32.totalorder %s539, %s541
      %p548 = scmp.eq.s32.totalorder %s90, 1
      %p549 = por %p547, %p548
      %p550 = scmp.ne.s32.totalorder %s541, %s542
      %p551 = scmp.eq.s32.totalorder %s90, 0
      %p552 = por %p550, %p551
      %p553 = scmp.ne.s32.totalorder %s541, %s542
      %p554 = scmp.eq.s32.totalorder %s91, 1
      %p555 = por %p553, %p554
      %p557 = scmp.ne.s32.totalorder %s542, %s556
      %p558 = scmp.eq.s32.totalorder %s91, 0
      %p559 = por %p557, %p558
      %s561 = sadd.s32 %s560, 1
      %p564 = scmp.eq.s32.totalorder %s85, 1
      %p565 = scmp.ne.s32.totalorder %s560, %s562
      %p566 = scmp.eq.s32.totalorder %s85, 0
      %p567 = por %p565, %p566
      %p568 = scmp.ne.s32.totalorder %s560, %s562
      %p569 = scmp.eq.s32.totalorder %s90, 1
      %p570 = por %p568, %p569
      %p571 = scmp.ne.s32.totalorder %s562, %s563
      %p572 = scmp.eq.s32.totalorder %s90, 0
      %p573 = por %p571, %p572
      %p574 = scmp.ne.s32.totalorder %s562, %s563
      %p575 = scmp.eq.s32.totalorder %s91, 1
      %p576 = por %p574, %p575
      %p578 = scmp.ne.s32.totalorder %s563, %s577
      %p579 = scmp.eq.s32.totalorder %s91, 0
      %p580 = por %p578, %p579
      %s582 = sadd.s32 %s581, 1
      %p585 = scmp.eq.s32.totalorder %s85, 1
      %p586 = scmp.ne.s32.totalorder %s581, %s583
      %p587 = scmp.eq.s32.totalorder %s85, 0
      %p588 = por %p586, %p587
      %p589 = scmp.ne.s32.totalorder %s581, %s583
      %p590 = scmp.eq.s32.totalorder %s90, 1
      %p591 = por %p589, %p590
      %p592 = scmp.ne.s32.totalorder %s583, %s584
      %p593 = scmp.eq.s32.totalorder %s90, 0
      %p594 = por %p592, %p593
      %p595 = scmp.ne.s32.totalorder %s583, %s584
      %p596 = scmp.eq.s32.totalorder %s91, 1
      %p597 = por %p595, %p596
      %p599 = scmp.ne.s32.totalorder %s584, %s598
      %p600 = scmp.eq.s32.totalorder %s91, 0
      %p601 = por %p599, %p600
      %s603 = sadd.s32 %s602, 1
      %p606 = scmp.eq.s32.totalorder %s85, 1
      %p607 = scmp.ne.s32.totalorder %s602, %s604
      %p608 = scmp.eq.s32.totalorder %s85, 0
      %p609 = por %p607, %p608
      %p610 = scmp.ne.s32.totalorder %s602, %s604
      %p611 = scmp.eq.s32.totalorder %s90, 1
      %p612 = por %p610, %p611
      %p613 = scmp.ne.s32.totalorder %s604, %s605
      %p614 = scmp.eq.s32.totalorder %s90, 0
      %p615 = por %p613, %p614
      %p616 = scmp.ne.s32.totalorder %s604, %s605
      %p617 = scmp.eq.s32.totalorder %s91, 1
      %p618 = por %p616, %p617
      %p620 = scmp.ne.s32.totalorder %s605, %s619
      %p621 = scmp.eq.s32.totalorder %s91, 0
      %p622 = por %p620, %p621
      %s624 = sadd.s32 %s623, 1
      %p627 = scmp.eq.s32.totalorder %s85, 1
      %p628 = scmp.ne.s32.totalorder %s623, %s625
      %p629 = scmp.eq.s32.totalorder %s85, 0
      %p630 = por %p628, %p629
      %p631 = scmp.ne.s32.totalorder %s623, %s625
      %p632 = scmp.eq.s32.totalorder %s90, 1
      %p633 = por %p631, %p632
      %p634 = scmp.ne.s32.totalorder %s625, %s626
      %p635 = scmp.eq.s32.totalorder %s90, 0
      %p636 = por %p634, %p635
      %p637 = scmp.ne.s32.totalorder %s625, %s626
      %p638 = scmp.eq.s32.totalorder %s91, 1
      %p639 = por %p637, %p638
      %p641 = scmp.ne.s32.totalorder %s626, %s640
      %p642 = scmp.eq.s32.totalorder %s91, 0
      %p643 = por %p641, %p642
      %s645 = sadd.s32 %s644, 1
      %p648 = scmp.eq.s32.totalorder %s85, 1
      %p649 = scmp.ne.s32.totalorder %s644, %s646
      %p650 = scmp.eq.s32.totalorder %s85, 0
      %p651 = por %p649, %p650
      %p652 = scmp.ne.s32.totalorder %s644, %s646
      %p653 = scmp.eq.s32.totalorder %s90, 1
      %p654 = por %p652, %p653
      %p655 = scmp.ne.s32.totalorder %s646, %s647
      %p656 = scmp.eq.s32.totalorder %s90, 0
      %p657 = por %p655, %p656
      %p658 = scmp.ne.s32.totalorder %s646, %s647
      %p659 = scmp.eq.s32.totalorder %s91, 1
      %p660 = por %p658, %p659
      %p662 = scmp.ne.s32.totalorder %s647, %s661
      %p663 = scmp.eq.s32.totalorder %s91, 0
      %p664 = por %p662, %p663
      %s666 = sadd.s32 %s665, 1
      %p669 = scmp.eq.s32.totalorder %s85, 1
      %p670 = scmp.ne.s32.totalorder %s665, %s667
      %p671 = scmp.eq.s32.totalorder %s85, 0
      %p672 = por %p670, %p671
      %p673 = scmp.ne.s32.totalorder %s665, %s667
      %p674 = scmp.eq.s32.totalorder %s90, 1
      %p675 = por %p673, %p674
      %p676 = scmp.ne.s32.totalorder %s667, %s668
      %p677 = scmp.eq.s32.totalorder %s90, 0
      %p678 = por %p676, %p677
      %p679 = scmp.ne.s32.totalorder %s667, %s668
      %p680 = scmp.eq.s32.totalorder %s91, 1
      %p681 = por %p679, %p680
      %p683 = scmp.ne.s32.totalorder %s668, %s682
      %p684 = scmp.eq.s32.totalorder %s91, 0
      %p685 = por %p683, %p684
      %s687 = sadd.s32 %s686, 1
      %p690 = scmp.eq.s32.totalorder %s85, 1
      %p691 = scmp.ne.s32.totalorder %s686, %s688
      %p692 = scmp.eq.s32.totalorder %s85, 0
      %p693 = por %p691, %p692
      %p694 = scmp.ne.s32.totalorder %s686, %s688
      %p695 = scmp.eq.s32.totalorder %s90, 1
      %p696 = por %p694, %p695
      %p697 = scmp.ne.s32.totalorder %s688, %s689
      %p698 = scmp.eq.s32.totalorder %s90, 0
      %p699 = por %p697, %p698
      %p700 = scmp.ne.s32.totalorder %s688, %s689
      %p701 = scmp.eq.s32.totalorder %s91, 1
      %p702 = por %p700, %p701
      %p704 = scmp.ne.s32.totalorder %s689, %s703
      %p705 = scmp.eq.s32.totalorder %s91, 0
      %p706 = por %p704, %p705
      %s708 = sadd.s32 %s707, 1
      %p711 = scmp.eq.s32.totalorder %s85, 1
      %p712 = scmp.ne.s32.totalorder %s707, %s709
      %p713 = scmp.eq.s32.totalorder %s85, 0
      %p714 = por %p712, %p713
      %p715 = scmp.ne.s32.totalorder %s707, %s709
      %p716 = scmp.eq.s32.totalorder %s90, 1
      %p717 = por %p715, %p716
      %p718 = scmp.ne.s32.totalorder %s709, %s710
      %p719 = scmp.eq.s32.totalorder %s90, 0
      %p720 = por %p718, %p719
      %p721 = scmp.ne.s32.totalorder %s709, %s710
      %p722 = scmp.eq.s32.totalorder %s91, 1
      %p723 = por %p721, %p722
      %p725 = scmp.ne.s32.totalorder %s710, %s724
      %p726 = scmp.eq.s32.totalorder %s91, 0
      %p727 = por %p725, %p726
      %s729 = sadd.s32 %s728, 1
      %p732 = scmp.eq.s32.totalorder %s85, 1
      %p733 = scmp.ne.s32.totalorder %s728, %s730
      %p734 = scmp.eq.s32.totalorder %s85, 0
      %p735 = por %p733, %p734
      %p736 = scmp.ne.s32.totalorder %s728, %s730
      %p737 = scmp.eq.s32.totalorder %s90, 1
      %p738 = por %p736, %p737
      %p739 = scmp.ne.s32.totalorder %s730, %s731
      %p740 = scmp.eq.s32.totalorder %s90, 0
      %p741 = por %p739, %p740
      %p742 = scmp.ne.s32.totalorder %s730, %s731
      %p743 = scmp.eq.s32.totalorder %s91, 1
      %p744 = por %p742, %p743
      %p746 = scmp.ne.s32.totalorder %s731, %s745
      %p747 = scmp.eq.s32.totalorder %s91, 0
      %p748 = por %p746, %p747
      %s750 = sadd.s32 %s749, 1
      %p753 = scmp.eq.s32.totalorder %s85, 1
      %p754 = scmp.ne.s32.totalorder %s749, %s751
      %p755 = scmp.eq.s32.totalorder %s85, 0
      %p756 = por %p754, %p755
      %p757 = scmp.ne.s32.totalorder %s749, %s751
      %p758 = scmp.eq.s32.totalorder %s90, 1
      %p759 = por %p757, %p758
      %p760 = scmp.ne.s32.totalorder %s751, %s752
      %p761 = scmp.eq.s32.totalorder %s90, 0
      %p762 = por %p760, %p761
      %p763 = scmp.ne.s32.totalorder %s751, %s752
      %p764 = scmp.eq.s32.totalorder %s91, 1
      %p765 = por %p763, %p764
      %p767 = scmp.ne.s32.totalorder %s752, %s766
      %p768 = scmp.eq.s32.totalorder %s91, 0
      %p769 = por %p767, %p768
      %s771 = sadd.s32 %s770, 1
      %p774 = scmp.eq.s32.totalorder %s85, 1
      %p775 = scmp.ne.s32.totalorder %s770, %s772
      %p776 = scmp.eq.s32.totalorder %s85, 0
      %p777 = por %p775, %p776
      %p778 = scmp.ne.s32.totalorder %s770, %s772
      %p779 = scmp.eq.s32.totalorder %s90, 1
      %p780 = por %p778, %p779
      %p781 = scmp.ne.s32.totalorder %s772, %s773
      %p782 = scmp.eq.s32.totalorder %s90, 0
      %p783 = por %p781, %p782
      %p784 = scmp.ne.s32.totalorder %s772, %s773
      %p785 = scmp.eq.s32.totalorder %s91, 1
      %p786 = por %p784, %p785
      %p788 = scmp.ne.s32.totalorder %s773, %s787
      %p789 = scmp.eq.s32.totalorder %s91, 0
      %p790 = por %p788, %p789
      %s792 = sadd.s32 %s791, 1
      %p795 = scmp.eq.s32.totalorder %s85, 1
      %p796 = scmp.ne.s32.totalorder %s791, %s793
      %p797 = scmp.eq.s32.totalorder %s85, 0
      %p798 = por %p796, %p797
      %p799 = scmp.ne.s32.totalorder %s791, %s793
      %p800 = scmp.eq.s32.totalorder %s90, 1
      %p801 = por %p799, %p800
      %p802 = scmp.ne.s32.totalorder %s793, %s794
      %p803 = scmp.eq.s32.totalorder %s90, 0
      %p804 = por %p802, %p803
      %p805 = scmp.ne.s32.totalorder %s793, %s794
      %p806 = scmp.eq.s32.totalorder %s91, 1
      %p807 = por %p805, %p806
      %p809 = scmp.ne.s32.totalorder %s794, %s808
      %p810 = scmp.eq.s32.totalorder %s91, 0
      %p811 = por %p809, %p810
      %s812 = ssub.s32 %s85, %s92
      %p813 = scmp.eq.s32.totalorder %s812, 0
      %s815 = sadd.s32 %s814, 1
      %s816 = scalar_select %p813, %s814, %s815
      %p819 = pneg %p813
      %p820 = scmp.eq.s32.totalorder %s85, 1
      %p821 = por %p819, %p820
      %p822 = scmp.ne.s32.totalorder %s814, %s817
      %p823 = scmp.eq.s32.totalorder %s85, 0
      %p824 = por %p822, %p823
      %p825 = scmp.ne.s32.totalorder %s814, %s817
      %p826 = scmp.eq.s32.totalorder %s90, 1
      %p827 = por %p825, %p826
      %p828 = scmp.ne.s32.totalorder %s817, %s818
      %p829 = scmp.eq.s32.totalorder %s90, 0
      %p830 = por %p828, %p829
      %p831 = scmp.ne.s32.totalorder %s817, %s818
      %p832 = scmp.eq.s32.totalorder %s91, 1
      %p833 = por %p831, %p832
      %p835 = scmp.ne.s32.totalorder %s818, %s834
      %p836 = scmp.eq.s32.totalorder %s91, 0
      %p837 = por %p835, %p836
      %p838 = scmp.le.s32.totalorder 1, %s85
      %p839 = scmp.lt.s32.totalorder %s85, 3
      %p840 = pnand %p838, %p839
      %p841 = pneg %p840
      // Predicated region
      $region9: #{radar_hybrid_autoencoder.1} parent=5 // pred_check
        _
      $region10: #{radar_hybrid_autoencoder.1} parent=5 // pred_check_branch
        %843 = sbr.rel (%p840) target = $region12
      $region11: #{radar_hybrid_autoencoder.1} parent=5 // pred_region
        %s844 = ssub.s32 %s85, 1
        // Predicated region
        $region13: #{radar_hybrid_autoencoder.1} parent=11 // pred_check
          %p845 = pneg %p132
        $region14: #{radar_hybrid_autoencoder.1} parent=11 // pred_check_branch
          %847 = sbr.rel (%p845) target = $region16
        $region15: #{radar_hybrid_autoencoder.1} parent=11 // pred_region
          %849 = vsyncadd [#allocation3], 0
          %s850 = sshll.u32 %s3, 4
          %s851 = int_to_ptr.hbm [resolvable:$true] %s850
          %s852 = sshll.u32 [#allocation2], 4
          %s853 = int_to_ptr.vmem [resolvable:$true] %s852
          %858 = dma.hbm_to_vmem [thread:$0]  %s851, 73728, %s853, [#allocation3], 256, 256, 16
        $region16: #{radar_hybrid_autoencoder.1} parent=11 // pred_fallthru
          _
        // Predicated region
        $region17: #{radar_hybrid_autoencoder.1} parent=11 // pred_check
          %p859 = pneg %p153
        $region18: #{radar_hybrid_autoencoder.1} parent=11 // pred_check_branch
          %861 = sbr.rel (%p859) target = $region20
        $region19: #{radar_hybrid_autoencoder.1} parent=11 // pred_region
          %863 = vsyncadd [#allocation5], 0
          %s864 = sshll.u32 %s5, 4
          %s865 = int_to_ptr.hbm [resolvable:$true] %s864
          %s866 = sshll.u32 [#allocation4], 4
          %s867 = int_to_ptr.vmem [resolvable:$true] %s866
          %872 = dma.hbm_to_vmem [thread:$0]  %s865, 9216, %s867, [#allocation5], 128, 128, 8
        $region20: #{radar_hybrid_autoencoder.1} parent=11 // pred_fallthru
          _
        // Predicated region
        $region21: #{radar_hybrid_autoencoder.1} parent=11 // pred_check
          %p873 = pneg %p174
        $region22: #{radar_hybrid_autoencoder.1} parent=11 // pred_check_branch
          %875 = sbr.rel (%p873) target = $region24
        $region23: #{radar_hybrid_autoencoder.1} parent=11 // pred_region
          %877 = vsyncadd [#allocation5], 0
          %s878 = sshll.u32 %s7, 4
          %s879 = int_to_ptr.hbm [resolvable:$true] %s878
          %s880 = sshll.u32 [#allocation6], 4
          %s881 = int_to_ptr.vmem [resolvable:$true] %s880
          %886 = dma.hbm_to_vmem [thread:$0]  %s879, 2304, %s881, [#allocation5], 128, 128, 8
        $region24: #{radar_hybrid_autoencoder.1} parent=11 // pred_fallthru
          _
        // Predicated region
        $region25: #{radar_hybrid_autoencoder.1} parent=11 // pred_check
          %p887 = pneg %p195
        $region26: #{radar_hybrid_autoencoder.1} parent=11 // pred_check_branch
          %889 = sbr.rel (%p887) target = $region28
        $region27: #{radar_hybrid_autoencoder.1} parent=11 // pred_region
          _
        $region28: #{radar_hybrid_autoencoder.1} parent=11 // pred_fallthru
          _
        // Predicated region
        $region29: #{radar_hybrid_autoencoder.1} parent=11 // pred_check
          %p890 = pneg %p216
        $region30: #{radar_hybrid_autoencoder.1} parent=11 // pred_check_branch
          %892 = sbr.rel (%p890) target = $region32
        $region31: #{radar_hybrid_autoencoder.1} parent=11 // pred_region
          _
        $region32: #{radar_hybrid_autoencoder.1} parent=11 // pred_fallthru
          _
        // Predicated region
        $region33: #{radar_hybrid_autoencoder.1} parent=11 // pred_check
          %p893 = pneg %p237
        $region34: #{radar_hybrid_autoencoder.1} parent=11 // pred_check_branch
          %895 = sbr.rel (%p893) target = $region36
        $region35: #{radar_hybrid_autoencoder.1} parent=11 // pred_region
          _
        $region36: #{radar_hybrid_autoencoder.1} parent=11 // pred_fallthru
          _
        // Predicated region
        $region37: #{radar_hybrid_autoencoder.1} parent=11 // pred_check
          %p896 = pneg %p258
        $region38: #{radar_hybrid_autoencoder.1} parent=11 // pred_check_branch
          %898 = sbr.rel (%p896) target = $region40
        $region39: #{radar_hybrid_autoencoder.1} parent=11 // pred_region
          _
        $region40: #{radar_hybrid_autoencoder.1} parent=11 // pred_fallthru
          _
        // Predicated region
        $region41: #{radar_hybrid_autoencoder.1} parent=11 // pred_check
          %p899 = pneg %p279
        $region42: #{radar_hybrid_autoencoder.1} parent=11 // pred_check_branch
          %901 = sbr.rel (%p899) target = $region44
        $region43: #{radar_hybrid_autoencoder.1} parent=11 // pred_region
          %903 = vsyncadd [#allocation8], 0
          %s905 = sshll.u32 %s17, 4
          %s906 = int_to_ptr.hbm [resolvable:$true] %s905
          %s907 = sshll.u32 [#allocation7], 4
          %s908 = int_to_ptr.vmem [resolvable:$true] %s907
          %910 = dma.hbm_to_vmem [thread:$0]  %s906, 64, %s908, [#allocation8]
        $region44: #{radar_hybrid_autoencoder.1} parent=11 // pred_fallthru
          _
        // Predicated region
        $region45: #{radar_hybrid_autoencoder.1} parent=11 // pred_check
          %p911 = pneg %p300
        $region46: #{radar_hybrid_autoencoder.1} parent=11 // pred_check_branch
          %913 = sbr.rel (%p911) target = $region48
        $region47: #{radar_hybrid_autoencoder.1} parent=11 // pred_region
          %915 = vsyncadd [#allocation8], 0
          %s916 = sshll.u32 %s19, 4
          %s917 = int_to_ptr.hbm [resolvable:$true] %s916
          %s918 = sshll.u32 [#allocation9], 4
          %s919 = int_to_ptr.vmem [resolvable:$true] %s918
          %924 = dma.hbm_to_vmem [thread:$0]  %s917, 256, %s919, [#allocation8], 128, 128, 8
        $region48: #{radar_hybrid_autoencoder.1} parent=11 // pred_fallthru
          _
        // Predicated region
        $region49: #{radar_hybrid_autoencoder.1} parent=11 // pred_check
          %p925 = pneg %p321
        $region50: #{radar_hybrid_autoencoder.1} parent=11 // pred_check_branch
          %927 = sbr.rel (%p925) target = $region52
        $region51: #{radar_hybrid_autoencoder.1} parent=11 // pred_region
          %929 = vsyncadd [#allocation11], 0
          %s930 = sshll.u32 %s21, 4
          %s931 = int_to_ptr.hbm [resolvable:$true] %s930
          %s932 = sshll.u32 [#allocation10], 4
          %s933 = int_to_ptr.vmem [resolvable:$true] %s932
          %938 = dma.hbm_to_vmem [thread:$0]  %s931, 2048, %s933, [#allocation11], 256, 256, 16
        $region52: #{radar_hybrid_autoencoder.1} parent=11 // pred_fallthru
          _
        // Predicated region
        $region53: #{radar_hybrid_autoencoder.1} parent=11 // pred_check
          %p939 = pneg %p342
        $region54: #{radar_hybrid_autoencoder.1} parent=11 // pred_check_branch
          %941 = sbr.rel (%p939) target = $region56
        $region55: #{radar_hybrid_autoencoder.1} parent=11 // pred_region
          %943 = vsyncadd [#allocation11], 0
          %s945 = sshll.u32 %s23, 4
          %s946 = int_to_ptr.hbm [resolvable:$true] %s945
          %s947 = sshll.u32 [#allocation12], 4
          %s948 = int_to_ptr.vmem [resolvable:$true] %s947
          %950 = dma.hbm_to_vmem [thread:$0]  %s946, 64, %s948, [#allocation11]
        $region56: #{radar_hybrid_autoencoder.1} parent=11 // pred_fallthru
          _
        // Predicated region
        $region57: #{radar_hybrid_autoencoder.1} parent=11 // pred_check
          %p951 = pneg %p363
        $region58: #{radar_hybrid_autoencoder.1} parent=11 // pred_check_branch
          %953 = sbr.rel (%p951) target = $region60
        $region59: #{radar_hybrid_autoencoder.1} parent=11 // pred_region
          _
        $region60: #{radar_hybrid_autoencoder.1} parent=11 // pred_fallthru
          _
        // Predicated region
        $region61: #{radar_hybrid_autoencoder.1} parent=11 // pred_check
          %p954 = pneg %p384
        $region62: #{radar_hybrid_autoencoder.1} parent=11 // pred_check_branch
          %956 = sbr.rel (%p954) target = $region64
        $region63: #{radar_hybrid_autoencoder.1} parent=11 // pred_region
          %958 = vsyncadd [#allocation14], 0
          %s959 = sshll.u32 %s27, 4
          %s960 = int_to_ptr.hbm [resolvable:$true] %s959
          %s961 = sshll.u32 [#allocation13], 4
          %s962 = int_to_ptr.vmem [resolvable:$true] %s961
          %967 = dma.hbm_to_vmem [thread:$0]  %s960, 512, %s962, [#allocation14], 128, 128, 8
        $region64: #{radar_hybrid_autoencoder.1} parent=11 // pred_fallthru
          _
        // Predicated region
        $region65: #{radar_hybrid_autoencoder.1} parent=11 // pred_check
          %p968 = pneg %p405
        $region66: #{radar_hybrid_autoencoder.1} parent=11 // pred_check_branch
          %970 = sbr.rel (%p968) target = $region68
        $region67: #{radar_hybrid_autoencoder.1} parent=11 // pred_region
          _
        $region68: #{radar_hybrid_autoencoder.1} parent=11 // pred_fallthru
          _
        // Predicated region
        $region69: #{radar_hybrid_autoencoder.1} parent=11 // pred_check
          %p971 = pneg %p426
        $region70: #{radar_hybrid_autoencoder.1} parent=11 // pred_check_branch
          %973 = sbr.rel (%p971) target = $region72
        $region71: #{radar_hybrid_autoencoder.1} parent=11 // pred_region
          _
        $region72: #{radar_hybrid_autoencoder.1} parent=11 // pred_fallthru
          _
        // Predicated region
        $region73: #{radar_hybrid_autoencoder.1} parent=11 // pred_check
          %p974 = pneg %p447
        $region74: #{radar_hybrid_autoencoder.1} parent=11 // pred_check_branch
          %976 = sbr.rel (%p974) target = $region76
        $region75: #{radar_hybrid_autoencoder.1} parent=11 // pred_region
          _
        $region76: #{radar_hybrid_autoencoder.1} parent=11 // pred_fallthru
          _
        // Predicated region
        $region77: #{radar_hybrid_autoencoder.1} parent=11 // pred_check
          %p977 = pneg %p468
        $region78: #{radar_hybrid_autoencoder.1} parent=11 // pred_check_branch
          %979 = sbr.rel (%p977) target = $region80
        $region79: #{radar_hybrid_autoencoder.1} parent=11 // pred_region
          _
        $region80: #{radar_hybrid_autoencoder.1} parent=11 // pred_fallthru
          _
        // Predicated region
        $region81: #{radar_hybrid_autoencoder.1} parent=11 // pred_check
          %p980 = pneg %p489
        $region82: #{radar_hybrid_autoencoder.1} parent=11 // pred_check_branch
          %982 = sbr.rel (%p980) target = $region84
        $region83: #{radar_hybrid_autoencoder.1} parent=11 // pred_region
          _
        $region84: #{radar_hybrid_autoencoder.1} parent=11 // pred_fallthru
          _
        // Predicated region
        $region85: #{radar_hybrid_autoencoder.1} parent=11 // pred_check
          %p983 = pneg %p510
        $region86: #{radar_hybrid_autoencoder.1} parent=11 // pred_check_branch
          %985 = sbr.rel (%p983) target = $region88
        $region87: #{radar_hybrid_autoencoder.1} parent=11 // pred_region
          _
        $region88: #{radar_hybrid_autoencoder.1} parent=11 // pred_fallthru
          _
        // Predicated region
        $region89: #{radar_hybrid_autoencoder.1} parent=11 // pred_check
          %p986 = pneg %p531
        $region90: #{radar_hybrid_autoencoder.1} parent=11 // pred_check_branch
          %988 = sbr.rel (%p986) target = $region92
        $region91: #{radar_hybrid_autoencoder.1} parent=11 // pred_region
          %990 = vsyncadd [#allocation14], 0
          %s991 = sshll.u32 %s41, 4
          %s992 = int_to_ptr.hbm [resolvable:$true] %s991
          %s993 = sshll.u32 [#allocation15], 4
          %s994 = int_to_ptr.vmem [resolvable:$true] %s993
          %999 = dma.hbm_to_vmem [thread:$0]  %s992, 4096, %s994, [#allocation14], 256, 256, 16
        $region92: #{radar_hybrid_autoencoder.1} parent=11 // pred_fallthru
          _
        // Predicated region
        $region93: #{radar_hybrid_autoencoder.1} parent=11 // pred_check
          %p1000 = pneg %p552
        $region94: #{radar_hybrid_autoencoder.1} parent=11 // pred_check_branch
          %1002 = sbr.rel (%p1000) target = $region96
        $region95: #{radar_hybrid_autoencoder.1} parent=11 // pred_region
          %1004 = vsyncadd [#allocation17], 0
          %s1006 = sshll.u32 %s43, 4
          %s1007 = int_to_ptr.hbm [resolvable:$true] %s1006
          %s1008 = sshll.u32 [#allocation16], 4
          %s1009 = int_to_ptr.vmem [resolvable:$true] %s1008
          %1011 = dma.hbm_to_vmem [thread:$0]  %s1007, 32, %s1009, [#allocation17]
        $region96: #{radar_hybrid_autoencoder.1} parent=11 // pred_fallthru
          _
        // Predicated region
        $region97: #{radar_hybrid_autoencoder.1} parent=11 // pred_check
          %p1012 = pneg %p573
        $region98: #{radar_hybrid_autoencoder.1} parent=11 // pred_check_branch
          %1014 = sbr.rel (%p1012) target = $region100
        $region99: #{radar_hybrid_autoencoder.1} parent=11 // pred_region
          %1016 = vsyncadd [#allocation17], 0
          %s1017 = sshll.u32 %s45, 4
          %s1018 = int_to_ptr.hbm [resolvable:$true] %s1017
          %s1019 = sshll.u32 [#allocation18], 4
          %s1020 = int_to_ptr.vmem [resolvable:$true] %s1019
          %1025 = dma.hbm_to_vmem [thread:$0]  %s1018, 4096, %s1020, [#allocation17], 128, 128, 8
        $region100: #{radar_hybrid_autoencoder.1} parent=11 // pred_fallthru
          _
        // Predicated region
        $region101: #{radar_hybrid_autoencoder.1} parent=11 // pred_check
          %p1026 = pneg %p594
        $region102: #{radar_hybrid_autoencoder.1} parent=11 // pred_check_branch
          %1028 = sbr.rel (%p1026) target = $region104
        $region103: #{radar_hybrid_autoencoder.1} parent=11 // pred_region
          %1030 = vsyncadd [#allocation20], 0
          %s1032 = sshll.u32 %s47, 4
          %s1033 = int_to_ptr.hbm [resolvable:$true] %s1032
          %s1034 = sshll.u32 [#allocation19], 4
          %s1035 = int_to_ptr.vmem [resolvable:$true] %s1034
          %1037 = dma.hbm_to_vmem [thread:$0]  %s1033, 16, %s1035, [#allocation20]
        $region104: #{radar_hybrid_autoencoder.1} parent=11 // pred_fallthru
          _
        // Predicated region
        $region105: #{radar_hybrid_autoencoder.1} parent=11 // pred_check
          %p1038 = pneg %p615
        $region106: #{radar_hybrid_autoencoder.1} parent=11 // pred_check_branch
          %1040 = sbr.rel (%p1038) target = $region108
        $region107: #{radar_hybrid_autoencoder.1} parent=11 // pred_region
          %1042 = vsyncadd [#allocation20], 0
          %s1043 = sshll.u32 %s49, 4
          %s1044 = int_to_ptr.hbm [resolvable:$true] %s1043
          %s1045 = sshll.u32 [#allocation21], 4
          %s1046 = int_to_ptr.vmem [resolvable:$true] %s1045
          %1051 = dma.hbm_to_vmem [thread:$0]  %s1044, 4096, %s1046, [#allocation20], 256, 256, 16
        $region108: #{radar_hybrid_autoencoder.1} parent=11 // pred_fallthru
          _
        // Predicated region
        $region109: #{radar_hybrid_autoencoder.1} parent=11 // pred_check
          %p1052 = pneg %p636
        $region110: #{radar_hybrid_autoencoder.1} parent=11 // pred_check_branch
          %1054 = sbr.rel (%p1052) target = $region112
        $region111: #{radar_hybrid_autoencoder.1} parent=11 // pred_region
          %1056 = vsyncadd [#allocation23], 0
          %s1058 = sshll.u32 %s51, 4
          %s1059 = int_to_ptr.hbm [resolvable:$true] %s1058
          %s1060 = sshll.u32 [#allocation22], 4
          %s1061 = int_to_ptr.vmem [resolvable:$true] %s1060
          %1063 = dma.hbm_to_vmem [thread:$0]  %s1059, 32, %s1061, [#allocation23]
        $region112: #{radar_hybrid_autoencoder.1} parent=11 // pred_fallthru
          _
        // Predicated region
        $region113: #{radar_hybrid_autoencoder.1} parent=11 // pred_check
          %p1064 = pneg %p657
        $region114: #{radar_hybrid_autoencoder.1} parent=11 // pred_check_branch
          %1066 = sbr.rel (%p1064) target = $region116
        $region115: #{radar_hybrid_autoencoder.1} parent=11 // pred_region
          %1068 = vsyncadd [#allocation23], 0
          %s1069 = sshll.u32 %s53, 4
          %s1070 = int_to_ptr.hbm [resolvable:$true] %s1069
          %s1071 = sshll.u32 [#allocation24], 4
          %s1072 = int_to_ptr.vmem [resolvable:$true] %s1071
          %1077 = dma.hbm_to_vmem [thread:$0]  %s1070, 4096, %s1072, [#allocation23], 128, 128, 8
        $region116: #{radar_hybrid_autoencoder.1} parent=11 // pred_fallthru
          _
        // Predicated region
        $region117: #{radar_hybrid_autoencoder.1} parent=11 // pred_check
          %p1078 = pneg %p678
        $region118: #{radar_hybrid_autoencoder.1} parent=11 // pred_check_branch
          %1080 = sbr.rel (%p1078) target = $region120
        $region119: #{radar_hybrid_autoencoder.1} parent=11 // pred_region
          %1082 = vsyncadd [#allocation26], 0
          %s1084 = sshll.u32 %s55, 4
          %s1085 = int_to_ptr.hbm [resolvable:$true] %s1084
          %s1086 = sshll.u32 [#allocation25], 4
          %s1087 = int_to_ptr.vmem [resolvable:$true] %s1086
          %1089 = dma.hbm_to_vmem [thread:$0]  %s1085, 16, %s1087, [#allocation26]
        $region120: #{radar_hybrid_autoencoder.1} parent=11 // pred_fallthru
          _
        // Predicated region
        $region121: #{radar_hybrid_autoencoder.1} parent=11 // pred_check
          %p1090 = pneg %p699
        $region122: #{radar_hybrid_autoencoder.1} parent=11 // pred_check_branch
          %1092 = sbr.rel (%p1090) target = $region124
        $region123: #{radar_hybrid_autoencoder.1} parent=11 // pred_region
          %1094 = vsyncadd [#allocation26], 0
          %s1095 = sshll.u32 %s57, 4
          %s1096 = int_to_ptr.hbm [resolvable:$true] %s1095
          %s1097 = sshll.u32 [#allocation27], 4
          %s1098 = int_to_ptr.vmem [resolvable:$true] %s1097
          %1103 = dma.hbm_to_vmem [thread:$0]  %s1096, 2304, %s1098, [#allocation26], 128, 128, 8
        $region124: #{radar_hybrid_autoencoder.1} parent=11 // pred_fallthru
          _
        // Predicated region
        $region125: #{radar_hybrid_autoencoder.1} parent=11 // pred_check
          %p1104 = pneg %p720
        $region126: #{radar_hybrid_autoencoder.1} parent=11 // pred_check_branch
          %1106 = sbr.rel (%p1104) target = $region128
        $region127: #{radar_hybrid_autoencoder.1} parent=11 // pred_region
          _
        $region128: #{radar_hybrid_autoencoder.1} parent=11 // pred_fallthru
          _
        // Predicated region
        $region129: #{radar_hybrid_autoencoder.1} parent=11 // pred_check
          %p1107 = pneg %p741
        $region130: #{radar_hybrid_autoencoder.1} parent=11 // pred_check_branch
          %1109 = sbr.rel (%p1107) target = $region132
        $region131: #{radar_hybrid_autoencoder.1} parent=11 // pred_region
          %1111 = vsyncadd [#allocation29], 0
          %s1112 = sshll.u32 %s61, 4
          %s1113 = int_to_ptr.hbm [resolvable:$true] %s1112
          %s1114 = sshll.u32 [#allocation28], 4
          %s1115 = int_to_ptr.vmem [resolvable:$true] %s1114
          %1120 = dma.hbm_to_vmem [thread:$0]  %s1113, 1152, %s1115, [#allocation29], 128, 128, 8
        $region132: #{radar_hybrid_autoencoder.1} parent=11 // pred_fallthru
          _
        // Predicated region
        $region133: #{radar_hybrid_autoencoder.1} parent=11 // pred_check
          %p1121 = pneg %p762
        $region134: #{radar_hybrid_autoencoder.1} parent=11 // pred_check_branch
          %1123 = sbr.rel (%p1121) target = $region136
        $region135: #{radar_hybrid_autoencoder.1} parent=11 // pred_region
          _
        $region136: #{radar_hybrid_autoencoder.1} parent=11 // pred_fallthru
          _
        // Predicated region
        $region137: #{radar_hybrid_autoencoder.1} parent=11 // pred_check
          %p1124 = pneg %p783
        $region138: #{radar_hybrid_autoencoder.1} parent=11 // pred_check_branch
          %1126 = sbr.rel (%p1124) target = $region140
        $region139: #{radar_hybrid_autoencoder.1} parent=11 // pred_region
          _
        $region140: #{radar_hybrid_autoencoder.1} parent=11 // pred_fallthru
          _
        // Predicated region
        $region141: #{radar_hybrid_autoencoder.1} parent=11 // pred_check
          %p1127 = pneg %p804
        $region142: #{radar_hybrid_autoencoder.1} parent=11 // pred_check_branch
          %1129 = sbr.rel (%p1127) target = $region144
        $region143: #{radar_hybrid_autoencoder.1} parent=11 // pred_region
          _
        $region144: #{radar_hybrid_autoencoder.1} parent=11 // pred_fallthru
          _
      $region12: #{radar_hybrid_autoencoder.1} parent=5 // pred_fallthru
        _
      %p1130 = scmp.lt.s32.totalorder %s85, 2
      // Predicated region
      $region145: #{radar_hybrid_autoencoder.1} parent=5 // pred_check
        %p1131 = pneg %p1130
      $region146: #{radar_hybrid_autoencoder.1} parent=5 // pred_check_branch
        %1133 = sbr.rel (%p1131) target = $region148
      $region147: #{radar_hybrid_autoencoder.1} parent=5 // pred_region
        // Predicated region
        $region149: #{radar_hybrid_autoencoder.1} parent=147 // pred_check
          %p1134 = pneg %p105
        $region150: #{radar_hybrid_autoencoder.1} parent=147 // pred_check_branch
          %1136 = sbr.rel (%p1134) target = $region152
        $region151: #{radar_hybrid_autoencoder.1} parent=147 // pred_region
          %p1137 = scmp.lt.s32.totalorder %s85, 1
          %s1138 = scalar_select %p1137, %s85, 1
          %s1139 = smul.addr %s1138, 2
          %s1140 = smul.addr %s1139, 2
          %s1141 = scalar_lea.vmem %s1, %s1140
        $region152: #{radar_hybrid_autoencoder.1} parent=147 // pred_fallthru
          _
      $region148: #{radar_hybrid_autoencoder.1} parent=5 // pred_fallthru
        _
      %p1142 = scmp.le.s32.totalorder 1, %s85
      %p1143 = scmp.lt.s32.totalorder %s85, 3
      %p1144 = pnand %p1142, %p1143
      %p1145 = pneg %p1144
      // Predicated region
      $region153: #{radar_hybrid_autoencoder.1} parent=5 // pred_check
        _
      $region154: #{radar_hybrid_autoencoder.1} parent=5 // pred_check_branch
        %1147 = sbr.rel (%p1144) target = $region156
      $region155: #{radar_hybrid_autoencoder.1} parent=5 // pred_region
        %s1148 = ssub.s32 %s85, 1
        // Predicated region
        $region157: #{radar_hybrid_autoencoder.1} parent=155 // pred_check
          %p1149 = pneg %p132
        $region158: #{radar_hybrid_autoencoder.1} parent=155 // pred_check_branch
          %1151 = sbr.rel (%p1149) target = $region160
        $region159: #{radar_hybrid_autoencoder.1} parent=155 // pred_region
          %1153 = dma.done [#allocation3], 73728
        $region160: #{radar_hybrid_autoencoder.1} parent=155 // pred_fallthru
          _
        // Predicated region
        $region161: #{radar_hybrid_autoencoder.1} parent=155 // pred_check
          %p1154 = pneg %p153
        $region162: #{radar_hybrid_autoencoder.1} parent=155 // pred_check_branch
          %1156 = sbr.rel (%p1154) target = $region164
        $region163: #{radar_hybrid_autoencoder.1} parent=155 // pred_region
          %1158 = dma.done [#allocation5], 9216
        $region164: #{radar_hybrid_autoencoder.1} parent=155 // pred_fallthru
          _
        // Predicated region
        $region165: #{radar_hybrid_autoencoder.1} parent=155 // pred_check
          %p1159 = pneg %p174
        $region166: #{radar_hybrid_autoencoder.1} parent=155 // pred_check_branch
          %1161 = sbr.rel (%p1159) target = $region168
        $region167: #{radar_hybrid_autoencoder.1} parent=155 // pred_region
          %1163 = dma.done [#allocation5], 2304
        $region168: #{radar_hybrid_autoencoder.1} parent=155 // pred_fallthru
          _
        // Predicated region
        $region169: #{radar_hybrid_autoencoder.1} parent=155 // pred_check
          %p1164 = pneg %p279
        $region170: #{radar_hybrid_autoencoder.1} parent=155 // pred_check_branch
          %1166 = sbr.rel (%p1164) target = $region172
        $region171: #{radar_hybrid_autoencoder.1} parent=155 // pred_region
          %1168 = dma.done [#allocation8], 64
        $region172: #{radar_hybrid_autoencoder.1} parent=155 // pred_fallthru
          _
        // Predicated region
        $region173: #{radar_hybrid_autoencoder.1} parent=155 // pred_check
          %p1169 = pneg %p300
        $region174: #{radar_hybrid_autoencoder.1} parent=155 // pred_check_branch
          %1171 = sbr.rel (%p1169) target = $region176
        $region175: #{radar_hybrid_autoencoder.1} parent=155 // pred_region
          %1173 = dma.done [#allocation8], 256
        $region176: #{radar_hybrid_autoencoder.1} parent=155 // pred_fallthru
          _
        // Predicated region
        $region177: #{radar_hybrid_autoencoder.1} parent=155 // pred_check
          %p1174 = pneg %p321
        $region178: #{radar_hybrid_autoencoder.1} parent=155 // pred_check_branch
          %1176 = sbr.rel (%p1174) target = $region180
        $region179: #{radar_hybrid_autoencoder.1} parent=155 // pred_region
          %1178 = dma.done [#allocation11], 2048
        $region180: #{radar_hybrid_autoencoder.1} parent=155 // pred_fallthru
          _
        // Predicated region
        $region181: #{radar_hybrid_autoencoder.1} parent=155 // pred_check
          %p1179 = pneg %p342
        $region182: #{radar_hybrid_autoencoder.1} parent=155 // pred_check_branch
          %1181 = sbr.rel (%p1179) target = $region184
        $region183: #{radar_hybrid_autoencoder.1} parent=155 // pred_region
          %1183 = dma.done [#allocation11], 64
        $region184: #{radar_hybrid_autoencoder.1} parent=155 // pred_fallthru
          _
        // Predicated region
        $region185: #{radar_hybrid_autoencoder.1} parent=155 // pred_check
          %p1184 = pneg %p384
        $region186: #{radar_hybrid_autoencoder.1} parent=155 // pred_check_branch
          %1186 = sbr.rel (%p1184) target = $region188
        $region187: #{radar_hybrid_autoencoder.1} parent=155 // pred_region
          %1188 = dma.done [#allocation14], 512
        $region188: #{radar_hybrid_autoencoder.1} parent=155 // pred_fallthru
          _
        // Predicated region
        $region189: #{radar_hybrid_autoencoder.1} parent=155 // pred_check
          %p1189 = pneg %p531
        $region190: #{radar_hybrid_autoencoder.1} parent=155 // pred_check_branch
          %1191 = sbr.rel (%p1189) target = $region192
        $region191: #{radar_hybrid_autoencoder.1} parent=155 // pred_region
          %1193 = dma.done [#allocation14], 4096
        $region192: #{radar_hybrid_autoencoder.1} parent=155 // pred_fallthru
          _
        // Predicated region
        $region193: #{radar_hybrid_autoencoder.1} parent=155 // pred_check
          %p1194 = pneg %p552
        $region194: #{radar_hybrid_autoencoder.1} parent=155 // pred_check_branch
          %1196 = sbr.rel (%p1194) target = $region196
        $region195: #{radar_hybrid_autoencoder.1} parent=155 // pred_region
          %1198 = dma.done [#allocation17], 32
        $region196: #{radar_hybrid_autoencoder.1} parent=155 // pred_fallthru
          _
        // Predicated region
        $region197: #{radar_hybrid_autoencoder.1} parent=155 // pred_check
          %p1199 = pneg %p573
        $region198: #{radar_hybrid_autoencoder.1} parent=155 // pred_check_branch
          %1201 = sbr.rel (%p1199) target = $region200
        $region199: #{radar_hybrid_autoencoder.1} parent=155 // pred_region
          %1203 = dma.done [#allocation17], 4096
        $region200: #{radar_hybrid_autoencoder.1} parent=155 // pred_fallthru
          _
        // Predicated region
        $region201: #{radar_hybrid_autoencoder.1} parent=155 // pred_check
          %p1204 = pneg %p594
        $region202: #{radar_hybrid_autoencoder.1} parent=155 // pred_check_branch
          %1206 = sbr.rel (%p1204) target = $region204
        $region203: #{radar_hybrid_autoencoder.1} parent=155 // pred_region
          %1208 = dma.done [#allocation20], 16
        $region204: #{radar_hybrid_autoencoder.1} parent=155 // pred_fallthru
          _
        // Predicated region
        $region205: #{radar_hybrid_autoencoder.1} parent=155 // pred_check
          %p1209 = pneg %p615
        $region206: #{radar_hybrid_autoencoder.1} parent=155 // pred_check_branch
          %1211 = sbr.rel (%p1209) target = $region208
        $region207: #{radar_hybrid_autoencoder.1} parent=155 // pred_region
          %1213 = dma.done [#allocation20], 4096
        $region208: #{radar_hybrid_autoencoder.1} parent=155 // pred_fallthru
          _
        // Predicated region
        $region209: #{radar_hybrid_autoencoder.1} parent=155 // pred_check
          %p1214 = pneg %p636
        $region210: #{radar_hybrid_autoencoder.1} parent=155 // pred_check_branch
          %1216 = sbr.rel (%p1214) target = $region212
        $region211: #{radar_hybrid_autoencoder.1} parent=155 // pred_region
          %1218 = dma.done [#allocation23], 32
        $region212: #{radar_hybrid_autoencoder.1} parent=155 // pred_fallthru
          _
        // Predicated region
        $region213: #{radar_hybrid_autoencoder.1} parent=155 // pred_check
          %p1219 = pneg %p657
        $region214: #{radar_hybrid_autoencoder.1} parent=155 // pred_check_branch
          %1221 = sbr.rel (%p1219) target = $region216
        $region215: #{radar_hybrid_autoencoder.1} parent=155 // pred_region
          %1223 = dma.done [#allocation23], 4096
        $region216: #{radar_hybrid_autoencoder.1} parent=155 // pred_fallthru
          _
        // Predicated region
        $region217: #{radar_hybrid_autoencoder.1} parent=155 // pred_check
          %p1224 = pneg %p678
        $region218: #{radar_hybrid_autoencoder.1} parent=155 // pred_check_branch
          %1226 = sbr.rel (%p1224) target = $region220
        $region219: #{radar_hybrid_autoencoder.1} parent=155 // pred_region
          %1228 = dma.done [#allocation26], 16
        $region220: #{radar_hybrid_autoencoder.1} parent=155 // pred_fallthru
          _
        // Predicated region
        $region221: #{radar_hybrid_autoencoder.1} parent=155 // pred_check
          %p1229 = pneg %p699
        $region222: #{radar_hybrid_autoencoder.1} parent=155 // pred_check_branch
          %1231 = sbr.rel (%p1229) target = $region224
        $region223: #{radar_hybrid_autoencoder.1} parent=155 // pred_region
          %1233 = dma.done [#allocation26], 2304
        $region224: #{radar_hybrid_autoencoder.1} parent=155 // pred_fallthru
          _
        // Predicated region
        $region225: #{radar_hybrid_autoencoder.1} parent=155 // pred_check
          %p1234 = pneg %p741
        $region226: #{radar_hybrid_autoencoder.1} parent=155 // pred_check_branch
          %1236 = sbr.rel (%p1234) target = $region228
        $region227: #{radar_hybrid_autoencoder.1} parent=155 // pred_region
          %1238 = dma.done [#allocation29], 1152
        $region228: #{radar_hybrid_autoencoder.1} parent=155 // pred_fallthru
          _
        %p1239 = scmp.lt.s32.totalorder %s90, 1
        %s1240 = scalar_select %p1239, %s90, 1
        %s1241 = smul.addr %s1240, 2
        %s1242 = smul.addr %s1241, 2
        %s1243 = scalar_lea.vmem %s1, %s1242
        %p1244 = pneg %p111
        %p1245 = pneg %p108
        %p1246 = pneg %p132
        %p1247 = pneg %p129
        %p1248 = pneg %p153
        %p1249 = pneg %p150
        %p1250 = pneg %p174
        %p1251 = pneg %p171
        %p1252 = pneg %p195
        %p1253 = pneg %p192
        %p1254 = pneg %p216
        %p1255 = pneg %p213
        %p1256 = pneg %p237
        %p1257 = pneg %p234
        %p1258 = pneg %p258
        %p1259 = pneg %p255
        %p1260 = pneg %p279
        %p1261 = pneg %p276
        %p1262 = pneg %p300
        %p1263 = pneg %p297
        %p1264 = pneg %p321
        %p1265 = pneg %p318
        %p1266 = pneg %p342
        %p1267 = pneg %p339
        %p1268 = pneg %p363
        %p1269 = pneg %p360
        %p1270 = pneg %p384
        %p1271 = pneg %p381
        %p1272 = pneg %p405
        %p1273 = pneg %p402
        %p1274 = pneg %p426
        %p1275 = pneg %p423
        %p1276 = pneg %p447
        %p1277 = pneg %p444
        %p1278 = pneg %p468
        %p1279 = pneg %p465
        %p1280 = pneg %p489
        %p1281 = pneg %p486
        %p1282 = pneg %p510
        %p1283 = pneg %p507
        %p1284 = pneg %p531
        %p1285 = pneg %p528
        %p1286 = pneg %p552
        %p1287 = pneg %p549
        %p1288 = pneg %p573
        %p1289 = pneg %p570
        %p1290 = pneg %p594
        %p1291 = pneg %p591
        %p1292 = pneg %p615
        %p1293 = pneg %p612
        %p1294 = pneg %p636
        %p1295 = pneg %p633
        %p1296 = pneg %p657
        %p1297 = pneg %p654
        %p1298 = pneg %p678
        %p1299 = pneg %p675
        %p1300 = pneg %p699
        %p1301 = pneg %p696
        %p1302 = pneg %p720
        %p1303 = pneg %p717
        %p1304 = pneg %p741
        %p1305 = pneg %p738
        %p1306 = pneg %p762
        %p1307 = pneg %p759
        %p1308 = pneg %p783
        %p1309 = pneg %p780
        %p1310 = pneg %p804
        %p1311 = pneg %p801
        %p1312 = pneg %p830
        %p1313 = pneg %p827
        %p1314 = scmp.lt.s32.totalorder %s90, 1
        %s1315 = scalar_select %p1314, %s90, 1
        %s1316 = smul.addr %s1315, 2
        %s1317 = smul.addr %s1316, 2
        %s1318 = scalar_lea.vmem %s69, %s1317
        %p1319 = scmp.lt.s32.totalorder %s90, 1
        %s1320 = scalar_select %p1319, %s90, 1
        %s1321 = smul.addr %s1320, 2
        %s1322 = smul.addr %s1321, 2
        %s1323 = scalar_lea.vmem %s1, %s1322
        %p1324 = scmp.lt.s32.totalorder %s90, 1
        %s1325 = scalar_select %p1324, %s90, 1
        %s1326 = smul.addr %s1325, 2
        %s1327 = smul.addr %s1326, 2
        %s1328 = scalar_lea.vmem %s69, %s1327
        %v1329 = vld [vmem:[%s1323] sm:$0xf]
        %v1330 = vld [vmem:[#allocation2] sm:$0xff]
        %v1331 = vld [vmem:[#allocation2 + $0x8] sm:$0xff]
        %v1332 = vld [vmem:[#allocation2 + $0x10] sm:$0xff]
        %v1333 = vld [vmem:[#allocation2 + $0x18] sm:$0xff]
        %v1334 = vld [vmem:[#allocation2 + $0x20] sm:$0xff]
        %v1335 = vld [vmem:[#allocation2 + $0x28] sm:$0xff]
        %v1336 = vld [vmem:[#allocation2 + $0x30] sm:$0xff]
        %v1337 = vld [vmem:[#allocation2 + $0x38] sm:$0xff]
        %v1338 = vld [vmem:[#allocation2 + $0x40] sm:$0xff]
        %v1339 = vld [vmem:[#allocation2 + $0x48] sm:$0xff]
        %v1340 = vld [vmem:[#allocation2 + $0x50] sm:$0xff]
        %v1341 = vld [vmem:[#allocation2 + $0x58] sm:$0xff]
        %v1342 = vld [vmem:[#allocation2 + $0x60] sm:$0xff]
        %v1343 = vld [vmem:[#allocation2 + $0x68] sm:$0xff]
        %v1344 = vld [vmem:[#allocation2 + $0x70] sm:$0xff]
        %v1345 = vld [vmem:[#allocation2 + $0x78] sm:$0xff]
        %v1346 = vld [vmem:[#allocation2 + $0x80] sm:$0xff]
        %v1347 = vld [vmem:[#allocation2 + $0x88] sm:$0xff]
        %v1348 = vld [vmem:[#allocation2 + $0x90] sm:$0xff]
        %v1349 = vld [vmem:[#allocation2 + $0x98] sm:$0xff]
        %v1350 = vld [vmem:[#allocation2 + $0xa0] sm:$0xff]
        %v1351 = vld [vmem:[#allocation2 + $0xa8] sm:$0xff]
        %v1352 = vld [vmem:[#allocation2 + $0xb0] sm:$0xff]
        %v1353 = vld [vmem:[#allocation2 + $0xb8] sm:$0xff]
        %v1354 = vld [vmem:[#allocation2 + $0xc0] sm:$0xff]
        %v1355 = vld [vmem:[#allocation2 + $0xc8] sm:$0xff]
        %v1356 = vld [vmem:[#allocation2 + $0xd0] sm:$0xff]
        %v1357 = vld [vmem:[#allocation2 + $0xd8] sm:$0xff]
        %v1358 = vld [vmem:[#allocation2 + $0xe0] sm:$0xff]
        %v1359 = vld [vmem:[#allocation2 + $0xe8] sm:$0xff]
        %v1360 = vld [vmem:[#allocation2 + $0xf0] sm:$0xff]
        %v1361 = vld [vmem:[#allocation2 + $0xf8] sm:$0xff]
        %v1362 = vld [vmem:[#allocation2 + $0x100] sm:$0xff]
        %v1363 = vld [vmem:[#allocation2 + $0x108] sm:$0xff]
        %v1364 = vld [vmem:[#allocation2 + $0x110] sm:$0xff]
        %v1365 = vld [vmem:[#allocation2 + $0x118] sm:$0xff]
        %v1366 = vld [vmem:[#allocation2 + $0x120] sm:$0xff]
        %v1367 = vld [vmem:[#allocation2 + $0x128] sm:$0xff]
        %v1368 = vld [vmem:[#allocation2 + $0x130] sm:$0xff]
        %v1369 = vld [vmem:[#allocation2 + $0x138] sm:$0xff]
        %v1370 = vld [vmem:[#allocation2 + $0x140] sm:$0xff]
        %v1371 = vld [vmem:[#allocation2 + $0x148] sm:$0xff]
        %v1372 = vld [vmem:[#allocation2 + $0x150] sm:$0xff]
        %v1373 = vld [vmem:[#allocation2 + $0x158] sm:$0xff]
        %v1374 = vld [vmem:[#allocation2 + $0x160] sm:$0xff]
        %v1375 = vld [vmem:[#allocation2 + $0x168] sm:$0xff]
        %v1376 = vld [vmem:[#allocation2 + $0x170] sm:$0xff]
        %v1377 = vld [vmem:[#allocation2 + $0x178] sm:$0xff]
        %v1378 = vld [vmem:[#allocation2 + $0x180] sm:$0xff]
        %v1379 = vld [vmem:[#allocation2 + $0x188] sm:$0xff]
        %v1380 = vld [vmem:[#allocation2 + $0x190] sm:$0xff]
        %v1381 = vld [vmem:[#allocation2 + $0x198] sm:$0xff]
        %v1382 = vld [vmem:[#allocation2 + $0x1a0] sm:$0xff]
        %v1383 = vld [vmem:[#allocation2 + $0x1a8] sm:$0xff]
        %v1384 = vld [vmem:[#allocation2 + $0x1b0] sm:$0xff]
        %v1385 = vld [vmem:[#allocation2 + $0x1b8] sm:$0xff]
        %v1386 = vld [vmem:[#allocation2 + $0x1c0] sm:$0xff]
        %v1387 = vld [vmem:[#allocation2 + $0x1c8] sm:$0xff]
        %v1388 = vld [vmem:[#allocation2 + $0x1d0] sm:$0xff]
        %v1389 = vld [vmem:[#allocation2 + $0x1d8] sm:$0xff]
        %v1390 = vld [vmem:[#allocation2 + $0x1e0] sm:$0xff]
        %v1391 = vld [vmem:[#allocation2 + $0x1e8] sm:$0xff]
        %v1392 = vld [vmem:[#allocation2 + $0x1f0] sm:$0xff]
        %v1393 = vld [vmem:[#allocation2 + $0x1f8] sm:$0xff]
        %1395 = vst [vmem:[#allocation1] ss:$4 sm:$0xff] %v1329
        %v1396 = vld.sshfl [vmem:[#allocation1] sm:$0xff pattern:$0x73625140]
        %v1397 = vld.sshfl [vmem:[#allocation1 + $0x8] sm:$0xff pattern:$0x73625140]
        %1400 = vmatpush.msra.mxu0 %v1360
        %1401 = vmatpush.msra.mxu0 %v1358
        %1402 = vmatpush.msra.mxu0 %v1356
        %1403 = vmatpush.msra.mxu0 %v1354
        %1404 = vmatpush.msra.mxu0 %v1352
        %1405 = vmatpush.msra.mxu0 %v1350
        %1406 = vmatpush.msra.mxu0 %v1348
        %1407 = vmatpush.msra.mxu0 %v1346
        %1408 = vmatpush.msra.mxu0 %v1344
        %1409 = vmatpush.msra.mxu0 %v1342
        %1410 = vmatpush.msra.mxu0 %v1340
        %1411 = vmatpush.msra.mxu0 %v1338
        %1412 = vmatpush.msra.mxu0 %v1336
        %1413 = vmatpush.msra.mxu0 %v1334
        %1414 = vmatpush.msra.mxu0 %v1332
        %1415 = vmatpush.msra.mxu0 %v1330
        %1416 = vmatmul.f32.gmra.mxu0 %v1396
        %v1417 = vpop.f32.mrf.mxu0
        %v1418 = vadd.f32 0.0, %v1417
        %1419 = vdwg.mxu0
        %1420 = vmatpush.msra.mxu0 %v1392
        %1421 = vmatpush.msra.mxu0 %v1390
        %1422 = vmatpush.msra.mxu0 %v1388
        %1423 = vmatpush.msra.mxu0 %v1386
        %1424 = vmatpush.msra.mxu0 %v1384
        %1425 = vmatpush.msra.mxu0 %v1382
        %1426 = vmatpush.msra.mxu0 %v1380
        %1427 = vmatpush.msra.mxu0 %v1378
        %1428 = vmatpush.msra.mxu0 %v1376
        %1429 = vmatpush.msra.mxu0 %v1374
        %1430 = vmatpush.msra.mxu0 %v1372
        %1431 = vmatpush.msra.mxu0 %v1370
        %1432 = vmatpush.msra.mxu0 %v1368
        %1433 = vmatpush.msra.mxu0 %v1366
        %1434 = vmatpush.msra.mxu0 %v1364
        %1435 = vmatpush.msra.mxu0 %v1362
        %1436 = vmatmul.f32.gmra.mxu0 %v1397
        %v1437 = vpop.f32.mrf.mxu0
        %v1438 = vadd.f32 %v1418, %v1437
        %1439 = vdwg.mxu0
        %1440 = vmatpush.msra.mxu0 %v1361
        %1441 = vmatpush.msra.mxu0 %v1359
        %1442 = vmatpush.msra.mxu0 %v1357
        %1443 = vmatpush.msra.mxu0 %v1355
        %1444 = vmatpush.msra.mxu0 %v1353
        %1445 = vmatpush.msra.mxu0 %v1351
        %1446 = vmatpush.msra.mxu0 %v1349
        %1447 = vmatpush.msra.mxu0 %v1347
        %1448 = vmatpush.msra.mxu0 %v1345
        %1449 = vmatpush.msra.mxu0 %v1343
        %1450 = vmatpush.msra.mxu0 %v1341
        %1451 = vmatpush.msra.mxu0 %v1339
        %1452 = vmatpush.msra.mxu0 %v1337
        %1453 = vmatpush.msra.mxu0 %v1335
        %1454 = vmatpush.msra.mxu0 %v1333
        %1455 = vmatpush.msra.mxu0 %v1331
        %1456 = vmatmul.f32.gmra.mxu0 %v1396
        %v1457 = vpop.f32.mrf.mxu0
        %v1458 = vadd.f32 0.0, %v1457
        %1459 = vdwg.mxu0
        %1460 = vmatpush.msra.mxu0 %v1393
        %1461 = vmatpush.msra.mxu0 %v1391
        %1462 = vmatpush.msra.mxu0 %v1389
        %1463 = vmatpush.msra.mxu0 %v1387
        %1464 = vmatpush.msra.mxu0 %v1385
        %1465 = vmatpush.msra.mxu0 %v1383
        %1466 = vmatpush.msra.mxu0 %v1381
        %1467 = vmatpush.msra.mxu0 %v1379
        %1468 = vmatpush.msra.mxu0 %v1377
        %1469 = vmatpush.msra.mxu0 %v1375
        %1470 = vmatpush.msra.mxu0 %v1373
        %1471 = vmatpush.msra.mxu0 %v1371
        %1472 = vmatpush.msra.mxu0 %v1369
        %1473 = vmatpush.msra.mxu0 %v1367
        %1474 = vmatpush.msra.mxu0 %v1365
        %1475 = vmatpush.msra.mxu0 %v1363
        %1476 = vmatmul.f32.gmra.mxu0 %v1397
        %v1477 = vpop.f32.mrf.mxu0
        %v1478 = vadd.f32 %v1458, %v1477
        %1479 = vdwg.mxu0
        %v1480 = vld [vmem:[%s29] sm:$0xff]
        %s1481 = scalar_lea.vmem [#allocation2], 512
        %v1482 = vld [vmem:[%s1481] sm:$0xff]
        %v1483 = vld [vmem:[%s1481 + $0x8] sm:$0xff]
        %v1484 = vld [vmem:[%s1481 + $0x10] sm:$0xff]
        %v1485 = vld [vmem:[%s1481 + $0x18] sm:$0xff]
        %v1486 = vld [vmem:[%s1481 + $0x20] sm:$0xff]
        %v1487 = vld [vmem:[%s1481 + $0x28] sm:$0xff]
        %v1488 = vld [vmem:[%s1481 + $0x30] sm:$0xff]
        %v1489 = vld [vmem:[%s1481 + $0x38] sm:$0xff]
        %v1490 = vld [vmem:[%s1481 + $0x40] sm:$0xff]
        %v1491 = vld [vmem:[%s1481 + $0x48] sm:$0xff]
        %v1492 = vld [vmem:[%s1481 + $0x50] sm:$0xff]
        %v1493 = vld [vmem:[%s1481 + $0x58] sm:$0xff]
        %v1494 = vld [vmem:[%s1481 + $0x60] sm:$0xff]
        %v1495 = vld [vmem:[%s1481 + $0x68] sm:$0xff]
        %v1496 = vld [vmem:[%s1481 + $0x70] sm:$0xff]
        %v1497 = vld [vmem:[%s1481 + $0x78] sm:$0xff]
        %v1498 = vld [vmem:[%s1481 + $0x80] sm:$0xff]
        %v1499 = vld [vmem:[%s1481 + $0x88] sm:$0xff]
        %v1500 = vld [vmem:[%s1481 + $0x90] sm:$0xff]
        %v1501 = vld [vmem:[%s1481 + $0x98] sm:$0xff]
        %v1502 = vld [vmem:[%s1481 + $0xa0] sm:$0xff]
        %v1503 = vld [vmem:[%s1481 + $0xa8] sm:$0xff]
        %v1504 = vld [vmem:[%s1481 + $0xb0] sm:$0xff]
        %v1505 = vld [vmem:[%s1481 + $0xb8] sm:$0xff]
        %v1506 = vld [vmem:[%s1481 + $0xc0] sm:$0xff]
        %v1507 = vld [vmem:[%s1481 + $0xc8] sm:$0xff]
        %v1508 = vld [vmem:[%s1481 + $0xd0] sm:$0xff]
        %v1509 = vld [vmem:[%s1481 + $0xd8] sm:$0xff]
        %v1510 = vld [vmem:[%s1481 + $0xe0] sm:$0xff]
        %v1511 = vld [vmem:[%s1481 + $0xe8] sm:$0xff]
        %v1512 = vld [vmem:[%s1481 + $0xf0] sm:$0xff]
        %v1513 = vld [vmem:[%s1481 + $0xf8] sm:$0xff]
        %v1514 = vld [vmem:[%s1481 + $0x100] sm:$0xff]
        %v1515 = vld [vmem:[%s1481 + $0x108] sm:$0xff]
        %v1516 = vld [vmem:[%s1481 + $0x110] sm:$0xff]
        %v1517 = vld [vmem:[%s1481 + $0x118] sm:$0xff]
        %v1518 = vld [vmem:[%s1481 + $0x120] sm:$0xff]
        %v1519 = vld [vmem:[%s1481 + $0x128] sm:$0xff]
        %v1520 = vld [vmem:[%s1481 + $0x130] sm:$0xff]
        %v1521 = vld [vmem:[%s1481 + $0x138] sm:$0xff]
        %v1522 = vld [vmem:[%s1481 + $0x140] sm:$0xff]
        %v1523 = vld [vmem:[%s1481 + $0x148] sm:$0xff]
        %v1524 = vld [vmem:[%s1481 + $0x150] sm:$0xff]
        %v1525 = vld [vmem:[%s1481 + $0x158] sm:$0xff]
        %v1526 = vld [vmem:[%s1481 + $0x160] sm:$0xff]
        %v1527 = vld [vmem:[%s1481 + $0x168] sm:$0xff]
        %v1528 = vld [vmem:[%s1481 + $0x170] sm:$0xff]
        %v1529 = vld [vmem:[%s1481 + $0x178] sm:$0xff]
        %v1530 = vld [vmem:[%s1481 + $0x180] sm:$0xff]
        %v1531 = vld [vmem:[%s1481 + $0x188] sm:$0xff]
        %v1532 = vld [vmem:[%s1481 + $0x190] sm:$0xff]
        %v1533 = vld [vmem:[%s1481 + $0x198] sm:$0xff]
        %v1534 = vld [vmem:[%s1481 + $0x1a0] sm:$0xff]
        %v1535 = vld [vmem:[%s1481 + $0x1a8] sm:$0xff]
        %v1536 = vld [vmem:[%s1481 + $0x1b0] sm:$0xff]
        %v1537 = vld [vmem:[%s1481 + $0x1b8] sm:$0xff]
        %v1538 = vld [vmem:[%s1481 + $0x1c0] sm:$0xff]
        %v1539 = vld [vmem:[%s1481 + $0x1c8] sm:$0xff]
        %v1540 = vld [vmem:[%s1481 + $0x1d0] sm:$0xff]
        %v1541 = vld [vmem:[%s1481 + $0x1d8] sm:$0xff]
        %v1542 = vld [vmem:[%s1481 + $0x1e0] sm:$0xff]
        %v1543 = vld [vmem:[%s1481 + $0x1e8] sm:$0xff]
        %v1544 = vld [vmem:[%s1481 + $0x1f0] sm:$0xff]
        %v1545 = vld [vmem:[%s1481 + $0x1f8] sm:$0xff]
        %1546 = vst [vmem:[#allocation1] ss:$4 sm:$0xff] %v1329
        %v1547 = vld.sshfl [vmem:[#allocation1] sm:$0xff pattern:$0x73625140]
        %v1548 = vld.sshfl [vmem:[#allocation1 + $0x8] sm:$0xff pattern:$0x73625140]
        %1551 = vmatpush.msra.mxu0 %v1512
        %1552 = vmatpush.msra.mxu0 %v1510
        %1553 = vmatpush.msra.mxu0 %v1508
        %1554 = vmatpush.msra.mxu0 %v1506
        %1555 = vmatpush.msra.mxu0 %v1504
        %1556 = vmatpush.msra.mxu0 %v1502
        %1557 = vmatpush.msra.mxu0 %v1500
        %1558 = vmatpush.msra.mxu0 %v1498
        %1559 = vmatpush.msra.mxu0 %v1496
        %1560 = vmatpush.msra.mxu0 %v1494
        %1561 = vmatpush.msra.mxu0 %v1492
        %1562 = vmatpush.msra.mxu0 %v1490
        %1563 = vmatpush.msra.mxu0 %v1488
        %1564 = vmatpush.msra.mxu0 %v1486
        %1565 = vmatpush.msra.mxu0 %v1484
        %1566 = vmatpush.msra.mxu0 %v1482
        %1567 = vmatmul.f32.gmra.mxu0 %v1547
        %v1568 = vpop.f32.mrf.mxu0
        %v1569 = vadd.f32 0.0, %v1568
        %1570 = vdwg.mxu0
        %1571 = vmatpush.msra.mxu0 %v1544
        %1572 = vmatpush.msra.mxu0 %v1542
        %1573 = vmatpush.msra.mxu0 %v1540
        %1574 = vmatpush.msra.mxu0 %v1538
        %1575 = vmatpush.msra.mxu0 %v1536
        %1576 = vmatpush.msra.mxu0 %v1534
        %1577 = vmatpush.msra.mxu0 %v1532
        %1578 = vmatpush.msra.mxu0 %v1530
        %1579 = vmatpush.msra.mxu0 %v1528
        %1580 = vmatpush.msra.mxu0 %v1526
        %1581 = vmatpush.msra.mxu0 %v1524
        %1582 = vmatpush.msra.mxu0 %v1522
        %1583 = vmatpush.msra.mxu0 %v1520
        %1584 = vmatpush.msra.mxu0 %v1518
        %1585 = vmatpush.msra.mxu0 %v1516
        %1586 = vmatpush.msra.mxu0 %v1514
        %1587 = vmatmul.f32.gmra.mxu0 %v1548
        %v1588 = vpop.f32.mrf.mxu0
        %v1589 = vadd.f32 %v1569, %v1588
        %1590 = vdwg.mxu0
        %1591 = vmatpush.msra.mxu0 %v1513
        %1592 = vmatpush.msra.mxu0 %v1511
        %1593 = vmatpush.msra.mxu0 %v1509
        %1594 = vmatpush.msra.mxu0 %v1507
        %1595 = vmatpush.msra.mxu0 %v1505
        %1596 = vmatpush.msra.mxu0 %v1503
        %1597 = vmatpush.msra.mxu0 %v1501
        %1598 = vmatpush.msra.mxu0 %v1499
        %1599 = vmatpush.msra.mxu0 %v1497
        %1600 = vmatpush.msra.mxu0 %v1495
        %1601 = vmatpush.msra.mxu0 %v1493
        %1602 = vmatpush.msra.mxu0 %v1491
        %1603 = vmatpush.msra.mxu0 %v1489
        %1604 = vmatpush.msra.mxu0 %v1487
        %1605 = vmatpush.msra.mxu0 %v1485
        %1606 = vmatpush.msra.mxu0 %v1483
        %1607 = vmatmul.f32.gmra.mxu0 %v1547
        %v1608 = vpop.f32.mrf.mxu0
        %v1609 = vadd.f32 0.0, %v1608
        %1610 = vdwg.mxu0
        %1611 = vmatpush.msra.mxu0 %v1545
        %1612 = vmatpush.msra.mxu0 %v1543
        %1613 = vmatpush.msra.mxu0 %v1541
        %1614 = vmatpush.msra.mxu0 %v1539
        %1615 = vmatpush.msra.mxu0 %v1537
        %1616 = vmatpush.msra.mxu0 %v1535
        %1617 = vmatpush.msra.mxu0 %v1533
        %1618 = vmatpush.msra.mxu0 %v1531
        %1619 = vmatpush.msra.mxu0 %v1529
        %1620 = vmatpush.msra.mxu0 %v1527
        %1621 = vmatpush.msra.mxu0 %v1525
        %1622 = vmatpush.msra.mxu0 %v1523
        %1623 = vmatpush.msra.mxu0 %v1521
        %1624 = vmatpush.msra.mxu0 %v1519
        %1625 = vmatpush.msra.mxu0 %v1517
        %1626 = vmatpush.msra.mxu0 %v1515
        %1627 = vmatmul.f32.gmra.mxu0 %v1548
        %v1628 = vpop.f32.mrf.mxu0
        %v1629 = vadd.f32 %v1609, %v1628
        %1630 = vdwg.mxu0
        %s1631 = scalar_lea.vmem %s29, 8
        %v1632 = vld [vmem:[%s1631] sm:$0xff]
        %vm1633 = vcmask 15360
        %v1635 = vsel %vm1633, %v1632, 0
        %vm1637 = vcmask 1041408
        %v1639 = vsel %vm1637, %v1589, 0
        %v1642 = vsel %vm1637, %v1629, 0
        %1644 = vmatpush.msra.mxu0 0.0
        %1645 = vmatpush.msra.mxu0 0.0
        %1646 = vmatpush.msra.mxu0 0.0
        %1647 = vmatpush.msra.mxu0 0.0
        %1648 = vmatpush.msra.mxu0 0.0
        %1649 = vmatpush.msra.mxu0 0.0
        %1650 = vmatpush.msra.mxu0 0.0
        %1651 = vmatpush.msra.mxu0 0.0
        %1652 = vmatpush.msra.mxu0 0.0
        %1653 = vmatpush.msra.mxu0 0.0
        %1654 = vmatpush.msra.mxu0 0.0
        %1655 = vmatpush.msra.mxu0 0.0
        %1656 = vmatpush.msra.mxu0 0.0
        %1657 = vmatpush.msra.mxu0 0.0
        %1658 = vmatpush.msra.mxu0 0.0
        %1659 = vmatpush.msra.mxu0 %v1639
        %1660 = vmatmul.f32.gmra.mxu0 %v1635
        %v1661 = vpop.f32.mrf.mxu0
        %v1662 = vadd.f32 0.0, %v1661
        %1663 = vdwg.mxu0
        %1664 = vmatpush.msra.mxu0 0.0
        %1665 = vmatpush.msra.mxu0 0.0
        %1666 = vmatpush.msra.mxu0 0.0
        %1667 = vmatpush.msra.mxu0 0.0
        %1668 = vmatpush.msra.mxu0 0.0
        %1669 = vmatpush.msra.mxu0 0.0
        %1670 = vmatpush.msra.mxu0 0.0
        %1671 = vmatpush.msra.mxu0 0.0
        %1672 = vmatpush.msra.mxu0 0.0
        %1673 = vmatpush.msra.mxu0 0.0
        %1674 = vmatpush.msra.mxu0 0.0
        %1675 = vmatpush.msra.mxu0 0.0
        %1676 = vmatpush.msra.mxu0 0.0
        %1677 = vmatpush.msra.mxu0 0.0
        %1678 = vmatpush.msra.mxu0 0.0
        %1679 = vmatpush.msra.mxu0 %v1642
        %1680 = vmatmul.f32.gmra.mxu0 %v1635
        %v1681 = vpop.f32.mrf.mxu0
        %v1682 = vadd.f32 0.0, %v1681
        %1683 = vdwg.mxu0
        %v1685 = vsel %vm1633, %v1480, 0
        %v1688 = vsel %vm1637, %v1438, 0
        %v1691 = vsel %vm1637, %v1478, 0
        %1693 = vmatpush.msra.mxu0 0.0
        %1694 = vmatpush.msra.mxu0 0.0
        %1695 = vmatpush.msra.mxu0 0.0
        %1696 = vmatpush.msra.mxu0 0.0
        %1697 = vmatpush.msra.mxu0 0.0
        %1698 = vmatpush.msra.mxu0 0.0
        %1699 = vmatpush.msra.mxu0 0.0
        %1700 = vmatpush.msra.mxu0 0.0
        %1701 = vmatpush.msra.mxu0 0.0
        %1702 = vmatpush.msra.mxu0 0.0
        %1703 = vmatpush.msra.mxu0 0.0
        %1704 = vmatpush.msra.mxu0 0.0
        %1705 = vmatpush.msra.mxu0 0.0
        %1706 = vmatpush.msra.mxu0 0.0
        %1707 = vmatpush.msra.mxu0 0.0
        %1708 = vmatpush.msra.mxu0 %v1688
        %1709 = vmatmul.f32.gmra.mxu0 %v1685
        %v1710 = vpop.f32.mrf.mxu0
        %v1711 = vadd.f32 %v1662, %v1710
        %1712 = vdwg.mxu0
        %1713 = vmatpush.msra.mxu0 0.0
        %1714 = vmatpush.msra.mxu0 0.0
        %1715 = vmatpush.msra.mxu0 0.0
        %1716 = vmatpush.msra.mxu0 0.0
        %1717 = vmatpush.msra.mxu0 0.0
        %1718 = vmatpush.msra.mxu0 0.0
        %1719 = vmatpush.msra.mxu0 0.0
        %1720 = vmatpush.msra.mxu0 0.0
        %1721 = vmatpush.msra.mxu0 0.0
        %1722 = vmatpush.msra.mxu0 0.0
        %1723 = vmatpush.msra.mxu0 0.0
        %1724 = vmatpush.msra.mxu0 0.0
        %1725 = vmatpush.msra.mxu0 0.0
        %1726 = vmatpush.msra.mxu0 0.0
        %1727 = vmatpush.msra.mxu0 0.0
        %1728 = vmatpush.msra.mxu0 %v1691
        %1729 = vmatmul.f32.gmra.mxu0 %v1685
        %v1730 = vpop.f32.mrf.mxu0
        %v1731 = vadd.f32 %v1682, %v1730
        %1732 = vdwg.mxu0
        %s1733 = scalar_lea.vmem [#allocation2], 1024
        %v1734 = vld [vmem:[%s1733] sm:$0xff]
        %v1735 = vld [vmem:[%s1733 + $0x8] sm:$0xff]
        %v1736 = vld [vmem:[%s1733 + $0x10] sm:$0xff]
        %v1737 = vld [vmem:[%s1733 + $0x18] sm:$0xff]
        %v1738 = vld [vmem:[%s1733 + $0x20] sm:$0xff]
        %v1739 = vld [vmem:[%s1733 + $0x28] sm:$0xff]
        %v1740 = vld [vmem:[%s1733 + $0x30] sm:$0xff]
        %v1741 = vld [vmem:[%s1733 + $0x38] sm:$0xff]
        %v1742 = vld [vmem:[%s1733 + $0x40] sm:$0xff]
        %v1743 = vld [vmem:[%s1733 + $0x48] sm:$0xff]
        %v1744 = vld [vmem:[%s1733 + $0x50] sm:$0xff]
        %v1745 = vld [vmem:[%s1733 + $0x58] sm:$0xff]
        %v1746 = vld [vmem:[%s1733 + $0x60] sm:$0xff]
        %v1747 = vld [vmem:[%s1733 + $0x68] sm:$0xff]
        %v1748 = vld [vmem:[%s1733 + $0x70] sm:$0xff]
        %v1749 = vld [vmem:[%s1733 + $0x78] sm:$0xff]
        %v1750 = vld [vmem:[%s1733 + $0x80] sm:$0xff]
        %v1751 = vld [vmem:[%s1733 + $0x88] sm:$0xff]
        %v1752 = vld [vmem:[%s1733 + $0x90] sm:$0xff]
        %v1753 = vld [vmem:[%s1733 + $0x98] sm:$0xff]
        %v1754 = vld [vmem:[%s1733 + $0xa0] sm:$0xff]
        %v1755 = vld [vmem:[%s1733 + $0xa8] sm:$0xff]
        %v1756 = vld [vmem:[%s1733 + $0xb0] sm:$0xff]
        %v1757 = vld [vmem:[%s1733 + $0xb8] sm:$0xff]
        %v1758 = vld [vmem:[%s1733 + $0xc0] sm:$0xff]
        %v1759 = vld [vmem:[%s1733 + $0xc8] sm:$0xff]
        %v1760 = vld [vmem:[%s1733 + $0xd0] sm:$0xff]
        %v1761 = vld [vmem:[%s1733 + $0xd8] sm:$0xff]
        %v1762 = vld [vmem:[%s1733 + $0xe0] sm:$0xff]
        %v1763 = vld [vmem:[%s1733 + $0xe8] sm:$0xff]
        %v1764 = vld [vmem:[%s1733 + $0xf0] sm:$0xff]
        %v1765 = vld [vmem:[%s1733 + $0xf8] sm:$0xff]
        %v1766 = vld [vmem:[%s1733 + $0x100] sm:$0xff]
        %v1767 = vld [vmem:[%s1733 + $0x108] sm:$0xff]
        %v1768 = vld [vmem:[%s1733 + $0x110] sm:$0xff]
        %v1769 = vld [vmem:[%s1733 + $0x118] sm:$0xff]
        %v1770 = vld [vmem:[%s1733 + $0x120] sm:$0xff]
        %v1771 = vld [vmem:[%s1733 + $0x128] sm:$0xff]
        %v1772 = vld [vmem:[%s1733 + $0x130] sm:$0xff]
        %v1773 = vld [vmem:[%s1733 + $0x138] sm:$0xff]
        %v1774 = vld [vmem:[%s1733 + $0x140] sm:$0xff]
        %v1775 = vld [vmem:[%s1733 + $0x148] sm:$0xff]
        %v1776 = vld [vmem:[%s1733 + $0x150] sm:$0xff]
        %v1777 = vld [vmem:[%s1733 + $0x158] sm:$0xff]
        %v1778 = vld [vmem:[%s1733 + $0x160] sm:$0xff]
        %v1779 = vld [vmem:[%s1733 + $0x168] sm:$0xff]
        %v1780 = vld [vmem:[%s1733 + $0x170] sm:$0xff]
        %v1781 = vld [vmem:[%s1733 + $0x178] sm:$0xff]
        %v1782 = vld [vmem:[%s1733 + $0x180] sm:$0xff]
        %v1783 = vld [vmem:[%s1733 + $0x188] sm:$0xff]
        %v1784 = vld [vmem:[%s1733 + $0x190] sm:$0xff]
        %v1785 = vld [vmem:[%s1733 + $0x198] sm:$0xff]
        %v1786 = vld [vmem:[%s1733 + $0x1a0] sm:$0xff]
        %v1787 = vld [vmem:[%s1733 + $0x1a8] sm:$0xff]
        %v1788 = vld [vmem:[%s1733 + $0x1b0] sm:$0xff]
        %v1789 = vld [vmem:[%s1733 + $0x1b8] sm:$0xff]
        %v1790 = vld [vmem:[%s1733 + $0x1c0] sm:$0xff]
        %v1791 = vld [vmem:[%s1733 + $0x1c8] sm:$0xff]
        %v1792 = vld [vmem:[%s1733 + $0x1d0] sm:$0xff]
        %v1793 = vld [vmem:[%s1733 + $0x1d8] sm:$0xff]
        %v1794 = vld [vmem:[%s1733 + $0x1e0] sm:$0xff]
        %v1795 = vld [vmem:[%s1733 + $0x1e8] sm:$0xff]
        %v1796 = vld [vmem:[%s1733 + $0x1f0] sm:$0xff]
        %v1797 = vld [vmem:[%s1733 + $0x1f8] sm:$0xff]
        %1798 = vst [vmem:[#allocation1] ss:$4 sm:$0xff] %v1329
        %v1799 = vld.sshfl [vmem:[#allocation1] sm:$0xff pattern:$0x73625140]
        %v1800 = vld.sshfl [vmem:[#allocation1 + $0x8] sm:$0xff pattern:$0x73625140]
        %1803 = vmatpush.msra.mxu0 %v1764
        %1804 = vmatpush.msra.mxu0 %v1762
        %1805 = vmatpush.msra.mxu0 %v1760
        %1806 = vmatpush.msra.mxu0 %v1758
        %1807 = vmatpush.msra.mxu0 %v1756
        %1808 = vmatpush.msra.mxu0 %v1754
        %1809 = vmatpush.msra.mxu0 %v1752
        %1810 = vmatpush.msra.mxu0 %v1750
        %1811 = vmatpush.msra.mxu0 %v1748
        %1812 = vmatpush.msra.mxu0 %v1746
        %1813 = vmatpush.msra.mxu0 %v1744
        %1814 = vmatpush.msra.mxu0 %v1742
        %1815 = vmatpush.msra.mxu0 %v1740
        %1816 = vmatpush.msra.mxu0 %v1738
        %1817 = vmatpush.msra.mxu0 %v1736
        %1818 = vmatpush.msra.mxu0 %v1734
        %1819 = vmatmul.f32.gmra.mxu0 %v1799
        %v1820 = vpop.f32.mrf.mxu0
        %v1821 = vadd.f32 0.0, %v1820
        %1822 = vdwg.mxu0
        %1823 = vmatpush.msra.mxu0 %v1796
        %1824 = vmatpush.msra.mxu0 %v1794
        %1825 = vmatpush.msra.mxu0 %v1792
        %1826 = vmatpush.msra.mxu0 %v1790
        %1827 = vmatpush.msra.mxu0 %v1788
        %1828 = vmatpush.msra.mxu0 %v1786
        %1829 = vmatpush.msra.mxu0 %v1784
        %1830 = vmatpush.msra.mxu0 %v1782
        %1831 = vmatpush.msra.mxu0 %v1780
        %1832 = vmatpush.msra.mxu0 %v1778
        %1833 = vmatpush.msra.mxu0 %v1776
        %1834 = vmatpush.msra.mxu0 %v1774
        %1835 = vmatpush.msra.mxu0 %v1772
        %1836 = vmatpush.msra.mxu0 %v1770
        %1837 = vmatpush.msra.mxu0 %v1768
        %1838 = vmatpush.msra.mxu0 %v1766
        %1839 = vmatmul.f32.gmra.mxu0 %v1800
        %v1840 = vpop.f32.mrf.mxu0
        %v1841 = vadd.f32 %v1821, %v1840
        %1842 = vdwg.mxu0
        %1843 = vmatpush.msra.mxu0 %v1765
        %1844 = vmatpush.msra.mxu0 %v1763
        %1845 = vmatpush.msra.mxu0 %v1761
        %1846 = vmatpush.msra.mxu0 %v1759
        %1847 = vmatpush.msra.mxu0 %v1757
        %1848 = vmatpush.msra.mxu0 %v1755
        %1849 = vmatpush.msra.mxu0 %v1753
        %1850 = vmatpush.msra.mxu0 %v1751
        %1851 = vmatpush.msra.mxu0 %v1749
        %1852 = vmatpush.msra.mxu0 %v1747
        %1853 = vmatpush.msra.mxu0 %v1745
        %1854 = vmatpush.msra.mxu0 %v1743
        %1855 = vmatpush.msra.mxu0 %v1741
        %1856 = vmatpush.msra.mxu0 %v1739
        %1857 = vmatpush.msra.mxu0 %v1737
        %1858 = vmatpush.msra.mxu0 %v1735
        %1859 = vmatmul.f32.gmra.mxu0 %v1799
        %v1860 = vpop.f32.mrf.mxu0
        %v1861 = vadd.f32 0.0, %v1860
        %1862 = vdwg.mxu0
        %1863 = vmatpush.msra.mxu0 %v1797
        %1864 = vmatpush.msra.mxu0 %v1795
        %1865 = vmatpush.msra.mxu0 %v1793
        %1866 = vmatpush.msra.mxu0 %v1791
        %1867 = vmatpush.msra.mxu0 %v1789
        %1868 = vmatpush.msra.mxu0 %v1787
        %1869 = vmatpush.msra.mxu0 %v1785
        %1870 = vmatpush.msra.mxu0 %v1783
        %1871 = vmatpush.msra.mxu0 %v1781
        %1872 = vmatpush.msra.mxu0 %v1779
        %1873 = vmatpush.msra.mxu0 %v1777
        %1874 = vmatpush.msra.mxu0 %v1775
        %1875 = vmatpush.msra.mxu0 %v1773
        %1876 = vmatpush.msra.mxu0 %v1771
        %1877 = vmatpush.msra.mxu0 %v1769
        %1878 = vmatpush.msra.mxu0 %v1767
        %1879 = vmatmul.f32.gmra.mxu0 %v1800
        %v1880 = vpop.f32.mrf.mxu0
        %v1881 = vadd.f32 %v1861, %v1880
        %1882 = vdwg.mxu0
        %s1883 = scalar_lea.vmem %s29, 16
        %v1884 = vld [vmem:[%s1883] sm:$0xff]
        %v1886 = vsel %vm1633, %v1884, 0
        %v1889 = vsel %vm1637, %v1841, 0
        %v1892 = vsel %vm1637, %v1881, 0
        %1894 = vmatpush.msra.mxu0 0.0
        %1895 = vmatpush.msra.mxu0 0.0
        %1896 = vmatpush.msra.mxu0 0.0
        %1897 = vmatpush.msra.mxu0 0.0
        %1898 = vmatpush.msra.mxu0 0.0
        %1899 = vmatpush.msra.mxu0 0.0
        %1900 = vmatpush.msra.mxu0 0.0
        %1901 = vmatpush.msra.mxu0 0.0
        %1902 = vmatpush.msra.mxu0 0.0
        %1903 = vmatpush.msra.mxu0 0.0
        %1904 = vmatpush.msra.mxu0 0.0
        %1905 = vmatpush.msra.mxu0 0.0
        %1906 = vmatpush.msra.mxu0 0.0
        %1907 = vmatpush.msra.mxu0 0.0
        %1908 = vmatpush.msra.mxu0 0.0
        %1909 = vmatpush.msra.mxu0 %v1889
        %1910 = vmatmul.f32.gmra.mxu0 %v1886
        %v1911 = vpop.f32.mrf.mxu0
        %v1912 = vadd.f32 0.0, %v1911
        %1913 = vdwg.mxu0
        %1914 = vmatpush.msra.mxu0 0.0
        %1915 = vmatpush.msra.mxu0 0.0
        %1916 = vmatpush.msra.mxu0 0.0
        %1917 = vmatpush.msra.mxu0 0.0
        %1918 = vmatpush.msra.mxu0 0.0
        %1919 = vmatpush.msra.mxu0 0.0
        %1920 = vmatpush.msra.mxu0 0.0
        %1921 = vmatpush.msra.mxu0 0.0
        %1922 = vmatpush.msra.mxu0 0.0
        %1923 = vmatpush.msra.mxu0 0.0
        %1924 = vmatpush.msra.mxu0 0.0
        %1925 = vmatpush.msra.mxu0 0.0
        %1926 = vmatpush.msra.mxu0 0.0
        %1927 = vmatpush.msra.mxu0 0.0
        %1928 = vmatpush.msra.mxu0 0.0
        %1929 = vmatpush.msra.mxu0 %v1892
        %1930 = vmatmul.f32.gmra.mxu0 %v1886
        %v1931 = vpop.f32.mrf.mxu0
        %v1932 = vadd.f32 0.0, %v1931
        %1933 = vdwg.mxu0
        %v1934 = vadd.f32 %v1711, %v1912
        %v1935 = vadd.f32 %v1731, %v1932
        %s1936 = scalar_lea.vmem [#allocation2], 1536
        %v1937 = vld [vmem:[%s1936] sm:$0xff]
        %v1938 = vld [vmem:[%s1936 + $0x8] sm:$0xff]
        %v1939 = vld [vmem:[%s1936 + $0x10] sm:$0xff]
        %v1940 = vld [vmem:[%s1936 + $0x18] sm:$0xff]
        %v1941 = vld [vmem:[%s1936 + $0x20] sm:$0xff]
        %v1942 = vld [vmem:[%s1936 + $0x28] sm:$0xff]
        %v1943 = vld [vmem:[%s1936 + $0x30] sm:$0xff]
        %v1944 = vld [vmem:[%s1936 + $0x38] sm:$0xff]
        %v1945 = vld [vmem:[%s1936 + $0x40] sm:$0xff]
        %v1946 = vld [vmem:[%s1936 + $0x48] sm:$0xff]
        %v1947 = vld [vmem:[%s1936 + $0x50] sm:$0xff]
        %v1948 = vld [vmem:[%s1936 + $0x58] sm:$0xff]
        %v1949 = vld [vmem:[%s1936 + $0x60] sm:$0xff]
        %v1950 = vld [vmem:[%s1936 + $0x68] sm:$0xff]
        %v1951 = vld [vmem:[%s1936 + $0x70] sm:$0xff]
        %v1952 = vld [vmem:[%s1936 + $0x78] sm:$0xff]
        %v1953 = vld [vmem:[%s1936 + $0x80] sm:$0xff]
        %v1954 = vld [vmem:[%s1936 + $0x88] sm:$0xff]
        %v1955 = vld [vmem:[%s1936 + $0x90] sm:$0xff]
        %v1956 = vld [vmem:[%s1936 + $0x98] sm:$0xff]
        %v1957 = vld [vmem:[%s1936 + $0xa0] sm:$0xff]
        %v1958 = vld [vmem:[%s1936 + $0xa8] sm:$0xff]
        %v1959 = vld [vmem:[%s1936 + $0xb0] sm:$0xff]
        %v1960 = vld [vmem:[%s1936 + $0xb8] sm:$0xff]
        %v1961 = vld [vmem:[%s1936 + $0xc0] sm:$0xff]
        %v1962 = vld [vmem:[%s1936 + $0xc8] sm:$0xff]
        %v1963 = vld [vmem:[%s1936 + $0xd0] sm:$0xff]
        %v1964 = vld [vmem:[%s1936 + $0xd8] sm:$0xff]
        %v1965 = vld [vmem:[%s1936 + $0xe0] sm:$0xff]
        %v1966 = vld [vmem:[%s1936 + $0xe8] sm:$0xff]
        %v1967 = vld [vmem:[%s1936 + $0xf0] sm:$0xff]
        %v1968 = vld [vmem:[%s1936 + $0xf8] sm:$0xff]
        %v1969 = vld [vmem:[%s1936 + $0x100] sm:$0xff]
        %v1970 = vld [vmem:[%s1936 + $0x108] sm:$0xff]
        %v1971 = vld [vmem:[%s1936 + $0x110] sm:$0xff]
        %v1972 = vld [vmem:[%s1936 + $0x118] sm:$0xff]
        %v1973 = vld [vmem:[%s1936 + $0x120] sm:$0xff]
        %v1974 = vld [vmem:[%s1936 + $0x128] sm:$0xff]
        %v1975 = vld [vmem:[%s1936 + $0x130] sm:$0xff]
        %v1976 = vld [vmem:[%s1936 + $0x138] sm:$0xff]
        %v1977 = vld [vmem:[%s1936 + $0x140] sm:$0xff]
        %v1978 = vld [vmem:[%s1936 + $0x148] sm:$0xff]
        %v1979 = vld [vmem:[%s1936 + $0x150] sm:$0xff]
        %v1980 = vld [vmem:[%s1936 + $0x158] sm:$0xff]
        %v1981 = vld [vmem:[%s1936 + $0x160] sm:$0xff]
        %v1982 = vld [vmem:[%s1936 + $0x168] sm:$0xff]
        %v1983 = vld [vmem:[%s1936 + $0x170] sm:$0xff]
        %v1984 = vld [vmem:[%s1936 + $0x178] sm:$0xff]
        %v1985 = vld [vmem:[%s1936 + $0x180] sm:$0xff]
        %v1986 = vld [vmem:[%s1936 + $0x188] sm:$0xff]
        %v1987 = vld [vmem:[%s1936 + $0x190] sm:$0xff]
        %v1988 = vld [vmem:[%s1936 + $0x198] sm:$0xff]
        %v1989 = vld [vmem:[%s1936 + $0x1a0] sm:$0xff]
        %v1990 = vld [vmem:[%s1936 + $0x1a8] sm:$0xff]
        %v1991 = vld [vmem:[%s1936 + $0x1b0] sm:$0xff]
        %v1992 = vld [vmem:[%s1936 + $0x1b8] sm:$0xff]
        %v1993 = vld [vmem:[%s1936 + $0x1c0] sm:$0xff]
        %v1994 = vld [vmem:[%s1936 + $0x1c8] sm:$0xff]
        %v1995 = vld [vmem:[%s1936 + $0x1d0] sm:$0xff]
        %v1996 = vld [vmem:[%s1936 + $0x1d8] sm:$0xff]
        %v1997 = vld [vmem:[%s1936 + $0x1e0] sm:$0xff]
        %v1998 = vld [vmem:[%s1936 + $0x1e8] sm:$0xff]
        %v1999 = vld [vmem:[%s1936 + $0x1f0] sm:$0xff]
        %v2000 = vld [vmem:[%s1936 + $0x1f8] sm:$0xff]
        %2001 = vst [vmem:[#allocation1] ss:$4 sm:$0xff] %v1329
        %v2002 = vld.sshfl [vmem:[#allocation1] sm:$0xff pattern:$0x73625140]
        %v2003 = vld.sshfl [vmem:[#allocation1 + $0x8] sm:$0xff pattern:$0x73625140]
        %2006 = vmatpush.msra.mxu0 %v1967
        %2007 = vmatpush.msra.mxu0 %v1965
        %2008 = vmatpush.msra.mxu0 %v1963
        %2009 = vmatpush.msra.mxu0 %v1961
        %2010 = vmatpush.msra.mxu0 %v1959
        %2011 = vmatpush.msra.mxu0 %v1957
        %2012 = vmatpush.msra.mxu0 %v1955
        %2013 = vmatpush.msra.mxu0 %v1953
        %2014 = vmatpush.msra.mxu0 %v1951
        %2015 = vmatpush.msra.mxu0 %v1949
        %2016 = vmatpush.msra.mxu0 %v1947
        %2017 = vmatpush.msra.mxu0 %v1945
        %2018 = vmatpush.msra.mxu0 %v1943
        %2019 = vmatpush.msra.mxu0 %v1941
        %2020 = vmatpush.msra.mxu0 %v1939
        %2021 = vmatpush.msra.mxu0 %v1937
        %2022 = vmatmul.f32.gmra.mxu0 %v2002
        %v2023 = vpop.f32.mrf.mxu0
        %v2024 = vadd.f32 0.0, %v2023
        %2025 = vdwg.mxu0
        %2026 = vmatpush.msra.mxu0 %v1999
        %2027 = vmatpush.msra.mxu0 %v1997
        %2028 = vmatpush.msra.mxu0 %v1995
        %2029 = vmatpush.msra.mxu0 %v1993
        %2030 = vmatpush.msra.mxu0 %v1991
        %2031 = vmatpush.msra.mxu0 %v1989
        %2032 = vmatpush.msra.mxu0 %v1987
        %2033 = vmatpush.msra.mxu0 %v1985
        %2034 = vmatpush.msra.mxu0 %v1983
        %2035 = vmatpush.msra.mxu0 %v1981
        %2036 = vmatpush.msra.mxu0 %v1979
        %2037 = vmatpush.msra.mxu0 %v1977
        %2038 = vmatpush.msra.mxu0 %v1975
        %2039 = vmatpush.msra.mxu0 %v1973
        %2040 = vmatpush.msra.mxu0 %v1971
        %2041 = vmatpush.msra.mxu0 %v1969
        %2042 = vmatmul.f32.gmra.mxu0 %v2003
        %v2043 = vpop.f32.mrf.mxu0
        %v2044 = vadd.f32 %v2024, %v2043
        %2045 = vdwg.mxu0
        %2046 = vmatpush.msra.mxu0 %v1968
        %2047 = vmatpush.msra.mxu0 %v1966
        %2048 = vmatpush.msra.mxu0 %v1964
        %2049 = vmatpush.msra.mxu0 %v1962
        %2050 = vmatpush.msra.mxu0 %v1960
        %2051 = vmatpush.msra.mxu0 %v1958
        %2052 = vmatpush.msra.mxu0 %v1956
        %2053 = vmatpush.msra.mxu0 %v1954
        %2054 = vmatpush.msra.mxu0 %v1952
        %2055 = vmatpush.msra.mxu0 %v1950
        %2056 = vmatpush.msra.mxu0 %v1948
        %2057 = vmatpush.msra.mxu0 %v1946
        %2058 = vmatpush.msra.mxu0 %v1944
        %2059 = vmatpush.msra.mxu0 %v1942
        %2060 = vmatpush.msra.mxu0 %v1940
        %2061 = vmatpush.msra.mxu0 %v1938
        %2062 = vmatmul.f32.gmra.mxu0 %v2002
        %v2063 = vpop.f32.mrf.mxu0
        %v2064 = vadd.f32 0.0, %v2063
        %2065 = vdwg.mxu0
        %2066 = vmatpush.msra.mxu0 %v2000
        %2067 = vmatpush.msra.mxu0 %v1998
        %2068 = vmatpush.msra.mxu0 %v1996
        %2069 = vmatpush.msra.mxu0 %v1994
        %2070 = vmatpush.msra.mxu0 %v1992
        %2071 = vmatpush.msra.mxu0 %v1990
        %2072 = vmatpush.msra.mxu0 %v1988
        %2073 = vmatpush.msra.mxu0 %v1986
        %2074 = vmatpush.msra.mxu0 %v1984
        %2075 = vmatpush.msra.mxu0 %v1982
        %2076 = vmatpush.msra.mxu0 %v1980
        %2077 = vmatpush.msra.mxu0 %v1978
        %2078 = vmatpush.msra.mxu0 %v1976
        %2079 = vmatpush.msra.mxu0 %v1974
        %2080 = vmatpush.msra.mxu0 %v1972
        %2081 = vmatpush.msra.mxu0 %v1970
        %2082 = vmatmul.f32.gmra.mxu0 %v2003
        %v2083 = vpop.f32.mrf.mxu0
        %v2084 = vadd.f32 %v2064, %v2083
        %2085 = vdwg.mxu0
        %s2086 = scalar_lea.vmem %s29, 24
        %v2087 = vld [vmem:[%s2086] sm:$0xff]
        %v2089 = vsel %vm1633, %v2087, 0
        %v2092 = vsel %vm1637, %v2044, 0
        %v2095 = vsel %vm1637, %v2084, 0
        %2097 = vmatpush.msra.mxu0 0.0
        %2098 = vmatpush.msra.mxu0 0.0
        %2099 = vmatpush.msra.mxu0 0.0
        %2100 = vmatpush.msra.mxu0 0.0
        %2101 = vmatpush.msra.mxu0 0.0
        %2102 = vmatpush.msra.mxu0 0.0
        %2103 = vmatpush.msra.mxu0 0.0
        %2104 = vmatpush.msra.mxu0 0.0
        %2105 = vmatpush.msra.mxu0 0.0
        %2106 = vmatpush.msra.mxu0 0.0
        %2107 = vmatpush.msra.mxu0 0.0
        %2108 = vmatpush.msra.mxu0 0.0
        %2109 = vmatpush.msra.mxu0 0.0
        %2110 = vmatpush.msra.mxu0 0.0
        %2111 = vmatpush.msra.mxu0 0.0
        %2112 = vmatpush.msra.mxu0 %v2092
        %2113 = vmatmul.f32.gmra.mxu0 %v2089
        %v2114 = vpop.f32.mrf.mxu0
        %v2115 = vadd.f32 0.0, %v2114
        %2116 = vdwg.mxu0
        %2117 = vmatpush.msra.mxu0 0.0
        %2118 = vmatpush.msra.mxu0 0.0
        %2119 = vmatpush.msra.mxu0 0.0
        %2120 = vmatpush.msra.mxu0 0.0
        %2121 = vmatpush.msra.mxu0 0.0
        %2122 = vmatpush.msra.mxu0 0.0
        %2123 = vmatpush.msra.mxu0 0.0
        %2124 = vmatpush.msra.mxu0 0.0
        %2125 = vmatpush.msra.mxu0 0.0
        %2126 = vmatpush.msra.mxu0 0.0
        %2127 = vmatpush.msra.mxu0 0.0
        %2128 = vmatpush.msra.mxu0 0.0
        %2129 = vmatpush.msra.mxu0 0.0
        %2130 = vmatpush.msra.mxu0 0.0
        %2131 = vmatpush.msra.mxu0 0.0
        %2132 = vmatpush.msra.mxu0 %v2095
        %2133 = vmatmul.f32.gmra.mxu0 %v2089
        %v2134 = vpop.f32.mrf.mxu0
        %v2135 = vadd.f32 0.0, %v2134
        %2136 = vdwg.mxu0
        %v2137 = vadd.f32 %v1934, %v2115
        %v2138 = vadd.f32 %v1935, %v2135
        %s2139 = scalar_lea.vmem [#allocation2], 2048
        %v2140 = vld [vmem:[%s2139] sm:$0xff]
        %v2141 = vld [vmem:[%s2139 + $0x8] sm:$0xff]
        %v2142 = vld [vmem:[%s2139 + $0x10] sm:$0xff]
        %v2143 = vld [vmem:[%s2139 + $0x18] sm:$0xff]
        %v2144 = vld [vmem:[%s2139 + $0x20] sm:$0xff]
        %v2145 = vld [vmem:[%s2139 + $0x28] sm:$0xff]
        %v2146 = vld [vmem:[%s2139 + $0x30] sm:$0xff]
        %v2147 = vld [vmem:[%s2139 + $0x38] sm:$0xff]
        %v2148 = vld [vmem:[%s2139 + $0x40] sm:$0xff]
        %v2149 = vld [vmem:[%s2139 + $0x48] sm:$0xff]
        %v2150 = vld [vmem:[%s2139 + $0x50] sm:$0xff]
        %v2151 = vld [vmem:[%s2139 + $0x58] sm:$0xff]
        %v2152 = vld [vmem:[%s2139 + $0x60] sm:$0xff]
        %v2153 = vld [vmem:[%s2139 + $0x68] sm:$0xff]
        %v2154 = vld [vmem:[%s2139 + $0x70] sm:$0xff]
        %v2155 = vld [vmem:[%s2139 + $0x78] sm:$0xff]
        %v2156 = vld [vmem:[%s2139 + $0x80] sm:$0xff]
        %v2157 = vld [vmem:[%s2139 + $0x88] sm:$0xff]
        %v2158 = vld [vmem:[%s2139 + $0x90] sm:$0xff]
        %v2159 = vld [vmem:[%s2139 + $0x98] sm:$0xff]
        %v2160 = vld [vmem:[%s2139 + $0xa0] sm:$0xff]
        %v2161 = vld [vmem:[%s2139 + $0xa8] sm:$0xff]
        %v2162 = vld [vmem:[%s2139 + $0xb0] sm:$0xff]
        %v2163 = vld [vmem:[%s2139 + $0xb8] sm:$0xff]
        %v2164 = vld [vmem:[%s2139 + $0xc0] sm:$0xff]
        %v2165 = vld [vmem:[%s2139 + $0xc8] sm:$0xff]
        %v2166 = vld [vmem:[%s2139 + $0xd0] sm:$0xff]
        %v2167 = vld [vmem:[%s2139 + $0xd8] sm:$0xff]
        %v2168 = vld [vmem:[%s2139 + $0xe0] sm:$0xff]
        %v2169 = vld [vmem:[%s2139 + $0xe8] sm:$0xff]
        %v2170 = vld [vmem:[%s2139 + $0xf0] sm:$0xff]
        %v2171 = vld [vmem:[%s2139 + $0xf8] sm:$0xff]
        %v2172 = vld [vmem:[%s2139 + $0x100] sm:$0xff]
        %v2173 = vld [vmem:[%s2139 + $0x108] sm:$0xff]
        %v2174 = vld [vmem:[%s2139 + $0x110] sm:$0xff]
        %v2175 = vld [vmem:[%s2139 + $0x118] sm:$0xff]
        %v2176 = vld [vmem:[%s2139 + $0x120] sm:$0xff]
        %v2177 = vld [vmem:[%s2139 + $0x128] sm:$0xff]
        %v2178 = vld [vmem:[%s2139 + $0x130] sm:$0xff]
        %v2179 = vld [vmem:[%s2139 + $0x138] sm:$0xff]
        %v2180 = vld [vmem:[%s2139 + $0x140] sm:$0xff]
        %v2181 = vld [vmem:[%s2139 + $0x148] sm:$0xff]
        %v2182 = vld [vmem:[%s2139 + $0x150] sm:$0xff]
        %v2183 = vld [vmem:[%s2139 + $0x158] sm:$0xff]
        %v2184 = vld [vmem:[%s2139 + $0x160] sm:$0xff]
        %v2185 = vld [vmem:[%s2139 + $0x168] sm:$0xff]
        %v2186 = vld [vmem:[%s2139 + $0x170] sm:$0xff]
        %v2187 = vld [vmem:[%s2139 + $0x178] sm:$0xff]
        %v2188 = vld [vmem:[%s2139 + $0x180] sm:$0xff]
        %v2189 = vld [vmem:[%s2139 + $0x188] sm:$0xff]
        %v2190 = vld [vmem:[%s2139 + $0x190] sm:$0xff]
        %v2191 = vld [vmem:[%s2139 + $0x198] sm:$0xff]
        %v2192 = vld [vmem:[%s2139 + $0x1a0] sm:$0xff]
        %v2193 = vld [vmem:[%s2139 + $0x1a8] sm:$0xff]
        %v2194 = vld [vmem:[%s2139 + $0x1b0] sm:$0xff]
        %v2195 = vld [vmem:[%s2139 + $0x1b8] sm:$0xff]
        %v2196 = vld [vmem:[%s2139 + $0x1c0] sm:$0xff]
        %v2197 = vld [vmem:[%s2139 + $0x1c8] sm:$0xff]
        %v2198 = vld [vmem:[%s2139 + $0x1d0] sm:$0xff]
        %v2199 = vld [vmem:[%s2139 + $0x1d8] sm:$0xff]
        %v2200 = vld [vmem:[%s2139 + $0x1e0] sm:$0xff]
        %v2201 = vld [vmem:[%s2139 + $0x1e8] sm:$0xff]
        %v2202 = vld [vmem:[%s2139 + $0x1f0] sm:$0xff]
        %v2203 = vld [vmem:[%s2139 + $0x1f8] sm:$0xff]
        %2204 = vst [vmem:[#allocation1] ss:$4 sm:$0xff] %v1329
        %v2205 = vld.sshfl [vmem:[#allocation1] sm:$0xff pattern:$0x73625140]
        %v2206 = vld.sshfl [vmem:[#allocation1 + $0x8] sm:$0xff pattern:$0x73625140]
        %2209 = vmatpush.msra.mxu0 %v2170
        %2210 = vmatpush.msra.mxu0 %v2168
        %2211 = vmatpush.msra.mxu0 %v2166
        %2212 = vmatpush.msra.mxu0 %v2164
        %2213 = vmatpush.msra.mxu0 %v2162
        %2214 = vmatpush.msra.mxu0 %v2160
        %2215 = vmatpush.msra.mxu0 %v2158
        %2216 = vmatpush.msra.mxu0 %v2156
        %2217 = vmatpush.msra.mxu0 %v2154
        %2218 = vmatpush.msra.mxu0 %v2152
        %2219 = vmatpush.msra.mxu0 %v2150
        %2220 = vmatpush.msra.mxu0 %v2148
        %2221 = vmatpush.msra.mxu0 %v2146
        %2222 = vmatpush.msra.mxu0 %v2144
        %2223 = vmatpush.msra.mxu0 %v2142
        %2224 = vmatpush.msra.mxu0 %v2140
        %2225 = vmatmul.f32.gmra.mxu0 %v2205
        %v2226 = vpop.f32.mrf.mxu0
        %v2227 = vadd.f32 0.0, %v2226
        %2228 = vdwg.mxu0
        %2229 = vmatpush.msra.mxu0 %v2202
        %2230 = vmatpush.msra.mxu0 %v2200
        %2231 = vmatpush.msra.mxu0 %v2198
        %2232 = vmatpush.msra.mxu0 %v2196
        %2233 = vmatpush.msra.mxu0 %v2194
        %2234 = vmatpush.msra.mxu0 %v2192
        %2235 = vmatpush.msra.mxu0 %v2190
        %2236 = vmatpush.msra.mxu0 %v2188
        %2237 = vmatpush.msra.mxu0 %v2186
        %2238 = vmatpush.msra.mxu0 %v2184
        %2239 = vmatpush.msra.mxu0 %v2182
        %2240 = vmatpush.msra.mxu0 %v2180
        %2241 = vmatpush.msra.mxu0 %v2178
        %2242 = vmatpush.msra.mxu0 %v2176
        %2243 = vmatpush.msra.mxu0 %v2174
        %2244 = vmatpush.msra.mxu0 %v2172
        %2245 = vmatmul.f32.gmra.mxu0 %v2206
        %v2246 = vpop.f32.mrf.mxu0
        %v2247 = vadd.f32 %v2227, %v2246
        %2248 = vdwg.mxu0
        %2249 = vmatpush.msra.mxu0 %v2171
        %2250 = vmatpush.msra.mxu0 %v2169
        %2251 = vmatpush.msra.mxu0 %v2167
        %2252 = vmatpush.msra.mxu0 %v2165
        %2253 = vmatpush.msra.mxu0 %v2163
        %2254 = vmatpush.msra.mxu0 %v2161
        %2255 = vmatpush.msra.mxu0 %v2159
        %2256 = vmatpush.msra.mxu0 %v2157
        %2257 = vmatpush.msra.mxu0 %v2155
        %2258 = vmatpush.msra.mxu0 %v2153
        %2259 = vmatpush.msra.mxu0 %v2151
        %2260 = vmatpush.msra.mxu0 %v2149
        %2261 = vmatpush.msra.mxu0 %v2147
        %2262 = vmatpush.msra.mxu0 %v2145
        %2263 = vmatpush.msra.mxu0 %v2143
        %2264 = vmatpush.msra.mxu0 %v2141
        %2265 = vmatmul.f32.gmra.mxu0 %v2205
        %v2266 = vpop.f32.mrf.mxu0
        %v2267 = vadd.f32 0.0, %v2266
        %2268 = vdwg.mxu0
        %2269 = vmatpush.msra.mxu0 %v2203
        %2270 = vmatpush.msra.mxu0 %v2201
        %2271 = vmatpush.msra.mxu0 %v2199
        %2272 = vmatpush.msra.mxu0 %v2197
        %2273 = vmatpush.msra.mxu0 %v2195
        %2274 = vmatpush.msra.mxu0 %v2193
        %2275 = vmatpush.msra.mxu0 %v2191
        %2276 = vmatpush.msra.mxu0 %v2189
        %2277 = vmatpush.msra.mxu0 %v2187
        %2278 = vmatpush.msra.mxu0 %v2185
        %2279 = vmatpush.msra.mxu0 %v2183
        %2280 = vmatpush.msra.mxu0 %v2181
        %2281 = vmatpush.msra.mxu0 %v2179
        %2282 = vmatpush.msra.mxu0 %v2177
        %2283 = vmatpush.msra.mxu0 %v2175
        %2284 = vmatpush.msra.mxu0 %v2173
        %2285 = vmatmul.f32.gmra.mxu0 %v2206
        %v2286 = vpop.f32.mrf.mxu0
        %v2287 = vadd.f32 %v2267, %v2286
        %2288 = vdwg.mxu0
        %s2289 = scalar_lea.vmem %s29, 32
        %v2290 = vld [vmem:[%s2289] sm:$0xff]
        %v2292 = vsel %vm1633, %v2290, 0
        %v2295 = vsel %vm1637, %v2247, 0
        %v2298 = vsel %vm1637, %v2287, 0
        %2300 = vmatpush.msra.mxu0 0.0
        %2301 = vmatpush.msra.mxu0 0.0
        %2302 = vmatpush.msra.mxu0 0.0
        %2303 = vmatpush.msra.mxu0 0.0
        %2304 = vmatpush.msra.mxu0 0.0
        %2305 = vmatpush.msra.mxu0 0.0
        %2306 = vmatpush.msra.mxu0 0.0
        %2307 = vmatpush.msra.mxu0 0.0
        %2308 = vmatpush.msra.mxu0 0.0
        %2309 = vmatpush.msra.mxu0 0.0
        %2310 = vmatpush.msra.mxu0 0.0
        %2311 = vmatpush.msra.mxu0 0.0
        %2312 = vmatpush.msra.mxu0 0.0
        %2313 = vmatpush.msra.mxu0 0.0
        %2314 = vmatpush.msra.mxu0 0.0
        %2315 = vmatpush.msra.mxu0 %v2295
        %2316 = vmatmul.f32.gmra.mxu0 %v2292
        %v2317 = vpop.f32.mrf.mxu0
        %v2318 = vadd.f32 0.0, %v2317
        %2319 = vdwg.mxu0
        %2320 = vmatpush.msra.mxu0 0.0
        %2321 = vmatpush.msra.mxu0 0.0
        %2322 = vmatpush.msra.mxu0 0.0
        %2323 = vmatpush.msra.mxu0 0.0
        %2324 = vmatpush.msra.mxu0 0.0
        %2325 = vmatpush.msra.mxu0 0.0
        %2326 = vmatpush.msra.mxu0 0.0
        %2327 = vmatpush.msra.mxu0 0.0
        %2328 = vmatpush.msra.mxu0 0.0
        %2329 = vmatpush.msra.mxu0 0.0
        %2330 = vmatpush.msra.mxu0 0.0
        %2331 = vmatpush.msra.mxu0 0.0
        %2332 = vmatpush.msra.mxu0 0.0
        %2333 = vmatpush.msra.mxu0 0.0
        %2334 = vmatpush.msra.mxu0 0.0
        %2335 = vmatpush.msra.mxu0 %v2298
        %2336 = vmatmul.f32.gmra.mxu0 %v2292
        %v2337 = vpop.f32.mrf.mxu0
        %v2338 = vadd.f32 0.0, %v2337
        %2339 = vdwg.mxu0
        %v2340 = vadd.f32 %v2137, %v2318
        %v2341 = vadd.f32 %v2138, %v2338
        %s2342 = scalar_lea.vmem [#allocation2], 2560
        %v2343 = vld [vmem:[%s2342] sm:$0xff]
        %v2344 = vld [vmem:[%s2342 + $0x8] sm:$0xff]
        %v2345 = vld [vmem:[%s2342 + $0x10] sm:$0xff]
        %v2346 = vld [vmem:[%s2342 + $0x18] sm:$0xff]
        %v2347 = vld [vmem:[%s2342 + $0x20] sm:$0xff]
        %v2348 = vld [vmem:[%s2342 + $0x28] sm:$0xff]
        %v2349 = vld [vmem:[%s2342 + $0x30] sm:$0xff]
        %v2350 = vld [vmem:[%s2342 + $0x38] sm:$0xff]
        %v2351 = vld [vmem:[%s2342 + $0x40] sm:$0xff]
        %v2352 = vld [vmem:[%s2342 + $0x48] sm:$0xff]
        %v2353 = vld [vmem:[%s2342 + $0x50] sm:$0xff]
        %v2354 = vld [vmem:[%s2342 + $0x58] sm:$0xff]
        %v2355 = vld [vmem:[%s2342 + $0x60] sm:$0xff]
        %v2356 = vld [vmem:[%s2342 + $0x68] sm:$0xff]
        %v2357 = vld [vmem:[%s2342 + $0x70] sm:$0xff]
        %v2358 = vld [vmem:[%s2342 + $0x78] sm:$0xff]
        %v2359 = vld [vmem:[%s2342 + $0x80] sm:$0xff]
        %v2360 = vld [vmem:[%s2342 + $0x88] sm:$0xff]
        %v2361 = vld [vmem:[%s2342 + $0x90] sm:$0xff]
        %v2362 = vld [vmem:[%s2342 + $0x98] sm:$0xff]
        %v2363 = vld [vmem:[%s2342 + $0xa0] sm:$0xff]
        %v2364 = vld [vmem:[%s2342 + $0xa8] sm:$0xff]
        %v2365 = vld [vmem:[%s2342 + $0xb0] sm:$0xff]
        %v2366 = vld [vmem:[%s2342 + $0xb8] sm:$0xff]
        %v2367 = vld [vmem:[%s2342 + $0xc0] sm:$0xff]
        %v2368 = vld [vmem:[%s2342 + $0xc8] sm:$0xff]
        %v2369 = vld [vmem:[%s2342 + $0xd0] sm:$0xff]
        %v2370 = vld [vmem:[%s2342 + $0xd8] sm:$0xff]
        %v2371 = vld [vmem:[%s2342 + $0xe0] sm:$0xff]
        %v2372 = vld [vmem:[%s2342 + $0xe8] sm:$0xff]
        %v2373 = vld [vmem:[%s2342 + $0xf0] sm:$0xff]
        %v2374 = vld [vmem:[%s2342 + $0xf8] sm:$0xff]
        %v2375 = vld [vmem:[%s2342 + $0x100] sm:$0xff]
        %v2376 = vld [vmem:[%s2342 + $0x108] sm:$0xff]
        %v2377 = vld [vmem:[%s2342 + $0x110] sm:$0xff]
        %v2378 = vld [vmem:[%s2342 + $0x118] sm:$0xff]
        %v2379 = vld [vmem:[%s2342 + $0x120] sm:$0xff]
        %v2380 = vld [vmem:[%s2342 + $0x128] sm:$0xff]
        %v2381 = vld [vmem:[%s2342 + $0x130] sm:$0xff]
        %v2382 = vld [vmem:[%s2342 + $0x138] sm:$0xff]
        %v2383 = vld [vmem:[%s2342 + $0x140] sm:$0xff]
        %v2384 = vld [vmem:[%s2342 + $0x148] sm:$0xff]
        %v2385 = vld [vmem:[%s2342 + $0x150] sm:$0xff]
        %v2386 = vld [vmem:[%s2342 + $0x158] sm:$0xff]
        %v2387 = vld [vmem:[%s2342 + $0x160] sm:$0xff]
        %v2388 = vld [vmem:[%s2342 + $0x168] sm:$0xff]
        %v2389 = vld [vmem:[%s2342 + $0x170] sm:$0xff]
        %v2390 = vld [vmem:[%s2342 + $0x178] sm:$0xff]
        %v2391 = vld [vmem:[%s2342 + $0x180] sm:$0xff]
        %v2392 = vld [vmem:[%s2342 + $0x188] sm:$0xff]
        %v2393 = vld [vmem:[%s2342 + $0x190] sm:$0xff]
        %v2394 = vld [vmem:[%s2342 + $0x198] sm:$0xff]
        %v2395 = vld [vmem:[%s2342 + $0x1a0] sm:$0xff]
        %v2396 = vld [vmem:[%s2342 + $0x1a8] sm:$0xff]
        %v2397 = vld [vmem:[%s2342 + $0x1b0] sm:$0xff]
        %v2398 = vld [vmem:[%s2342 + $0x1b8] sm:$0xff]
        %v2399 = vld [vmem:[%s2342 + $0x1c0] sm:$0xff]
        %v2400 = vld [vmem:[%s2342 + $0x1c8] sm:$0xff]
        %v2401 = vld [vmem:[%s2342 + $0x1d0] sm:$0xff]
        %v2402 = vld [vmem:[%s2342 + $0x1d8] sm:$0xff]
        %v2403 = vld [vmem:[%s2342 + $0x1e0] sm:$0xff]
        %v2404 = vld [vmem:[%s2342 + $0x1e8] sm:$0xff]
        %v2405 = vld [vmem:[%s2342 + $0x1f0] sm:$0xff]
        %v2406 = vld [vmem:[%s2342 + $0x1f8] sm:$0xff]
        %2407 = vst [vmem:[#allocation1] ss:$4 sm:$0xff] %v1329
        %v2408 = vld.sshfl [vmem:[#allocation1] sm:$0xff pattern:$0x73625140]
        %v2409 = vld.sshfl [vmem:[#allocation1 + $0x8] sm:$0xff pattern:$0x73625140]
        %2412 = vmatpush.msra.mxu0 %v2373
        %2413 = vmatpush.msra.mxu0 %v2371
        %2414 = vmatpush.msra.mxu0 %v2369
        %2415 = vmatpush.msra.mxu0 %v2367
        %2416 = vmatpush.msra.mxu0 %v2365
        %2417 = vmatpush.msra.mxu0 %v2363
        %2418 = vmatpush.msra.mxu0 %v2361
        %2419 = vmatpush.msra.mxu0 %v2359
        %2420 = vmatpush.msra.mxu0 %v2357
        %2421 = vmatpush.msra.mxu0 %v2355
        %2422 = vmatpush.msra.mxu0 %v2353
        %2423 = vmatpush.msra.mxu0 %v2351
        %2424 = vmatpush.msra.mxu0 %v2349
        %2425 = vmatpush.msra.mxu0 %v2347
        %2426 = vmatpush.msra.mxu0 %v2345
        %2427 = vmatpush.msra.mxu0 %v2343
        %2428 = vmatmul.f32.gmra.mxu0 %v2408
        %v2429 = vpop.f32.mrf.mxu0
        %v2430 = vadd.f32 0.0, %v2429
        %2431 = vdwg.mxu0
        %2432 = vmatpush.msra.mxu0 %v2405
        %2433 = vmatpush.msra.mxu0 %v2403
        %2434 = vmatpush.msra.mxu0 %v2401
        %2435 = vmatpush.msra.mxu0 %v2399
        %2436 = vmatpush.msra.mxu0 %v2397
        %2437 = vmatpush.msra.mxu0 %v2395
        %2438 = vmatpush.msra.mxu0 %v2393
        %2439 = vmatpush.msra.mxu0 %v2391
        %2440 = vmatpush.msra.mxu0 %v2389
        %2441 = vmatpush.msra.mxu0 %v2387
        %2442 = vmatpush.msra.mxu0 %v2385
        %2443 = vmatpush.msra.mxu0 %v2383
        %2444 = vmatpush.msra.mxu0 %v2381
        %2445 = vmatpush.msra.mxu0 %v2379
        %2446 = vmatpush.msra.mxu0 %v2377
        %2447 = vmatpush.msra.mxu0 %v2375
        %2448 = vmatmul.f32.gmra.mxu0 %v2409
        %v2449 = vpop.f32.mrf.mxu0
        %v2450 = vadd.f32 %v2430, %v2449
        %2451 = vdwg.mxu0
        %2452 = vmatpush.msra.mxu0 %v2374
        %2453 = vmatpush.msra.mxu0 %v2372
        %2454 = vmatpush.msra.mxu0 %v2370
        %2455 = vmatpush.msra.mxu0 %v2368
        %2456 = vmatpush.msra.mxu0 %v2366
        %2457 = vmatpush.msra.mxu0 %v2364
        %2458 = vmatpush.msra.mxu0 %v2362
        %2459 = vmatpush.msra.mxu0 %v2360
        %2460 = vmatpush.msra.mxu0 %v2358
        %2461 = vmatpush.msra.mxu0 %v2356
        %2462 = vmatpush.msra.mxu0 %v2354
        %2463 = vmatpush.msra.mxu0 %v2352
        %2464 = vmatpush.msra.mxu0 %v2350
        %2465 = vmatpush.msra.mxu0 %v2348
        %2466 = vmatpush.msra.mxu0 %v2346
        %2467 = vmatpush.msra.mxu0 %v2344
        %2468 = vmatmul.f32.gmra.mxu0 %v2408
        %v2469 = vpop.f32.mrf.mxu0
        %v2470 = vadd.f32 0.0, %v2469
        %2471 = vdwg.mxu0
        %2472 = vmatpush.msra.mxu0 %v2406
        %2473 = vmatpush.msra.mxu0 %v2404
        %2474 = vmatpush.msra.mxu0 %v2402
        %2475 = vmatpush.msra.mxu0 %v2400
        %2476 = vmatpush.msra.mxu0 %v2398
        %2477 = vmatpush.msra.mxu0 %v2396
        %2478 = vmatpush.msra.mxu0 %v2394
        %2479 = vmatpush.msra.mxu0 %v2392
        %2480 = vmatpush.msra.mxu0 %v2390
        %2481 = vmatpush.msra.mxu0 %v2388
        %2482 = vmatpush.msra.mxu0 %v2386
        %2483 = vmatpush.msra.mxu0 %v2384
        %2484 = vmatpush.msra.mxu0 %v2382
        %2485 = vmatpush.msra.mxu0 %v2380
        %2486 = vmatpush.msra.mxu0 %v2378
        %2487 = vmatpush.msra.mxu0 %v2376
        %2488 = vmatmul.f32.gmra.mxu0 %v2409
        %v2489 = vpop.f32.mrf.mxu0
        %v2490 = vadd.f32 %v2470, %v2489
        %2491 = vdwg.mxu0
        %s2492 = scalar_lea.vmem %s29, 40
        %v2493 = vld [vmem:[%s2492] sm:$0xff]
        %v2495 = vsel %vm1633, %v2493, 0
        %v2498 = vsel %vm1637, %v2450, 0
        %v2501 = vsel %vm1637, %v2490, 0
        %2503 = vmatpush.msra.mxu0 0.0
        %2504 = vmatpush.msra.mxu0 0.0
        %2505 = vmatpush.msra.mxu0 0.0
        %2506 = vmatpush.msra.mxu0 0.0
        %2507 = vmatpush.msra.mxu0 0.0
        %2508 = vmatpush.msra.mxu0 0.0
        %2509 = vmatpush.msra.mxu0 0.0
        %2510 = vmatpush.msra.mxu0 0.0
        %2511 = vmatpush.msra.mxu0 0.0
        %2512 = vmatpush.msra.mxu0 0.0
        %2513 = vmatpush.msra.mxu0 0.0
        %2514 = vmatpush.msra.mxu0 0.0
        %2515 = vmatpush.msra.mxu0 0.0
        %2516 = vmatpush.msra.mxu0 0.0
        %2517 = vmatpush.msra.mxu0 0.0
        %2518 = vmatpush.msra.mxu0 %v2498
        %2519 = vmatmul.f32.gmra.mxu0 %v2495
        %v2520 = vpop.f32.mrf.mxu0
        %v2521 = vadd.f32 0.0, %v2520
        %2522 = vdwg.mxu0
        %2523 = vmatpush.msra.mxu0 0.0
        %2524 = vmatpush.msra.mxu0 0.0
        %2525 = vmatpush.msra.mxu0 0.0
        %2526 = vmatpush.msra.mxu0 0.0
        %2527 = vmatpush.msra.mxu0 0.0
        %2528 = vmatpush.msra.mxu0 0.0
        %2529 = vmatpush.msra.mxu0 0.0
        %2530 = vmatpush.msra.mxu0 0.0
        %2531 = vmatpush.msra.mxu0 0.0
        %2532 = vmatpush.msra.mxu0 0.0
        %2533 = vmatpush.msra.mxu0 0.0
        %2534 = vmatpush.msra.mxu0 0.0
        %2535 = vmatpush.msra.mxu0 0.0
        %2536 = vmatpush.msra.mxu0 0.0
        %2537 = vmatpush.msra.mxu0 0.0
        %2538 = vmatpush.msra.mxu0 %v2501
        %2539 = vmatmul.f32.gmra.mxu0 %v2495
        %v2540 = vpop.f32.mrf.mxu0
        %v2541 = vadd.f32 0.0, %v2540
        %2542 = vdwg.mxu0
        %v2543 = vadd.f32 %v2340, %v2521
        %v2544 = vadd.f32 %v2341, %v2541
        %s2545 = scalar_lea.vmem [#allocation2], 3072
        %v2546 = vld [vmem:[%s2545] sm:$0xff]
        %v2547 = vld [vmem:[%s2545 + $0x8] sm:$0xff]
        %v2548 = vld [vmem:[%s2545 + $0x10] sm:$0xff]
        %v2549 = vld [vmem:[%s2545 + $0x18] sm:$0xff]
        %v2550 = vld [vmem:[%s2545 + $0x20] sm:$0xff]
        %v2551 = vld [vmem:[%s2545 + $0x28] sm:$0xff]
        %v2552 = vld [vmem:[%s2545 + $0x30] sm:$0xff]
        %v2553 = vld [vmem:[%s2545 + $0x38] sm:$0xff]
        %v2554 = vld [vmem:[%s2545 + $0x40] sm:$0xff]
        %v2555 = vld [vmem:[%s2545 + $0x48] sm:$0xff]
        %v2556 = vld [vmem:[%s2545 + $0x50] sm:$0xff]
        %v2557 = vld [vmem:[%s2545 + $0x58] sm:$0xff]
        %v2558 = vld [vmem:[%s2545 + $0x60] sm:$0xff]
        %v2559 = vld [vmem:[%s2545 + $0x68] sm:$0xff]
        %v2560 = vld [vmem:[%s2545 + $0x70] sm:$0xff]
        %v2561 = vld [vmem:[%s2545 + $0x78] sm:$0xff]
        %v2562 = vld [vmem:[%s2545 + $0x80] sm:$0xff]
        %v2563 = vld [vmem:[%s2545 + $0x88] sm:$0xff]
        %v2564 = vld [vmem:[%s2545 + $0x90] sm:$0xff]
        %v2565 = vld [vmem:[%s2545 + $0x98] sm:$0xff]
        %v2566 = vld [vmem:[%s2545 + $0xa0] sm:$0xff]
        %v2567 = vld [vmem:[%s2545 + $0xa8] sm:$0xff]
        %v2568 = vld [vmem:[%s2545 + $0xb0] sm:$0xff]
        %v2569 = vld [vmem:[%s2545 + $0xb8] sm:$0xff]
        %v2570 = vld [vmem:[%s2545 + $0xc0] sm:$0xff]
        %v2571 = vld [vmem:[%s2545 + $0xc8] sm:$0xff]
        %v2572 = vld [vmem:[%s2545 + $0xd0] sm:$0xff]
        %v2573 = vld [vmem:[%s2545 + $0xd8] sm:$0xff]
        %v2574 = vld [vmem:[%s2545 + $0xe0] sm:$0xff]
        %v2575 = vld [vmem:[%s2545 + $0xe8] sm:$0xff]
        %v2576 = vld [vmem:[%s2545 + $0xf0] sm:$0xff]
        %v2577 = vld [vmem:[%s2545 + $0xf8] sm:$0xff]
        %v2578 = vld [vmem:[%s2545 + $0x100] sm:$0xff]
        %v2579 = vld [vmem:[%s2545 + $0x108] sm:$0xff]
        %v2580 = vld [vmem:[%s2545 + $0x110] sm:$0xff]
        %v2581 = vld [vmem:[%s2545 + $0x118] sm:$0xff]
        %v2582 = vld [vmem:[%s2545 + $0x120] sm:$0xff]
        %v2583 = vld [vmem:[%s2545 + $0x128] sm:$0xff]
        %v2584 = vld [vmem:[%s2545 + $0x130] sm:$0xff]
        %v2585 = vld [vmem:[%s2545 + $0x138] sm:$0xff]
        %v2586 = vld [vmem:[%s2545 + $0x140] sm:$0xff]
        %v2587 = vld [vmem:[%s2545 + $0x148] sm:$0xff]
        %v2588 = vld [vmem:[%s2545 + $0x150] sm:$0xff]
        %v2589 = vld [vmem:[%s2545 + $0x158] sm:$0xff]
        %v2590 = vld [vmem:[%s2545 + $0x160] sm:$0xff]
        %v2591 = vld [vmem:[%s2545 + $0x168] sm:$0xff]
        %v2592 = vld [vmem:[%s2545 + $0x170] sm:$0xff]
        %v2593 = vld [vmem:[%s2545 + $0x178] sm:$0xff]
        %v2594 = vld [vmem:[%s2545 + $0x180] sm:$0xff]
        %v2595 = vld [vmem:[%s2545 + $0x188] sm:$0xff]
        %v2596 = vld [vmem:[%s2545 + $0x190] sm:$0xff]
        %v2597 = vld [vmem:[%s2545 + $0x198] sm:$0xff]
        %v2598 = vld [vmem:[%s2545 + $0x1a0] sm:$0xff]
        %v2599 = vld [vmem:[%s2545 + $0x1a8] sm:$0xff]
        %v2600 = vld [vmem:[%s2545 + $0x1b0] sm:$0xff]
        %v2601 = vld [vmem:[%s2545 + $0x1b8] sm:$0xff]
        %v2602 = vld [vmem:[%s2545 + $0x1c0] sm:$0xff]
        %v2603 = vld [vmem:[%s2545 + $0x1c8] sm:$0xff]
        %v2604 = vld [vmem:[%s2545 + $0x1d0] sm:$0xff]
        %v2605 = vld [vmem:[%s2545 + $0x1d8] sm:$0xff]
        %v2606 = vld [vmem:[%s2545 + $0x1e0] sm:$0xff]
        %v2607 = vld [vmem:[%s2545 + $0x1e8] sm:$0xff]
        %v2608 = vld [vmem:[%s2545 + $0x1f0] sm:$0xff]
        %v2609 = vld [vmem:[%s2545 + $0x1f8] sm:$0xff]
        %2610 = vst [vmem:[#allocation1] ss:$4 sm:$0xff] %v1329
        %v2611 = vld.sshfl [vmem:[#allocation1] sm:$0xff pattern:$0x73625140]
        %v2612 = vld.sshfl [vmem:[#allocation1 + $0x8] sm:$0xff pattern:$0x73625140]
        %2615 = vmatpush.msra.mxu0 %v2576
        %2616 = vmatpush.msra.mxu0 %v2574
        %2617 = vmatpush.msra.mxu0 %v2572
        %2618 = vmatpush.msra.mxu0 %v2570
        %2619 = vmatpush.msra.mxu0 %v2568
        %2620 = vmatpush.msra.mxu0 %v2566
        %2621 = vmatpush.msra.mxu0 %v2564
        %2622 = vmatpush.msra.mxu0 %v2562
        %2623 = vmatpush.msra.mxu0 %v2560
        %2624 = vmatpush.msra.mxu0 %v2558
        %2625 = vmatpush.msra.mxu0 %v2556
        %2626 = vmatpush.msra.mxu0 %v2554
        %2627 = vmatpush.msra.mxu0 %v2552
        %2628 = vmatpush.msra.mxu0 %v2550
        %2629 = vmatpush.msra.mxu0 %v2548
        %2630 = vmatpush.msra.mxu0 %v2546
        %2631 = vmatmul.f32.gmra.mxu0 %v2611
        %v2632 = vpop.f32.mrf.mxu0
        %v2633 = vadd.f32 0.0, %v2632
        %2634 = vdwg.mxu0
        %2635 = vmatpush.msra.mxu0 %v2608
        %2636 = vmatpush.msra.mxu0 %v2606
        %2637 = vmatpush.msra.mxu0 %v2604
        %2638 = vmatpush.msra.mxu0 %v2602
        %2639 = vmatpush.msra.mxu0 %v2600
        %2640 = vmatpush.msra.mxu0 %v2598
        %2641 = vmatpush.msra.mxu0 %v2596
        %2642 = vmatpush.msra.mxu0 %v2594
        %2643 = vmatpush.msra.mxu0 %v2592
        %2644 = vmatpush.msra.mxu0 %v2590
        %2645 = vmatpush.msra.mxu0 %v2588
        %2646 = vmatpush.msra.mxu0 %v2586
        %2647 = vmatpush.msra.mxu0 %v2584
        %2648 = vmatpush.msra.mxu0 %v2582
        %2649 = vmatpush.msra.mxu0 %v2580
        %2650 = vmatpush.msra.mxu0 %v2578
        %2651 = vmatmul.f32.gmra.mxu0 %v2612
        %v2652 = vpop.f32.mrf.mxu0
        %v2653 = vadd.f32 %v2633, %v2652
        %2654 = vdwg.mxu0
        %2655 = vmatpush.msra.mxu0 %v2577
        %2656 = vmatpush.msra.mxu0 %v2575
        %2657 = vmatpush.msra.mxu0 %v2573
        %2658 = vmatpush.msra.mxu0 %v2571
        %2659 = vmatpush.msra.mxu0 %v2569
        %2660 = vmatpush.msra.mxu0 %v2567
        %2661 = vmatpush.msra.mxu0 %v2565
        %2662 = vmatpush.msra.mxu0 %v2563
        %2663 = vmatpush.msra.mxu0 %v2561
        %2664 = vmatpush.msra.mxu0 %v2559
        %2665 = vmatpush.msra.mxu0 %v2557
        %2666 = vmatpush.msra.mxu0 %v2555
        %2667 = vmatpush.msra.mxu0 %v2553
        %2668 = vmatpush.msra.mxu0 %v2551
        %2669 = vmatpush.msra.mxu0 %v2549
        %2670 = vmatpush.msra.mxu0 %v2547
        %2671 = vmatmul.f32.gmra.mxu0 %v2611
        %v2672 = vpop.f32.mrf.mxu0
        %v2673 = vadd.f32 0.0, %v2672
        %2674 = vdwg.mxu0
        %2675 = vmatpush.msra.mxu0 %v2609
        %2676 = vmatpush.msra.mxu0 %v2607
        %2677 = vmatpush.msra.mxu0 %v2605
        %2678 = vmatpush.msra.mxu0 %v2603
        %2679 = vmatpush.msra.mxu0 %v2601
        %2680 = vmatpush.msra.mxu0 %v2599
        %2681 = vmatpush.msra.mxu0 %v2597
        %2682 = vmatpush.msra.mxu0 %v2595
        %2683 = vmatpush.msra.mxu0 %v2593
        %2684 = vmatpush.msra.mxu0 %v2591
        %2685 = vmatpush.msra.mxu0 %v2589
        %2686 = vmatpush.msra.mxu0 %v2587
        %2687 = vmatpush.msra.mxu0 %v2585
        %2688 = vmatpush.msra.mxu0 %v2583
        %2689 = vmatpush.msra.mxu0 %v2581
        %2690 = vmatpush.msra.mxu0 %v2579
        %2691 = vmatmul.f32.gmra.mxu0 %v2612
        %v2692 = vpop.f32.mrf.mxu0
        %v2693 = vadd.f32 %v2673, %v2692
        %2694 = vdwg.mxu0
        %s2695 = scalar_lea.vmem %s29, 48
        %v2696 = vld [vmem:[%s2695] sm:$0xff]
        %v2698 = vsel %vm1633, %v2696, 0
        %v2701 = vsel %vm1637, %v2653, 0
        %v2704 = vsel %vm1637, %v2693, 0
        %2706 = vmatpush.msra.mxu0 0.0
        %2707 = vmatpush.msra.mxu0 0.0
        %2708 = vmatpush.msra.mxu0 0.0
        %2709 = vmatpush.msra.mxu0 0.0
        %2710 = vmatpush.msra.mxu0 0.0
        %2711 = vmatpush.msra.mxu0 0.0
        %2712 = vmatpush.msra.mxu0 0.0
        %2713 = vmatpush.msra.mxu0 0.0
        %2714 = vmatpush.msra.mxu0 0.0
        %2715 = vmatpush.msra.mxu0 0.0
        %2716 = vmatpush.msra.mxu0 0.0
        %2717 = vmatpush.msra.mxu0 0.0
        %2718 = vmatpush.msra.mxu0 0.0
        %2719 = vmatpush.msra.mxu0 0.0
        %2720 = vmatpush.msra.mxu0 0.0
        %2721 = vmatpush.msra.mxu0 %v2701
        %2722 = vmatmul.f32.gmra.mxu0 %v2698
        %v2723 = vpop.f32.mrf.mxu0
        %v2724 = vadd.f32 0.0, %v2723
        %2725 = vdwg.mxu0
        %2726 = vmatpush.msra.mxu0 0.0
        %2727 = vmatpush.msra.mxu0 0.0
        %2728 = vmatpush.msra.mxu0 0.0
        %2729 = vmatpush.msra.mxu0 0.0
        %2730 = vmatpush.msra.mxu0 0.0
        %2731 = vmatpush.msra.mxu0 0.0
        %2732 = vmatpush.msra.mxu0 0.0
        %2733 = vmatpush.msra.mxu0 0.0
        %2734 = vmatpush.msra.mxu0 0.0
        %2735 = vmatpush.msra.mxu0 0.0
        %2736 = vmatpush.msra.mxu0 0.0
        %2737 = vmatpush.msra.mxu0 0.0
        %2738 = vmatpush.msra.mxu0 0.0
        %2739 = vmatpush.msra.mxu0 0.0
        %2740 = vmatpush.msra.mxu0 0.0
        %2741 = vmatpush.msra.mxu0 %v2704
        %2742 = vmatmul.f32.gmra.mxu0 %v2698
        %v2743 = vpop.f32.mrf.mxu0
        %v2744 = vadd.f32 0.0, %v2743
        %2745 = vdwg.mxu0
        %v2746 = vadd.f32 %v2543, %v2724
        %v2747 = vadd.f32 %v2544, %v2744
        %s2748 = scalar_lea.vmem [#allocation2], 3584
        %v2749 = vld [vmem:[%s2748] sm:$0xff]
        %v2750 = vld [vmem:[%s2748 + $0x8] sm:$0xff]
        %v2751 = vld [vmem:[%s2748 + $0x10] sm:$0xff]
        %v2752 = vld [vmem:[%s2748 + $0x18] sm:$0xff]
        %v2753 = vld [vmem:[%s2748 + $0x20] sm:$0xff]
        %v2754 = vld [vmem:[%s2748 + $0x28] sm:$0xff]
        %v2755 = vld [vmem:[%s2748 + $0x30] sm:$0xff]
        %v2756 = vld [vmem:[%s2748 + $0x38] sm:$0xff]
        %v2757 = vld [vmem:[%s2748 + $0x40] sm:$0xff]
        %v2758 = vld [vmem:[%s2748 + $0x48] sm:$0xff]
        %v2759 = vld [vmem:[%s2748 + $0x50] sm:$0xff]
        %v2760 = vld [vmem:[%s2748 + $0x58] sm:$0xff]
        %v2761 = vld [vmem:[%s2748 + $0x60] sm:$0xff]
        %v2762 = vld [vmem:[%s2748 + $0x68] sm:$0xff]
        %v2763 = vld [vmem:[%s2748 + $0x70] sm:$0xff]
        %v2764 = vld [vmem:[%s2748 + $0x78] sm:$0xff]
        %v2765 = vld [vmem:[%s2748 + $0x80] sm:$0xff]
        %v2766 = vld [vmem:[%s2748 + $0x88] sm:$0xff]
        %v2767 = vld [vmem:[%s2748 + $0x90] sm:$0xff]
        %v2768 = vld [vmem:[%s2748 + $0x98] sm:$0xff]
        %v2769 = vld [vmem:[%s2748 + $0xa0] sm:$0xff]
        %v2770 = vld [vmem:[%s2748 + $0xa8] sm:$0xff]
        %v2771 = vld [vmem:[%s2748 + $0xb0] sm:$0xff]
        %v2772 = vld [vmem:[%s2748 + $0xb8] sm:$0xff]
        %v2773 = vld [vmem:[%s2748 + $0xc0] sm:$0xff]
        %v2774 = vld [vmem:[%s2748 + $0xc8] sm:$0xff]
        %v2775 = vld [vmem:[%s2748 + $0xd0] sm:$0xff]
        %v2776 = vld [vmem:[%s2748 + $0xd8] sm:$0xff]
        %v2777 = vld [vmem:[%s2748 + $0xe0] sm:$0xff]
        %v2778 = vld [vmem:[%s2748 + $0xe8] sm:$0xff]
        %v2779 = vld [vmem:[%s2748 + $0xf0] sm:$0xff]
        %v2780 = vld [vmem:[%s2748 + $0xf8] sm:$0xff]
        %v2781 = vld [vmem:[%s2748 + $0x100] sm:$0xff]
        %v2782 = vld [vmem:[%s2748 + $0x108] sm:$0xff]
        %v2783 = vld [vmem:[%s2748 + $0x110] sm:$0xff]
        %v2784 = vld [vmem:[%s2748 + $0x118] sm:$0xff]
        %v2785 = vld [vmem:[%s2748 + $0x120] sm:$0xff]
        %v2786 = vld [vmem:[%s2748 + $0x128] sm:$0xff]
        %v2787 = vld [vmem:[%s2748 + $0x130] sm:$0xff]
        %v2788 = vld [vmem:[%s2748 + $0x138] sm:$0xff]
        %v2789 = vld [vmem:[%s2748 + $0x140] sm:$0xff]
        %v2790 = vld [vmem:[%s2748 + $0x148] sm:$0xff]
        %v2791 = vld [vmem:[%s2748 + $0x150] sm:$0xff]
        %v2792 = vld [vmem:[%s2748 + $0x158] sm:$0xff]
        %v2793 = vld [vmem:[%s2748 + $0x160] sm:$0xff]
        %v2794 = vld [vmem:[%s2748 + $0x168] sm:$0xff]
        %v2795 = vld [vmem:[%s2748 + $0x170] sm:$0xff]
        %v2796 = vld [vmem:[%s2748 + $0x178] sm:$0xff]
        %v2797 = vld [vmem:[%s2748 + $0x180] sm:$0xff]
        %v2798 = vld [vmem:[%s2748 + $0x188] sm:$0xff]
        %v2799 = vld [vmem:[%s2748 + $0x190] sm:$0xff]
        %v2800 = vld [vmem:[%s2748 + $0x198] sm:$0xff]
        %v2801 = vld [vmem:[%s2748 + $0x1a0] sm:$0xff]
        %v2802 = vld [vmem:[%s2748 + $0x1a8] sm:$0xff]
        %v2803 = vld [vmem:[%s2748 + $0x1b0] sm:$0xff]
        %v2804 = vld [vmem:[%s2748 + $0x1b8] sm:$0xff]
        %v2805 = vld [vmem:[%s2748 + $0x1c0] sm:$0xff]
        %v2806 = vld [vmem:[%s2748 + $0x1c8] sm:$0xff]
        %v2807 = vld [vmem:[%s2748 + $0x1d0] sm:$0xff]
        %v2808 = vld [vmem:[%s2748 + $0x1d8] sm:$0xff]
        %v2809 = vld [vmem:[%s2748 + $0x1e0] sm:$0xff]
        %v2810 = vld [vmem:[%s2748 + $0x1e8] sm:$0xff]
        %v2811 = vld [vmem:[%s2748 + $0x1f0] sm:$0xff]
        %v2812 = vld [vmem:[%s2748 + $0x1f8] sm:$0xff]
        %2813 = vst [vmem:[#allocation1] ss:$4 sm:$0xff] %v1329
        %v2814 = vld.sshfl [vmem:[#allocation1] sm:$0xff pattern:$0x73625140]
        %v2815 = vld.sshfl [vmem:[#allocation1 + $0x8] sm:$0xff pattern:$0x73625140]
        %2818 = vmatpush.msra.mxu0 %v2779
        %2819 = vmatpush.msra.mxu0 %v2777
        %2820 = vmatpush.msra.mxu0 %v2775
        %2821 = vmatpush.msra.mxu0 %v2773
        %2822 = vmatpush.msra.mxu0 %v2771
        %2823 = vmatpush.msra.mxu0 %v2769
        %2824 = vmatpush.msra.mxu0 %v2767
        %2825 = vmatpush.msra.mxu0 %v2765
        %2826 = vmatpush.msra.mxu0 %v2763
        %2827 = vmatpush.msra.mxu0 %v2761
        %2828 = vmatpush.msra.mxu0 %v2759
        %2829 = vmatpush.msra.mxu0 %v2757
        %2830 = vmatpush.msra.mxu0 %v2755
        %2831 = vmatpush.msra.mxu0 %v2753
        %2832 = vmatpush.msra.mxu0 %v2751
        %2833 = vmatpush.msra.mxu0 %v2749
        %2834 = vmatmul.f32.gmra.mxu0 %v2814
        %v2835 = vpop.f32.mrf.mxu0
        %v2836 = vadd.f32 0.0, %v2835
        %2837 = vdwg.mxu0
        %2838 = vmatpush.msra.mxu0 %v2811
        %2839 = vmatpush.msra.mxu0 %v2809
        %2840 = vmatpush.msra.mxu0 %v2807
        %2841 = vmatpush.msra.mxu0 %v2805
        %2842 = vmatpush.msra.mxu0 %v2803
        %2843 = vmatpush.msra.mxu0 %v2801
        %2844 = vmatpush.msra.mxu0 %v2799
        %2845 = vmatpush.msra.mxu0 %v2797
        %2846 = vmatpush.msra.mxu0 %v2795
        %2847 = vmatpush.msra.mxu0 %v2793
        %2848 = vmatpush.msra.mxu0 %v2791
        %2849 = vmatpush.msra.mxu0 %v2789
        %2850 = vmatpush.msra.mxu0 %v2787
        %2851 = vmatpush.msra.mxu0 %v2785
        %2852 = vmatpush.msra.mxu0 %v2783
        %2853 = vmatpush.msra.mxu0 %v2781
        %2854 = vmatmul.f32.gmra.mxu0 %v2815
        %v2855 = vpop.f32.mrf.mxu0
        %v2856 = vadd.f32 %v2836, %v2855
        %2857 = vdwg.mxu0
        %2858 = vmatpush.msra.mxu0 %v2780
        %2859 = vmatpush.msra.mxu0 %v2778
        %2860 = vmatpush.msra.mxu0 %v2776
        %2861 = vmatpush.msra.mxu0 %v2774
        %2862 = vmatpush.msra.mxu0 %v2772
        %2863 = vmatpush.msra.mxu0 %v2770
        %2864 = vmatpush.msra.mxu0 %v2768
        %2865 = vmatpush.msra.mxu0 %v2766
        %2866 = vmatpush.msra.mxu0 %v2764
        %2867 = vmatpush.msra.mxu0 %v2762
        %2868 = vmatpush.msra.mxu0 %v2760
        %2869 = vmatpush.msra.mxu0 %v2758
        %2870 = vmatpush.msra.mxu0 %v2756
        %2871 = vmatpush.msra.mxu0 %v2754
        %2872 = vmatpush.msra.mxu0 %v2752
        %2873 = vmatpush.msra.mxu0 %v2750
        %2874 = vmatmul.f32.gmra.mxu0 %v2814
        %v2875 = vpop.f32.mrf.mxu0
        %v2876 = vadd.f32 0.0, %v2875
        %2877 = vdwg.mxu0
        %2878 = vmatpush.msra.mxu0 %v2812
        %2879 = vmatpush.msra.mxu0 %v2810
        %2880 = vmatpush.msra.mxu0 %v2808
        %2881 = vmatpush.msra.mxu0 %v2806
        %2882 = vmatpush.msra.mxu0 %v2804
        %2883 = vmatpush.msra.mxu0 %v2802
        %2884 = vmatpush.msra.mxu0 %v2800
        %2885 = vmatpush.msra.mxu0 %v2798
        %2886 = vmatpush.msra.mxu0 %v2796
        %2887 = vmatpush.msra.mxu0 %v2794
        %2888 = vmatpush.msra.mxu0 %v2792
        %2889 = vmatpush.msra.mxu0 %v2790
        %2890 = vmatpush.msra.mxu0 %v2788
        %2891 = vmatpush.msra.mxu0 %v2786
        %2892 = vmatpush.msra.mxu0 %v2784
        %2893 = vmatpush.msra.mxu0 %v2782
        %2894 = vmatmul.f32.gmra.mxu0 %v2815
        %v2895 = vpop.f32.mrf.mxu0
        %v2896 = vadd.f32 %v2876, %v2895
        %2897 = vdwg.mxu0
        %s2898 = scalar_lea.vmem %s29, 56
        %v2899 = vld [vmem:[%s2898] sm:$0xff]
        %v2901 = vsel %vm1633, %v2899, 0
        %v2904 = vsel %vm1637, %v2856, 0
        %v2907 = vsel %vm1637, %v2896, 0
        %2909 = vmatpush.msra.mxu0 0.0
        %2910 = vmatpush.msra.mxu0 0.0
        %2911 = vmatpush.msra.mxu0 0.0
        %2912 = vmatpush.msra.mxu0 0.0
        %2913 = vmatpush.msra.mxu0 0.0
        %2914 = vmatpush.msra.mxu0 0.0
        %2915 = vmatpush.msra.mxu0 0.0
        %2916 = vmatpush.msra.mxu0 0.0
        %2917 = vmatpush.msra.mxu0 0.0
        %2918 = vmatpush.msra.mxu0 0.0
        %2919 = vmatpush.msra.mxu0 0.0
        %2920 = vmatpush.msra.mxu0 0.0
        %2921 = vmatpush.msra.mxu0 0.0
        %2922 = vmatpush.msra.mxu0 0.0
        %2923 = vmatpush.msra.mxu0 0.0
        %2924 = vmatpush.msra.mxu0 %v2904
        %2925 = vmatmul.f32.gmra.mxu0 %v2901
        %v2926 = vpop.f32.mrf.mxu0
        %v2927 = vadd.f32 0.0, %v2926
        %2928 = vdwg.mxu0
        %2929 = vmatpush.msra.mxu0 0.0
        %2930 = vmatpush.msra.mxu0 0.0
        %2931 = vmatpush.msra.mxu0 0.0
        %2932 = vmatpush.msra.mxu0 0.0
        %2933 = vmatpush.msra.mxu0 0.0
        %2934 = vmatpush.msra.mxu0 0.0
        %2935 = vmatpush.msra.mxu0 0.0
        %2936 = vmatpush.msra.mxu0 0.0
        %2937 = vmatpush.msra.mxu0 0.0
        %2938 = vmatpush.msra.mxu0 0.0
        %2939 = vmatpush.msra.mxu0 0.0
        %2940 = vmatpush.msra.mxu0 0.0
        %2941 = vmatpush.msra.mxu0 0.0
        %2942 = vmatpush.msra.mxu0 0.0
        %2943 = vmatpush.msra.mxu0 0.0
        %2944 = vmatpush.msra.mxu0 %v2907
        %2945 = vmatmul.f32.gmra.mxu0 %v2901
        %v2946 = vpop.f32.mrf.mxu0
        %v2947 = vadd.f32 0.0, %v2946
        %2948 = vdwg.mxu0
        %v2949 = vadd.f32 %v2746, %v2927
        %v2950 = vadd.f32 %v2747, %v2947
        %s2951 = scalar_lea.vmem [#allocation2], 4096
        %v2952 = vld [vmem:[%s2951] sm:$0xff]
        %v2953 = vld [vmem:[%s2951 + $0x8] sm:$0xff]
        %v2954 = vld [vmem:[%s2951 + $0x10] sm:$0xff]
        %v2955 = vld [vmem:[%s2951 + $0x18] sm:$0xff]
        %v2956 = vld [vmem:[%s2951 + $0x20] sm:$0xff]
        %v2957 = vld [vmem:[%s2951 + $0x28] sm:$0xff]
        %v2958 = vld [vmem:[%s2951 + $0x30] sm:$0xff]
        %v2959 = vld [vmem:[%s2951 + $0x38] sm:$0xff]
        %v2960 = vld [vmem:[%s2951 + $0x40] sm:$0xff]
        %v2961 = vld [vmem:[%s2951 + $0x48] sm:$0xff]
        %v2962 = vld [vmem:[%s2951 + $0x50] sm:$0xff]
        %v2963 = vld [vmem:[%s2951 + $0x58] sm:$0xff]
        %v2964 = vld [vmem:[%s2951 + $0x60] sm:$0xff]
        %v2965 = vld [vmem:[%s2951 + $0x68] sm:$0xff]
        %v2966 = vld [vmem:[%s2951 + $0x70] sm:$0xff]
        %v2967 = vld [vmem:[%s2951 + $0x78] sm:$0xff]
        %v2968 = vld [vmem:[%s2951 + $0x80] sm:$0xff]
        %v2969 = vld [vmem:[%s2951 + $0x88] sm:$0xff]
        %v2970 = vld [vmem:[%s2951 + $0x90] sm:$0xff]
        %v2971 = vld [vmem:[%s2951 + $0x98] sm:$0xff]
        %v2972 = vld [vmem:[%s2951 + $0xa0] sm:$0xff]
        %v2973 = vld [vmem:[%s2951 + $0xa8] sm:$0xff]
        %v2974 = vld [vmem:[%s2951 + $0xb0] sm:$0xff]
        %v2975 = vld [vmem:[%s2951 + $0xb8] sm:$0xff]
        %v2976 = vld [vmem:[%s2951 + $0xc0] sm:$0xff]
        %v2977 = vld [vmem:[%s2951 + $0xc8] sm:$0xff]
        %v2978 = vld [vmem:[%s2951 + $0xd0] sm:$0xff]
        %v2979 = vld [vmem:[%s2951 + $0xd8] sm:$0xff]
        %v2980 = vld [vmem:[%s2951 + $0xe0] sm:$0xff]
        %v2981 = vld [vmem:[%s2951 + $0xe8] sm:$0xff]
        %v2982 = vld [vmem:[%s2951 + $0xf0] sm:$0xff]
        %v2983 = vld [vmem:[%s2951 + $0xf8] sm:$0xff]
        %v2984 = vld [vmem:[%s2951 + $0x100] sm:$0xff]
        %v2985 = vld [vmem:[%s2951 + $0x108] sm:$0xff]
        %v2986 = vld [vmem:[%s2951 + $0x110] sm:$0xff]
        %v2987 = vld [vmem:[%s2951 + $0x118] sm:$0xff]
        %v2988 = vld [vmem:[%s2951 + $0x120] sm:$0xff]
        %v2989 = vld [vmem:[%s2951 + $0x128] sm:$0xff]
        %v2990 = vld [vmem:[%s2951 + $0x130] sm:$0xff]
        %v2991 = vld [vmem:[%s2951 + $0x138] sm:$0xff]
        %v2992 = vld [vmem:[%s2951 + $0x140] sm:$0xff]
        %v2993 = vld [vmem:[%s2951 + $0x148] sm:$0xff]
        %v2994 = vld [vmem:[%s2951 + $0x150] sm:$0xff]
        %v2995 = vld [vmem:[%s2951 + $0x158] sm:$0xff]
        %v2996 = vld [vmem:[%s2951 + $0x160] sm:$0xff]
        %v2997 = vld [vmem:[%s2951 + $0x168] sm:$0xff]
        %v2998 = vld [vmem:[%s2951 + $0x170] sm:$0xff]
        %v2999 = vld [vmem:[%s2951 + $0x178] sm:$0xff]
        %v3000 = vld [vmem:[%s2951 + $0x180] sm:$0xff]
        %v3001 = vld [vmem:[%s2951 + $0x188] sm:$0xff]
        %v3002 = vld [vmem:[%s2951 + $0x190] sm:$0xff]
        %v3003 = vld [vmem:[%s2951 + $0x198] sm:$0xff]
        %v3004 = vld [vmem:[%s2951 + $0x1a0] sm:$0xff]
        %v3005 = vld [vmem:[%s2951 + $0x1a8] sm:$0xff]
        %v3006 = vld [vmem:[%s2951 + $0x1b0] sm:$0xff]
        %v3007 = vld [vmem:[%s2951 + $0x1b8] sm:$0xff]
        %v3008 = vld [vmem:[%s2951 + $0x1c0] sm:$0xff]
        %v3009 = vld [vmem:[%s2951 + $0x1c8] sm:$0xff]
        %v3010 = vld [vmem:[%s2951 + $0x1d0] sm:$0xff]
        %v3011 = vld [vmem:[%s2951 + $0x1d8] sm:$0xff]
        %v3012 = vld [vmem:[%s2951 + $0x1e0] sm:$0xff]
        %v3013 = vld [vmem:[%s2951 + $0x1e8] sm:$0xff]
        %v3014 = vld [vmem:[%s2951 + $0x1f0] sm:$0xff]
        %v3015 = vld [vmem:[%s2951 + $0x1f8] sm:$0xff]
        %3016 = vst [vmem:[#allocation1] ss:$4 sm:$0xff] %v1329
        %v3017 = vld.sshfl [vmem:[#allocation1] sm:$0xff pattern:$0x73625140]
        %v3018 = vld.sshfl [vmem:[#allocation1 + $0x8] sm:$0xff pattern:$0x73625140]
        %3021 = vmatpush.msra.mxu0 %v2982
        %3022 = vmatpush.msra.mxu0 %v2980
        %3023 = vmatpush.msra.mxu0 %v2978
        %3024 = vmatpush.msra.mxu0 %v2976
        %3025 = vmatpush.msra.mxu0 %v2974
        %3026 = vmatpush.msra.mxu0 %v2972
        %3027 = vmatpush.msra.mxu0 %v2970
        %3028 = vmatpush.msra.mxu0 %v2968
        %3029 = vmatpush.msra.mxu0 %v2966
        %3030 = vmatpush.msra.mxu0 %v2964
        %3031 = vmatpush.msra.mxu0 %v2962
        %3032 = vmatpush.msra.mxu0 %v2960
        %3033 = vmatpush.msra.mxu0 %v2958
        %3034 = vmatpush.msra.mxu0 %v2956
        %3035 = vmatpush.msra.mxu0 %v2954
        %3036 = vmatpush.msra.mxu0 %v2952
        %3037 = vmatmul.f32.gmra.mxu0 %v3017
        %v3038 = vpop.f32.mrf.mxu0
        %v3039 = vadd.f32 0.0, %v3038
        %3040 = vdwg.mxu0
        %3041 = vmatpush.msra.mxu0 %v3014
        %3042 = vmatpush.msra.mxu0 %v3012
        %3043 = vmatpush.msra.mxu0 %v3010
        %3044 = vmatpush.msra.mxu0 %v3008
        %3045 = vmatpush.msra.mxu0 %v3006
        %3046 = vmatpush.msra.mxu0 %v3004
        %3047 = vmatpush.msra.mxu0 %v3002
        %3048 = vmatpush.msra.mxu0 %v3000
        %3049 = vmatpush.msra.mxu0 %v2998
        %3050 = vmatpush.msra.mxu0 %v2996
        %3051 = vmatpush.msra.mxu0 %v2994
        %3052 = vmatpush.msra.mxu0 %v2992
        %3053 = vmatpush.msra.mxu0 %v2990
        %3054 = vmatpush.msra.mxu0 %v2988
        %3055 = vmatpush.msra.mxu0 %v2986
        %3056 = vmatpush.msra.mxu0 %v2984
        %3057 = vmatmul.f32.gmra.mxu0 %v3018
        %v3058 = vpop.f32.mrf.mxu0
        %v3059 = vadd.f32 %v3039, %v3058
        %3060 = vdwg.mxu0
        %3061 = vmatpush.msra.mxu0 %v2983
        %3062 = vmatpush.msra.mxu0 %v2981
        %3063 = vmatpush.msra.mxu0 %v2979
        %3064 = vmatpush.msra.mxu0 %v2977
        %3065 = vmatpush.msra.mxu0 %v2975
        %3066 = vmatpush.msra.mxu0 %v2973
        %3067 = vmatpush.msra.mxu0 %v2971
        %3068 = vmatpush.msra.mxu0 %v2969
        %3069 = vmatpush.msra.mxu0 %v2967
        %3070 = vmatpush.msra.mxu0 %v2965
        %3071 = vmatpush.msra.mxu0 %v2963
        %3072 = vmatpush.msra.mxu0 %v2961
        %3073 = vmatpush.msra.mxu0 %v2959
        %3074 = vmatpush.msra.mxu0 %v2957
        %3075 = vmatpush.msra.mxu0 %v2955
        %3076 = vmatpush.msra.mxu0 %v2953
        %3077 = vmatmul.f32.gmra.mxu0 %v3017
        %v3078 = vpop.f32.mrf.mxu0
        %v3079 = vadd.f32 0.0, %v3078
        %3080 = vdwg.mxu0
        %3081 = vmatpush.msra.mxu0 %v3015
        %3082 = vmatpush.msra.mxu0 %v3013
        %3083 = vmatpush.msra.mxu0 %v3011
        %3084 = vmatpush.msra.mxu0 %v3009
        %3085 = vmatpush.msra.mxu0 %v3007
        %3086 = vmatpush.msra.mxu0 %v3005
        %3087 = vmatpush.msra.mxu0 %v3003
        %3088 = vmatpush.msra.mxu0 %v3001
        %3089 = vmatpush.msra.mxu0 %v2999
        %3090 = vmatpush.msra.mxu0 %v2997
        %3091 = vmatpush.msra.mxu0 %v2995
        %3092 = vmatpush.msra.mxu0 %v2993
        %3093 = vmatpush.msra.mxu0 %v2991
        %3094 = vmatpush.msra.mxu0 %v2989
        %3095 = vmatpush.msra.mxu0 %v2987
        %3096 = vmatpush.msra.mxu0 %v2985
        %3097 = vmatmul.f32.gmra.mxu0 %v3018
        %v3098 = vpop.f32.mrf.mxu0
        %v3099 = vadd.f32 %v3079, %v3098
        %3100 = vdwg.mxu0
        %s3101 = scalar_lea.vmem %s29, 64
        %v3102 = vld [vmem:[%s3101] sm:$0xff]
        %v3104 = vsel %vm1633, %v3102, 0
        %v3107 = vsel %vm1637, %v3059, 0
        %v3110 = vsel %vm1637, %v3099, 0
        %3112 = vmatpush.msra.mxu0 0.0
        %3113 = vmatpush.msra.mxu0 0.0
        %3114 = vmatpush.msra.mxu0 0.0
        %3115 = vmatpush.msra.mxu0 0.0
        %3116 = vmatpush.msra.mxu0 0.0
        %3117 = vmatpush.msra.mxu0 0.0
        %3118 = vmatpush.msra.mxu0 0.0
        %3119 = vmatpush.msra.mxu0 0.0
        %3120 = vmatpush.msra.mxu0 0.0
        %3121 = vmatpush.msra.mxu0 0.0
        %3122 = vmatpush.msra.mxu0 0.0
        %3123 = vmatpush.msra.mxu0 0.0
        %3124 = vmatpush.msra.mxu0 0.0
        %3125 = vmatpush.msra.mxu0 0.0
        %3126 = vmatpush.msra.mxu0 0.0
        %3127 = vmatpush.msra.mxu0 %v3107
        %3128 = vmatmul.f32.gmra.mxu0 %v3104
        %v3129 = vpop.f32.mrf.mxu0
        %v3130 = vadd.f32 0.0, %v3129
        %3131 = vdwg.mxu0
        %3132 = vmatpush.msra.mxu0 0.0
        %3133 = vmatpush.msra.mxu0 0.0
        %3134 = vmatpush.msra.mxu0 0.0
        %3135 = vmatpush.msra.mxu0 0.0
        %3136 = vmatpush.msra.mxu0 0.0
        %3137 = vmatpush.msra.mxu0 0.0
        %3138 = vmatpush.msra.mxu0 0.0
        %3139 = vmatpush.msra.mxu0 0.0
        %3140 = vmatpush.msra.mxu0 0.0
        %3141 = vmatpush.msra.mxu0 0.0
        %3142 = vmatpush.msra.mxu0 0.0
        %3143 = vmatpush.msra.mxu0 0.0
        %3144 = vmatpush.msra.mxu0 0.0
        %3145 = vmatpush.msra.mxu0 0.0
        %3146 = vmatpush.msra.mxu0 0.0
        %3147 = vmatpush.msra.mxu0 %v3110
        %3148 = vmatmul.f32.gmra.mxu0 %v3104
        %v3149 = vpop.f32.mrf.mxu0
        %v3150 = vadd.f32 0.0, %v3149
        %3151 = vdwg.mxu0
        %v3152 = vadd.f32 %v2949, %v3130
        %v3153 = vadd.f32 %v2950, %v3150
        %v3154 = vld [vmem:[%s31] sm:$0xff]
        %3156 = vset.pattern.permute.xlu0 0
        %3157 = vperm.xlu0 %3156, %v3154
        %v3158 = vpop.permute.xlu0 %3157
        %v3160 = vadd.f32 %v3152, %v3158
        %v3161 = vadd.f32 %v3153, %v3158
        %v3162 = vmul.f32 %v3160, 0.2
        %v3163 = vmul.f32 %v3161, 0.2
        %v3164 = vmax.f32 %v3160, %v3162
        %v3165 = vmax.f32 %v3161, %v3163
        %v3166 = vld [vmem:[%s11] sm:$0xff]
        %v3167 = vld [vmem:[%s11 + $0x8] sm:$0xff]
        %v3168 = vld [vmem:[%s11 + $0x10] sm:$0xff]
        %v3169 = vld [vmem:[%s11 + $0x18] sm:$0xff]
        %v3170 = vld [vmem:[%s11 + $0x20] sm:$0xff]
        %v3171 = vld [vmem:[%s11 + $0x28] sm:$0xff]
        %v3172 = vld [vmem:[%s11 + $0x30] sm:$0xff]
        %v3173 = vld [vmem:[%s11 + $0x38] sm:$0xff]
        %v3174 = vld [vmem:[%s11 + $0x40] sm:$0xff]
        %v3175 = vld [vmem:[%s11 + $0x48] sm:$0xff]
        %v3176 = vld [vmem:[%s11 + $0x50] sm:$0xff]
        %v3177 = vld [vmem:[%s11 + $0x58] sm:$0xff]
        %v3178 = vld [vmem:[%s11 + $0x60] sm:$0xff]
        %v3179 = vld [vmem:[%s11 + $0x68] sm:$0xff]
        %v3180 = vld [vmem:[%s11 + $0x70] sm:$0xff]
        %v3181 = vld [vmem:[%s11 + $0x78] sm:$0xff]
        %v3182 = vld [vmem:[%s11 + $0x80] sm:$0xff]
        %v3183 = vld [vmem:[%s11 + $0x88] sm:$0xff]
        %v3184 = vld [vmem:[%s11 + $0x90] sm:$0xff]
        %v3185 = vld [vmem:[%s11 + $0x98] sm:$0xff]
        %v3186 = vld [vmem:[%s11 + $0xa0] sm:$0xff]
        %v3187 = vld [vmem:[%s11 + $0xa8] sm:$0xff]
        %v3188 = vld [vmem:[%s11 + $0xb0] sm:$0xff]
        %v3189 = vld [vmem:[%s11 + $0xb8] sm:$0xff]
        %v3190 = vld [vmem:[%s11 + $0xc0] sm:$0xff]
        %v3191 = vld [vmem:[%s11 + $0xc8] sm:$0xff]
        %v3192 = vld [vmem:[%s11 + $0xd0] sm:$0xff]
        %v3193 = vld [vmem:[%s11 + $0xd8] sm:$0xff]
        %v3194 = vld [vmem:[%s11 + $0xe0] sm:$0xff]
        %v3195 = vld [vmem:[%s11 + $0xe8] sm:$0xff]
        %v3196 = vld [vmem:[%s11 + $0xf0] sm:$0xff]
        %v3197 = vld [vmem:[%s11 + $0xf8] sm:$0xff]
        %3198 = vmatpush.msra.mxu0 %v3181
        %3199 = vmatpush.msra.mxu0 %v3180
        %3200 = vmatpush.msra.mxu0 %v3179
        %3201 = vmatpush.msra.mxu0 %v3178
        %3202 = vmatpush.msra.mxu0 %v3177
        %3203 = vmatpush.msra.mxu0 %v3176
        %3204 = vmatpush.msra.mxu0 %v3175
        %3205 = vmatpush.msra.mxu0 %v3174
        %3206 = vmatpush.msra.mxu0 %v3173
        %3207 = vmatpush.msra.mxu0 %v3172
        %3208 = vmatpush.msra.mxu0 %v3171
        %3209 = vmatpush.msra.mxu0 %v3170
        %3210 = vmatpush.msra.mxu0 %v3169
        %3211 = vmatpush.msra.mxu0 %v3168
        %3212 = vmatpush.msra.mxu0 %v3167
        %3213 = vmatpush.msra.mxu0 %v3166
        %3214 = vmatmul.f32.gmra.mxu0 %v3164
        %v3215 = vpop.f32.mrf.mxu0
        %v3216 = vadd.f32 0.0, %v3215
        %3217 = vdwg.mxu0
        %3218 = vmatpush.msra.mxu0 %v3197
        %3219 = vmatpush.msra.mxu0 %v3196
        %3220 = vmatpush.msra.mxu0 %v3195
        %3221 = vmatpush.msra.mxu0 %v3194
        %3222 = vmatpush.msra.mxu0 %v3193
        %3223 = vmatpush.msra.mxu0 %v3192
        %3224 = vmatpush.msra.mxu0 %v3191
        %3225 = vmatpush.msra.mxu0 %v3190
        %3226 = vmatpush.msra.mxu0 %v3189
        %3227 = vmatpush.msra.mxu0 %v3188
        %3228 = vmatpush.msra.mxu0 %v3187
        %3229 = vmatpush.msra.mxu0 %v3186
        %3230 = vmatpush.msra.mxu0 %v3185
        %3231 = vmatpush.msra.mxu0 %v3184
        %3232 = vmatpush.msra.mxu0 %v3183
        %3233 = vmatpush.msra.mxu0 %v3182
        %3234 = vmatmul.f32.gmra.mxu0 %v3165
        %v3235 = vpop.f32.mrf.mxu0
        %v3236 = vadd.f32 %v3216, %v3235
        %3237 = vdwg.mxu0
        %s3238 = scalar_lea.vmem %s11, 256
        %v3239 = vld [vmem:[%s3238] sm:$0xff]
        %v3240 = vld [vmem:[%s3238 + $0x8] sm:$0xff]
        %v3241 = vld [vmem:[%s3238 + $0x10] sm:$0xff]
        %v3242 = vld [vmem:[%s3238 + $0x18] sm:$0xff]
        %v3243 = vld [vmem:[%s3238 + $0x20] sm:$0xff]
        %v3244 = vld [vmem:[%s3238 + $0x28] sm:$0xff]
        %v3245 = vld [vmem:[%s3238 + $0x30] sm:$0xff]
        %v3246 = vld [vmem:[%s3238 + $0x38] sm:$0xff]
        %v3247 = vld [vmem:[%s3238 + $0x40] sm:$0xff]
        %v3248 = vld [vmem:[%s3238 + $0x48] sm:$0xff]
        %v3249 = vld [vmem:[%s3238 + $0x50] sm:$0xff]
        %v3250 = vld [vmem:[%s3238 + $0x58] sm:$0xff]
        %v3251 = vld [vmem:[%s3238 + $0x60] sm:$0xff]
        %v3252 = vld [vmem:[%s3238 + $0x68] sm:$0xff]
        %v3253 = vld [vmem:[%s3238 + $0x70] sm:$0xff]
        %v3254 = vld [vmem:[%s3238 + $0x78] sm:$0xff]
        %v3255 = vld [vmem:[%s3238 + $0x80] sm:$0xff]
        %v3256 = vld [vmem:[%s3238 + $0x88] sm:$0xff]
        %v3257 = vld [vmem:[%s3238 + $0x90] sm:$0xff]
        %v3258 = vld [vmem:[%s3238 + $0x98] sm:$0xff]
        %v3259 = vld [vmem:[%s3238 + $0xa0] sm:$0xff]
        %v3260 = vld [vmem:[%s3238 + $0xa8] sm:$0xff]
        %v3261 = vld [vmem:[%s3238 + $0xb0] sm:$0xff]
        %v3262 = vld [vmem:[%s3238 + $0xb8] sm:$0xff]
        %v3263 = vld [vmem:[%s3238 + $0xc0] sm:$0xff]
        %v3264 = vld [vmem:[%s3238 + $0xc8] sm:$0xff]
        %v3265 = vld [vmem:[%s3238 + $0xd0] sm:$0xff]
        %v3266 = vld [vmem:[%s3238 + $0xd8] sm:$0xff]
        %v3267 = vld [vmem:[%s3238 + $0xe0] sm:$0xff]
        %v3268 = vld [vmem:[%s3238 + $0xe8] sm:$0xff]
        %v3269 = vld [vmem:[%s3238 + $0xf0] sm:$0xff]
        %v3270 = vld [vmem:[%s3238 + $0xf8] sm:$0xff]
        %3271 = vmatpush.msra.mxu0 %v3254
        %3272 = vmatpush.msra.mxu0 %v3253
        %3273 = vmatpush.msra.mxu0 %v3252
        %3274 = vmatpush.msra.mxu0 %v3251
        %3275 = vmatpush.msra.mxu0 %v3250
        %3276 = vmatpush.msra.mxu0 %v3249
        %3277 = vmatpush.msra.mxu0 %v3248
        %3278 = vmatpush.msra.mxu0 %v3247
        %3279 = vmatpush.msra.mxu0 %v3246
        %3280 = vmatpush.msra.mxu0 %v3245
        %3281 = vmatpush.msra.mxu0 %v3244
        %3282 = vmatpush.msra.mxu0 %v3243
        %3283 = vmatpush.msra.mxu0 %v3242
        %3284 = vmatpush.msra.mxu0 %v3241
        %3285 = vmatpush.msra.mxu0 %v3240
        %3286 = vmatpush.msra.mxu0 %v3239
        %3287 = vmatmul.f32.gmra.mxu0 %v3164
        %v3288 = vpop.f32.mrf.mxu0
        %v3289 = vadd.f32 0.0, %v3288
        %3290 = vdwg.mxu0
        %3291 = vmatpush.msra.mxu0 %v3270
        %3292 = vmatpush.msra.mxu0 %v3269
        %3293 = vmatpush.msra.mxu0 %v3268
        %3294 = vmatpush.msra.mxu0 %v3267
        %3295 = vmatpush.msra.mxu0 %v3266
        %3296 = vmatpush.msra.mxu0 %v3265
        %3297 = vmatpush.msra.mxu0 %v3264
        %3298 = vmatpush.msra.mxu0 %v3263
        %3299 = vmatpush.msra.mxu0 %v3262
        %3300 = vmatpush.msra.mxu0 %v3261
        %3301 = vmatpush.msra.mxu0 %v3260
        %3302 = vmatpush.msra.mxu0 %v3259
        %3303 = vmatpush.msra.mxu0 %v3258
        %3304 = vmatpush.msra.mxu0 %v3257
        %3305 = vmatpush.msra.mxu0 %v3256
        %3306 = vmatpush.msra.mxu0 %v3255
        %3307 = vmatmul.f32.gmra.mxu0 %v3165
        %v3308 = vpop.f32.mrf.mxu0
        %v3309 = vadd.f32 %v3289, %v3308
        %3310 = vdwg.mxu0
        %s3311 = scalar_lea.vmem %s11, 512
        %v3312 = vld [vmem:[%s3311] sm:$0xff]
        %v3313 = vld [vmem:[%s3311 + $0x8] sm:$0xff]
        %v3314 = vld [vmem:[%s3311 + $0x10] sm:$0xff]
        %v3315 = vld [vmem:[%s3311 + $0x18] sm:$0xff]
        %v3316 = vld [vmem:[%s3311 + $0x20] sm:$0xff]
        %v3317 = vld [vmem:[%s3311 + $0x28] sm:$0xff]
        %v3318 = vld [vmem:[%s3311 + $0x30] sm:$0xff]
        %v3319 = vld [vmem:[%s3311 + $0x38] sm:$0xff]
        %v3320 = vld [vmem:[%s3311 + $0x40] sm:$0xff]
        %v3321 = vld [vmem:[%s3311 + $0x48] sm:$0xff]
        %v3322 = vld [vmem:[%s3311 + $0x50] sm:$0xff]
        %v3323 = vld [vmem:[%s3311 + $0x58] sm:$0xff]
        %v3324 = vld [vmem:[%s3311 + $0x60] sm:$0xff]
        %v3325 = vld [vmem:[%s3311 + $0x68] sm:$0xff]
        %v3326 = vld [vmem:[%s3311 + $0x70] sm:$0xff]
        %v3327 = vld [vmem:[%s3311 + $0x78] sm:$0xff]
        %v3328 = vld [vmem:[%s3311 + $0x80] sm:$0xff]
        %v3329 = vld [vmem:[%s3311 + $0x88] sm:$0xff]
        %v3330 = vld [vmem:[%s3311 + $0x90] sm:$0xff]
        %v3331 = vld [vmem:[%s3311 + $0x98] sm:$0xff]
        %v3332 = vld [vmem:[%s3311 + $0xa0] sm:$0xff]
        %v3333 = vld [vmem:[%s3311 + $0xa8] sm:$0xff]
        %v3334 = vld [vmem:[%s3311 + $0xb0] sm:$0xff]
        %v3335 = vld [vmem:[%s3311 + $0xb8] sm:$0xff]
        %v3336 = vld [vmem:[%s3311 + $0xc0] sm:$0xff]
        %v3337 = vld [vmem:[%s3311 + $0xc8] sm:$0xff]
        %v3338 = vld [vmem:[%s3311 + $0xd0] sm:$0xff]
        %v3339 = vld [vmem:[%s3311 + $0xd8] sm:$0xff]
        %v3340 = vld [vmem:[%s3311 + $0xe0] sm:$0xff]
        %v3341 = vld [vmem:[%s3311 + $0xe8] sm:$0xff]
        %v3342 = vld [vmem:[%s3311 + $0xf0] sm:$0xff]
        %v3343 = vld [vmem:[%s3311 + $0xf8] sm:$0xff]
        %3344 = vmatpush.msra.mxu0 %v3327
        %3345 = vmatpush.msra.mxu0 %v3326
        %3346 = vmatpush.msra.mxu0 %v3325
        %3347 = vmatpush.msra.mxu0 %v3324
        %3348 = vmatpush.msra.mxu0 %v3323
        %3349 = vmatpush.msra.mxu0 %v3322
        %3350 = vmatpush.msra.mxu0 %v3321
        %3351 = vmatpush.msra.mxu0 %v3320
        %3352 = vmatpush.msra.mxu0 %v3319
        %3353 = vmatpush.msra.mxu0 %v3318
        %3354 = vmatpush.msra.mxu0 %v3317
        %3355 = vmatpush.msra.mxu0 %v3316
        %3356 = vmatpush.msra.mxu0 %v3315
        %3357 = vmatpush.msra.mxu0 %v3314
        %3358 = vmatpush.msra.mxu0 %v3313
        %3359 = vmatpush.msra.mxu0 %v3312
        %3360 = vmatmul.f32.gmra.mxu0 %v3164
        %v3361 = vpop.f32.mrf.mxu0
        %v3362 = vadd.f32 0.0, %v3361
        %3363 = vdwg.mxu0
        %3364 = vmatpush.msra.mxu0 %v3343
        %3365 = vmatpush.msra.mxu0 %v3342
        %3366 = vmatpush.msra.mxu0 %v3341
        %3367 = vmatpush.msra.mxu0 %v3340
        %3368 = vmatpush.msra.mxu0 %v3339
        %3369 = vmatpush.msra.mxu0 %v3338
        %3370 = vmatpush.msra.mxu0 %v3337
        %3371 = vmatpush.msra.mxu0 %v3336
        %3372 = vmatpush.msra.mxu0 %v3335
        %3373 = vmatpush.msra.mxu0 %v3334
        %3374 = vmatpush.msra.mxu0 %v3333
        %3375 = vmatpush.msra.mxu0 %v3332
        %3376 = vmatpush.msra.mxu0 %v3331
        %3377 = vmatpush.msra.mxu0 %v3330
        %3378 = vmatpush.msra.mxu0 %v3329
        %3379 = vmatpush.msra.mxu0 %v3328
        %3380 = vmatmul.f32.gmra.mxu0 %v3165
        %v3381 = vpop.f32.mrf.mxu0
        %v3382 = vadd.f32 %v3362, %v3381
        %3383 = vdwg.mxu0
        %s3384 = scalar_lea.vmem %s11, 768
        %v3385 = vld [vmem:[%s3384] sm:$0xff]
        %v3386 = vld [vmem:[%s3384 + $0x8] sm:$0xff]
        %v3387 = vld [vmem:[%s3384 + $0x10] sm:$0xff]
        %v3388 = vld [vmem:[%s3384 + $0x18] sm:$0xff]
        %v3389 = vld [vmem:[%s3384 + $0x20] sm:$0xff]
        %v3390 = vld [vmem:[%s3384 + $0x28] sm:$0xff]
        %v3391 = vld [vmem:[%s3384 + $0x30] sm:$0xff]
        %v3392 = vld [vmem:[%s3384 + $0x38] sm:$0xff]
        %v3393 = vld [vmem:[%s3384 + $0x40] sm:$0xff]
        %v3394 = vld [vmem:[%s3384 + $0x48] sm:$0xff]
        %v3395 = vld [vmem:[%s3384 + $0x50] sm:$0xff]
        %v3396 = vld [vmem:[%s3384 + $0x58] sm:$0xff]
        %v3397 = vld [vmem:[%s3384 + $0x60] sm:$0xff]
        %v3398 = vld [vmem:[%s3384 + $0x68] sm:$0xff]
        %v3399 = vld [vmem:[%s3384 + $0x70] sm:$0xff]
        %v3400 = vld [vmem:[%s3384 + $0x78] sm:$0xff]
        %v3401 = vld [vmem:[%s3384 + $0x80] sm:$0xff]
        %v3402 = vld [vmem:[%s3384 + $0x88] sm:$0xff]
        %v3403 = vld [vmem:[%s3384 + $0x90] sm:$0xff]
        %v3404 = vld [vmem:[%s3384 + $0x98] sm:$0xff]
        %v3405 = vld [vmem:[%s3384 + $0xa0] sm:$0xff]
        %v3406 = vld [vmem:[%s3384 + $0xa8] sm:$0xff]
        %v3407 = vld [vmem:[%s3384 + $0xb0] sm:$0xff]
        %v3408 = vld [vmem:[%s3384 + $0xb8] sm:$0xff]
        %v3409 = vld [vmem:[%s3384 + $0xc0] sm:$0xff]
        %v3410 = vld [vmem:[%s3384 + $0xc8] sm:$0xff]
        %v3411 = vld [vmem:[%s3384 + $0xd0] sm:$0xff]
        %v3412 = vld [vmem:[%s3384 + $0xd8] sm:$0xff]
        %v3413 = vld [vmem:[%s3384 + $0xe0] sm:$0xff]
        %v3414 = vld [vmem:[%s3384 + $0xe8] sm:$0xff]
        %v3415 = vld [vmem:[%s3384 + $0xf0] sm:$0xff]
        %v3416 = vld [vmem:[%s3384 + $0xf8] sm:$0xff]
        %3417 = vmatpush.msra.mxu0 %v3400
        %3418 = vmatpush.msra.mxu0 %v3399
        %3419 = vmatpush.msra.mxu0 %v3398
        %3420 = vmatpush.msra.mxu0 %v3397
        %3421 = vmatpush.msra.mxu0 %v3396
        %3422 = vmatpush.msra.mxu0 %v3395
        %3423 = vmatpush.msra.mxu0 %v3394
        %3424 = vmatpush.msra.mxu0 %v3393
        %3425 = vmatpush.msra.mxu0 %v3392
        %3426 = vmatpush.msra.mxu0 %v3391
        %3427 = vmatpush.msra.mxu0 %v3390
        %3428 = vmatpush.msra.mxu0 %v3389
        %3429 = vmatpush.msra.mxu0 %v3388
        %3430 = vmatpush.msra.mxu0 %v3387
        %3431 = vmatpush.msra.mxu0 %v3386
        %3432 = vmatpush.msra.mxu0 %v3385
        %3433 = vmatmul.f32.gmra.mxu0 %v3164
        %v3434 = vpop.f32.mrf.mxu0
        %v3435 = vadd.f32 0.0, %v3434
        %3436 = vdwg.mxu0
        %3437 = vmatpush.msra.mxu0 %v3416
        %3438 = vmatpush.msra.mxu0 %v3415
        %3439 = vmatpush.msra.mxu0 %v3414
        %3440 = vmatpush.msra.mxu0 %v3413
        %3441 = vmatpush.msra.mxu0 %v3412
        %3442 = vmatpush.msra.mxu0 %v3411
        %3443 = vmatpush.msra.mxu0 %v3410
        %3444 = vmatpush.msra.mxu0 %v3409
        %3445 = vmatpush.msra.mxu0 %v3408
        %3446 = vmatpush.msra.mxu0 %v3407
        %3447 = vmatpush.msra.mxu0 %v3406
        %3448 = vmatpush.msra.mxu0 %v3405
        %3449 = vmatpush.msra.mxu0 %v3404
        %3450 = vmatpush.msra.mxu0 %v3403
        %3451 = vmatpush.msra.mxu0 %v3402
        %3452 = vmatpush.msra.mxu0 %v3401
        %3453 = vmatmul.f32.gmra.mxu0 %v3165
        %v3454 = vpop.f32.mrf.mxu0
        %v3455 = vadd.f32 %v3435, %v3454
        %3456 = vdwg.mxu0
        %v3457 = vmax.f32 %v3236, %v3309
        %v3458 = vmax.f32 %v3382, %v3455
        %v3459 = vmax.f32 %v3457, %v3458
        %v3460 = vld [vmem:[#allocation4] sm:$0xff]
        %v3461 = vld [vmem:[#allocation4 + $0x8] sm:$0xff]
        %v3462 = vld [vmem:[#allocation4 + $0x10] sm:$0xff]
        %v3463 = vld [vmem:[#allocation4 + $0x18] sm:$0xff]
        %v3464 = vld [vmem:[#allocation4 + $0x20] sm:$0xff]
        %v3465 = vld [vmem:[#allocation4 + $0x28] sm:$0xff]
        %v3466 = vld [vmem:[#allocation4 + $0x30] sm:$0xff]
        %v3467 = vld [vmem:[#allocation4 + $0x38] sm:$0xff]
        %vm3468 = vcmask 523264
        %v3470 = vsel %vm3468, %v3459, 0
        %3472 = vmatpush.msra.mxu0 0.0
        %3473 = vmatpush.msra.mxu0 0.0
        %3474 = vmatpush.msra.mxu0 0.0
        %3475 = vmatpush.msra.mxu0 0.0
        %3476 = vmatpush.msra.mxu0 0.0
        %3477 = vmatpush.msra.mxu0 0.0
        %3478 = vmatpush.msra.mxu0 0.0
        %3479 = vmatpush.msra.mxu0 0.0
        %3480 = vmatpush.msra.mxu0 %v3467
        %3481 = vmatpush.msra.mxu0 %v3466
        %3482 = vmatpush.msra.mxu0 %v3465
        %3483 = vmatpush.msra.mxu0 %v3464
        %3484 = vmatpush.msra.mxu0 %v3463
        %3485 = vmatpush.msra.mxu0 %v3462
        %3486 = vmatpush.msra.mxu0 %v3461
        %3487 = vmatpush.msra.mxu0 %v3460
        %3488 = vmatmul.f32.gmra.mxu0 %v3470
        %v3489 = vpop.f32.mrf.mxu0
        %v3490 = vadd.f32 0.0, %v3489
        %3491 = vdwg.mxu0
        %v3492 = vld [vmem:[%s33] sm:$0xff]
        %v3493 = vld [vmem:[%s33 + $0x8] sm:$0xff]
        %s3494 = scalar_lea.vmem [#allocation4], 64
        %v3495 = vld [vmem:[%s3494] sm:$0xff]
        %v3496 = vld [vmem:[%s3494 + $0x8] sm:$0xff]
        %v3497 = vld [vmem:[%s3494 + $0x10] sm:$0xff]
        %v3498 = vld [vmem:[%s3494 + $0x18] sm:$0xff]
        %v3499 = vld [vmem:[%s3494 + $0x20] sm:$0xff]
        %v3500 = vld [vmem:[%s3494 + $0x28] sm:$0xff]
        %v3501 = vld [vmem:[%s3494 + $0x30] sm:$0xff]
        %v3502 = vld [vmem:[%s3494 + $0x38] sm:$0xff]
        %3503 = vmatpush.msra.mxu0 0.0
        %3504 = vmatpush.msra.mxu0 0.0
        %3505 = vmatpush.msra.mxu0 0.0
        %3506 = vmatpush.msra.mxu0 0.0
        %3507 = vmatpush.msra.mxu0 0.0
        %3508 = vmatpush.msra.mxu0 0.0
        %3509 = vmatpush.msra.mxu0 0.0
        %3510 = vmatpush.msra.mxu0 0.0
        %3511 = vmatpush.msra.mxu0 %v3502
        %3512 = vmatpush.msra.mxu0 %v3501
        %3513 = vmatpush.msra.mxu0 %v3500
        %3514 = vmatpush.msra.mxu0 %v3499
        %3515 = vmatpush.msra.mxu0 %v3498
        %3516 = vmatpush.msra.mxu0 %v3497
        %3517 = vmatpush.msra.mxu0 %v3496
        %3518 = vmatpush.msra.mxu0 %v3495
        %3519 = vmatmul.f32.gmra.mxu0 %v3470
        %v3520 = vpop.f32.mrf.mxu0
        %v3521 = vadd.f32 0.0, %v3520
        %3522 = vdwg.mxu0
        %s3523 = scalar_lea.vmem %s33, 16
        %v3524 = vld [vmem:[%s3523] sm:$0xff]
        %v3525 = vld [vmem:[%s3523 + $0x8] sm:$0xff]
        %vm3526 = vcmask 64512
        %v3528 = vsel %vm3526, %v3524, 0
        %v3531 = vsel %vm3526, %v3525, 0
        %3533 = vmatpush.msra.mxu0 0.0
        %3534 = vmatpush.msra.mxu0 0.0
        %3535 = vmatpush.msra.mxu0 0.0
        %3536 = vmatpush.msra.mxu0 0.0
        %3537 = vmatpush.msra.mxu0 0.0
        %3538 = vmatpush.msra.mxu0 0.0
        %3539 = vmatpush.msra.mxu0 0.0
        %3540 = vmatpush.msra.mxu0 0.0
        %3541 = vmatpush.msra.mxu0 0.0
        %3542 = vmatpush.msra.mxu0 0.0
        %3543 = vmatpush.msra.mxu0 0.0
        %3544 = vmatpush.msra.mxu0 0.0
        %3545 = vmatpush.msra.mxu0 0.0
        %3546 = vmatpush.msra.mxu0 0.0
        %3547 = vmatpush.msra.mxu0 0.0
        %3548 = vmatpush.msra.mxu0 %v3521
        %3549 = vmatmul.f32.gmra.mxu0 %v3528
        %v3550 = vpop.f32.mrf.mxu0
        %v3551 = vadd.f32 0.0, %v3550
        %3552 = vmatmul.f32.gmra.mxu0 %v3531
        %v3553 = vpop.f32.mrf.mxu0
        %v3554 = vadd.f32 0.0, %v3553
        %3555 = vdwg.mxu0
        %v3557 = vsel %vm3526, %v3492, 0
        %v3560 = vsel %vm3526, %v3493, 0
        %3562 = vmatpush.msra.mxu0 0.0
        %3563 = vmatpush.msra.mxu0 0.0
        %3564 = vmatpush.msra.mxu0 0.0
        %3565 = vmatpush.msra.mxu0 0.0
        %3566 = vmatpush.msra.mxu0 0.0
        %3567 = vmatpush.msra.mxu0 0.0
        %3568 = vmatpush.msra.mxu0 0.0
        %3569 = vmatpush.msra.mxu0 0.0
        %3570 = vmatpush.msra.mxu0 0.0
        %3571 = vmatpush.msra.mxu0 0.0
        %3572 = vmatpush.msra.mxu0 0.0
        %3573 = vmatpush.msra.mxu0 0.0
        %3574 = vmatpush.msra.mxu0 0.0
        %3575 = vmatpush.msra.mxu0 0.0
        %3576 = vmatpush.msra.mxu0 0.0
        %3577 = vmatpush.msra.mxu0 %v3490
        %3578 = vmatmul.f32.gmra.mxu0 %v3557
        %v3579 = vpop.f32.mrf.mxu0
        %v3580 = vadd.f32 %v3551, %v3579
        %3581 = vmatmul.f32.gmra.mxu0 %v3560
        %v3582 = vpop.f32.mrf.mxu0
        %v3583 = vadd.f32 %v3554, %v3582
        %3584 = vdwg.mxu0
        %s3585 = scalar_lea.vmem [#allocation4], 128
        %v3586 = vld [vmem:[%s3585] sm:$0xff]
        %v3587 = vld [vmem:[%s3585 + $0x8] sm:$0xff]
        %v3588 = vld [vmem:[%s3585 + $0x10] sm:$0xff]
        %v3589 = vld [vmem:[%s3585 + $0x18] sm:$0xff]
        %v3590 = vld [vmem:[%s3585 + $0x20] sm:$0xff]
        %v3591 = vld [vmem:[%s3585 + $0x28] sm:$0xff]
        %v3592 = vld [vmem:[%s3585 + $0x30] sm:$0xff]
        %v3593 = vld [vmem:[%s3585 + $0x38] sm:$0xff]
        %3594 = vmatpush.msra.mxu0 0.0
        %3595 = vmatpush.msra.mxu0 0.0
        %3596 = vmatpush.msra.mxu0 0.0
        %3597 = vmatpush.msra.mxu0 0.0
        %3598 = vmatpush.msra.mxu0 0.0
        %3599 = vmatpush.msra.mxu0 0.0
        %3600 = vmatpush.msra.mxu0 0.0
        %3601 = vmatpush.msra.mxu0 0.0
        %3602 = vmatpush.msra.mxu0 %v3593
        %3603 = vmatpush.msra.mxu0 %v3592
        %3604 = vmatpush.msra.mxu0 %v3591
        %3605 = vmatpush.msra.mxu0 %v3590
        %3606 = vmatpush.msra.mxu0 %v3589
        %3607 = vmatpush.msra.mxu0 %v3588
        %3608 = vmatpush.msra.mxu0 %v3587
        %3609 = vmatpush.msra.mxu0 %v3586
        %3610 = vmatmul.f32.gmra.mxu0 %v3470
        %v3611 = vpop.f32.mrf.mxu0
        %v3612 = vadd.f32 0.0, %v3611
        %3613 = vdwg.mxu0
        %s3614 = scalar_lea.vmem %s33, 32
        %v3615 = vld [vmem:[%s3614] sm:$0xff]
        %v3616 = vld [vmem:[%s3614 + $0x8] sm:$0xff]
        %v3618 = vsel %vm3526, %v3615, 0
        %v3621 = vsel %vm3526, %v3616, 0
        %3623 = vmatpush.msra.mxu0 0.0
        %3624 = vmatpush.msra.mxu0 0.0
        %3625 = vmatpush.msra.mxu0 0.0
        %3626 = vmatpush.msra.mxu0 0.0
        %3627 = vmatpush.msra.mxu0 0.0
        %3628 = vmatpush.msra.mxu0 0.0
        %3629 = vmatpush.msra.mxu0 0.0
        %3630 = vmatpush.msra.mxu0 0.0
        %3631 = vmatpush.msra.mxu0 0.0
        %3632 = vmatpush.msra.mxu0 0.0
        %3633 = vmatpush.msra.mxu0 0.0
        %3634 = vmatpush.msra.mxu0 0.0
        %3635 = vmatpush.msra.mxu0 0.0
        %3636 = vmatpush.msra.mxu0 0.0
        %3637 = vmatpush.msra.mxu0 0.0
        %3638 = vmatpush.msra.mxu0 %v3612
        %3639 = vmatmul.f32.gmra.mxu0 %v3618
        %v3640 = vpop.f32.mrf.mxu0
        %v3641 = vadd.f32 0.0, %v3640
        %3642 = vmatmul.f32.gmra.mxu0 %v3621
        %v3643 = vpop.f32.mrf.mxu0
        %v3644 = vadd.f32 0.0, %v3643
        %3645 = vdwg.mxu0
        %v3646 = vadd.f32 %v3580, %v3641
        %v3647 = vadd.f32 %v3583, %v3644
        %s3648 = scalar_lea.vmem [#allocation4], 192
        %v3649 = vld [vmem:[%s3648] sm:$0xff]
        %v3650 = vld [vmem:[%s3648 + $0x8] sm:$0xff]
        %v3651 = vld [vmem:[%s3648 + $0x10] sm:$0xff]
        %v3652 = vld [vmem:[%s3648 + $0x18] sm:$0xff]
        %v3653 = vld [vmem:[%s3648 + $0x20] sm:$0xff]
        %v3654 = vld [vmem:[%s3648 + $0x28] sm:$0xff]
        %v3655 = vld [vmem:[%s3648 + $0x30] sm:$0xff]
        %v3656 = vld [vmem:[%s3648 + $0x38] sm:$0xff]
        %3657 = vmatpush.msra.mxu0 0.0
        %3658 = vmatpush.msra.mxu0 0.0
        %3659 = vmatpush.msra.mxu0 0.0
        %3660 = vmatpush.msra.mxu0 0.0
        %3661 = vmatpush.msra.mxu0 0.0
        %3662 = vmatpush.msra.mxu0 0.0
        %3663 = vmatpush.msra.mxu0 0.0
        %3664 = vmatpush.msra.mxu0 0.0
        %3665 = vmatpush.msra.mxu0 %v3656
        %3666 = vmatpush.msra.mxu0 %v3655
        %3667 = vmatpush.msra.mxu0 %v3654
        %3668 = vmatpush.msra.mxu0 %v3653
        %3669 = vmatpush.msra.mxu0 %v3652
        %3670 = vmatpush.msra.mxu0 %v3651
        %3671 = vmatpush.msra.mxu0 %v3650
        %3672 = vmatpush.msra.mxu0 %v3649
        %3673 = vmatmul.f32.gmra.mxu0 %v3470
        %v3674 = vpop.f32.mrf.mxu0
        %v3675 = vadd.f32 0.0, %v3674
        %3676 = vdwg.mxu0
        %s3677 = scalar_lea.vmem %s33, 48
        %v3678 = vld [vmem:[%s3677] sm:$0xff]
        %v3679 = vld [vmem:[%s3677 + $0x8] sm:$0xff]
        %v3681 = vsel %vm3526, %v3678, 0
        %v3684 = vsel %vm3526, %v3679, 0
        %3686 = vmatpush.msra.mxu0 0.0
        %3687 = vmatpush.msra.mxu0 0.0
        %3688 = vmatpush.msra.mxu0 0.0
        %3689 = vmatpush.msra.mxu0 0.0
        %3690 = vmatpush.msra.mxu0 0.0
        %3691 = vmatpush.msra.mxu0 0.0
        %3692 = vmatpush.msra.mxu0 0.0
        %3693 = vmatpush.msra.mxu0 0.0
        %3694 = vmatpush.msra.mxu0 0.0
        %3695 = vmatpush.msra.mxu0 0.0
        %3696 = vmatpush.msra.mxu0 0.0
        %3697 = vmatpush.msra.mxu0 0.0
        %3698 = vmatpush.msra.mxu0 0.0
        %3699 = vmatpush.msra.mxu0 0.0
        %3700 = vmatpush.msra.mxu0 0.0
        %3701 = vmatpush.msra.mxu0 %v3675
        %3702 = vmatmul.f32.gmra.mxu0 %v3681
        %v3703 = vpop.f32.mrf.mxu0
        %v3704 = vadd.f32 0.0, %v3703
        %3705 = vmatmul.f32.gmra.mxu0 %v3684
        %v3706 = vpop.f32.mrf.mxu0
        %v3707 = vadd.f32 0.0, %v3706
        %3708 = vdwg.mxu0
        %v3709 = vadd.f32 %v3646, %v3704
        %v3710 = vadd.f32 %v3647, %v3707
        %s3711 = scalar_lea.vmem [#allocation4], 256
        %v3712 = vld [vmem:[%s3711] sm:$0xff]
        %v3713 = vld [vmem:[%s3711 + $0x8] sm:$0xff]
        %v3714 = vld [vmem:[%s3711 + $0x10] sm:$0xff]
        %v3715 = vld [vmem:[%s3711 + $0x18] sm:$0xff]
        %v3716 = vld [vmem:[%s3711 + $0x20] sm:$0xff]
        %v3717 = vld [vmem:[%s3711 + $0x28] sm:$0xff]
        %v3718 = vld [vmem:[%s3711 + $0x30] sm:$0xff]
        %v3719 = vld [vmem:[%s3711 + $0x38] sm:$0xff]
        %3720 = vmatpush.msra.mxu0 0.0
        %3721 = vmatpush.msra.mxu0 0.0
        %3722 = vmatpush.msra.mxu0 0.0
        %3723 = vmatpush.msra.mxu0 0.0
        %3724 = vmatpush.msra.mxu0 0.0
        %3725 = vmatpush.msra.mxu0 0.0
        %3726 = vmatpush.msra.mxu0 0.0
        %3727 = vmatpush.msra.mxu0 0.0
        %3728 = vmatpush.msra.mxu0 %v3719
        %3729 = vmatpush.msra.mxu0 %v3718
        %3730 = vmatpush.msra.mxu0 %v3717
        %3731 = vmatpush.msra.mxu0 %v3716
        %3732 = vmatpush.msra.mxu0 %v3715
        %3733 = vmatpush.msra.mxu0 %v3714
        %3734 = vmatpush.msra.mxu0 %v3713
        %3735 = vmatpush.msra.mxu0 %v3712
        %3736 = vmatmul.f32.gmra.mxu0 %v3470
        %v3737 = vpop.f32.mrf.mxu0
        %v3738 = vadd.f32 0.0, %v3737
        %3739 = vdwg.mxu0
        %s3740 = scalar_lea.vmem %s33, 64
        %v3741 = vld [vmem:[%s3740] sm:$0xff]
        %v3742 = vld [vmem:[%s3740 + $0x8] sm:$0xff]
        %v3744 = vsel %vm3526, %v3741, 0
        %v3747 = vsel %vm3526, %v3742, 0
        %3749 = vmatpush.msra.mxu0 0.0
        %3750 = vmatpush.msra.mxu0 0.0
        %3751 = vmatpush.msra.mxu0 0.0
        %3752 = vmatpush.msra.mxu0 0.0
        %3753 = vmatpush.msra.mxu0 0.0
        %3754 = vmatpush.msra.mxu0 0.0
        %3755 = vmatpush.msra.mxu0 0.0
        %3756 = vmatpush.msra.mxu0 0.0
        %3757 = vmatpush.msra.mxu0 0.0
        %3758 = vmatpush.msra.mxu0 0.0
        %3759 = vmatpush.msra.mxu0 0.0
        %3760 = vmatpush.msra.mxu0 0.0
        %3761 = vmatpush.msra.mxu0 0.0
        %3762 = vmatpush.msra.mxu0 0.0
        %3763 = vmatpush.msra.mxu0 0.0
        %3764 = vmatpush.msra.mxu0 %v3738
        %3765 = vmatmul.f32.gmra.mxu0 %v3744
        %v3766 = vpop.f32.mrf.mxu0
        %v3767 = vadd.f32 0.0, %v3766
        %3768 = vmatmul.f32.gmra.mxu0 %v3747
        %v3769 = vpop.f32.mrf.mxu0
        %v3770 = vadd.f32 0.0, %v3769
        %3771 = vdwg.mxu0
        %v3772 = vadd.f32 %v3709, %v3767
        %v3773 = vadd.f32 %v3710, %v3770
        %s3774 = scalar_lea.vmem [#allocation4], 320
        %v3775 = vld [vmem:[%s3774] sm:$0xff]
        %v3776 = vld [vmem:[%s3774 + $0x8] sm:$0xff]
        %v3777 = vld [vmem:[%s3774 + $0x10] sm:$0xff]
        %v3778 = vld [vmem:[%s3774 + $0x18] sm:$0xff]
        %v3779 = vld [vmem:[%s3774 + $0x20] sm:$0xff]
        %v3780 = vld [vmem:[%s3774 + $0x28] sm:$0xff]
        %v3781 = vld [vmem:[%s3774 + $0x30] sm:$0xff]
        %v3782 = vld [vmem:[%s3774 + $0x38] sm:$0xff]
        %3783 = vmatpush.msra.mxu0 0.0
        %3784 = vmatpush.msra.mxu0 0.0
        %3785 = vmatpush.msra.mxu0 0.0
        %3786 = vmatpush.msra.mxu0 0.0
        %3787 = vmatpush.msra.mxu0 0.0
        %3788 = vmatpush.msra.mxu0 0.0
        %3789 = vmatpush.msra.mxu0 0.0
        %3790 = vmatpush.msra.mxu0 0.0
        %3791 = vmatpush.msra.mxu0 %v3782
        %3792 = vmatpush.msra.mxu0 %v3781
        %3793 = vmatpush.msra.mxu0 %v3780
        %3794 = vmatpush.msra.mxu0 %v3779
        %3795 = vmatpush.msra.mxu0 %v3778
        %3796 = vmatpush.msra.mxu0 %v3777
        %3797 = vmatpush.msra.mxu0 %v3776
        %3798 = vmatpush.msra.mxu0 %v3775
        %3799 = vmatmul.f32.gmra.mxu0 %v3470
        %v3800 = vpop.f32.mrf.mxu0
        %v3801 = vadd.f32 0.0, %v3800
        %3802 = vdwg.mxu0
        %s3803 = scalar_lea.vmem %s33, 80
        %v3804 = vld [vmem:[%s3803] sm:$0xff]
        %v3805 = vld [vmem:[%s3803 + $0x8] sm:$0xff]
        %v3807 = vsel %vm3526, %v3804, 0
        %v3810 = vsel %vm3526, %v3805, 0
        %3812 = vmatpush.msra.mxu0 0.0
        %3813 = vmatpush.msra.mxu0 0.0
        %3814 = vmatpush.msra.mxu0 0.0
        %3815 = vmatpush.msra.mxu0 0.0
        %3816 = vmatpush.msra.mxu0 0.0
        %3817 = vmatpush.msra.mxu0 0.0
        %3818 = vmatpush.msra.mxu0 0.0
        %3819 = vmatpush.msra.mxu0 0.0
        %3820 = vmatpush.msra.mxu0 0.0
        %3821 = vmatpush.msra.mxu0 0.0
        %3822 = vmatpush.msra.mxu0 0.0
        %3823 = vmatpush.msra.mxu0 0.0
        %3824 = vmatpush.msra.mxu0 0.0
        %3825 = vmatpush.msra.mxu0 0.0
        %3826 = vmatpush.msra.mxu0 0.0
        %3827 = vmatpush.msra.mxu0 %v3801
        %3828 = vmatmul.f32.gmra.mxu0 %v3807
        %v3829 = vpop.f32.mrf.mxu0
        %v3830 = vadd.f32 0.0, %v3829
        %3831 = vmatmul.f32.gmra.mxu0 %v3810
        %v3832 = vpop.f32.mrf.mxu0
        %v3833 = vadd.f32 0.0, %v3832
        %3834 = vdwg.mxu0
        %v3835 = vadd.f32 %v3772, %v3830
        %v3836 = vadd.f32 %v3773, %v3833
        %s3837 = scalar_lea.vmem [#allocation4], 384
        %v3838 = vld [vmem:[%s3837] sm:$0xff]
        %v3839 = vld [vmem:[%s3837 + $0x8] sm:$0xff]
        %v3840 = vld [vmem:[%s3837 + $0x10] sm:$0xff]
        %v3841 = vld [vmem:[%s3837 + $0x18] sm:$0xff]
        %v3842 = vld [vmem:[%s3837 + $0x20] sm:$0xff]
        %v3843 = vld [vmem:[%s3837 + $0x28] sm:$0xff]
        %v3844 = vld [vmem:[%s3837 + $0x30] sm:$0xff]
        %v3845 = vld [vmem:[%s3837 + $0x38] sm:$0xff]
        %3846 = vmatpush.msra.mxu0 0.0
        %3847 = vmatpush.msra.mxu0 0.0
        %3848 = vmatpush.msra.mxu0 0.0
        %3849 = vmatpush.msra.mxu0 0.0
        %3850 = vmatpush.msra.mxu0 0.0
        %3851 = vmatpush.msra.mxu0 0.0
        %3852 = vmatpush.msra.mxu0 0.0
        %3853 = vmatpush.msra.mxu0 0.0
        %3854 = vmatpush.msra.mxu0 %v3845
        %3855 = vmatpush.msra.mxu0 %v3844
        %3856 = vmatpush.msra.mxu0 %v3843
        %3857 = vmatpush.msra.mxu0 %v3842
        %3858 = vmatpush.msra.mxu0 %v3841
        %3859 = vmatpush.msra.mxu0 %v3840
        %3860 = vmatpush.msra.mxu0 %v3839
        %3861 = vmatpush.msra.mxu0 %v3838
        %3862 = vmatmul.f32.gmra.mxu0 %v3470
        %v3863 = vpop.f32.mrf.mxu0
        %v3864 = vadd.f32 0.0, %v3863
        %3865 = vdwg.mxu0
        %s3866 = scalar_lea.vmem %s33, 96
        %v3867 = vld [vmem:[%s3866] sm:$0xff]
        %v3868 = vld [vmem:[%s3866 + $0x8] sm:$0xff]
        %v3870 = vsel %vm3526, %v3867, 0
        %v3873 = vsel %vm3526, %v3868, 0
        %3875 = vmatpush.msra.mxu0 0.0
        %3876 = vmatpush.msra.mxu0 0.0
        %3877 = vmatpush.msra.mxu0 0.0
        %3878 = vmatpush.msra.mxu0 0.0
        %3879 = vmatpush.msra.mxu0 0.0
        %3880 = vmatpush.msra.mxu0 0.0
        %3881 = vmatpush.msra.mxu0 0.0
        %3882 = vmatpush.msra.mxu0 0.0
        %3883 = vmatpush.msra.mxu0 0.0
        %3884 = vmatpush.msra.mxu0 0.0
        %3885 = vmatpush.msra.mxu0 0.0
        %3886 = vmatpush.msra.mxu0 0.0
        %3887 = vmatpush.msra.mxu0 0.0
        %3888 = vmatpush.msra.mxu0 0.0
        %3889 = vmatpush.msra.mxu0 0.0
        %3890 = vmatpush.msra.mxu0 %v3864
        %3891 = vmatmul.f32.gmra.mxu0 %v3870
        %v3892 = vpop.f32.mrf.mxu0
        %v3893 = vadd.f32 0.0, %v3892
        %3894 = vmatmul.f32.gmra.mxu0 %v3873
        %v3895 = vpop.f32.mrf.mxu0
        %v3896 = vadd.f32 0.0, %v3895
        %3897 = vdwg.mxu0
        %v3898 = vadd.f32 %v3835, %v3893
        %v3899 = vadd.f32 %v3836, %v3896
        %s3900 = scalar_lea.vmem [#allocation4], 448
        %v3901 = vld [vmem:[%s3900] sm:$0xff]
        %v3902 = vld [vmem:[%s3900 + $0x8] sm:$0xff]
        %v3903 = vld [vmem:[%s3900 + $0x10] sm:$0xff]
        %v3904 = vld [vmem:[%s3900 + $0x18] sm:$0xff]
        %v3905 = vld [vmem:[%s3900 + $0x20] sm:$0xff]
        %v3906 = vld [vmem:[%s3900 + $0x28] sm:$0xff]
        %v3907 = vld [vmem:[%s3900 + $0x30] sm:$0xff]
        %v3908 = vld [vmem:[%s3900 + $0x38] sm:$0xff]
        %3909 = vmatpush.msra.mxu0 0.0
        %3910 = vmatpush.msra.mxu0 0.0
        %3911 = vmatpush.msra.mxu0 0.0
        %3912 = vmatpush.msra.mxu0 0.0
        %3913 = vmatpush.msra.mxu0 0.0
        %3914 = vmatpush.msra.mxu0 0.0
        %3915 = vmatpush.msra.mxu0 0.0
        %3916 = vmatpush.msra.mxu0 0.0
        %3917 = vmatpush.msra.mxu0 %v3908
        %3918 = vmatpush.msra.mxu0 %v3907
        %3919 = vmatpush.msra.mxu0 %v3906
        %3920 = vmatpush.msra.mxu0 %v3905
        %3921 = vmatpush.msra.mxu0 %v3904
        %3922 = vmatpush.msra.mxu0 %v3903
        %3923 = vmatpush.msra.mxu0 %v3902
        %3924 = vmatpush.msra.mxu0 %v3901
        %3925 = vmatmul.f32.gmra.mxu0 %v3470
        %v3926 = vpop.f32.mrf.mxu0
        %v3927 = vadd.f32 0.0, %v3926
        %3928 = vdwg.mxu0
        %s3929 = scalar_lea.vmem %s33, 112
        %v3930 = vld [vmem:[%s3929] sm:$0xff]
        %v3931 = vld [vmem:[%s3929 + $0x8] sm:$0xff]
        %v3933 = vsel %vm3526, %v3930, 0
        %v3936 = vsel %vm3526, %v3931, 0
        %3938 = vmatpush.msra.mxu0 0.0
        %3939 = vmatpush.msra.mxu0 0.0
        %3940 = vmatpush.msra.mxu0 0.0
        %3941 = vmatpush.msra.mxu0 0.0
        %3942 = vmatpush.msra.mxu0 0.0
        %3943 = vmatpush.msra.mxu0 0.0
        %3944 = vmatpush.msra.mxu0 0.0
        %3945 = vmatpush.msra.mxu0 0.0
        %3946 = vmatpush.msra.mxu0 0.0
        %3947 = vmatpush.msra.mxu0 0.0
        %3948 = vmatpush.msra.mxu0 0.0
        %3949 = vmatpush.msra.mxu0 0.0
        %3950 = vmatpush.msra.mxu0 0.0
        %3951 = vmatpush.msra.mxu0 0.0
        %3952 = vmatpush.msra.mxu0 0.0
        %3953 = vmatpush.msra.mxu0 %v3927
        %3954 = vmatmul.f32.gmra.mxu0 %v3933
        %v3955 = vpop.f32.mrf.mxu0
        %v3956 = vadd.f32 0.0, %v3955
        %3957 = vmatmul.f32.gmra.mxu0 %v3936
        %v3958 = vpop.f32.mrf.mxu0
        %v3959 = vadd.f32 0.0, %v3958
        %3960 = vdwg.mxu0
        %v3961 = vadd.f32 %v3898, %v3956
        %v3962 = vadd.f32 %v3899, %v3959
        %s3963 = scalar_lea.vmem [#allocation4], 512
        %v3964 = vld [vmem:[%s3963] sm:$0xff]
        %v3965 = vld [vmem:[%s3963 + $0x8] sm:$0xff]
        %v3966 = vld [vmem:[%s3963 + $0x10] sm:$0xff]
        %v3967 = vld [vmem:[%s3963 + $0x18] sm:$0xff]
        %v3968 = vld [vmem:[%s3963 + $0x20] sm:$0xff]
        %v3969 = vld [vmem:[%s3963 + $0x28] sm:$0xff]
        %v3970 = vld [vmem:[%s3963 + $0x30] sm:$0xff]
        %v3971 = vld [vmem:[%s3963 + $0x38] sm:$0xff]
        %3972 = vmatpush.msra.mxu0 0.0
        %3973 = vmatpush.msra.mxu0 0.0
        %3974 = vmatpush.msra.mxu0 0.0
        %3975 = vmatpush.msra.mxu0 0.0
        %3976 = vmatpush.msra.mxu0 0.0
        %3977 = vmatpush.msra.mxu0 0.0
        %3978 = vmatpush.msra.mxu0 0.0
        %3979 = vmatpush.msra.mxu0 0.0
        %3980 = vmatpush.msra.mxu0 %v3971
        %3981 = vmatpush.msra.mxu0 %v3970
        %3982 = vmatpush.msra.mxu0 %v3969
        %3983 = vmatpush.msra.mxu0 %v3968
        %3984 = vmatpush.msra.mxu0 %v3967
        %3985 = vmatpush.msra.mxu0 %v3966
        %3986 = vmatpush.msra.mxu0 %v3965
        %3987 = vmatpush.msra.mxu0 %v3964
        %3988 = vmatmul.f32.gmra.mxu0 %v3470
        %v3989 = vpop.f32.mrf.mxu0
        %v3990 = vadd.f32 0.0, %v3989
        %3991 = vdwg.mxu0
        %s3992 = scalar_lea.vmem %s33, 128
        %v3993 = vld [vmem:[%s3992] sm:$0xff]
        %v3994 = vld [vmem:[%s3992 + $0x8] sm:$0xff]
        %v3996 = vsel %vm3526, %v3993, 0
        %v3999 = vsel %vm3526, %v3994, 0
        %4001 = vmatpush.msra.mxu0 0.0
        %4002 = vmatpush.msra.mxu0 0.0
        %4003 = vmatpush.msra.mxu0 0.0
        %4004 = vmatpush.msra.mxu0 0.0
        %4005 = vmatpush.msra.mxu0 0.0
        %4006 = vmatpush.msra.mxu0 0.0
        %4007 = vmatpush.msra.mxu0 0.0
        %4008 = vmatpush.msra.mxu0 0.0
        %4009 = vmatpush.msra.mxu0 0.0
        %4010 = vmatpush.msra.mxu0 0.0
        %4011 = vmatpush.msra.mxu0 0.0
        %4012 = vmatpush.msra.mxu0 0.0
        %4013 = vmatpush.msra.mxu0 0.0
        %4014 = vmatpush.msra.mxu0 0.0
        %4015 = vmatpush.msra.mxu0 0.0
        %4016 = vmatpush.msra.mxu0 %v3990
        %4017 = vmatmul.f32.gmra.mxu0 %v3996
        %v4018 = vpop.f32.mrf.mxu0
        %v4019 = vadd.f32 0.0, %v4018
        %4020 = vmatmul.f32.gmra.mxu0 %v3999
        %v4021 = vpop.f32.mrf.mxu0
        %v4022 = vadd.f32 0.0, %v4021
        %4023 = vdwg.mxu0
        %v4024 = vadd.f32 %v3961, %v4019
        %v4025 = vadd.f32 %v3962, %v4022
        %v4026 = vld [vmem:[%s35] sm:$0xff]
        %v4027 = vld [vmem:[%s35 + $0x8] sm:$0xff]
        %4029 = vset.pattern.permute.xlu0 0
        %4030 = vperm.xlu0 %4029, %v4026
        %v4031 = vpop.permute.xlu0 %4030
        %4034 = vset.pattern.permute.xlu0 0
        %4035 = vperm.xlu0 %4034, %v4027
        %v4036 = vpop.permute.xlu0 %4035
        %v4038 = vadd.f32 %v4024, %v4031
        %v4039 = vadd.f32 %v4025, %v4036
        %v4040 = vmul.f32 %v4038, 0.2
        %v4041 = vmul.f32 %v4039, 0.2
        %v4042 = vmax.f32 %v4038, %v4040
        %v4043 = vmax.f32 %v4039, %v4041
        %v4044 = vld [vmem:[%s13] sm:$0xff]
        %v4045 = vld [vmem:[%s13 + $0x8] sm:$0xff]
        %v4046 = vld [vmem:[%s13 + $0x10] sm:$0xff]
        %v4047 = vld [vmem:[%s13 + $0x18] sm:$0xff]
        %v4048 = vld [vmem:[%s13 + $0x20] sm:$0xff]
        %v4049 = vld [vmem:[%s13 + $0x28] sm:$0xff]
        %v4050 = vld [vmem:[%s13 + $0x30] sm:$0xff]
        %v4051 = vld [vmem:[%s13 + $0x38] sm:$0xff]
        %v4053 = vsel %vm3468, %v4042, 0
        %v4056 = vsel %vm3468, %v4043, 0
        %4058 = vmatpush.msra.mxu0 0.0
        %4059 = vmatpush.msra.mxu0 0.0
        %4060 = vmatpush.msra.mxu0 0.0
        %4061 = vmatpush.msra.mxu0 0.0
        %4062 = vmatpush.msra.mxu0 0.0
        %4063 = vmatpush.msra.mxu0 0.0
        %4064 = vmatpush.msra.mxu0 0.0
        %4065 = vmatpush.msra.mxu0 0.0
        %4066 = vmatpush.msra.mxu0 %v4051
        %4067 = vmatpush.msra.mxu0 %v4050
        %4068 = vmatpush.msra.mxu0 %v4049
        %4069 = vmatpush.msra.mxu0 %v4048
        %4070 = vmatpush.msra.mxu0 %v4047
        %4071 = vmatpush.msra.mxu0 %v4046
        %4072 = vmatpush.msra.mxu0 %v4045
        %4073 = vmatpush.msra.mxu0 %v4044
        %4074 = vmatmul.f32.gmra.mxu0 %v4053
        %v4075 = vpop.f32.mrf.mxu0
        %v4076 = vadd.f32 0.0, %v4075
        %4077 = vmatmul.f32.gmra.mxu0 %v4056
        %v4078 = vpop.f32.mrf.mxu0
        %v4079 = vadd.f32 0.0, %v4078
        %4080 = vdwg.mxu0
        %s4081 = scalar_lea.vmem %s13, 64
        %v4082 = vld [vmem:[%s4081] sm:$0xff]
        %v4083 = vld [vmem:[%s4081 + $0x8] sm:$0xff]
        %v4084 = vld [vmem:[%s4081 + $0x10] sm:$0xff]
        %v4085 = vld [vmem:[%s4081 + $0x18] sm:$0xff]
        %v4086 = vld [vmem:[%s4081 + $0x20] sm:$0xff]
        %v4087 = vld [vmem:[%s4081 + $0x28] sm:$0xff]
        %v4088 = vld [vmem:[%s4081 + $0x30] sm:$0xff]
        %v4089 = vld [vmem:[%s4081 + $0x38] sm:$0xff]
        %4090 = vmatpush.msra.mxu0 0.0
        %4091 = vmatpush.msra.mxu0 0.0
        %4092 = vmatpush.msra.mxu0 0.0
        %4093 = vmatpush.msra.mxu0 0.0
        %4094 = vmatpush.msra.mxu0 0.0
        %4095 = vmatpush.msra.mxu0 0.0
        %4096 = vmatpush.msra.mxu0 0.0
        %4097 = vmatpush.msra.mxu0 0.0
        %4098 = vmatpush.msra.mxu0 %v4089
        %4099 = vmatpush.msra.mxu0 %v4088
        %4100 = vmatpush.msra.mxu0 %v4087
        %4101 = vmatpush.msra.mxu0 %v4086
        %4102 = vmatpush.msra.mxu0 %v4085
        %4103 = vmatpush.msra.mxu0 %v4084
        %4104 = vmatpush.msra.mxu0 %v4083
        %4105 = vmatpush.msra.mxu0 %v4082
        %4106 = vmatmul.f32.gmra.mxu0 %v4053
        %v4107 = vpop.f32.mrf.mxu0
        %v4108 = vadd.f32 0.0, %v4107
        %4109 = vmatmul.f32.gmra.mxu0 %v4056
        %v4110 = vpop.f32.mrf.mxu0
        %v4111 = vadd.f32 0.0, %v4110
        %4112 = vdwg.mxu0
        %s4113 = scalar_lea.vmem %s13, 128
        %v4114 = vld [vmem:[%s4113] sm:$0xff]
        %v4115 = vld [vmem:[%s4113 + $0x8] sm:$0xff]
        %v4116 = vld [vmem:[%s4113 + $0x10] sm:$0xff]
        %v4117 = vld [vmem:[%s4113 + $0x18] sm:$0xff]
        %v4118 = vld [vmem:[%s4113 + $0x20] sm:$0xff]
        %v4119 = vld [vmem:[%s4113 + $0x28] sm:$0xff]
        %v4120 = vld [vmem:[%s4113 + $0x30] sm:$0xff]
        %v4121 = vld [vmem:[%s4113 + $0x38] sm:$0xff]
        %4122 = vmatpush.msra.mxu0 0.0
        %4123 = vmatpush.msra.mxu0 0.0
        %4124 = vmatpush.msra.mxu0 0.0
        %4125 = vmatpush.msra.mxu0 0.0
        %4126 = vmatpush.msra.mxu0 0.0
        %4127 = vmatpush.msra.mxu0 0.0
        %4128 = vmatpush.msra.mxu0 0.0
        %4129 = vmatpush.msra.mxu0 0.0
        %4130 = vmatpush.msra.mxu0 %v4121
        %4131 = vmatpush.msra.mxu0 %v4120
        %4132 = vmatpush.msra.mxu0 %v4119
        %4133 = vmatpush.msra.mxu0 %v4118
        %4134 = vmatpush.msra.mxu0 %v4117
        %4135 = vmatpush.msra.mxu0 %v4116
        %4136 = vmatpush.msra.mxu0 %v4115
        %4137 = vmatpush.msra.mxu0 %v4114
        %4138 = vmatmul.f32.gmra.mxu0 %v4053
        %v4139 = vpop.f32.mrf.mxu0
        %v4140 = vadd.f32 0.0, %v4139
        %4141 = vmatmul.f32.gmra.mxu0 %v4056
        %v4142 = vpop.f32.mrf.mxu0
        %v4143 = vadd.f32 0.0, %v4142
        %4144 = vdwg.mxu0
        %s4145 = scalar_lea.vmem %s13, 192
        %v4146 = vld [vmem:[%s4145] sm:$0xff]
        %v4147 = vld [vmem:[%s4145 + $0x8] sm:$0xff]
        %v4148 = vld [vmem:[%s4145 + $0x10] sm:$0xff]
        %v4149 = vld [vmem:[%s4145 + $0x18] sm:$0xff]
        %v4150 = vld [vmem:[%s4145 + $0x20] sm:$0xff]
        %v4151 = vld [vmem:[%s4145 + $0x28] sm:$0xff]
        %v4152 = vld [vmem:[%s4145 + $0x30] sm:$0xff]
        %v4153 = vld [vmem:[%s4145 + $0x38] sm:$0xff]
        %4154 = vmatpush.msra.mxu0 0.0
        %4155 = vmatpush.msra.mxu0 0.0
        %4156 = vmatpush.msra.mxu0 0.0
        %4157 = vmatpush.msra.mxu0 0.0
        %4158 = vmatpush.msra.mxu0 0.0
        %4159 = vmatpush.msra.mxu0 0.0
        %4160 = vmatpush.msra.mxu0 0.0
        %4161 = vmatpush.msra.mxu0 0.0
        %4162 = vmatpush.msra.mxu0 %v4153
        %4163 = vmatpush.msra.mxu0 %v4152
        %4164 = vmatpush.msra.mxu0 %v4151
        %4165 = vmatpush.msra.mxu0 %v4150
        %4166 = vmatpush.msra.mxu0 %v4149
        %4167 = vmatpush.msra.mxu0 %v4148
        %4168 = vmatpush.msra.mxu0 %v4147
        %4169 = vmatpush.msra.mxu0 %v4146
        %4170 = vmatmul.f32.gmra.mxu0 %v4053
        %v4171 = vpop.f32.mrf.mxu0
        %v4172 = vadd.f32 0.0, %v4171
        %4173 = vmatmul.f32.gmra.mxu0 %v4056
        %v4174 = vpop.f32.mrf.mxu0
        %v4175 = vadd.f32 0.0, %v4174
        %4176 = vdwg.mxu0
        %v4177 = vmax.f32 %v4076, %v4108
        %v4178 = vmax.f32 %v4079, %v4111
        %v4179 = vmax.f32 %v4140, %v4172
        %v4180 = vmax.f32 %v4143, %v4175
        %v4181 = vmax.f32 %v4177, %v4179
        %v4182 = vmax.f32 %v4178, %v4180
        %v4183 = vld [vmem:[#allocation6] sm:$0xff]
        %v4184 = vld [vmem:[#allocation6 + $0x8] sm:$0xff]
        %vm4185 = vcmask 130048
        %v4187 = vsel %vm4185, %v4181, 0
        %v4190 = vsel %vm4185, %v4182, 0
        %4192 = vmatpush.msra.mxu0 0.0
        %4193 = vmatpush.msra.mxu0 0.0
        %4194 = vmatpush.msra.mxu0 0.0
        %4195 = vmatpush.msra.mxu0 0.0
        %4196 = vmatpush.msra.mxu0 0.0
        %4197 = vmatpush.msra.mxu0 0.0
        %4198 = vmatpush.msra.mxu0 0.0
        %4199 = vmatpush.msra.mxu0 0.0
        %4200 = vmatpush.msra.mxu0 0.0
        %4201 = vmatpush.msra.mxu0 0.0
        %4202 = vmatpush.msra.mxu0 0.0
        %4203 = vmatpush.msra.mxu0 0.0
        %4204 = vmatpush.msra.mxu0 0.0
        %4205 = vmatpush.msra.mxu0 0.0
        %4206 = vmatpush.msra.mxu0 %v4184
        %4207 = vmatpush.msra.mxu0 %v4183
        %4208 = vmatmul.f32.gmra.mxu0 %v4187
        %v4209 = vpop.f32.mrf.mxu0
        %v4210 = vadd.f32 0.0, %v4209
        %4211 = vmatmul.f32.gmra.mxu0 %v4190
        %v4212 = vpop.f32.mrf.mxu0
        %v4213 = vadd.f32 0.0, %v4212
        %4214 = vdwg.mxu0
        %v4215 = vld [vmem:[%s37] sm:$0xff]
        %v4216 = vld [vmem:[%s37 + $0x8] sm:$0xff]
        %v4217 = vld [vmem:[%s37 + $0x10] sm:$0xff]
        %v4218 = vld [vmem:[%s37 + $0x18] sm:$0xff]
        %s4219 = scalar_lea.vmem [#allocation6], 16
        %v4220 = vld [vmem:[%s4219] sm:$0xff]
        %v4221 = vld [vmem:[%s4219 + $0x8] sm:$0xff]
        %4222 = vmatpush.msra.mxu0 0.0
        %4223 = vmatpush.msra.mxu0 0.0
        %4224 = vmatpush.msra.mxu0 0.0
        %4225 = vmatpush.msra.mxu0 0.0
        %4226 = vmatpush.msra.mxu0 0.0
        %4227 = vmatpush.msra.mxu0 0.0
        %4228 = vmatpush.msra.mxu0 0.0
        %4229 = vmatpush.msra.mxu0 0.0
        %4230 = vmatpush.msra.mxu0 0.0
        %4231 = vmatpush.msra.mxu0 0.0
        %4232 = vmatpush.msra.mxu0 0.0
        %4233 = vmatpush.msra.mxu0 0.0
        %4234 = vmatpush.msra.mxu0 0.0
        %4235 = vmatpush.msra.mxu0 0.0
        %4236 = vmatpush.msra.mxu0 %v4221
        %4237 = vmatpush.msra.mxu0 %v4220
        %4238 = vmatmul.f32.gmra.mxu0 %v4187
        %v4239 = vpop.f32.mrf.mxu0
        %v4240 = vadd.f32 0.0, %v4239
        %4241 = vmatmul.f32.gmra.mxu0 %v4190
        %v4242 = vpop.f32.mrf.mxu0
        %v4243 = vadd.f32 0.0, %v4242
        %4244 = vdwg.mxu0
        %s4245 = scalar_lea.vmem %s37, 32
        %v4246 = vld [vmem:[%s4245] sm:$0xff]
        %v4247 = vld [vmem:[%s4245 + $0x8] sm:$0xff]
        %v4248 = vld [vmem:[%s4245 + $0x10] sm:$0xff]
        %v4249 = vld [vmem:[%s4245 + $0x18] sm:$0xff]
        %v4251 = vsel %vm4185, %v4246, 0
        %v4254 = vsel %vm4185, %v4247, 0
        %v4257 = vsel %vm4185, %v4248, 0
        %v4260 = vsel %vm4185, %v4249, 0
        %4262 = vmatpush.msra.mxu0 0.0
        %4263 = vmatpush.msra.mxu0 0.0
        %4264 = vmatpush.msra.mxu0 0.0
        %4265 = vmatpush.msra.mxu0 0.0
        %4266 = vmatpush.msra.mxu0 0.0
        %4267 = vmatpush.msra.mxu0 0.0
        %4268 = vmatpush.msra.mxu0 0.0
        %4269 = vmatpush.msra.mxu0 0.0
        %4270 = vmatpush.msra.mxu0 0.0
        %4271 = vmatpush.msra.mxu0 0.0
        %4272 = vmatpush.msra.mxu0 0.0
        %4273 = vmatpush.msra.mxu0 0.0
        %4274 = vmatpush.msra.mxu0 0.0
        %4275 = vmatpush.msra.mxu0 0.0
        %4276 = vmatpush.msra.mxu0 %v4243
        %4277 = vmatpush.msra.mxu0 %v4240
        %4278 = vmatmul.f32.gmra.mxu0 %v4251
        %v4279 = vpop.f32.mrf.mxu0
        %v4280 = vadd.f32 0.0, %v4279
        %4281 = vmatmul.f32.gmra.mxu0 %v4254
        %v4282 = vpop.f32.mrf.mxu0
        %v4283 = vadd.f32 0.0, %v4282
        %4284 = vmatmul.f32.gmra.mxu0 %v4257
        %v4285 = vpop.f32.mrf.mxu0
        %v4286 = vadd.f32 0.0, %v4285
        %4287 = vmatmul.f32.gmra.mxu0 %v4260
        %v4288 = vpop.f32.mrf.mxu0
        %v4289 = vadd.f32 0.0, %v4288
        %4290 = vdwg.mxu0
        %v4292 = vsel %vm4185, %v4215, 0
        %v4295 = vsel %vm4185, %v4216, 0
        %v4298 = vsel %vm4185, %v4217, 0
        %v4301 = vsel %vm4185, %v4218, 0
        %4303 = vmatpush.msra.mxu0 0.0
        %4304 = vmatpush.msra.mxu0 0.0
        %4305 = vmatpush.msra.mxu0 0.0
        %4306 = vmatpush.msra.mxu0 0.0
        %4307 = vmatpush.msra.mxu0 0.0
        %4308 = vmatpush.msra.mxu0 0.0
        %4309 = vmatpush.msra.mxu0 0.0
        %4310 = vmatpush.msra.mxu0 0.0
        %4311 = vmatpush.msra.mxu0 0.0
        %4312 = vmatpush.msra.mxu0 0.0
        %4313 = vmatpush.msra.mxu0 0.0
        %4314 = vmatpush.msra.mxu0 0.0
        %4315 = vmatpush.msra.mxu0 0.0
        %4316 = vmatpush.msra.mxu0 0.0
        %4317 = vmatpush.msra.mxu0 %v4213
        %4318 = vmatpush.msra.mxu0 %v4210
        %4319 = vmatmul.f32.gmra.mxu0 %v4292
        %v4320 = vpop.f32.mrf.mxu0
        %v4321 = vadd.f32 %v4280, %v4320
        %4322 = vmatmul.f32.gmra.mxu0 %v4295
        %v4323 = vpop.f32.mrf.mxu0
        %v4324 = vadd.f32 %v4283, %v4323
        %4325 = vmatmul.f32.gmra.mxu0 %v4298
        %v4326 = vpop.f32.mrf.mxu0
        %v4327 = vadd.f32 %v4286, %v4326
        %4328 = vmatmul.f32.gmra.mxu0 %v4301
        %v4329 = vpop.f32.mrf.mxu0
        %v4330 = vadd.f32 %v4289, %v4329
        %4331 = vdwg.mxu0
        %s4332 = scalar_lea.vmem [#allocation6], 32
        %v4333 = vld [vmem:[%s4332] sm:$0xff]
        %v4334 = vld [vmem:[%s4332 + $0x8] sm:$0xff]
        %4335 = vmatpush.msra.mxu0 0.0
        %4336 = vmatpush.msra.mxu0 0.0
        %4337 = vmatpush.msra.mxu0 0.0
        %4338 = vmatpush.msra.mxu0 0.0
        %4339 = vmatpush.msra.mxu0 0.0
        %4340 = vmatpush.msra.mxu0 0.0
        %4341 = vmatpush.msra.mxu0 0.0
        %4342 = vmatpush.msra.mxu0 0.0
        %4343 = vmatpush.msra.mxu0 0.0
        %4344 = vmatpush.msra.mxu0 0.0
        %4345 = vmatpush.msra.mxu0 0.0
        %4346 = vmatpush.msra.mxu0 0.0
        %4347 = vmatpush.msra.mxu0 0.0
        %4348 = vmatpush.msra.mxu0 0.0
        %4349 = vmatpush.msra.mxu0 %v4334
        %4350 = vmatpush.msra.mxu0 %v4333
        %4351 = vmatmul.f32.gmra.mxu0 %v4187
        %v4352 = vpop.f32.mrf.mxu0
        %v4353 = vadd.f32 0.0, %v4352
        %4354 = vmatmul.f32.gmra.mxu0 %v4190
        %v4355 = vpop.f32.mrf.mxu0
        %v4356 = vadd.f32 0.0, %v4355
        %4357 = vdwg.mxu0
        %s4358 = scalar_lea.vmem %s37, 64
        %v4359 = vld [vmem:[%s4358] sm:$0xff]
        %v4360 = vld [vmem:[%s4358 + $0x8] sm:$0xff]
        %v4361 = vld [vmem:[%s4358 + $0x10] sm:$0xff]
        %v4362 = vld [vmem:[%s4358 + $0x18] sm:$0xff]
        %v4364 = vsel %vm4185, %v4359, 0
        %v4367 = vsel %vm4185, %v4360, 0
        %v4370 = vsel %vm4185, %v4361, 0
        %v4373 = vsel %vm4185, %v4362, 0
        %4375 = vmatpush.msra.mxu0 0.0
        %4376 = vmatpush.msra.mxu0 0.0
        %4377 = vmatpush.msra.mxu0 0.0
        %4378 = vmatpush.msra.mxu0 0.0
        %4379 = vmatpush.msra.mxu0 0.0
        %4380 = vmatpush.msra.mxu0 0.0
        %4381 = vmatpush.msra.mxu0 0.0
        %4382 = vmatpush.msra.mxu0 0.0
        %4383 = vmatpush.msra.mxu0 0.0
        %4384 = vmatpush.msra.mxu0 0.0
        %4385 = vmatpush.msra.mxu0 0.0
        %4386 = vmatpush.msra.mxu0 0.0
        %4387 = vmatpush.msra.mxu0 0.0
        %4388 = vmatpush.msra.mxu0 0.0
        %4389 = vmatpush.msra.mxu0 %v4356
        %4390 = vmatpush.msra.mxu0 %v4353
        %4391 = vmatmul.f32.gmra.mxu0 %v4364
        %v4392 = vpop.f32.mrf.mxu0
        %v4393 = vadd.f32 0.0, %v4392
        %4394 = vmatmul.f32.gmra.mxu0 %v4367
        %v4395 = vpop.f32.mrf.mxu0
        %v4396 = vadd.f32 0.0, %v4395
        %4397 = vmatmul.f32.gmra.mxu0 %v4370
        %v4398 = vpop.f32.mrf.mxu0
        %v4399 = vadd.f32 0.0, %v4398
        %4400 = vmatmul.f32.gmra.mxu0 %v4373
        %v4401 = vpop.f32.mrf.mxu0
        %v4402 = vadd.f32 0.0, %v4401
        %4403 = vdwg.mxu0
        %v4404 = vadd.f32 %v4321, %v4393
        %v4405 = vadd.f32 %v4324, %v4396
        %v4406 = vadd.f32 %v4327, %v4399
        %v4407 = vadd.f32 %v4330, %v4402
        %s4408 = scalar_lea.vmem [#allocation6], 48
        %v4409 = vld [vmem:[%s4408] sm:$0xff]
        %v4410 = vld [vmem:[%s4408 + $0x8] sm:$0xff]
        %4411 = vmatpush.msra.mxu0 0.0
        %4412 = vmatpush.msra.mxu0 0.0
        %4413 = vmatpush.msra.mxu0 0.0
        %4414 = vmatpush.msra.mxu0 0.0
        %4415 = vmatpush.msra.mxu0 0.0
        %4416 = vmatpush.msra.mxu0 0.0
        %4417 = vmatpush.msra.mxu0 0.0
        %4418 = vmatpush.msra.mxu0 0.0
        %4419 = vmatpush.msra.mxu0 0.0
        %4420 = vmatpush.msra.mxu0 0.0
        %4421 = vmatpush.msra.mxu0 0.0
        %4422 = vmatpush.msra.mxu0 0.0
        %4423 = vmatpush.msra.mxu0 0.0
        %4424 = vmatpush.msra.mxu0 0.0
        %4425 = vmatpush.msra.mxu0 %v4410
        %4426 = vmatpush.msra.mxu0 %v4409
        %4427 = vmatmul.f32.gmra.mxu0 %v4187
        %v4428 = vpop.f32.mrf.mxu0
        %v4429 = vadd.f32 0.0, %v4428
        %4430 = vmatmul.f32.gmra.mxu0 %v4190
        %v4431 = vpop.f32.mrf.mxu0
        %v4432 = vadd.f32 0.0, %v4431
        %4433 = vdwg.mxu0
        %s4434 = scalar_lea.vmem %s37, 96
        %v4435 = vld [vmem:[%s4434] sm:$0xff]
        %v4436 = vld [vmem:[%s4434 + $0x8] sm:$0xff]
        %v4437 = vld [vmem:[%s4434 + $0x10] sm:$0xff]
        %v4438 = vld [vmem:[%s4434 + $0x18] sm:$0xff]
        %v4440 = vsel %vm4185, %v4435, 0
        %v4443 = vsel %vm4185, %v4436, 0
        %v4446 = vsel %vm4185, %v4437, 0
        %v4449 = vsel %vm4185, %v4438, 0
        %4451 = vmatpush.msra.mxu0 0.0
        %4452 = vmatpush.msra.mxu0 0.0
        %4453 = vmatpush.msra.mxu0 0.0
        %4454 = vmatpush.msra.mxu0 0.0
        %4455 = vmatpush.msra.mxu0 0.0
        %4456 = vmatpush.msra.mxu0 0.0
        %4457 = vmatpush.msra.mxu0 0.0
        %4458 = vmatpush.msra.mxu0 0.0
        %4459 = vmatpush.msra.mxu0 0.0
        %4460 = vmatpush.msra.mxu0 0.0
        %4461 = vmatpush.msra.mxu0 0.0
        %4462 = vmatpush.msra.mxu0 0.0
        %4463 = vmatpush.msra.mxu0 0.0
        %4464 = vmatpush.msra.mxu0 0.0
        %4465 = vmatpush.msra.mxu0 %v4432
        %4466 = vmatpush.msra.mxu0 %v4429
        %4467 = vmatmul.f32.gmra.mxu0 %v4440
        %v4468 = vpop.f32.mrf.mxu0
        %v4469 = vadd.f32 0.0, %v4468
        %4470 = vmatmul.f32.gmra.mxu0 %v4443
        %v4471 = vpop.f32.mrf.mxu0
        %v4472 = vadd.f32 0.0, %v4471
        %4473 = vmatmul.f32.gmra.mxu0 %v4446
        %v4474 = vpop.f32.mrf.mxu0
        %v4475 = vadd.f32 0.0, %v4474
        %4476 = vmatmul.f32.gmra.mxu0 %v4449
        %v4477 = vpop.f32.mrf.mxu0
        %v4478 = vadd.f32 0.0, %v4477
        %4479 = vdwg.mxu0
        %v4480 = vadd.f32 %v4404, %v4469
        %v4481 = vadd.f32 %v4405, %v4472
        %v4482 = vadd.f32 %v4406, %v4475
        %v4483 = vadd.f32 %v4407, %v4478
        %s4484 = scalar_lea.vmem [#allocation6], 64
        %v4485 = vld [vmem:[%s4484] sm:$0xff]
        %v4486 = vld [vmem:[%s4484 + $0x8] sm:$0xff]
        %4487 = vmatpush.msra.mxu0 0.0
        %4488 = vmatpush.msra.mxu0 0.0
        %4489 = vmatpush.msra.mxu0 0.0
        %4490 = vmatpush.msra.mxu0 0.0
        %4491 = vmatpush.msra.mxu0 0.0
        %4492 = vmatpush.msra.mxu0 0.0
        %4493 = vmatpush.msra.mxu0 0.0
        %4494 = vmatpush.msra.mxu0 0.0
        %4495 = vmatpush.msra.mxu0 0.0
        %4496 = vmatpush.msra.mxu0 0.0
        %4497 = vmatpush.msra.mxu0 0.0
        %4498 = vmatpush.msra.mxu0 0.0
        %4499 = vmatpush.msra.mxu0 0.0
        %4500 = vmatpush.msra.mxu0 0.0
        %4501 = vmatpush.msra.mxu0 %v4486
        %4502 = vmatpush.msra.mxu0 %v4485
        %4503 = vmatmul.f32.gmra.mxu0 %v4187
        %v4504 = vpop.f32.mrf.mxu0
        %v4505 = vadd.f32 0.0, %v4504
        %4506 = vmatmul.f32.gmra.mxu0 %v4190
        %v4507 = vpop.f32.mrf.mxu0
        %v4508 = vadd.f32 0.0, %v4507
        %4509 = vdwg.mxu0
        %s4510 = scalar_lea.vmem %s37, 128
        %v4511 = vld [vmem:[%s4510] sm:$0xff]
        %v4512 = vld [vmem:[%s4510 + $0x8] sm:$0xff]
        %v4513 = vld [vmem:[%s4510 + $0x10] sm:$0xff]
        %v4514 = vld [vmem:[%s4510 + $0x18] sm:$0xff]
        %v4516 = vsel %vm4185, %v4511, 0
        %v4519 = vsel %vm4185, %v4512, 0
        %v4522 = vsel %vm4185, %v4513, 0
        %v4525 = vsel %vm4185, %v4514, 0
        %4527 = vmatpush.msra.mxu0 0.0
        %4528 = vmatpush.msra.mxu0 0.0
        %4529 = vmatpush.msra.mxu0 0.0
        %4530 = vmatpush.msra.mxu0 0.0
        %4531 = vmatpush.msra.mxu0 0.0
        %4532 = vmatpush.msra.mxu0 0.0
        %4533 = vmatpush.msra.mxu0 0.0
        %4534 = vmatpush.msra.mxu0 0.0
        %4535 = vmatpush.msra.mxu0 0.0
        %4536 = vmatpush.msra.mxu0 0.0
        %4537 = vmatpush.msra.mxu0 0.0
        %4538 = vmatpush.msra.mxu0 0.0
        %4539 = vmatpush.msra.mxu0 0.0
        %4540 = vmatpush.msra.mxu0 0.0
        %4541 = vmatpush.msra.mxu0 %v4508
        %4542 = vmatpush.msra.mxu0 %v4505
        %4543 = vmatmul.f32.gmra.mxu0 %v4516
        %v4544 = vpop.f32.mrf.mxu0
        %v4545 = vadd.f32 0.0, %v4544
        %4546 = vmatmul.f32.gmra.mxu0 %v4519
        %v4547 = vpop.f32.mrf.mxu0
        %v4548 = vadd.f32 0.0, %v4547
        %4549 = vmatmul.f32.gmra.mxu0 %v4522
        %v4550 = vpop.f32.mrf.mxu0
        %v4551 = vadd.f32 0.0, %v4550
        %4552 = vmatmul.f32.gmra.mxu0 %v4525
        %v4553 = vpop.f32.mrf.mxu0
        %v4554 = vadd.f32 0.0, %v4553
        %4555 = vdwg.mxu0
        %v4556 = vadd.f32 %v4480, %v4545
        %v4557 = vadd.f32 %v4481, %v4548
        %v4558 = vadd.f32 %v4482, %v4551
        %v4559 = vadd.f32 %v4483, %v4554
        %s4560 = scalar_lea.vmem [#allocation6], 80
        %v4561 = vld [vmem:[%s4560] sm:$0xff]
        %v4562 = vld [vmem:[%s4560 + $0x8] sm:$0xff]
        %4563 = vmatpush.msra.mxu0 0.0
        %4564 = vmatpush.msra.mxu0 0.0
        %4565 = vmatpush.msra.mxu0 0.0
        %4566 = vmatpush.msra.mxu0 0.0
        %4567 = vmatpush.msra.mxu0 0.0
        %4568 = vmatpush.msra.mxu0 0.0
        %4569 = vmatpush.msra.mxu0 0.0
        %4570 = vmatpush.msra.mxu0 0.0
        %4571 = vmatpush.msra.mxu0 0.0
        %4572 = vmatpush.msra.mxu0 0.0
        %4573 = vmatpush.msra.mxu0 0.0
        %4574 = vmatpush.msra.mxu0 0.0
        %4575 = vmatpush.msra.mxu0 0.0
        %4576 = vmatpush.msra.mxu0 0.0
        %4577 = vmatpush.msra.mxu0 %v4562
        %4578 = vmatpush.msra.mxu0 %v4561
        %4579 = vmatmul.f32.gmra.mxu0 %v4187
        %v4580 = vpop.f32.mrf.mxu0
        %v4581 = vadd.f32 0.0, %v4580
        %4582 = vmatmul.f32.gmra.mxu0 %v4190
        %v4583 = vpop.f32.mrf.mxu0
        %v4584 = vadd.f32 0.0, %v4583
        %4585 = vdwg.mxu0
        %s4586 = scalar_lea.vmem %s37, 160
        %v4587 = vld [vmem:[%s4586] sm:$0xff]
        %v4588 = vld [vmem:[%s4586 + $0x8] sm:$0xff]
        %v4589 = vld [vmem:[%s4586 + $0x10] sm:$0xff]
        %v4590 = vld [vmem:[%s4586 + $0x18] sm:$0xff]
        %v4592 = vsel %vm4185, %v4587, 0
        %v4595 = vsel %vm4185, %v4588, 0
        %v4598 = vsel %vm4185, %v4589, 0
        %v4601 = vsel %vm4185, %v4590, 0
        %4603 = vmatpush.msra.mxu0 0.0
        %4604 = vmatpush.msra.mxu0 0.0
        %4605 = vmatpush.msra.mxu0 0.0
        %4606 = vmatpush.msra.mxu0 0.0
        %4607 = vmatpush.msra.mxu0 0.0
        %4608 = vmatpush.msra.mxu0 0.0
        %4609 = vmatpush.msra.mxu0 0.0
        %4610 = vmatpush.msra.mxu0 0.0
        %4611 = vmatpush.msra.mxu0 0.0
        %4612 = vmatpush.msra.mxu0 0.0
        %4613 = vmatpush.msra.mxu0 0.0
        %4614 = vmatpush.msra.mxu0 0.0
        %4615 = vmatpush.msra.mxu0 0.0
        %4616 = vmatpush.msra.mxu0 0.0
        %4617 = vmatpush.msra.mxu0 %v4584
        %4618 = vmatpush.msra.mxu0 %v4581
        %4619 = vmatmul.f32.gmra.mxu0 %v4592
        %v4620 = vpop.f32.mrf.mxu0
        %v4621 = vadd.f32 0.0, %v4620
        %4622 = vmatmul.f32.gmra.mxu0 %v4595
        %v4623 = vpop.f32.mrf.mxu0
        %v4624 = vadd.f32 0.0, %v4623
        %4625 = vmatmul.f32.gmra.mxu0 %v4598
        %v4626 = vpop.f32.mrf.mxu0
        %v4627 = vadd.f32 0.0, %v4626
        %4628 = vmatmul.f32.gmra.mxu0 %v4601
        %v4629 = vpop.f32.mrf.mxu0
        %v4630 = vadd.f32 0.0, %v4629
        %4631 = vdwg.mxu0
        %v4632 = vadd.f32 %v4556, %v4621
        %v4633 = vadd.f32 %v4557, %v4624
        %v4634 = vadd.f32 %v4558, %v4627
        %v4635 = vadd.f32 %v4559, %v4630
        %s4636 = scalar_lea.vmem [#allocation6], 96
        %v4637 = vld [vmem:[%s4636] sm:$0xff]
        %v4638 = vld [vmem:[%s4636 + $0x8] sm:$0xff]
        %4639 = vmatpush.msra.mxu0 0.0
        %4640 = vmatpush.msra.mxu0 0.0
        %4641 = vmatpush.msra.mxu0 0.0
        %4642 = vmatpush.msra.mxu0 0.0
        %4643 = vmatpush.msra.mxu0 0.0
        %4644 = vmatpush.msra.mxu0 0.0
        %4645 = vmatpush.msra.mxu0 0.0
        %4646 = vmatpush.msra.mxu0 0.0
        %4647 = vmatpush.msra.mxu0 0.0
        %4648 = vmatpush.msra.mxu0 0.0
        %4649 = vmatpush.msra.mxu0 0.0
        %4650 = vmatpush.msra.mxu0 0.0
        %4651 = vmatpush.msra.mxu0 0.0
        %4652 = vmatpush.msra.mxu0 0.0
        %4653 = vmatpush.msra.mxu0 %v4638
        %4654 = vmatpush.msra.mxu0 %v4637
        %4655 = vmatmul.f32.gmra.mxu0 %v4187
        %v4656 = vpop.f32.mrf.mxu0
        %v4657 = vadd.f32 0.0, %v4656
        %4658 = vmatmul.f32.gmra.mxu0 %v4190
        %v4659 = vpop.f32.mrf.mxu0
        %v4660 = vadd.f32 0.0, %v4659
        %4661 = vdwg.mxu0
        %s4662 = scalar_lea.vmem %s37, 192
        %v4663 = vld [vmem:[%s4662] sm:$0xff]
        %v4664 = vld [vmem:[%s4662 + $0x8] sm:$0xff]
        %v4665 = vld [vmem:[%s4662 + $0x10] sm:$0xff]
        %v4666 = vld [vmem:[%s4662 + $0x18] sm:$0xff]
        %v4668 = vsel %vm4185, %v4663, 0
        %v4671 = vsel %vm4185, %v4664, 0
        %v4674 = vsel %vm4185, %v4665, 0
        %v4677 = vsel %vm4185, %v4666, 0
        %4679 = vmatpush.msra.mxu0 0.0
        %4680 = vmatpush.msra.mxu0 0.0
        %4681 = vmatpush.msra.mxu0 0.0
        %4682 = vmatpush.msra.mxu0 0.0
        %4683 = vmatpush.msra.mxu0 0.0
        %4684 = vmatpush.msra.mxu0 0.0
        %4685 = vmatpush.msra.mxu0 0.0
        %4686 = vmatpush.msra.mxu0 0.0
        %4687 = vmatpush.msra.mxu0 0.0
        %4688 = vmatpush.msra.mxu0 0.0
        %4689 = vmatpush.msra.mxu0 0.0
        %4690 = vmatpush.msra.mxu0 0.0
        %4691 = vmatpush.msra.mxu0 0.0
        %4692 = vmatpush.msra.mxu0 0.0
        %4693 = vmatpush.msra.mxu0 %v4660
        %4694 = vmatpush.msra.mxu0 %v4657
        %4695 = vmatmul.f32.gmra.mxu0 %v4668
        %v4696 = vpop.f32.mrf.mxu0
        %v4697 = vadd.f32 0.0, %v4696
        %4698 = vmatmul.f32.gmra.mxu0 %v4671
        %v4699 = vpop.f32.mrf.mxu0
        %v4700 = vadd.f32 0.0, %v4699
        %4701 = vmatmul.f32.gmra.mxu0 %v4674
        %v4702 = vpop.f32.mrf.mxu0
        %v4703 = vadd.f32 0.0, %v4702
        %4704 = vmatmul.f32.gmra.mxu0 %v4677
        %v4705 = vpop.f32.mrf.mxu0
        %v4706 = vadd.f32 0.0, %v4705
        %4707 = vdwg.mxu0
        %v4708 = vadd.f32 %v4632, %v4697
        %v4709 = vadd.f32 %v4633, %v4700
        %v4710 = vadd.f32 %v4634, %v4703
        %v4711 = vadd.f32 %v4635, %v4706
        %s4712 = scalar_lea.vmem [#allocation6], 112
        %v4713 = vld [vmem:[%s4712] sm:$0xff]
        %v4714 = vld [vmem:[%s4712 + $0x8] sm:$0xff]
        %4715 = vmatpush.msra.mxu0 0.0
        %4716 = vmatpush.msra.mxu0 0.0
        %4717 = vmatpush.msra.mxu0 0.0
        %4718 = vmatpush.msra.mxu0 0.0
        %4719 = vmatpush.msra.mxu0 0.0
        %4720 = vmatpush.msra.mxu0 0.0
        %4721 = vmatpush.msra.mxu0 0.0
        %4722 = vmatpush.msra.mxu0 0.0
        %4723 = vmatpush.msra.mxu0 0.0
        %4724 = vmatpush.msra.mxu0 0.0
        %4725 = vmatpush.msra.mxu0 0.0
        %4726 = vmatpush.msra.mxu0 0.0
        %4727 = vmatpush.msra.mxu0 0.0
        %4728 = vmatpush.msra.mxu0 0.0
        %4729 = vmatpush.msra.mxu0 %v4714
        %4730 = vmatpush.msra.mxu0 %v4713
        %4731 = vmatmul.f32.gmra.mxu0 %v4187
        %v4732 = vpop.f32.mrf.mxu0
        %v4733 = vadd.f32 0.0, %v4732
        %4734 = vmatmul.f32.gmra.mxu0 %v4190
        %v4735 = vpop.f32.mrf.mxu0
        %v4736 = vadd.f32 0.0, %v4735
        %4737 = vdwg.mxu0
        %s4738 = scalar_lea.vmem %s37, 224
        %v4739 = vld [vmem:[%s4738] sm:$0xff]
        %v4740 = vld [vmem:[%s4738 + $0x8] sm:$0xff]
        %v4741 = vld [vmem:[%s4738 + $0x10] sm:$0xff]
        %v4742 = vld [vmem:[%s4738 + $0x18] sm:$0xff]
        %v4744 = vsel %vm4185, %v4739, 0
        %v4747 = vsel %vm4185, %v4740, 0
        %v4750 = vsel %vm4185, %v4741, 0
        %v4753 = vsel %vm4185, %v4742, 0
        %4755 = vmatpush.msra.mxu0 0.0
        %4756 = vmatpush.msra.mxu0 0.0
        %4757 = vmatpush.msra.mxu0 0.0
        %4758 = vmatpush.msra.mxu0 0.0
        %4759 = vmatpush.msra.mxu0 0.0
        %4760 = vmatpush.msra.mxu0 0.0
        %4761 = vmatpush.msra.mxu0 0.0
        %4762 = vmatpush.msra.mxu0 0.0
        %4763 = vmatpush.msra.mxu0 0.0
        %4764 = vmatpush.msra.mxu0 0.0
        %4765 = vmatpush.msra.mxu0 0.0
        %4766 = vmatpush.msra.mxu0 0.0
        %4767 = vmatpush.msra.mxu0 0.0
        %4768 = vmatpush.msra.mxu0 0.0
        %4769 = vmatpush.msra.mxu0 %v4736
        %4770 = vmatpush.msra.mxu0 %v4733
        %4771 = vmatmul.f32.gmra.mxu0 %v4744
        %v4772 = vpop.f32.mrf.mxu0
        %v4773 = vadd.f32 0.0, %v4772
        %4774 = vmatmul.f32.gmra.mxu0 %v4747
        %v4775 = vpop.f32.mrf.mxu0
        %v4776 = vadd.f32 0.0, %v4775
        %4777 = vmatmul.f32.gmra.mxu0 %v4750
        %v4778 = vpop.f32.mrf.mxu0
        %v4779 = vadd.f32 0.0, %v4778
        %4780 = vmatmul.f32.gmra.mxu0 %v4753
        %v4781 = vpop.f32.mrf.mxu0
        %v4782 = vadd.f32 0.0, %v4781
        %4783 = vdwg.mxu0
        %v4784 = vadd.f32 %v4708, %v4773
        %v4785 = vadd.f32 %v4709, %v4776
        %v4786 = vadd.f32 %v4710, %v4779
        %v4787 = vadd.f32 %v4711, %v4782
        %s4788 = scalar_lea.vmem [#allocation6], 128
        %v4789 = vld [vmem:[%s4788] sm:$0xff]
        %v4790 = vld [vmem:[%s4788 + $0x8] sm:$0xff]
        %4791 = vmatpush.msra.mxu0 0.0
        %4792 = vmatpush.msra.mxu0 0.0
        %4793 = vmatpush.msra.mxu0 0.0
        %4794 = vmatpush.msra.mxu0 0.0
        %4795 = vmatpush.msra.mxu0 0.0
        %4796 = vmatpush.msra.mxu0 0.0
        %4797 = vmatpush.msra.mxu0 0.0
        %4798 = vmatpush.msra.mxu0 0.0
        %4799 = vmatpush.msra.mxu0 0.0
        %4800 = vmatpush.msra.mxu0 0.0
        %4801 = vmatpush.msra.mxu0 0.0
        %4802 = vmatpush.msra.mxu0 0.0
        %4803 = vmatpush.msra.mxu0 0.0
        %4804 = vmatpush.msra.mxu0 0.0
        %4805 = vmatpush.msra.mxu0 %v4790
        %4806 = vmatpush.msra.mxu0 %v4789
        %4807 = vmatmul.f32.gmra.mxu0 %v4187
        %v4808 = vpop.f32.mrf.mxu0
        %v4809 = vadd.f32 0.0, %v4808
        %4810 = vmatmul.f32.gmra.mxu0 %v4190
        %v4811 = vpop.f32.mrf.mxu0
        %v4812 = vadd.f32 0.0, %v4811
        %4813 = vdwg.mxu0
        %s4814 = scalar_lea.vmem %s37, 256
        %v4815 = vld [vmem:[%s4814] sm:$0xff]
        %v4816 = vld [vmem:[%s4814 + $0x8] sm:$0xff]
        %v4817 = vld [vmem:[%s4814 + $0x10] sm:$0xff]
        %v4818 = vld [vmem:[%s4814 + $0x18] sm:$0xff]
        %v4820 = vsel %vm4185, %v4815, 0
        %v4823 = vsel %vm4185, %v4816, 0
        %v4826 = vsel %vm4185, %v4817, 0
        %v4829 = vsel %vm4185, %v4818, 0
        %4831 = vmatpush.msra.mxu0 0.0
        %4832 = vmatpush.msra.mxu0 0.0
        %4833 = vmatpush.msra.mxu0 0.0
        %4834 = vmatpush.msra.mxu0 0.0
        %4835 = vmatpush.msra.mxu0 0.0
        %4836 = vmatpush.msra.mxu0 0.0
        %4837 = vmatpush.msra.mxu0 0.0
        %4838 = vmatpush.msra.mxu0 0.0
        %4839 = vmatpush.msra.mxu0 0.0
        %4840 = vmatpush.msra.mxu0 0.0
        %4841 = vmatpush.msra.mxu0 0.0
        %4842 = vmatpush.msra.mxu0 0.0
        %4843 = vmatpush.msra.mxu0 0.0
        %4844 = vmatpush.msra.mxu0 0.0
        %4845 = vmatpush.msra.mxu0 %v4812
        %4846 = vmatpush.msra.mxu0 %v4809
        %4847 = vmatmul.f32.gmra.mxu0 %v4820
        %v4848 = vpop.f32.mrf.mxu0
        %v4849 = vadd.f32 0.0, %v4848
        %4850 = vmatmul.f32.gmra.mxu0 %v4823
        %v4851 = vpop.f32.mrf.mxu0
        %v4852 = vadd.f32 0.0, %v4851
        %4853 = vmatmul.f32.gmra.mxu0 %v4826
        %v4854 = vpop.f32.mrf.mxu0
        %v4855 = vadd.f32 0.0, %v4854
        %4856 = vmatmul.f32.gmra.mxu0 %v4829
        %v4857 = vpop.f32.mrf.mxu0
        %v4858 = vadd.f32 0.0, %v4857
        %4859 = vdwg.mxu0
        %v4860 = vadd.f32 %v4784, %v4849
        %v4861 = vadd.f32 %v4785, %v4852
        %v4862 = vadd.f32 %v4786, %v4855
        %v4863 = vadd.f32 %v4787, %v4858
        %v4864 = vld [vmem:[%s39] sm:$0xff]
        %v4865 = vld [vmem:[%s39 + $0x8] sm:$0xff]
        %v4866 = vld [vmem:[%s39 + $0x10] sm:$0xff]
        %v4867 = vld [vmem:[%s39 + $0x18] sm:$0xff]
        %4869 = vset.pattern.permute.xlu0 0
        %4870 = vperm.xlu0 %4869, %v4864
        %v4871 = vpop.permute.xlu0 %4870
        %4874 = vset.pattern.permute.xlu0 0
        %4875 = vperm.xlu0 %4874, %v4865
        %v4876 = vpop.permute.xlu0 %4875
        %4879 = vset.pattern.permute.xlu0 0
        %4880 = vperm.xlu0 %4879, %v4866
        %v4881 = vpop.permute.xlu0 %4880
        %4884 = vset.pattern.permute.xlu0 0
        %4885 = vperm.xlu0 %4884, %v4867
        %v4886 = vpop.permute.xlu0 %4885
        %v4888 = vadd.f32 %v4860, %v4871
        %v4889 = vadd.f32 %v4861, %v4876
        %v4890 = vadd.f32 %v4862, %v4881
        %v4891 = vadd.f32 %v4863, %v4886
        %v4892 = vmul.f32 %v4888, 0.2
        %v4893 = vmul.f32 %v4889, 0.2
        %v4894 = vmul.f32 %v4890, 0.2
        %v4895 = vmul.f32 %v4891, 0.2
        %v4896 = vmax.f32 %v4888, %v4892
        %v4897 = vmax.f32 %v4889, %v4893
        %v4898 = vmax.f32 %v4890, %v4894
        %v4899 = vmax.f32 %v4891, %v4895
        %v4900 = vld [vmem:[%s15] sm:$0xff]
        %v4901 = vld [vmem:[%s15 + $0x8] sm:$0xff]
        %v4903 = vsel %vm4185, %v4896, 0
        %v4906 = vsel %vm4185, %v4897, 0
        %v4909 = vsel %vm4185, %v4898, 0
        %v4912 = vsel %vm4185, %v4899, 0
        %4914 = vmatpush.msra.mxu0 0.0
        %4915 = vmatpush.msra.mxu0 0.0
        %4916 = vmatpush.msra.mxu0 0.0
        %4917 = vmatpush.msra.mxu0 0.0
        %4918 = vmatpush.msra.mxu0 0.0
        %4919 = vmatpush.msra.mxu0 0.0
        %4920 = vmatpush.msra.mxu0 0.0
        %4921 = vmatpush.msra.mxu0 0.0
        %4922 = vmatpush.msra.mxu0 0.0
        %4923 = vmatpush.msra.mxu0 0.0
        %4924 = vmatpush.msra.mxu0 0.0
        %4925 = vmatpush.msra.mxu0 0.0
        %4926 = vmatpush.msra.mxu0 0.0
        %4927 = vmatpush.msra.mxu0 0.0
        %4928 = vmatpush.msra.mxu0 %v4901
        %4929 = vmatpush.msra.mxu0 %v4900
        %4930 = vmatmul.f32.gmra.mxu0 %v4903
        %v4931 = vpop.f32.mrf.mxu0
        %v4932 = vadd.f32 0.0, %v4931
        %4933 = vmatmul.f32.gmra.mxu0 %v4906
        %v4934 = vpop.f32.mrf.mxu0
        %v4935 = vadd.f32 0.0, %v4934
        %4936 = vmatmul.f32.gmra.mxu0 %v4909
        %v4937 = vpop.f32.mrf.mxu0
        %v4938 = vadd.f32 0.0, %v4937
        %4939 = vmatmul.f32.gmra.mxu0 %v4912
        %v4940 = vpop.f32.mrf.mxu0
        %v4941 = vadd.f32 0.0, %v4940
        %4942 = vdwg.mxu0
        %s4943 = scalar_lea.vmem %s15, 16
        %v4944 = vld [vmem:[%s4943] sm:$0xff]
        %v4945 = vld [vmem:[%s4943 + $0x8] sm:$0xff]
        %4946 = vmatpush.msra.mxu0 0.0
        %4947 = vmatpush.msra.mxu0 0.0
        %4948 = vmatpush.msra.mxu0 0.0
        %4949 = vmatpush.msra.mxu0 0.0
        %4950 = vmatpush.msra.mxu0 0.0
        %4951 = vmatpush.msra.mxu0 0.0
        %4952 = vmatpush.msra.mxu0 0.0
        %4953 = vmatpush.msra.mxu0 0.0
        %4954 = vmatpush.msra.mxu0 0.0
        %4955 = vmatpush.msra.mxu0 0.0
        %4956 = vmatpush.msra.mxu0 0.0
        %4957 = vmatpush.msra.mxu0 0.0
        %4958 = vmatpush.msra.mxu0 0.0
        %4959 = vmatpush.msra.mxu0 0.0
        %4960 = vmatpush.msra.mxu0 %v4945
        %4961 = vmatpush.msra.mxu0 %v4944
        %4962 = vmatmul.f32.gmra.mxu0 %v4903
        %v4963 = vpop.f32.mrf.mxu0
        %v4964 = vadd.f32 0.0, %v4963
        %4965 = vmatmul.f32.gmra.mxu0 %v4906
        %v4966 = vpop.f32.mrf.mxu0
        %v4967 = vadd.f32 0.0, %v4966
        %4968 = vmatmul.f32.gmra.mxu0 %v4909
        %v4969 = vpop.f32.mrf.mxu0
        %v4970 = vadd.f32 0.0, %v4969
        %4971 = vmatmul.f32.gmra.mxu0 %v4912
        %v4972 = vpop.f32.mrf.mxu0
        %v4973 = vadd.f32 0.0, %v4972
        %4974 = vdwg.mxu0
        %s4975 = scalar_lea.vmem %s15, 32
        %v4976 = vld [vmem:[%s4975] sm:$0xff]
        %v4977 = vld [vmem:[%s4975 + $0x8] sm:$0xff]
        %4978 = vmatpush.msra.mxu0 0.0
        %4979 = vmatpush.msra.mxu0 0.0
        %4980 = vmatpush.msra.mxu0 0.0
        %4981 = vmatpush.msra.mxu0 0.0
        %4982 = vmatpush.msra.mxu0 0.0
        %4983 = vmatpush.msra.mxu0 0.0
        %4984 = vmatpush.msra.mxu0 0.0
        %4985 = vmatpush.msra.mxu0 0.0
        %4986 = vmatpush.msra.mxu0 0.0
        %4987 = vmatpush.msra.mxu0 0.0
        %4988 = vmatpush.msra.mxu0 0.0
        %4989 = vmatpush.msra.mxu0 0.0
        %4990 = vmatpush.msra.mxu0 0.0
        %4991 = vmatpush.msra.mxu0 0.0
        %4992 = vmatpush.msra.mxu0 %v4977
        %4993 = vmatpush.msra.mxu0 %v4976
        %4994 = vmatmul.f32.gmra.mxu0 %v4903
        %v4995 = vpop.f32.mrf.mxu0
        %v4996 = vadd.f32 0.0, %v4995
        %4997 = vmatmul.f32.gmra.mxu0 %v4906
        %v4998 = vpop.f32.mrf.mxu0
        %v4999 = vadd.f32 0.0, %v4998
        %5000 = vmatmul.f32.gmra.mxu0 %v4909
        %v5001 = vpop.f32.mrf.mxu0
        %v5002 = vadd.f32 0.0, %v5001
        %5003 = vmatmul.f32.gmra.mxu0 %v4912
        %v5004 = vpop.f32.mrf.mxu0
        %v5005 = vadd.f32 0.0, %v5004
        %5006 = vdwg.mxu0
        %s5007 = scalar_lea.vmem %s15, 48
        %v5008 = vld [vmem:[%s5007] sm:$0xff]
        %v5009 = vld [vmem:[%s5007 + $0x8] sm:$0xff]
        %5010 = vmatpush.msra.mxu0 0.0
        %5011 = vmatpush.msra.mxu0 0.0
        %5012 = vmatpush.msra.mxu0 0.0
        %5013 = vmatpush.msra.mxu0 0.0
        %5014 = vmatpush.msra.mxu0 0.0
        %5015 = vmatpush.msra.mxu0 0.0
        %5016 = vmatpush.msra.mxu0 0.0
        %5017 = vmatpush.msra.mxu0 0.0
        %5018 = vmatpush.msra.mxu0 0.0
        %5019 = vmatpush.msra.mxu0 0.0
        %5020 = vmatpush.msra.mxu0 0.0
        %5021 = vmatpush.msra.mxu0 0.0
        %5022 = vmatpush.msra.mxu0 0.0
        %5023 = vmatpush.msra.mxu0 0.0
        %5024 = vmatpush.msra.mxu0 %v5009
        %5025 = vmatpush.msra.mxu0 %v5008
        %5026 = vmatmul.f32.gmra.mxu0 %v4903
        %v5027 = vpop.f32.mrf.mxu0
        %v5028 = vadd.f32 0.0, %v5027
        %5029 = vmatmul.f32.gmra.mxu0 %v4906
        %v5030 = vpop.f32.mrf.mxu0
        %v5031 = vadd.f32 0.0, %v5030
        %5032 = vmatmul.f32.gmra.mxu0 %v4909
        %v5033 = vpop.f32.mrf.mxu0
        %v5034 = vadd.f32 0.0, %v5033
        %5035 = vmatmul.f32.gmra.mxu0 %v4912
        %v5036 = vpop.f32.mrf.mxu0
        %v5037 = vadd.f32 0.0, %v5036
        %5038 = vdwg.mxu0
        %v5039 = vmax.f32 %v4932, %v4964
        %v5040 = vmax.f32 %v4935, %v4967
        %v5041 = vmax.f32 %v4938, %v4970
        %v5042 = vmax.f32 %v4941, %v4973
        %v5043 = vmax.f32 %v4996, %v5028
        %v5044 = vmax.f32 %v4999, %v5031
        %v5045 = vmax.f32 %v5002, %v5034
        %v5046 = vmax.f32 %v5005, %v5037
        %v5047 = vmax.f32 %v5039, %v5043
        %v5048 = vmax.f32 %v5040, %v5044
        %v5049 = vmax.f32 %v5041, %v5045
        %v5050 = vmax.f32 %v5042, %v5046
        %v5051 = vld [vmem:[#allocation12] sm:$0xf]
        %vm5052 = vcmask 31744
        %v5054 = vsel %vm5052, %v5047, 0
        %v5057 = vsel %vm5052, %v5048, 0
        %v5060 = vsel %vm5052, %v5049, 0
        %v5063 = vsel %vm5052, %v5050, 0
        %vm5065 = vcmask 1043456
        %v5067 = vsel %vm5065, %v5051, 0
        %5069 = vmatpush.msra.mxu0 0.0
        %5070 = vmatpush.msra.mxu0 0.0
        %5071 = vmatpush.msra.mxu0 0.0
        %5072 = vmatpush.msra.mxu0 0.0
        %5073 = vmatpush.msra.mxu0 0.0
        %5074 = vmatpush.msra.mxu0 0.0
        %5075 = vmatpush.msra.mxu0 0.0
        %5076 = vmatpush.msra.mxu0 0.0
        %5077 = vmatpush.msra.mxu0 0.0
        %5078 = vmatpush.msra.mxu0 0.0
        %5079 = vmatpush.msra.mxu0 0.0
        %5080 = vmatpush.msra.mxu0 0.0
        %5081 = vmatpush.msra.mxu0 0.0
        %5082 = vmatpush.msra.mxu0 0.0
        %5083 = vmatpush.msra.mxu0 0.0
        %5084 = vmatpush.msra.mxu0 %v5067
        %5085 = vmatmul.f32.gmra.mxu0 %v5054
        %v5086 = vpop.f32.mrf.mxu0
        %v5087 = vadd.f32 0.0, %v5086
        %5088 = vmatmul.f32.gmra.mxu0 %v5057
        %v5089 = vpop.f32.mrf.mxu0
        %v5090 = vadd.f32 0.0, %v5089
        %5091 = vmatmul.f32.gmra.mxu0 %v5060
        %v5092 = vpop.f32.mrf.mxu0
        %v5093 = vadd.f32 0.0, %v5092
        %5094 = vmatmul.f32.gmra.mxu0 %v5063
        %v5095 = vpop.f32.mrf.mxu0
        %v5096 = vadd.f32 0.0, %v5095
        %5097 = vdwg.mxu0
        %v5098 = vld [vmem:[#allocation13] sm:$0xff]
        %v5099 = vld [vmem:[#allocation13 + $0x8] sm:$0xff]
        %v5100 = vld [vmem:[#allocation13 + $0x10] sm:$0xff]
        %v5101 = vld [vmem:[#allocation13 + $0x18] sm:$0xff]
        %v5102 = vmul.f32 %v5087, %v5098
        %v5103 = vmul.f32 %v5090, %v5099
        %v5104 = vmul.f32 %v5093, %v5100
        %v5105 = vmul.f32 %v5096, %v5101
        %v5106 = vadd.f32 %v5102, %v5103
        %v5107 = vadd.f32 %v5106, %v5104
        %v5108 = vadd.f32 %v5107, %v5105
        %v5109 = vrot.slane %v5108, 4
        %v5110 = vadd.f32 %v5108, %v5109
        %v5111 = vrot.slane %v5110, 2
        %v5112 = vadd.f32 %v5110, %v5111
        %v5113 = vrot.slane %v5112, 1
        %v5114 = vadd.f32 %v5112, %v5113
        %v5115 = vld [vmem:[#allocation15] sm:$0xff]
        %v5116 = vld [vmem:[#allocation15 + $0x8] sm:$0xff]
        %v5117 = vld [vmem:[#allocation15 + $0x10] sm:$0xff]
        %v5118 = vld [vmem:[#allocation15 + $0x18] sm:$0xff]
        %v5119 = vld [vmem:[#allocation15 + $0x20] sm:$0xff]
        %v5120 = vld [vmem:[#allocation15 + $0x28] sm:$0xff]
        %v5121 = vld [vmem:[#allocation15 + $0x30] sm:$0xff]
        %v5122 = vld [vmem:[#allocation15 + $0x38] sm:$0xff]
        %v5123 = vld [vmem:[#allocation15 + $0x40] sm:$0xff]
        %v5124 = vld [vmem:[#allocation15 + $0x48] sm:$0xff]
        %v5125 = vld [vmem:[#allocation15 + $0x50] sm:$0xff]
        %v5126 = vld [vmem:[#allocation15 + $0x58] sm:$0xff]
        %v5127 = vld [vmem:[#allocation15 + $0x60] sm:$0xff]
        %v5128 = vld [vmem:[#allocation15 + $0x68] sm:$0xff]
        %v5129 = vld [vmem:[#allocation15 + $0x70] sm:$0xff]
        %v5130 = vld [vmem:[#allocation15 + $0x78] sm:$0xff]
        %v5131 = vld [vmem:[#allocation15 + $0x80] sm:$0xff]
        %v5132 = vld [vmem:[#allocation15 + $0x88] sm:$0xff]
        %v5133 = vld [vmem:[#allocation15 + $0x90] sm:$0xff]
        %v5134 = vld [vmem:[#allocation15 + $0x98] sm:$0xff]
        %v5135 = vld [vmem:[#allocation15 + $0xa0] sm:$0xff]
        %v5136 = vld [vmem:[#allocation15 + $0xa8] sm:$0xff]
        %v5137 = vld [vmem:[#allocation15 + $0xb0] sm:$0xff]
        %v5138 = vld [vmem:[#allocation15 + $0xb8] sm:$0xff]
        %v5139 = vld [vmem:[#allocation15 + $0xc0] sm:$0xff]
        %v5140 = vld [vmem:[#allocation15 + $0xc8] sm:$0xff]
        %v5141 = vld [vmem:[#allocation15 + $0xd0] sm:$0xff]
        %v5142 = vld [vmem:[#allocation15 + $0xd8] sm:$0xff]
        %v5143 = vld [vmem:[#allocation15 + $0xe0] sm:$0xff]
        %v5144 = vld [vmem:[#allocation15 + $0xe8] sm:$0xff]
        %v5145 = vld [vmem:[#allocation15 + $0xf0] sm:$0xff]
        %v5146 = vld [vmem:[#allocation15 + $0xf8] sm:$0xff]
        %v5147 = vld [vmem:[#allocation16] sm:$0x3]
        %v5149 = vperm.slane %v5147, 0
        %v5150 = vperm.slane %v5147, 1
        %5153 = vmatpush.msra.mxu0 %v5145
        %5154 = vmatpush.msra.mxu0 %v5143
        %5155 = vmatpush.msra.mxu0 %v5141
        %5156 = vmatpush.msra.mxu0 %v5139
        %5157 = vmatpush.msra.mxu0 %v5137
        %5158 = vmatpush.msra.mxu0 %v5135
        %5159 = vmatpush.msra.mxu0 %v5133
        %5160 = vmatpush.msra.mxu0 %v5131
        %5161 = vmatpush.msra.mxu0 %v5129
        %5162 = vmatpush.msra.mxu0 %v5127
        %5163 = vmatpush.msra.mxu0 %v5125
        %5164 = vmatpush.msra.mxu0 %v5123
        %5165 = vmatpush.msra.mxu0 %v5121
        %5166 = vmatpush.msra.mxu0 %v5119
        %5167 = vmatpush.msra.mxu0 %v5117
        %5168 = vmatpush.msra.mxu0 %v5115
        %5169 = vmatmul.f32.gmra.mxu0 %v5114
        %v5170 = vpop.f32.mrf.mxu0
        %v5171 = vadd.f32 %v5149, %v5170
        %5172 = vdwg.mxu0
        %5173 = vmatpush.msra.mxu0 %v5146
        %5174 = vmatpush.msra.mxu0 %v5144
        %5175 = vmatpush.msra.mxu0 %v5142
        %5176 = vmatpush.msra.mxu0 %v5140
        %5177 = vmatpush.msra.mxu0 %v5138
        %5178 = vmatpush.msra.mxu0 %v5136
        %5179 = vmatpush.msra.mxu0 %v5134
        %5180 = vmatpush.msra.mxu0 %v5132
        %5181 = vmatpush.msra.mxu0 %v5130
        %5182 = vmatpush.msra.mxu0 %v5128
        %5183 = vmatpush.msra.mxu0 %v5126
        %5184 = vmatpush.msra.mxu0 %v5124
        %5185 = vmatpush.msra.mxu0 %v5122
        %5186 = vmatpush.msra.mxu0 %v5120
        %5187 = vmatpush.msra.mxu0 %v5118
        %5188 = vmatpush.msra.mxu0 %v5116
        %5189 = vmatmul.f32.gmra.mxu0 %v5114
        %v5190 = vpop.f32.mrf.mxu0
        %v5191 = vadd.f32 %v5150, %v5190
        %5192 = vdwg.mxu0
        %v5193 = vmul.f32 %v5171, 0.2
        %v5194 = vmul.f32 %v5191, 0.2
        %v5195 = vmax.f32 %v5171, %v5193
        %v5196 = vmax.f32 %v5191, %v5194
        %v5197 = vld [vmem:[#allocation18] sm:$0xff]
        %v5198 = vld [vmem:[#allocation18 + $0x8] sm:$0xff]
        %v5199 = vld [vmem:[#allocation18 + $0x10] sm:$0xff]
        %v5200 = vld [vmem:[#allocation18 + $0x18] sm:$0xff]
        %v5201 = vld [vmem:[#allocation18 + $0x20] sm:$0xff]
        %v5202 = vld [vmem:[#allocation18 + $0x28] sm:$0xff]
        %v5203 = vld [vmem:[#allocation18 + $0x30] sm:$0xff]
        %v5204 = vld [vmem:[#allocation18 + $0x38] sm:$0xff]
        %v5205 = vld [vmem:[#allocation18 + $0x40] sm:$0xff]
        %v5206 = vld [vmem:[#allocation18 + $0x48] sm:$0xff]
        %v5207 = vld [vmem:[#allocation18 + $0x50] sm:$0xff]
        %v5208 = vld [vmem:[#allocation18 + $0x58] sm:$0xff]
        %v5209 = vld [vmem:[#allocation18 + $0x60] sm:$0xff]
        %v5210 = vld [vmem:[#allocation18 + $0x68] sm:$0xff]
        %v5211 = vld [vmem:[#allocation18 + $0x70] sm:$0xff]
        %v5212 = vld [vmem:[#allocation18 + $0x78] sm:$0xff]
        %v5213 = vld [vmem:[#allocation18 + $0x80] sm:$0xff]
        %v5214 = vld [vmem:[#allocation18 + $0x88] sm:$0xff]
        %v5215 = vld [vmem:[#allocation18 + $0x90] sm:$0xff]
        %v5216 = vld [vmem:[#allocation18 + $0x98] sm:$0xff]
        %v5217 = vld [vmem:[#allocation18 + $0xa0] sm:$0xff]
        %v5218 = vld [vmem:[#allocation18 + $0xa8] sm:$0xff]
        %v5219 = vld [vmem:[#allocation18 + $0xb0] sm:$0xff]
        %v5220 = vld [vmem:[#allocation18 + $0xb8] sm:$0xff]
        %v5221 = vld [vmem:[#allocation18 + $0xc0] sm:$0xff]
        %v5222 = vld [vmem:[#allocation18 + $0xc8] sm:$0xff]
        %v5223 = vld [vmem:[#allocation18 + $0xd0] sm:$0xff]
        %v5224 = vld [vmem:[#allocation18 + $0xd8] sm:$0xff]
        %v5225 = vld [vmem:[#allocation18 + $0xe0] sm:$0xff]
        %v5226 = vld [vmem:[#allocation18 + $0xe8] sm:$0xff]
        %v5227 = vld [vmem:[#allocation18 + $0xf0] sm:$0xff]
        %v5228 = vld [vmem:[#allocation18 + $0xf8] sm:$0xff]
        %v5229 = vld [vmem:[#allocation19] sm:$0x1]
        %5230 = vmatpush.msra.mxu0 %v5212
        %5231 = vmatpush.msra.mxu0 %v5211
        %5232 = vmatpush.msra.mxu0 %v5210
        %5233 = vmatpush.msra.mxu0 %v5209
        %5234 = vmatpush.msra.mxu0 %v5208
        %5235 = vmatpush.msra.mxu0 %v5207
        %5236 = vmatpush.msra.mxu0 %v5206
        %5237 = vmatpush.msra.mxu0 %v5205
        %5238 = vmatpush.msra.mxu0 %v5204
        %5239 = vmatpush.msra.mxu0 %v5203
        %5240 = vmatpush.msra.mxu0 %v5202
        %5241 = vmatpush.msra.mxu0 %v5201
        %5242 = vmatpush.msra.mxu0 %v5200
        %5243 = vmatpush.msra.mxu0 %v5199
        %5244 = vmatpush.msra.mxu0 %v5198
        %5245 = vmatpush.msra.mxu0 %v5197
        %5246 = vmatmul.f32.gmra.mxu0 %v5195
        %v5247 = vpop.f32.mrf.mxu0
        %v5248 = vadd.f32 %v5229, %v5247
        %5249 = vdwg.mxu0
        %5250 = vmatpush.msra.mxu0 %v5228
        %5251 = vmatpush.msra.mxu0 %v5227
        %5252 = vmatpush.msra.mxu0 %v5226
        %5253 = vmatpush.msra.mxu0 %v5225
        %5254 = vmatpush.msra.mxu0 %v5224
        %5255 = vmatpush.msra.mxu0 %v5223
        %5256 = vmatpush.msra.mxu0 %v5222
        %5257 = vmatpush.msra.mxu0 %v5221
        %5258 = vmatpush.msra.mxu0 %v5220
        %5259 = vmatpush.msra.mxu0 %v5219
        %5260 = vmatpush.msra.mxu0 %v5218
        %5261 = vmatpush.msra.mxu0 %v5217
        %5262 = vmatpush.msra.mxu0 %v5216
        %5263 = vmatpush.msra.mxu0 %v5215
        %5264 = vmatpush.msra.mxu0 %v5214
        %5265 = vmatpush.msra.mxu0 %v5213
        %5266 = vmatmul.f32.gmra.mxu0 %v5196
        %v5267 = vpop.f32.mrf.mxu0
        %v5268 = vadd.f32 %v5248, %v5267
        %5269 = vdwg.mxu0
        %v5270 = vld [vmem:[#allocation21] sm:$0xff]
        %v5271 = vld [vmem:[#allocation21 + $0x8] sm:$0xff]
        %v5272 = vld [vmem:[#allocation21 + $0x10] sm:$0xff]
        %v5273 = vld [vmem:[#allocation21 + $0x18] sm:$0xff]
        %v5274 = vld [vmem:[#allocation21 + $0x20] sm:$0xff]
        %v5275 = vld [vmem:[#allocation21 + $0x28] sm:$0xff]
        %v5276 = vld [vmem:[#allocation21 + $0x30] sm:$0xff]
        %v5277 = vld [vmem:[#allocation21 + $0x38] sm:$0xff]
        %v5278 = vld [vmem:[#allocation21 + $0x40] sm:$0xff]
        %v5279 = vld [vmem:[#allocation21 + $0x48] sm:$0xff]
        %v5280 = vld [vmem:[#allocation21 + $0x50] sm:$0xff]
        %v5281 = vld [vmem:[#allocation21 + $0x58] sm:$0xff]
        %v5282 = vld [vmem:[#allocation21 + $0x60] sm:$0xff]
        %v5283 = vld [vmem:[#allocation21 + $0x68] sm:$0xff]
        %v5284 = vld [vmem:[#allocation21 + $0x70] sm:$0xff]
        %v5285 = vld [vmem:[#allocation21 + $0x78] sm:$0xff]
        %v5286 = vld [vmem:[#allocation21 + $0x80] sm:$0xff]
        %v5287 = vld [vmem:[#allocation21 + $0x88] sm:$0xff]
        %v5288 = vld [vmem:[#allocation21 + $0x90] sm:$0xff]
        %v5289 = vld [vmem:[#allocation21 + $0x98] sm:$0xff]
        %v5290 = vld [vmem:[#allocation21 + $0xa0] sm:$0xff]
        %v5291 = vld [vmem:[#allocation21 + $0xa8] sm:$0xff]
        %v5292 = vld [vmem:[#allocation21 + $0xb0] sm:$0xff]
        %v5293 = vld [vmem:[#allocation21 + $0xb8] sm:$0xff]
        %v5294 = vld [vmem:[#allocation21 + $0xc0] sm:$0xff]
        %v5295 = vld [vmem:[#allocation21 + $0xc8] sm:$0xff]
        %v5296 = vld [vmem:[#allocation21 + $0xd0] sm:$0xff]
        %v5297 = vld [vmem:[#allocation21 + $0xd8] sm:$0xff]
        %v5298 = vld [vmem:[#allocation21 + $0xe0] sm:$0xff]
        %v5299 = vld [vmem:[#allocation21 + $0xe8] sm:$0xff]
        %v5300 = vld [vmem:[#allocation21 + $0xf0] sm:$0xff]
        %v5301 = vld [vmem:[#allocation21 + $0xf8] sm:$0xff]
        %v5302 = vld [vmem:[#allocation22] sm:$0x3]
        %v5304 = vperm.slane %v5302, 0
        %v5305 = vperm.slane %v5302, 1
        %5308 = vmatpush.msra.mxu0 %v5300
        %5309 = vmatpush.msra.mxu0 %v5298
        %5310 = vmatpush.msra.mxu0 %v5296
        %5311 = vmatpush.msra.mxu0 %v5294
        %5312 = vmatpush.msra.mxu0 %v5292
        %5313 = vmatpush.msra.mxu0 %v5290
        %5314 = vmatpush.msra.mxu0 %v5288
        %5315 = vmatpush.msra.mxu0 %v5286
        %5316 = vmatpush.msra.mxu0 %v5284
        %5317 = vmatpush.msra.mxu0 %v5282
        %5318 = vmatpush.msra.mxu0 %v5280
        %5319 = vmatpush.msra.mxu0 %v5278
        %5320 = vmatpush.msra.mxu0 %v5276
        %5321 = vmatpush.msra.mxu0 %v5274
        %5322 = vmatpush.msra.mxu0 %v5272
        %5323 = vmatpush.msra.mxu0 %v5270
        %5324 = vmatmul.f32.gmra.mxu0 %v5268
        %v5325 = vpop.f32.mrf.mxu0
        %v5326 = vadd.f32 %v5304, %v5325
        %5327 = vdwg.mxu0
        %5328 = vmatpush.msra.mxu0 %v5301
        %5329 = vmatpush.msra.mxu0 %v5299
        %5330 = vmatpush.msra.mxu0 %v5297
        %5331 = vmatpush.msra.mxu0 %v5295
        %5332 = vmatpush.msra.mxu0 %v5293
        %5333 = vmatpush.msra.mxu0 %v5291
        %5334 = vmatpush.msra.mxu0 %v5289
        %5335 = vmatpush.msra.mxu0 %v5287
        %5336 = vmatpush.msra.mxu0 %v5285
        %5337 = vmatpush.msra.mxu0 %v5283
        %5338 = vmatpush.msra.mxu0 %v5281
        %5339 = vmatpush.msra.mxu0 %v5279
        %5340 = vmatpush.msra.mxu0 %v5277
        %5341 = vmatpush.msra.mxu0 %v5275
        %5342 = vmatpush.msra.mxu0 %v5273
        %5343 = vmatpush.msra.mxu0 %v5271
        %5344 = vmatmul.f32.gmra.mxu0 %v5268
        %v5345 = vpop.f32.mrf.mxu0
        %v5346 = vadd.f32 %v5305, %v5345
        %5347 = vdwg.mxu0
        %v5348 = vmul.f32 %v5326, 0.2
        %v5349 = vmul.f32 %v5346, 0.2
        %v5350 = vmax.f32 %v5326, %v5348
        %v5351 = vmax.f32 %v5346, %v5349
        %v5352 = vld [vmem:[#allocation24] sm:$0xff]
        %v5353 = vld [vmem:[#allocation24 + $0x8] sm:$0xff]
        %v5354 = vld [vmem:[#allocation24 + $0x10] sm:$0xff]
        %v5355 = vld [vmem:[#allocation24 + $0x18] sm:$0xff]
        %v5356 = vld [vmem:[#allocation24 + $0x20] sm:$0xff]
        %v5357 = vld [vmem:[#allocation24 + $0x28] sm:$0xff]
        %v5358 = vld [vmem:[#allocation24 + $0x30] sm:$0xff]
        %v5359 = vld [vmem:[#allocation24 + $0x38] sm:$0xff]
        %v5360 = vld [vmem:[#allocation24 + $0x40] sm:$0xff]
        %v5361 = vld [vmem:[#allocation24 + $0x48] sm:$0xff]
        %v5362 = vld [vmem:[#allocation24 + $0x50] sm:$0xff]
        %v5363 = vld [vmem:[#allocation24 + $0x58] sm:$0xff]
        %v5364 = vld [vmem:[#allocation24 + $0x60] sm:$0xff]
        %v5365 = vld [vmem:[#allocation24 + $0x68] sm:$0xff]
        %v5366 = vld [vmem:[#allocation24 + $0x70] sm:$0xff]
        %v5367 = vld [vmem:[#allocation24 + $0x78] sm:$0xff]
        %v5368 = vld [vmem:[#allocation24 + $0x80] sm:$0xff]
        %v5369 = vld [vmem:[#allocation24 + $0x88] sm:$0xff]
        %v5370 = vld [vmem:[#allocation24 + $0x90] sm:$0xff]
        %v5371 = vld [vmem:[#allocation24 + $0x98] sm:$0xff]
        %v5372 = vld [vmem:[#allocation24 + $0xa0] sm:$0xff]
        %v5373 = vld [vmem:[#allocation24 + $0xa8] sm:$0xff]
        %v5374 = vld [vmem:[#allocation24 + $0xb0] sm:$0xff]
        %v5375 = vld [vmem:[#allocation24 + $0xb8] sm:$0xff]
        %v5376 = vld [vmem:[#allocation24 + $0xc0] sm:$0xff]
        %v5377 = vld [vmem:[#allocation24 + $0xc8] sm:$0xff]
        %v5378 = vld [vmem:[#allocation24 + $0xd0] sm:$0xff]
        %v5379 = vld [vmem:[#allocation24 + $0xd8] sm:$0xff]
        %v5380 = vld [vmem:[#allocation24 + $0xe0] sm:$0xff]
        %v5381 = vld [vmem:[#allocation24 + $0xe8] sm:$0xff]
        %v5382 = vld [vmem:[#allocation24 + $0xf0] sm:$0xff]
        %v5383 = vld [vmem:[#allocation24 + $0xf8] sm:$0xff]
        %v5384 = vld [vmem:[#allocation25] sm:$0x1]
        %5385 = vmatpush.msra.mxu0 %v5367
        %5386 = vmatpush.msra.mxu0 %v5366
        %5387 = vmatpush.msra.mxu0 %v5365
        %5388 = vmatpush.msra.mxu0 %v5364
        %5389 = vmatpush.msra.mxu0 %v5363
        %5390 = vmatpush.msra.mxu0 %v5362
        %5391 = vmatpush.msra.mxu0 %v5361
        %5392 = vmatpush.msra.mxu0 %v5360
        %5393 = vmatpush.msra.mxu0 %v5359
        %5394 = vmatpush.msra.mxu0 %v5358
        %5395 = vmatpush.msra.mxu0 %v5357
        %5396 = vmatpush.msra.mxu0 %v5356
        %5397 = vmatpush.msra.mxu0 %v5355
        %5398 = vmatpush.msra.mxu0 %v5354
        %5399 = vmatpush.msra.mxu0 %v5353
        %5400 = vmatpush.msra.mxu0 %v5352
        %5401 = vmatmul.f32.gmra.mxu0 %v5350
        %v5402 = vpop.f32.mrf.mxu0
        %v5403 = vadd.f32 %v5384, %v5402
        %5404 = vdwg.mxu0
        %5405 = vmatpush.msra.mxu0 %v5383
        %5406 = vmatpush.msra.mxu0 %v5382
        %5407 = vmatpush.msra.mxu0 %v5381
        %5408 = vmatpush.msra.mxu0 %v5380
        %5409 = vmatpush.msra.mxu0 %v5379
        %5410 = vmatpush.msra.mxu0 %v5378
        %5411 = vmatpush.msra.mxu0 %v5377
        %5412 = vmatpush.msra.mxu0 %v5376
        %5413 = vmatpush.msra.mxu0 %v5375
        %5414 = vmatpush.msra.mxu0 %v5374
        %5415 = vmatpush.msra.mxu0 %v5373
        %5416 = vmatpush.msra.mxu0 %v5372
        %5417 = vmatpush.msra.mxu0 %v5371
        %5418 = vmatpush.msra.mxu0 %v5370
        %5419 = vmatpush.msra.mxu0 %v5369
        %5420 = vmatpush.msra.mxu0 %v5368
        %5421 = vmatmul.f32.gmra.mxu0 %v5351
        %v5422 = vpop.f32.mrf.mxu0
        %v5423 = vadd.f32 %v5403, %v5422
        %5424 = vdwg.mxu0
        %v5425 = vperm.slane %v5423, 0
        %v5426 = vmul.f32 %v5425, %v5098
        %v5427 = vmul.f32 %v5425, %v5099
        %v5428 = vmul.f32 %v5425, %v5100
        %v5429 = vmul.f32 %v5425, %v5101
        %v5430 = vld [vmem:[%s25] sm:$0xff]
        %v5431 = vld [vmem:[%s25 + $0x8] sm:$0xff]
        %v5432 = vld [vmem:[%s25 + $0x10] sm:$0xff]
        %v5433 = vld [vmem:[%s25 + $0x18] sm:$0xff]
        %v5434 = vld [vmem:[%s25 + $0x20] sm:$0xff]
        %v5435 = vld [vmem:[%s25 + $0x28] sm:$0xff]
        %v5436 = vld [vmem:[%s25 + $0x30] sm:$0xff]
        %v5437 = vld [vmem:[%s25 + $0x38] sm:$0xff]
        %v5438 = vld [vmem:[%s25 + $0x40] sm:$0xff]
        %v5439 = vld [vmem:[%s25 + $0x48] sm:$0xff]
        %v5440 = vld [vmem:[%s25 + $0x50] sm:$0xff]
        %v5441 = vld [vmem:[%s25 + $0x58] sm:$0xff]
        %v5442 = vld [vmem:[%s25 + $0x60] sm:$0xff]
        %v5443 = vld [vmem:[%s25 + $0x68] sm:$0xff]
        %v5444 = vld [vmem:[%s25 + $0x70] sm:$0xff]
        %v5445 = vld [vmem:[%s25 + $0x78] sm:$0xff]
        %5446 = vmatpush.msra.mxu0 %v5445
        %5447 = vmatpush.msra.mxu0 %v5444
        %5448 = vmatpush.msra.mxu0 %v5443
        %5449 = vmatpush.msra.mxu0 %v5442
        %5450 = vmatpush.msra.mxu0 %v5441
        %5451 = vmatpush.msra.mxu0 %v5440
        %5452 = vmatpush.msra.mxu0 %v5439
        %5453 = vmatpush.msra.mxu0 %v5438
        %5454 = vmatpush.msra.mxu0 %v5437
        %5455 = vmatpush.msra.mxu0 %v5436
        %5456 = vmatpush.msra.mxu0 %v5435
        %5457 = vmatpush.msra.mxu0 %v5434
        %5458 = vmatpush.msra.mxu0 %v5433
        %5459 = vmatpush.msra.mxu0 %v5432
        %5460 = vmatpush.msra.mxu0 %v5431
        %5461 = vmatpush.msra.mxu0 %v5430
        %5462 = vmatmul.f32.gmra.mxu0 %v5426
        %v5463 = vpop.f32.mrf.mxu0
        %v5464 = vadd.f32 0.0, %v5463
        %5465 = vmatmul.f32.gmra.mxu0 %v5427
        %v5466 = vpop.f32.mrf.mxu0
        %v5467 = vadd.f32 0.0, %v5466
        %5468 = vmatmul.f32.gmra.mxu0 %v5428
        %v5469 = vpop.f32.mrf.mxu0
        %v5470 = vadd.f32 0.0, %v5469
        %5471 = vmatmul.f32.gmra.mxu0 %v5429
        %v5472 = vpop.f32.mrf.mxu0
        %v5473 = vadd.f32 0.0, %v5472
        %5474 = vdwg.mxu0
        %v5475 = vld [vmem:[%s9] sm:$0xf]
        %v5477 = vsel %vm5052, %v5464, 0
        %v5480 = vsel %vm5052, %v5467, 0
        %v5483 = vsel %vm5052, %v5470, 0
        %v5486 = vsel %vm5052, %v5473, 0
        %v5489 = vsel %vm5065, %v5475, 0
        %5491 = vmatpush.msra.mxu0 0.0
        %5492 = vmatpush.msra.mxu0 0.0
        %5493 = vmatpush.msra.mxu0 0.0
        %5494 = vmatpush.msra.mxu0 0.0
        %5495 = vmatpush.msra.mxu0 0.0
        %5496 = vmatpush.msra.mxu0 0.0
        %5497 = vmatpush.msra.mxu0 0.0
        %5498 = vmatpush.msra.mxu0 0.0
        %5499 = vmatpush.msra.mxu0 0.0
        %5500 = vmatpush.msra.mxu0 0.0
        %5501 = vmatpush.msra.mxu0 0.0
        %5502 = vmatpush.msra.mxu0 0.0
        %5503 = vmatpush.msra.mxu0 0.0
        %5504 = vmatpush.msra.mxu0 0.0
        %5505 = vmatpush.msra.mxu0 0.0
        %5506 = vmatpush.msra.mxu0 %v5489
        %5507 = vmatmul.f32.gmra.mxu0 %v5477
        %v5508 = vpop.f32.mrf.mxu0
        %v5509 = vadd.f32 0.0, %v5508
        %5510 = vmatmul.f32.gmra.mxu0 %v5480
        %v5511 = vpop.f32.mrf.mxu0
        %v5512 = vadd.f32 0.0, %v5511
        %5513 = vmatmul.f32.gmra.mxu0 %v5483
        %v5514 = vpop.f32.mrf.mxu0
        %v5515 = vadd.f32 0.0, %v5514
        %5516 = vmatmul.f32.gmra.mxu0 %v5486
        %v5517 = vpop.f32.mrf.mxu0
        %v5518 = vadd.f32 0.0, %v5517
        %5519 = vdwg.mxu0
        %v5520 = vld [vmem:[#allocation27] sm:$0xff]
        %v5521 = vld [vmem:[#allocation27 + $0x8] sm:$0xff]
        %s5522 = scalar_lea.vmem %s9, 4
        %v5523 = vld [vmem:[%s5522] sm:$0xf]
        %v5525 = vsel %vm5065, %v5523, 0
        %5527 = vmatpush.msra.mxu0 0.0
        %5528 = vmatpush.msra.mxu0 0.0
        %5529 = vmatpush.msra.mxu0 0.0
        %5530 = vmatpush.msra.mxu0 0.0
        %5531 = vmatpush.msra.mxu0 0.0
        %5532 = vmatpush.msra.mxu0 0.0
        %5533 = vmatpush.msra.mxu0 0.0
        %5534 = vmatpush.msra.mxu0 0.0
        %5535 = vmatpush.msra.mxu0 0.0
        %5536 = vmatpush.msra.mxu0 0.0
        %5537 = vmatpush.msra.mxu0 0.0
        %5538 = vmatpush.msra.mxu0 0.0
        %5539 = vmatpush.msra.mxu0 0.0
        %5540 = vmatpush.msra.mxu0 0.0
        %5541 = vmatpush.msra.mxu0 0.0
        %5542 = vmatpush.msra.mxu0 %v5525
        %5543 = vmatmul.f32.gmra.mxu0 %v5477
        %v5544 = vpop.f32.mrf.mxu0
        %v5545 = vadd.f32 0.0, %v5544
        %5546 = vmatmul.f32.gmra.mxu0 %v5480
        %v5547 = vpop.f32.mrf.mxu0
        %v5548 = vadd.f32 0.0, %v5547
        %5549 = vmatmul.f32.gmra.mxu0 %v5483
        %v5550 = vpop.f32.mrf.mxu0
        %v5551 = vadd.f32 0.0, %v5550
        %5552 = vmatmul.f32.gmra.mxu0 %v5486
        %v5553 = vpop.f32.mrf.mxu0
        %v5554 = vadd.f32 0.0, %v5553
        %5555 = vdwg.mxu0
        %s5556 = scalar_lea.vmem [#allocation27], 16
        %v5557 = vld [vmem:[%s5556] sm:$0xff]
        %v5558 = vld [vmem:[%s5556 + $0x8] sm:$0xff]
        %vm5559 = vcmask 261120
        %v5561 = vsel %vm5559, %v5557, 0
        %v5564 = vsel %vm5559, %v5558, 0
        %5566 = vmatpush.msra.mxu0 0.0
        %5567 = vmatpush.msra.mxu0 0.0
        %5568 = vmatpush.msra.mxu0 0.0
        %5569 = vmatpush.msra.mxu0 0.0
        %5570 = vmatpush.msra.mxu0 0.0
        %5571 = vmatpush.msra.mxu0 0.0
        %5572 = vmatpush.msra.mxu0 0.0
        %5573 = vmatpush.msra.mxu0 0.0
        %5574 = vmatpush.msra.mxu0 0.0
        %5575 = vmatpush.msra.mxu0 0.0
        %5576 = vmatpush.msra.mxu0 0.0
        %5577 = vmatpush.msra.mxu0 0.0
        %5578 = vmatpush.msra.mxu0 %v5554
        %5579 = vmatpush.msra.mxu0 %v5551
        %5580 = vmatpush.msra.mxu0 %v5548
        %5581 = vmatpush.msra.mxu0 %v5545
        %5582 = vmatmul.f32.gmra.mxu0 %v5561
        %v5583 = vpop.f32.mrf.mxu0
        %v5584 = vadd.f32 0.0, %v5583
        %5585 = vmatmul.f32.gmra.mxu0 %v5564
        %v5586 = vpop.f32.mrf.mxu0
        %v5587 = vadd.f32 0.0, %v5586
        %5588 = vdwg.mxu0
        %v5590 = vsel %vm5559, %v5520, 0
        %v5593 = vsel %vm5559, %v5521, 0
        %5595 = vmatpush.msra.mxu0 0.0
        %5596 = vmatpush.msra.mxu0 0.0
        %5597 = vmatpush.msra.mxu0 0.0
        %5598 = vmatpush.msra.mxu0 0.0
        %5599 = vmatpush.msra.mxu0 0.0
        %5600 = vmatpush.msra.mxu0 0.0
        %5601 = vmatpush.msra.mxu0 0.0
        %5602 = vmatpush.msra.mxu0 0.0
        %5603 = vmatpush.msra.mxu0 0.0
        %5604 = vmatpush.msra.mxu0 0.0
        %5605 = vmatpush.msra.mxu0 0.0
        %5606 = vmatpush.msra.mxu0 0.0
        %5607 = vmatpush.msra.mxu0 %v5518
        %5608 = vmatpush.msra.mxu0 %v5515
        %5609 = vmatpush.msra.mxu0 %v5512
        %5610 = vmatpush.msra.mxu0 %v5509
        %5611 = vmatmul.f32.gmra.mxu0 %v5590
        %v5612 = vpop.f32.mrf.mxu0
        %v5613 = vadd.f32 %v5584, %v5612
        %5614 = vmatmul.f32.gmra.mxu0 %v5593
        %v5615 = vpop.f32.mrf.mxu0
        %v5616 = vadd.f32 %v5587, %v5615
        %5617 = vdwg.mxu0
        %s5618 = scalar_lea.vmem %s9, 8
        %v5619 = vld [vmem:[%s5618] sm:$0xf]
        %v5621 = vsel %vm5065, %v5619, 0
        %5623 = vmatpush.msra.mxu0 0.0
        %5624 = vmatpush.msra.mxu0 0.0
        %5625 = vmatpush.msra.mxu0 0.0
        %5626 = vmatpush.msra.mxu0 0.0
        %5627 = vmatpush.msra.mxu0 0.0
        %5628 = vmatpush.msra.mxu0 0.0
        %5629 = vmatpush.msra.mxu0 0.0
        %5630 = vmatpush.msra.mxu0 0.0
        %5631 = vmatpush.msra.mxu0 0.0
        %5632 = vmatpush.msra.mxu0 0.0
        %5633 = vmatpush.msra.mxu0 0.0
        %5634 = vmatpush.msra.mxu0 0.0
        %5635 = vmatpush.msra.mxu0 0.0
        %5636 = vmatpush.msra.mxu0 0.0
        %5637 = vmatpush.msra.mxu0 0.0
        %5638 = vmatpush.msra.mxu0 %v5621
        %5639 = vmatmul.f32.gmra.mxu0 %v5477
        %v5640 = vpop.f32.mrf.mxu0
        %v5641 = vadd.f32 0.0, %v5640
        %5642 = vmatmul.f32.gmra.mxu0 %v5480
        %v5643 = vpop.f32.mrf.mxu0
        %v5644 = vadd.f32 0.0, %v5643
        %5645 = vmatmul.f32.gmra.mxu0 %v5483
        %v5646 = vpop.f32.mrf.mxu0
        %v5647 = vadd.f32 0.0, %v5646
        %5648 = vmatmul.f32.gmra.mxu0 %v5486
        %v5649 = vpop.f32.mrf.mxu0
        %v5650 = vadd.f32 0.0, %v5649
        %5651 = vdwg.mxu0
        %s5652 = scalar_lea.vmem [#allocation27], 32
        %v5653 = vld [vmem:[%s5652] sm:$0xff]
        %v5654 = vld [vmem:[%s5652 + $0x8] sm:$0xff]
        %v5656 = vsel %vm5559, %v5653, 0
        %v5659 = vsel %vm5559, %v5654, 0
        %5661 = vmatpush.msra.mxu0 0.0
        %5662 = vmatpush.msra.mxu0 0.0
        %5663 = vmatpush.msra.mxu0 0.0
        %5664 = vmatpush.msra.mxu0 0.0
        %5665 = vmatpush.msra.mxu0 0.0
        %5666 = vmatpush.msra.mxu0 0.0
        %5667 = vmatpush.msra.mxu0 0.0
        %5668 = vmatpush.msra.mxu0 0.0
        %5669 = vmatpush.msra.mxu0 0.0
        %5670 = vmatpush.msra.mxu0 0.0
        %5671 = vmatpush.msra.mxu0 0.0
        %5672 = vmatpush.msra.mxu0 0.0
        %5673 = vmatpush.msra.mxu0 %v5650
        %5674 = vmatpush.msra.mxu0 %v5647
        %5675 = vmatpush.msra.mxu0 %v5644
        %5676 = vmatpush.msra.mxu0 %v5641
        %5677 = vmatmul.f32.gmra.mxu0 %v5656
        %v5678 = vpop.f32.mrf.mxu0
        %v5679 = vadd.f32 0.0, %v5678
        %5680 = vmatmul.f32.gmra.mxu0 %v5659
        %v5681 = vpop.f32.mrf.mxu0
        %v5682 = vadd.f32 0.0, %v5681
        %5683 = vdwg.mxu0
        %v5684 = vadd.f32 %v5613, %v5679
        %v5685 = vadd.f32 %v5616, %v5682
        %s5686 = scalar_lea.vmem %s9, 12
        %v5687 = vld [vmem:[%s5686] sm:$0xf]
        %v5689 = vsel %vm5065, %v5687, 0
        %5691 = vmatpush.msra.mxu0 0.0
        %5692 = vmatpush.msra.mxu0 0.0
        %5693 = vmatpush.msra.mxu0 0.0
        %5694 = vmatpush.msra.mxu0 0.0
        %5695 = vmatpush.msra.mxu0 0.0
        %5696 = vmatpush.msra.mxu0 0.0
        %5697 = vmatpush.msra.mxu0 0.0
        %5698 = vmatpush.msra.mxu0 0.0
        %5699 = vmatpush.msra.mxu0 0.0
        %5700 = vmatpush.msra.mxu0 0.0
        %5701 = vmatpush.msra.mxu0 0.0
        %5702 = vmatpush.msra.mxu0 0.0
        %5703 = vmatpush.msra.mxu0 0.0
        %5704 = vmatpush.msra.mxu0 0.0
        %5705 = vmatpush.msra.mxu0 0.0
        %5706 = vmatpush.msra.mxu0 %v5689
        %5707 = vmatmul.f32.gmra.mxu0 %v5477
        %v5708 = vpop.f32.mrf.mxu0
        %v5709 = vadd.f32 0.0, %v5708
        %5710 = vmatmul.f32.gmra.mxu0 %v5480
        %v5711 = vpop.f32.mrf.mxu0
        %v5712 = vadd.f32 0.0, %v5711
        %5713 = vmatmul.f32.gmra.mxu0 %v5483
        %v5714 = vpop.f32.mrf.mxu0
        %v5715 = vadd.f32 0.0, %v5714
        %5716 = vmatmul.f32.gmra.mxu0 %v5486
        %v5717 = vpop.f32.mrf.mxu0
        %v5718 = vadd.f32 0.0, %v5717
        %5719 = vdwg.mxu0
        %s5720 = scalar_lea.vmem [#allocation27], 48
        %v5721 = vld [vmem:[%s5720] sm:$0xff]
        %v5722 = vld [vmem:[%s5720 + $0x8] sm:$0xff]
        %v5724 = vsel %vm5559, %v5721, 0
        %v5727 = vsel %vm5559, %v5722, 0
        %5729 = vmatpush.msra.mxu0 0.0
        %5730 = vmatpush.msra.mxu0 0.0
        %5731 = vmatpush.msra.mxu0 0.0
        %5732 = vmatpush.msra.mxu0 0.0
        %5733 = vmatpush.msra.mxu0 0.0
        %5734 = vmatpush.msra.mxu0 0.0
        %5735 = vmatpush.msra.mxu0 0.0
        %5736 = vmatpush.msra.mxu0 0.0
        %5737 = vmatpush.msra.mxu0 0.0
        %5738 = vmatpush.msra.mxu0 0.0
        %5739 = vmatpush.msra.mxu0 0.0
        %5740 = vmatpush.msra.mxu0 0.0
        %5741 = vmatpush.msra.mxu0 %v5718
        %5742 = vmatpush.msra.mxu0 %v5715
        %5743 = vmatpush.msra.mxu0 %v5712
        %5744 = vmatpush.msra.mxu0 %v5709
        %5745 = vmatmul.f32.gmra.mxu0 %v5724
        %v5746 = vpop.f32.mrf.mxu0
        %v5747 = vadd.f32 0.0, %v5746
        %5748 = vmatmul.f32.gmra.mxu0 %v5727
        %v5749 = vpop.f32.mrf.mxu0
        %v5750 = vadd.f32 0.0, %v5749
        %5751 = vdwg.mxu0
        %v5752 = vadd.f32 %v5684, %v5747
        %v5753 = vadd.f32 %v5685, %v5750
        %s5754 = scalar_lea.vmem %s9, 16
        %v5755 = vld [vmem:[%s5754] sm:$0xf]
        %v5757 = vsel %vm5065, %v5755, 0
        %5759 = vmatpush.msra.mxu0 0.0
        %5760 = vmatpush.msra.mxu0 0.0
        %5761 = vmatpush.msra.mxu0 0.0
        %5762 = vmatpush.msra.mxu0 0.0
        %5763 = vmatpush.msra.mxu0 0.0
        %5764 = vmatpush.msra.mxu0 0.0
        %5765 = vmatpush.msra.mxu0 0.0
        %5766 = vmatpush.msra.mxu0 0.0
        %5767 = vmatpush.msra.mxu0 0.0
        %5768 = vmatpush.msra.mxu0 0.0
        %5769 = vmatpush.msra.mxu0 0.0
        %5770 = vmatpush.msra.mxu0 0.0
        %5771 = vmatpush.msra.mxu0 0.0
        %5772 = vmatpush.msra.mxu0 0.0
        %5773 = vmatpush.msra.mxu0 0.0
        %5774 = vmatpush.msra.mxu0 %v5757
        %5775 = vmatmul.f32.gmra.mxu0 %v5477
        %v5776 = vpop.f32.mrf.mxu0
        %v5777 = vadd.f32 0.0, %v5776
        %5778 = vmatmul.f32.gmra.mxu0 %v5480
        %v5779 = vpop.f32.mrf.mxu0
        %v5780 = vadd.f32 0.0, %v5779
        %5781 = vmatmul.f32.gmra.mxu0 %v5483
        %v5782 = vpop.f32.mrf.mxu0
        %v5783 = vadd.f32 0.0, %v5782
        %5784 = vmatmul.f32.gmra.mxu0 %v5486
        %v5785 = vpop.f32.mrf.mxu0
        %v5786 = vadd.f32 0.0, %v5785
        %5787 = vdwg.mxu0
        %s5788 = scalar_lea.vmem [#allocation27], 64
        %v5789 = vld [vmem:[%s5788] sm:$0xff]
        %v5790 = vld [vmem:[%s5788 + $0x8] sm:$0xff]
        %v5792 = vsel %vm5559, %v5789, 0
        %v5795 = vsel %vm5559, %v5790, 0
        %5797 = vmatpush.msra.mxu0 0.0
        %5798 = vmatpush.msra.mxu0 0.0
        %5799 = vmatpush.msra.mxu0 0.0
        %5800 = vmatpush.msra.mxu0 0.0
        %5801 = vmatpush.msra.mxu0 0.0
        %5802 = vmatpush.msra.mxu0 0.0
        %5803 = vmatpush.msra.mxu0 0.0
        %5804 = vmatpush.msra.mxu0 0.0
        %5805 = vmatpush.msra.mxu0 0.0
        %5806 = vmatpush.msra.mxu0 0.0
        %5807 = vmatpush.msra.mxu0 0.0
        %5808 = vmatpush.msra.mxu0 0.0
        %5809 = vmatpush.msra.mxu0 %v5786
        %5810 = vmatpush.msra.mxu0 %v5783
        %5811 = vmatpush.msra.mxu0 %v5780
        %5812 = vmatpush.msra.mxu0 %v5777
        %5813 = vmatmul.f32.gmra.mxu0 %v5792
        %v5814 = vpop.f32.mrf.mxu0
        %v5815 = vadd.f32 0.0, %v5814
        %5816 = vmatmul.f32.gmra.mxu0 %v5795
        %v5817 = vpop.f32.mrf.mxu0
        %v5818 = vadd.f32 0.0, %v5817
        %5819 = vdwg.mxu0
        %v5820 = vadd.f32 %v5752, %v5815
        %v5821 = vadd.f32 %v5753, %v5818
        %s5822 = scalar_lea.vmem %s9, 20
        %v5823 = vld [vmem:[%s5822] sm:$0xf]
        %v5825 = vsel %vm5065, %v5823, 0
        %5827 = vmatpush.msra.mxu0 0.0
        %5828 = vmatpush.msra.mxu0 0.0
        %5829 = vmatpush.msra.mxu0 0.0
        %5830 = vmatpush.msra.mxu0 0.0
        %5831 = vmatpush.msra.mxu0 0.0
        %5832 = vmatpush.msra.mxu0 0.0
        %5833 = vmatpush.msra.mxu0 0.0
        %5834 = vmatpush.msra.mxu0 0.0
        %5835 = vmatpush.msra.mxu0 0.0
        %5836 = vmatpush.msra.mxu0 0.0
        %5837 = vmatpush.msra.mxu0 0.0
        %5838 = vmatpush.msra.mxu0 0.0
        %5839 = vmatpush.msra.mxu0 0.0
        %5840 = vmatpush.msra.mxu0 0.0
        %5841 = vmatpush.msra.mxu0 0.0
        %5842 = vmatpush.msra.mxu0 %v5825
        %5843 = vmatmul.f32.gmra.mxu0 %v5477
        %v5844 = vpop.f32.mrf.mxu0
        %v5845 = vadd.f32 0.0, %v5844
        %5846 = vmatmul.f32.gmra.mxu0 %v5480
        %v5847 = vpop.f32.mrf.mxu0
        %v5848 = vadd.f32 0.0, %v5847
        %5849 = vmatmul.f32.gmra.mxu0 %v5483
        %v5850 = vpop.f32.mrf.mxu0
        %v5851 = vadd.f32 0.0, %v5850
        %5852 = vmatmul.f32.gmra.mxu0 %v5486
        %v5853 = vpop.f32.mrf.mxu0
        %v5854 = vadd.f32 0.0, %v5853
        %5855 = vdwg.mxu0
        %s5856 = scalar_lea.vmem [#allocation27], 80
        %v5857 = vld [vmem:[%s5856] sm:$0xff]
        %v5858 = vld [vmem:[%s5856 + $0x8] sm:$0xff]
        %v5860 = vsel %vm5559, %v5857, 0
        %v5863 = vsel %vm5559, %v5858, 0
        %5865 = vmatpush.msra.mxu0 0.0
        %5866 = vmatpush.msra.mxu0 0.0
        %5867 = vmatpush.msra.mxu0 0.0
        %5868 = vmatpush.msra.mxu0 0.0
        %5869 = vmatpush.msra.mxu0 0.0
        %5870 = vmatpush.msra.mxu0 0.0
        %5871 = vmatpush.msra.mxu0 0.0
        %5872 = vmatpush.msra.mxu0 0.0
        %5873 = vmatpush.msra.mxu0 0.0
        %5874 = vmatpush.msra.mxu0 0.0
        %5875 = vmatpush.msra.mxu0 0.0
        %5876 = vmatpush.msra.mxu0 0.0
        %5877 = vmatpush.msra.mxu0 %v5854
        %5878 = vmatpush.msra.mxu0 %v5851
        %5879 = vmatpush.msra.mxu0 %v5848
        %5880 = vmatpush.msra.mxu0 %v5845
        %5881 = vmatmul.f32.gmra.mxu0 %v5860
        %v5882 = vpop.f32.mrf.mxu0
        %v5883 = vadd.f32 0.0, %v5882
        %5884 = vmatmul.f32.gmra.mxu0 %v5863
        %v5885 = vpop.f32.mrf.mxu0
        %v5886 = vadd.f32 0.0, %v5885
        %5887 = vdwg.mxu0
        %v5888 = vadd.f32 %v5820, %v5883
        %v5889 = vadd.f32 %v5821, %v5886
        %s5890 = scalar_lea.vmem %s9, 24
        %v5891 = vld [vmem:[%s5890] sm:$0xf]
        %v5893 = vsel %vm5065, %v5891, 0
        %5895 = vmatpush.msra.mxu0 0.0
        %5896 = vmatpush.msra.mxu0 0.0
        %5897 = vmatpush.msra.mxu0 0.0
        %5898 = vmatpush.msra.mxu0 0.0
        %5899 = vmatpush.msra.mxu0 0.0
        %5900 = vmatpush.msra.mxu0 0.0
        %5901 = vmatpush.msra.mxu0 0.0
        %5902 = vmatpush.msra.mxu0 0.0
        %5903 = vmatpush.msra.mxu0 0.0
        %5904 = vmatpush.msra.mxu0 0.0
        %5905 = vmatpush.msra.mxu0 0.0
        %5906 = vmatpush.msra.mxu0 0.0
        %5907 = vmatpush.msra.mxu0 0.0
        %5908 = vmatpush.msra.mxu0 0.0
        %5909 = vmatpush.msra.mxu0 0.0
        %5910 = vmatpush.msra.mxu0 %v5893
        %5911 = vmatmul.f32.gmra.mxu0 %v5477
        %v5912 = vpop.f32.mrf.mxu0
        %v5913 = vadd.f32 0.0, %v5912
        %5914 = vmatmul.f32.gmra.mxu0 %v5480
        %v5915 = vpop.f32.mrf.mxu0
        %v5916 = vadd.f32 0.0, %v5915
        %5917 = vmatmul.f32.gmra.mxu0 %v5483
        %v5918 = vpop.f32.mrf.mxu0
        %v5919 = vadd.f32 0.0, %v5918
        %5920 = vmatmul.f32.gmra.mxu0 %v5486
        %v5921 = vpop.f32.mrf.mxu0
        %v5922 = vadd.f32 0.0, %v5921
        %5923 = vdwg.mxu0
        %s5924 = scalar_lea.vmem [#allocation27], 96
        %v5925 = vld [vmem:[%s5924] sm:$0xff]
        %v5926 = vld [vmem:[%s5924 + $0x8] sm:$0xff]
        %v5928 = vsel %vm5559, %v5925, 0
        %v5931 = vsel %vm5559, %v5926, 0
        %5933 = vmatpush.msra.mxu0 0.0
        %5934 = vmatpush.msra.mxu0 0.0
        %5935 = vmatpush.msra.mxu0 0.0
        %5936 = vmatpush.msra.mxu0 0.0
        %5937 = vmatpush.msra.mxu0 0.0
        %5938 = vmatpush.msra.mxu0 0.0
        %5939 = vmatpush.msra.mxu0 0.0
        %5940 = vmatpush.msra.mxu0 0.0
        %5941 = vmatpush.msra.mxu0 0.0
        %5942 = vmatpush.msra.mxu0 0.0
        %5943 = vmatpush.msra.mxu0 0.0
        %5944 = vmatpush.msra.mxu0 0.0
        %5945 = vmatpush.msra.mxu0 %v5922
        %5946 = vmatpush.msra.mxu0 %v5919
        %5947 = vmatpush.msra.mxu0 %v5916
        %5948 = vmatpush.msra.mxu0 %v5913
        %5949 = vmatmul.f32.gmra.mxu0 %v5928
        %v5950 = vpop.f32.mrf.mxu0
        %v5951 = vadd.f32 0.0, %v5950
        %5952 = vmatmul.f32.gmra.mxu0 %v5931
        %v5953 = vpop.f32.mrf.mxu0
        %v5954 = vadd.f32 0.0, %v5953
        %5955 = vdwg.mxu0
        %v5956 = vadd.f32 %v5888, %v5951
        %v5957 = vadd.f32 %v5889, %v5954
        %s5958 = scalar_lea.vmem %s9, 28
        %v5959 = vld [vmem:[%s5958] sm:$0xf]
        %v5961 = vsel %vm5065, %v5959, 0
        %5963 = vmatpush.msra.mxu0 0.0
        %5964 = vmatpush.msra.mxu0 0.0
        %5965 = vmatpush.msra.mxu0 0.0
        %5966 = vmatpush.msra.mxu0 0.0
        %5967 = vmatpush.msra.mxu0 0.0
        %5968 = vmatpush.msra.mxu0 0.0
        %5969 = vmatpush.msra.mxu0 0.0
        %5970 = vmatpush.msra.mxu0 0.0
        %5971 = vmatpush.msra.mxu0 0.0
        %5972 = vmatpush.msra.mxu0 0.0
        %5973 = vmatpush.msra.mxu0 0.0
        %5974 = vmatpush.msra.mxu0 0.0
        %5975 = vmatpush.msra.mxu0 0.0
        %5976 = vmatpush.msra.mxu0 0.0
        %5977 = vmatpush.msra.mxu0 0.0
        %5978 = vmatpush.msra.mxu0 %v5961
        %5979 = vmatmul.f32.gmra.mxu0 %v5477
        %v5980 = vpop.f32.mrf.mxu0
        %v5981 = vadd.f32 0.0, %v5980
        %5982 = vmatmul.f32.gmra.mxu0 %v5480
        %v5983 = vpop.f32.mrf.mxu0
        %v5984 = vadd.f32 0.0, %v5983
        %5985 = vmatmul.f32.gmra.mxu0 %v5483
        %v5986 = vpop.f32.mrf.mxu0
        %v5987 = vadd.f32 0.0, %v5986
        %5988 = vmatmul.f32.gmra.mxu0 %v5486
        %v5989 = vpop.f32.mrf.mxu0
        %v5990 = vadd.f32 0.0, %v5989
        %5991 = vdwg.mxu0
        %s5992 = scalar_lea.vmem [#allocation27], 112
        %v5993 = vld [vmem:[%s5992] sm:$0xff]
        %v5994 = vld [vmem:[%s5992 + $0x8] sm:$0xff]
        %v5996 = vsel %vm5559, %v5993, 0
        %v5999 = vsel %vm5559, %v5994, 0
        %6001 = vmatpush.msra.mxu0 0.0
        %6002 = vmatpush.msra.mxu0 0.0
        %6003 = vmatpush.msra.mxu0 0.0
        %6004 = vmatpush.msra.mxu0 0.0
        %6005 = vmatpush.msra.mxu0 0.0
        %6006 = vmatpush.msra.mxu0 0.0
        %6007 = vmatpush.msra.mxu0 0.0
        %6008 = vmatpush.msra.mxu0 0.0
        %6009 = vmatpush.msra.mxu0 0.0
        %6010 = vmatpush.msra.mxu0 0.0
        %6011 = vmatpush.msra.mxu0 0.0
        %6012 = vmatpush.msra.mxu0 0.0
        %6013 = vmatpush.msra.mxu0 %v5990
        %6014 = vmatpush.msra.mxu0 %v5987
        %6015 = vmatpush.msra.mxu0 %v5984
        %6016 = vmatpush.msra.mxu0 %v5981
        %6017 = vmatmul.f32.gmra.mxu0 %v5996
        %v6018 = vpop.f32.mrf.mxu0
        %v6019 = vadd.f32 0.0, %v6018
        %6020 = vmatmul.f32.gmra.mxu0 %v5999
        %v6021 = vpop.f32.mrf.mxu0
        %v6022 = vadd.f32 0.0, %v6021
        %6023 = vdwg.mxu0
        %v6024 = vadd.f32 %v5956, %v6019
        %v6025 = vadd.f32 %v5957, %v6022
        %s6026 = scalar_lea.vmem %s9, 32
        %v6027 = vld [vmem:[%s6026] sm:$0xf]
        %v6029 = vsel %vm5065, %v6027, 0
        %6031 = vmatpush.msra.mxu0 0.0
        %6032 = vmatpush.msra.mxu0 0.0
        %6033 = vmatpush.msra.mxu0 0.0
        %6034 = vmatpush.msra.mxu0 0.0
        %6035 = vmatpush.msra.mxu0 0.0
        %6036 = vmatpush.msra.mxu0 0.0
        %6037 = vmatpush.msra.mxu0 0.0
        %6038 = vmatpush.msra.mxu0 0.0
        %6039 = vmatpush.msra.mxu0 0.0
        %6040 = vmatpush.msra.mxu0 0.0
        %6041 = vmatpush.msra.mxu0 0.0
        %6042 = vmatpush.msra.mxu0 0.0
        %6043 = vmatpush.msra.mxu0 0.0
        %6044 = vmatpush.msra.mxu0 0.0
        %6045 = vmatpush.msra.mxu0 0.0
        %6046 = vmatpush.msra.mxu0 %v6029
        %6047 = vmatmul.f32.gmra.mxu0 %v5477
        %v6048 = vpop.f32.mrf.mxu0
        %v6049 = vadd.f32 0.0, %v6048
        %6050 = vmatmul.f32.gmra.mxu0 %v5480
        %v6051 = vpop.f32.mrf.mxu0
        %v6052 = vadd.f32 0.0, %v6051
        %6053 = vmatmul.f32.gmra.mxu0 %v5483
        %v6054 = vpop.f32.mrf.mxu0
        %v6055 = vadd.f32 0.0, %v6054
        %6056 = vmatmul.f32.gmra.mxu0 %v5486
        %v6057 = vpop.f32.mrf.mxu0
        %v6058 = vadd.f32 0.0, %v6057
        %6059 = vdwg.mxu0
        %s6060 = scalar_lea.vmem [#allocation27], 128
        %v6061 = vld [vmem:[%s6060] sm:$0xff]
        %v6062 = vld [vmem:[%s6060 + $0x8] sm:$0xff]
        %v6064 = vsel %vm5559, %v6061, 0
        %v6067 = vsel %vm5559, %v6062, 0
        %6069 = vmatpush.msra.mxu0 0.0
        %6070 = vmatpush.msra.mxu0 0.0
        %6071 = vmatpush.msra.mxu0 0.0
        %6072 = vmatpush.msra.mxu0 0.0
        %6073 = vmatpush.msra.mxu0 0.0
        %6074 = vmatpush.msra.mxu0 0.0
        %6075 = vmatpush.msra.mxu0 0.0
        %6076 = vmatpush.msra.mxu0 0.0
        %6077 = vmatpush.msra.mxu0 0.0
        %6078 = vmatpush.msra.mxu0 0.0
        %6079 = vmatpush.msra.mxu0 0.0
        %6080 = vmatpush.msra.mxu0 0.0
        %6081 = vmatpush.msra.mxu0 %v6058
        %6082 = vmatpush.msra.mxu0 %v6055
        %6083 = vmatpush.msra.mxu0 %v6052
        %6084 = vmatpush.msra.mxu0 %v6049
        %6085 = vmatmul.f32.gmra.mxu0 %v6064
        %v6086 = vpop.f32.mrf.mxu0
        %v6087 = vadd.f32 0.0, %v6086
        %6088 = vmatmul.f32.gmra.mxu0 %v6067
        %v6089 = vpop.f32.mrf.mxu0
        %v6090 = vadd.f32 0.0, %v6089
        %6091 = vdwg.mxu0
        %v6092 = vadd.f32 %v6024, %v6087
        %v6093 = vadd.f32 %v6025, %v6090
        %v6094 = vld [vmem:[%s59] sm:$0xff]
        %v6095 = vld [vmem:[%s59 + $0x8] sm:$0xff]
        %6097 = vset.pattern.permute.xlu0 0
        %6098 = vperm.xlu0 %6097, %v6094
        %v6099 = vpop.permute.xlu0 %6098
        %6102 = vset.pattern.permute.xlu0 0
        %6103 = vperm.xlu0 %6102, %v6095
        %v6104 = vpop.permute.xlu0 %6103
        %v6106 = vadd.f32 %v6092, %v6099
        %v6107 = vadd.f32 %v6093, %v6104
        %v6108 = vmul.f32 %v6106, 0.2
        %v6109 = vmul.f32 %v6107, 0.2
        %v6110 = vmax.f32 %v6106, %v6108
        %v6111 = vmax.f32 %v6107, %v6109
        %v6112 = vld [vmem:[#allocation7] sm:$0xf]
        %v6114 = vsel %vm5052, %v6110, 0
        %v6117 = vsel %vm5052, %v6111, 0
        %v6120 = vsel %vm5065, %v6112, 0
        %6122 = vmatpush.msra.mxu0 0.0
        %6123 = vmatpush.msra.mxu0 0.0
        %6124 = vmatpush.msra.mxu0 0.0
        %6125 = vmatpush.msra.mxu0 0.0
        %6126 = vmatpush.msra.mxu0 0.0
        %6127 = vmatpush.msra.mxu0 0.0
        %6128 = vmatpush.msra.mxu0 0.0
        %6129 = vmatpush.msra.mxu0 0.0
        %6130 = vmatpush.msra.mxu0 0.0
        %6131 = vmatpush.msra.mxu0 0.0
        %6132 = vmatpush.msra.mxu0 0.0
        %6133 = vmatpush.msra.mxu0 0.0
        %6134 = vmatpush.msra.mxu0 0.0
        %6135 = vmatpush.msra.mxu0 0.0
        %6136 = vmatpush.msra.mxu0 0.0
        %6137 = vmatpush.msra.mxu0 %v6120
        %6138 = vmatmul.f32.gmra.mxu0 %v6114
        %v6139 = vpop.f32.mrf.mxu0
        %v6140 = vadd.f32 0.0, %v6139
        %6141 = vmatmul.f32.gmra.mxu0 %v6117
        %v6142 = vpop.f32.mrf.mxu0
        %v6143 = vadd.f32 0.0, %v6142
        %6144 = vdwg.mxu0
        %v6146 = vsel %vm4185, %v6140, 0
        %v6149 = vsel %vm4185, %v6143, 0
        %6151 = vmatpush.msra.mxu0 0.0
        %6152 = vmatpush.msra.mxu0 0.0
        %6153 = vmatpush.msra.mxu0 0.0
        %6154 = vmatpush.msra.mxu0 0.0
        %6155 = vmatpush.msra.mxu0 0.0
        %6156 = vmatpush.msra.mxu0 0.0
        %6157 = vmatpush.msra.mxu0 0.0
        %6158 = vmatpush.msra.mxu0 0.0
        %6159 = vmatpush.msra.mxu0 0.0
        %6160 = vmatpush.msra.mxu0 0.0
        %6161 = vmatpush.msra.mxu0 0.0
        %6162 = vmatpush.msra.mxu0 0.0
        %6163 = vmatpush.msra.mxu0 0.0
        %6164 = vmatpush.msra.mxu0 0.0
        %6165 = vmatpush.msra.mxu0 %v4184
        %6166 = vmatpush.msra.mxu0 %v4183
        %6167 = vmatmul.f32.gmra.mxu0 %v6146
        %v6168 = vpop.f32.mrf.mxu0
        %v6169 = vadd.f32 0.0, %v6168
        %6170 = vmatmul.f32.gmra.mxu0 %v6149
        %v6171 = vpop.f32.mrf.mxu0
        %v6172 = vadd.f32 0.0, %v6171
        %6173 = vdwg.mxu0
        %v6174 = vld [vmem:[#allocation28] sm:$0xff]
        %6175 = vmatpush.msra.mxu0 0.0
        %6176 = vmatpush.msra.mxu0 0.0
        %6177 = vmatpush.msra.mxu0 0.0
        %6178 = vmatpush.msra.mxu0 0.0
        %6179 = vmatpush.msra.mxu0 0.0
        %6180 = vmatpush.msra.mxu0 0.0
        %6181 = vmatpush.msra.mxu0 0.0
        %6182 = vmatpush.msra.mxu0 0.0
        %6183 = vmatpush.msra.mxu0 0.0
        %6184 = vmatpush.msra.mxu0 0.0
        %6185 = vmatpush.msra.mxu0 0.0
        %6186 = vmatpush.msra.mxu0 0.0
        %6187 = vmatpush.msra.mxu0 0.0
        %6188 = vmatpush.msra.mxu0 0.0
        %6189 = vmatpush.msra.mxu0 %v4221
        %6190 = vmatpush.msra.mxu0 %v4220
        %6191 = vmatmul.f32.gmra.mxu0 %v6146
        %v6192 = vpop.f32.mrf.mxu0
        %v6193 = vadd.f32 0.0, %v6192
        %6194 = vmatmul.f32.gmra.mxu0 %v6149
        %v6195 = vpop.f32.mrf.mxu0
        %v6196 = vadd.f32 0.0, %v6195
        %6197 = vdwg.mxu0
        %s6198 = scalar_lea.vmem [#allocation28], 8
        %v6199 = vld [vmem:[%s6198] sm:$0xff]
        %v6201 = vsel %vm4185, %v6199, 0
        %6203 = vmatpush.msra.mxu0 0.0
        %6204 = vmatpush.msra.mxu0 0.0
        %6205 = vmatpush.msra.mxu0 0.0
        %6206 = vmatpush.msra.mxu0 0.0
        %6207 = vmatpush.msra.mxu0 0.0
        %6208 = vmatpush.msra.mxu0 0.0
        %6209 = vmatpush.msra.mxu0 0.0
        %6210 = vmatpush.msra.mxu0 0.0
        %6211 = vmatpush.msra.mxu0 0.0
        %6212 = vmatpush.msra.mxu0 0.0
        %6213 = vmatpush.msra.mxu0 0.0
        %6214 = vmatpush.msra.mxu0 0.0
        %6215 = vmatpush.msra.mxu0 0.0
        %6216 = vmatpush.msra.mxu0 0.0
        %6217 = vmatpush.msra.mxu0 %v6196
        %6218 = vmatpush.msra.mxu0 %v6193
        %6219 = vmatmul.f32.gmra.mxu0 %v6201
        %v6220 = vpop.f32.mrf.mxu0
        %v6221 = vadd.f32 0.0, %v6220
        %6222 = vdwg.mxu0
        %v6224 = vsel %vm4185, %v6174, 0
        %6226 = vmatpush.msra.mxu0 0.0
        %6227 = vmatpush.msra.mxu0 0.0
        %6228 = vmatpush.msra.mxu0 0.0
        %6229 = vmatpush.msra.mxu0 0.0
        %6230 = vmatpush.msra.mxu0 0.0
        %6231 = vmatpush.msra.mxu0 0.0
        %6232 = vmatpush.msra.mxu0 0.0
        %6233 = vmatpush.msra.mxu0 0.0
        %6234 = vmatpush.msra.mxu0 0.0
        %6235 = vmatpush.msra.mxu0 0.0
        %6236 = vmatpush.msra.mxu0 0.0
        %6237 = vmatpush.msra.mxu0 0.0
        %6238 = vmatpush.msra.mxu0 0.0
        %6239 = vmatpush.msra.mxu0 0.0
        %6240 = vmatpush.msra.mxu0 %v6172
        %6241 = vmatpush.msra.mxu0 %v6169
        %6242 = vmatmul.f32.gmra.mxu0 %v6224
        %v6243 = vpop.f32.mrf.mxu0
        %v6244 = vadd.f32 %v6221, %v6243
        %6245 = vdwg.mxu0
        %6246 = vmatpush.msra.mxu0 0.0
        %6247 = vmatpush.msra.mxu0 0.0
        %6248 = vmatpush.msra.mxu0 0.0
        %6249 = vmatpush.msra.mxu0 0.0
        %6250 = vmatpush.msra.mxu0 0.0
        %6251 = vmatpush.msra.mxu0 0.0
        %6252 = vmatpush.msra.mxu0 0.0
        %6253 = vmatpush.msra.mxu0 0.0
        %6254 = vmatpush.msra.mxu0 0.0
        %6255 = vmatpush.msra.mxu0 0.0
        %6256 = vmatpush.msra.mxu0 0.0
        %6257 = vmatpush.msra.mxu0 0.0
        %6258 = vmatpush.msra.mxu0 0.0
        %6259 = vmatpush.msra.mxu0 0.0
        %6260 = vmatpush.msra.mxu0 %v4334
        %6261 = vmatpush.msra.mxu0 %v4333
        %6262 = vmatmul.f32.gmra.mxu0 %v6146
        %v6263 = vpop.f32.mrf.mxu0
        %v6264 = vadd.f32 0.0, %v6263
        %6265 = vmatmul.f32.gmra.mxu0 %v6149
        %v6266 = vpop.f32.mrf.mxu0
        %v6267 = vadd.f32 0.0, %v6266
        %6268 = vdwg.mxu0
        %s6269 = scalar_lea.vmem [#allocation28], 16
        %v6270 = vld [vmem:[%s6269] sm:$0xff]
        %v6272 = vsel %vm4185, %v6270, 0
        %6274 = vmatpush.msra.mxu0 0.0
        %6275 = vmatpush.msra.mxu0 0.0
        %6276 = vmatpush.msra.mxu0 0.0
        %6277 = vmatpush.msra.mxu0 0.0
        %6278 = vmatpush.msra.mxu0 0.0
        %6279 = vmatpush.msra.mxu0 0.0
        %6280 = vmatpush.msra.mxu0 0.0
        %6281 = vmatpush.msra.mxu0 0.0
        %6282 = vmatpush.msra.mxu0 0.0
        %6283 = vmatpush.msra.mxu0 0.0
        %6284 = vmatpush.msra.mxu0 0.0
        %6285 = vmatpush.msra.mxu0 0.0
        %6286 = vmatpush.msra.mxu0 0.0
        %6287 = vmatpush.msra.mxu0 0.0
        %6288 = vmatpush.msra.mxu0 %v6267
        %6289 = vmatpush.msra.mxu0 %v6264
        %6290 = vmatmul.f32.gmra.mxu0 %v6272
        %v6291 = vpop.f32.mrf.mxu0
        %v6292 = vadd.f32 0.0, %v6291
        %6293 = vdwg.mxu0
        %v6294 = vadd.f32 %v6244, %v6292
        %6295 = vmatpush.msra.mxu0 0.0
        %6296 = vmatpush.msra.mxu0 0.0
        %6297 = vmatpush.msra.mxu0 0.0
        %6298 = vmatpush.msra.mxu0 0.0
        %6299 = vmatpush.msra.mxu0 0.0
        %6300 = vmatpush.msra.mxu0 0.0
        %6301 = vmatpush.msra.mxu0 0.0
        %6302 = vmatpush.msra.mxu0 0.0
        %6303 = vmatpush.msra.mxu0 0.0
        %6304 = vmatpush.msra.mxu0 0.0
        %6305 = vmatpush.msra.mxu0 0.0
        %6306 = vmatpush.msra.mxu0 0.0
        %6307 = vmatpush.msra.mxu0 0.0
        %6308 = vmatpush.msra.mxu0 0.0
        %6309 = vmatpush.msra.mxu0 %v4410
        %6310 = vmatpush.msra.mxu0 %v4409
        %6311 = vmatmul.f32.gmra.mxu0 %v6146
        %v6312 = vpop.f32.mrf.mxu0
        %v6313 = vadd.f32 0.0, %v6312
        %6314 = vmatmul.f32.gmra.mxu0 %v6149
        %v6315 = vpop.f32.mrf.mxu0
        %v6316 = vadd.f32 0.0, %v6315
        %6317 = vdwg.mxu0
        %s6318 = scalar_lea.vmem [#allocation28], 24
        %v6319 = vld [vmem:[%s6318] sm:$0xff]
        %v6321 = vsel %vm4185, %v6319, 0
        %6323 = vmatpush.msra.mxu0 0.0
        %6324 = vmatpush.msra.mxu0 0.0
        %6325 = vmatpush.msra.mxu0 0.0
        %6326 = vmatpush.msra.mxu0 0.0
        %6327 = vmatpush.msra.mxu0 0.0
        %6328 = vmatpush.msra.mxu0 0.0
        %6329 = vmatpush.msra.mxu0 0.0
        %6330 = vmatpush.msra.mxu0 0.0
        %6331 = vmatpush.msra.mxu0 0.0
        %6332 = vmatpush.msra.mxu0 0.0
        %6333 = vmatpush.msra.mxu0 0.0
        %6334 = vmatpush.msra.mxu0 0.0
        %6335 = vmatpush.msra.mxu0 0.0
        %6336 = vmatpush.msra.mxu0 0.0
        %6337 = vmatpush.msra.mxu0 %v6316
        %6338 = vmatpush.msra.mxu0 %v6313
        %6339 = vmatmul.f32.gmra.mxu0 %v6321
        %v6340 = vpop.f32.mrf.mxu0
        %v6341 = vadd.f32 0.0, %v6340
        %6342 = vdwg.mxu0
        %v6343 = vadd.f32 %v6294, %v6341
        %6344 = vmatpush.msra.mxu0 0.0
        %6345 = vmatpush.msra.mxu0 0.0
        %6346 = vmatpush.msra.mxu0 0.0
        %6347 = vmatpush.msra.mxu0 0.0
        %6348 = vmatpush.msra.mxu0 0.0
        %6349 = vmatpush.msra.mxu0 0.0
        %6350 = vmatpush.msra.mxu0 0.0
        %6351 = vmatpush.msra.mxu0 0.0
        %6352 = vmatpush.msra.mxu0 0.0
        %6353 = vmatpush.msra.mxu0 0.0
        %6354 = vmatpush.msra.mxu0 0.0
        %6355 = vmatpush.msra.mxu0 0.0
        %6356 = vmatpush.msra.mxu0 0.0
        %6357 = vmatpush.msra.mxu0 0.0
        %6358 = vmatpush.msra.mxu0 %v4486
        %6359 = vmatpush.msra.mxu0 %v4485
        %6360 = vmatmul.f32.gmra.mxu0 %v6146
        %v6361 = vpop.f32.mrf.mxu0
        %v6362 = vadd.f32 0.0, %v6361
        %6363 = vmatmul.f32.gmra.mxu0 %v6149
        %v6364 = vpop.f32.mrf.mxu0
        %v6365 = vadd.f32 0.0, %v6364
        %6366 = vdwg.mxu0
        %s6367 = scalar_lea.vmem [#allocation28], 32
        %v6368 = vld [vmem:[%s6367] sm:$0xff]
        %v6370 = vsel %vm4185, %v6368, 0
        %6372 = vmatpush.msra.mxu0 0.0
        %6373 = vmatpush.msra.mxu0 0.0
        %6374 = vmatpush.msra.mxu0 0.0
        %6375 = vmatpush.msra.mxu0 0.0
        %6376 = vmatpush.msra.mxu0 0.0
        %6377 = vmatpush.msra.mxu0 0.0
        %6378 = vmatpush.msra.mxu0 0.0
        %6379 = vmatpush.msra.mxu0 0.0
        %6380 = vmatpush.msra.mxu0 0.0
        %6381 = vmatpush.msra.mxu0 0.0
        %6382 = vmatpush.msra.mxu0 0.0
        %6383 = vmatpush.msra.mxu0 0.0
        %6384 = vmatpush.msra.mxu0 0.0
        %6385 = vmatpush.msra.mxu0 0.0
        %6386 = vmatpush.msra.mxu0 %v6365
        %6387 = vmatpush.msra.mxu0 %v6362
        %6388 = vmatmul.f32.gmra.mxu0 %v6370
        %v6389 = vpop.f32.mrf.mxu0
        %v6390 = vadd.f32 0.0, %v6389
        %6391 = vdwg.mxu0
        %v6392 = vadd.f32 %v6343, %v6390
        %6393 = vmatpush.msra.mxu0 0.0
        %6394 = vmatpush.msra.mxu0 0.0
        %6395 = vmatpush.msra.mxu0 0.0
        %6396 = vmatpush.msra.mxu0 0.0
        %6397 = vmatpush.msra.mxu0 0.0
        %6398 = vmatpush.msra.mxu0 0.0
        %6399 = vmatpush.msra.mxu0 0.0
        %6400 = vmatpush.msra.mxu0 0.0
        %6401 = vmatpush.msra.mxu0 0.0
        %6402 = vmatpush.msra.mxu0 0.0
        %6403 = vmatpush.msra.mxu0 0.0
        %6404 = vmatpush.msra.mxu0 0.0
        %6405 = vmatpush.msra.mxu0 0.0
        %6406 = vmatpush.msra.mxu0 0.0
        %6407 = vmatpush.msra.mxu0 %v4562
        %6408 = vmatpush.msra.mxu0 %v4561
        %6409 = vmatmul.f32.gmra.mxu0 %v6146
        %v6410 = vpop.f32.mrf.mxu0
        %v6411 = vadd.f32 0.0, %v6410
        %6412 = vmatmul.f32.gmra.mxu0 %v6149
        %v6413 = vpop.f32.mrf.mxu0
        %v6414 = vadd.f32 0.0, %v6413
        %6415 = vdwg.mxu0
        %s6416 = scalar_lea.vmem [#allocation28], 40
        %v6417 = vld [vmem:[%s6416] sm:$0xff]
        %v6419 = vsel %vm4185, %v6417, 0
        %6421 = vmatpush.msra.mxu0 0.0
        %6422 = vmatpush.msra.mxu0 0.0
        %6423 = vmatpush.msra.mxu0 0.0
        %6424 = vmatpush.msra.mxu0 0.0
        %6425 = vmatpush.msra.mxu0 0.0
        %6426 = vmatpush.msra.mxu0 0.0
        %6427 = vmatpush.msra.mxu0 0.0
        %6428 = vmatpush.msra.mxu0 0.0
        %6429 = vmatpush.msra.mxu0 0.0
        %6430 = vmatpush.msra.mxu0 0.0
        %6431 = vmatpush.msra.mxu0 0.0
        %6432 = vmatpush.msra.mxu0 0.0
        %6433 = vmatpush.msra.mxu0 0.0
        %6434 = vmatpush.msra.mxu0 0.0
        %6435 = vmatpush.msra.mxu0 %v6414
        %6436 = vmatpush.msra.mxu0 %v6411
        %6437 = vmatmul.f32.gmra.mxu0 %v6419
        %v6438 = vpop.f32.mrf.mxu0
        %v6439 = vadd.f32 0.0, %v6438
        %6440 = vdwg.mxu0
        %v6441 = vadd.f32 %v6392, %v6439
        %6442 = vmatpush.msra.mxu0 0.0
        %6443 = vmatpush.msra.mxu0 0.0
        %6444 = vmatpush.msra.mxu0 0.0
        %6445 = vmatpush.msra.mxu0 0.0
        %6446 = vmatpush.msra.mxu0 0.0
        %6447 = vmatpush.msra.mxu0 0.0
        %6448 = vmatpush.msra.mxu0 0.0
        %6449 = vmatpush.msra.mxu0 0.0
        %6450 = vmatpush.msra.mxu0 0.0
        %6451 = vmatpush.msra.mxu0 0.0
        %6452 = vmatpush.msra.mxu0 0.0
        %6453 = vmatpush.msra.mxu0 0.0
        %6454 = vmatpush.msra.mxu0 0.0
        %6455 = vmatpush.msra.mxu0 0.0
        %6456 = vmatpush.msra.mxu0 %v4638
        %6457 = vmatpush.msra.mxu0 %v4637
        %6458 = vmatmul.f32.gmra.mxu0 %v6146
        %v6459 = vpop.f32.mrf.mxu0
        %v6460 = vadd.f32 0.0, %v6459
        %6461 = vmatmul.f32.gmra.mxu0 %v6149
        %v6462 = vpop.f32.mrf.mxu0
        %v6463 = vadd.f32 0.0, %v6462
        %6464 = vdwg.mxu0
        %s6465 = scalar_lea.vmem [#allocation28], 48
        %v6466 = vld [vmem:[%s6465] sm:$0xff]
        %v6468 = vsel %vm4185, %v6466, 0
        %6470 = vmatpush.msra.mxu0 0.0
        %6471 = vmatpush.msra.mxu0 0.0
        %6472 = vmatpush.msra.mxu0 0.0
        %6473 = vmatpush.msra.mxu0 0.0
        %6474 = vmatpush.msra.mxu0 0.0
        %6475 = vmatpush.msra.mxu0 0.0
        %6476 = vmatpush.msra.mxu0 0.0
        %6477 = vmatpush.msra.mxu0 0.0
        %6478 = vmatpush.msra.mxu0 0.0
        %6479 = vmatpush.msra.mxu0 0.0
        %6480 = vmatpush.msra.mxu0 0.0
        %6481 = vmatpush.msra.mxu0 0.0
        %6482 = vmatpush.msra.mxu0 0.0
        %6483 = vmatpush.msra.mxu0 0.0
        %6484 = vmatpush.msra.mxu0 %v6463
        %6485 = vmatpush.msra.mxu0 %v6460
        %6486 = vmatmul.f32.gmra.mxu0 %v6468
        %v6487 = vpop.f32.mrf.mxu0
        %v6488 = vadd.f32 0.0, %v6487
        %6489 = vdwg.mxu0
        %v6490 = vadd.f32 %v6441, %v6488
        %6491 = vmatpush.msra.mxu0 0.0
        %6492 = vmatpush.msra.mxu0 0.0
        %6493 = vmatpush.msra.mxu0 0.0
        %6494 = vmatpush.msra.mxu0 0.0
        %6495 = vmatpush.msra.mxu0 0.0
        %6496 = vmatpush.msra.mxu0 0.0
        %6497 = vmatpush.msra.mxu0 0.0
        %6498 = vmatpush.msra.mxu0 0.0
        %6499 = vmatpush.msra.mxu0 0.0
        %6500 = vmatpush.msra.mxu0 0.0
        %6501 = vmatpush.msra.mxu0 0.0
        %6502 = vmatpush.msra.mxu0 0.0
        %6503 = vmatpush.msra.mxu0 0.0
        %6504 = vmatpush.msra.mxu0 0.0
        %6505 = vmatpush.msra.mxu0 %v4714
        %6506 = vmatpush.msra.mxu0 %v4713
        %6507 = vmatmul.f32.gmra.mxu0 %v6146
        %v6508 = vpop.f32.mrf.mxu0
        %v6509 = vadd.f32 0.0, %v6508
        %6510 = vmatmul.f32.gmra.mxu0 %v6149
        %v6511 = vpop.f32.mrf.mxu0
        %v6512 = vadd.f32 0.0, %v6511
        %6513 = vdwg.mxu0
        %s6514 = scalar_lea.vmem [#allocation28], 56
        %v6515 = vld [vmem:[%s6514] sm:$0xff]
        %v6517 = vsel %vm4185, %v6515, 0
        %6519 = vmatpush.msra.mxu0 0.0
        %6520 = vmatpush.msra.mxu0 0.0
        %6521 = vmatpush.msra.mxu0 0.0
        %6522 = vmatpush.msra.mxu0 0.0
        %6523 = vmatpush.msra.mxu0 0.0
        %6524 = vmatpush.msra.mxu0 0.0
        %6525 = vmatpush.msra.mxu0 0.0
        %6526 = vmatpush.msra.mxu0 0.0
        %6527 = vmatpush.msra.mxu0 0.0
        %6528 = vmatpush.msra.mxu0 0.0
        %6529 = vmatpush.msra.mxu0 0.0
        %6530 = vmatpush.msra.mxu0 0.0
        %6531 = vmatpush.msra.mxu0 0.0
        %6532 = vmatpush.msra.mxu0 0.0
        %6533 = vmatpush.msra.mxu0 %v6512
        %6534 = vmatpush.msra.mxu0 %v6509
        %6535 = vmatmul.f32.gmra.mxu0 %v6517
        %v6536 = vpop.f32.mrf.mxu0
        %v6537 = vadd.f32 0.0, %v6536
        %6538 = vdwg.mxu0
        %v6539 = vadd.f32 %v6490, %v6537
        %6540 = vmatpush.msra.mxu0 0.0
        %6541 = vmatpush.msra.mxu0 0.0
        %6542 = vmatpush.msra.mxu0 0.0
        %6543 = vmatpush.msra.mxu0 0.0
        %6544 = vmatpush.msra.mxu0 0.0
        %6545 = vmatpush.msra.mxu0 0.0
        %6546 = vmatpush.msra.mxu0 0.0
        %6547 = vmatpush.msra.mxu0 0.0
        %6548 = vmatpush.msra.mxu0 0.0
        %6549 = vmatpush.msra.mxu0 0.0
        %6550 = vmatpush.msra.mxu0 0.0
        %6551 = vmatpush.msra.mxu0 0.0
        %6552 = vmatpush.msra.mxu0 0.0
        %6553 = vmatpush.msra.mxu0 0.0
        %6554 = vmatpush.msra.mxu0 %v4790
        %6555 = vmatpush.msra.mxu0 %v4789
        %6556 = vmatmul.f32.gmra.mxu0 %v6146
        %v6557 = vpop.f32.mrf.mxu0
        %v6558 = vadd.f32 0.0, %v6557
        %6559 = vmatmul.f32.gmra.mxu0 %v6149
        %v6560 = vpop.f32.mrf.mxu0
        %v6561 = vadd.f32 0.0, %v6560
        %6562 = vdwg.mxu0
        %s6563 = scalar_lea.vmem [#allocation28], 64
        %v6564 = vld [vmem:[%s6563] sm:$0xff]
        %v6566 = vsel %vm4185, %v6564, 0
        %6568 = vmatpush.msra.mxu0 0.0
        %6569 = vmatpush.msra.mxu0 0.0
        %6570 = vmatpush.msra.mxu0 0.0
        %6571 = vmatpush.msra.mxu0 0.0
        %6572 = vmatpush.msra.mxu0 0.0
        %6573 = vmatpush.msra.mxu0 0.0
        %6574 = vmatpush.msra.mxu0 0.0
        %6575 = vmatpush.msra.mxu0 0.0
        %6576 = vmatpush.msra.mxu0 0.0
        %6577 = vmatpush.msra.mxu0 0.0
        %6578 = vmatpush.msra.mxu0 0.0
        %6579 = vmatpush.msra.mxu0 0.0
        %6580 = vmatpush.msra.mxu0 0.0
        %6581 = vmatpush.msra.mxu0 0.0
        %6582 = vmatpush.msra.mxu0 %v6561
        %6583 = vmatpush.msra.mxu0 %v6558
        %6584 = vmatmul.f32.gmra.mxu0 %v6566
        %v6585 = vpop.f32.mrf.mxu0
        %v6586 = vadd.f32 0.0, %v6585
        %6587 = vdwg.mxu0
        %v6588 = vadd.f32 %v6539, %v6586
        %v6589 = vld [vmem:[%s63] sm:$0xff]
        %6591 = vset.pattern.permute.xlu0 0
        %6592 = vperm.xlu0 %6591, %v6589
        %v6593 = vpop.permute.xlu0 %6592
        %v6595 = vadd.f32 %v6588, %v6593
        %v6596 = vmul.f32 %v6595, 0.2
        %v6597 = vmax.f32 %v6595, %v6596
        %v6598 = vld [vmem:[#allocation9] sm:$0xff]
        %v6599 = vld [vmem:[#allocation9 + $0x8] sm:$0xff]
        %v6601 = vsel %vm4185, %v6597, 0
        %6603 = vmatpush.msra.mxu0 0.0
        %6604 = vmatpush.msra.mxu0 0.0
        %6605 = vmatpush.msra.mxu0 0.0
        %6606 = vmatpush.msra.mxu0 0.0
        %6607 = vmatpush.msra.mxu0 0.0
        %6608 = vmatpush.msra.mxu0 0.0
        %6609 = vmatpush.msra.mxu0 0.0
        %6610 = vmatpush.msra.mxu0 0.0
        %6611 = vmatpush.msra.mxu0 0.0
        %6612 = vmatpush.msra.mxu0 0.0
        %6613 = vmatpush.msra.mxu0 0.0
        %6614 = vmatpush.msra.mxu0 0.0
        %6615 = vmatpush.msra.mxu0 0.0
        %6616 = vmatpush.msra.mxu0 0.0
        %6617 = vmatpush.msra.mxu0 %v6599
        %6618 = vmatpush.msra.mxu0 %v6598
        %6619 = vmatmul.f32.gmra.mxu0 %v6601
        %v6620 = vpop.f32.mrf.mxu0
        %v6621 = vadd.f32 0.0, %v6620
        %6622 = vdwg.mxu0
        %v6624 = vsel %vm3468, %v6621, 0
        %6626 = vmatpush.msra.mxu0 0.0
        %6627 = vmatpush.msra.mxu0 0.0
        %6628 = vmatpush.msra.mxu0 0.0
        %6629 = vmatpush.msra.mxu0 0.0
        %6630 = vmatpush.msra.mxu0 0.0
        %6631 = vmatpush.msra.mxu0 0.0
        %6632 = vmatpush.msra.mxu0 0.0
        %6633 = vmatpush.msra.mxu0 0.0
        %6634 = vmatpush.msra.mxu0 %v3467
        %6635 = vmatpush.msra.mxu0 %v3466
        %6636 = vmatpush.msra.mxu0 %v3465
        %6637 = vmatpush.msra.mxu0 %v3464
        %6638 = vmatpush.msra.mxu0 %v3463
        %6639 = vmatpush.msra.mxu0 %v3462
        %6640 = vmatpush.msra.mxu0 %v3461
        %6641 = vmatpush.msra.mxu0 %v3460
        %6642 = vmatmul.f32.gmra.mxu0 %v6624
        %v6643 = vpop.f32.mrf.mxu0
        %v6644 = vadd.f32 0.0, %v6643
        %6645 = vdwg.mxu0
        %v6646 = vld [vmem:[%s65] sm:$0x3]
        %6647 = vmatpush.msra.mxu0 0.0
        %6648 = vmatpush.msra.mxu0 0.0
        %6649 = vmatpush.msra.mxu0 0.0
        %6650 = vmatpush.msra.mxu0 0.0
        %6651 = vmatpush.msra.mxu0 0.0
        %6652 = vmatpush.msra.mxu0 0.0
        %6653 = vmatpush.msra.mxu0 0.0
        %6654 = vmatpush.msra.mxu0 0.0
        %6655 = vmatpush.msra.mxu0 %v3502
        %6656 = vmatpush.msra.mxu0 %v3501
        %6657 = vmatpush.msra.mxu0 %v3500
        %6658 = vmatpush.msra.mxu0 %v3499
        %6659 = vmatpush.msra.mxu0 %v3498
        %6660 = vmatpush.msra.mxu0 %v3497
        %6661 = vmatpush.msra.mxu0 %v3496
        %6662 = vmatpush.msra.mxu0 %v3495
        %6663 = vmatmul.f32.gmra.mxu0 %v6624
        %v6664 = vpop.f32.mrf.mxu0
        %v6665 = vadd.f32 0.0, %v6664
        %6666 = vdwg.mxu0
        %s6667 = scalar_lea.vmem %s65, 2
        %v6668 = vld [vmem:[%s6667] sm:$0x3]
        %v6670 = vsel %vm3526, %v6668, 0
        %6672 = vmatpush.msra.mxu0 0.0
        %6673 = vmatpush.msra.mxu0 0.0
        %6674 = vmatpush.msra.mxu0 0.0
        %6675 = vmatpush.msra.mxu0 0.0
        %6676 = vmatpush.msra.mxu0 0.0
        %6677 = vmatpush.msra.mxu0 0.0
        %6678 = vmatpush.msra.mxu0 0.0
        %6679 = vmatpush.msra.mxu0 0.0
        %6680 = vmatpush.msra.mxu0 0.0
        %6681 = vmatpush.msra.mxu0 0.0
        %6682 = vmatpush.msra.mxu0 0.0
        %6683 = vmatpush.msra.mxu0 0.0
        %6684 = vmatpush.msra.mxu0 0.0
        %6685 = vmatpush.msra.mxu0 0.0
        %6686 = vmatpush.msra.mxu0 0.0
        %6687 = vmatpush.msra.mxu0 %v6665
        %6688 = vmatmul.f32.gmra.mxu0 %v6670
        %v6689 = vpop.f32.mrf.mxu0
        %v6690 = vadd.f32 0.0, %v6689
        %6691 = vdwg.mxu0
        %v6693 = vsel %vm3526, %v6646, 0
        %6695 = vmatpush.msra.mxu0 0.0
        %6696 = vmatpush.msra.mxu0 0.0
        %6697 = vmatpush.msra.mxu0 0.0
        %6698 = vmatpush.msra.mxu0 0.0
        %6699 = vmatpush.msra.mxu0 0.0
        %6700 = vmatpush.msra.mxu0 0.0
        %6701 = vmatpush.msra.mxu0 0.0
        %6702 = vmatpush.msra.mxu0 0.0
        %6703 = vmatpush.msra.mxu0 0.0
        %6704 = vmatpush.msra.mxu0 0.0
        %6705 = vmatpush.msra.mxu0 0.0
        %6706 = vmatpush.msra.mxu0 0.0
        %6707 = vmatpush.msra.mxu0 0.0
        %6708 = vmatpush.msra.mxu0 0.0
        %6709 = vmatpush.msra.mxu0 0.0
        %6710 = vmatpush.msra.mxu0 %v6644
        %6711 = vmatmul.f32.gmra.mxu0 %v6693
        %v6712 = vpop.f32.mrf.mxu0
        %v6713 = vadd.f32 %v6690, %v6712
        %6714 = vdwg.mxu0
        %6715 = vmatpush.msra.mxu0 0.0
        %6716 = vmatpush.msra.mxu0 0.0
        %6717 = vmatpush.msra.mxu0 0.0
        %6718 = vmatpush.msra.mxu0 0.0
        %6719 = vmatpush.msra.mxu0 0.0
        %6720 = vmatpush.msra.mxu0 0.0
        %6721 = vmatpush.msra.mxu0 0.0
        %6722 = vmatpush.msra.mxu0 0.0
        %6723 = vmatpush.msra.mxu0 %v3593
        %6724 = vmatpush.msra.mxu0 %v3592
        %6725 = vmatpush.msra.mxu0 %v3591
        %6726 = vmatpush.msra.mxu0 %v3590
        %6727 = vmatpush.msra.mxu0 %v3589
        %6728 = vmatpush.msra.mxu0 %v3588
        %6729 = vmatpush.msra.mxu0 %v3587
        %6730 = vmatpush.msra.mxu0 %v3586
        %6731 = vmatmul.f32.gmra.mxu0 %v6624
        %v6732 = vpop.f32.mrf.mxu0
        %v6733 = vadd.f32 0.0, %v6732
        %6734 = vdwg.mxu0
        %s6735 = scalar_lea.vmem %s65, 4
        %v6736 = vld [vmem:[%s6735] sm:$0x3]
        %v6738 = vsel %vm3526, %v6736, 0
        %6740 = vmatpush.msra.mxu0 0.0
        %6741 = vmatpush.msra.mxu0 0.0
        %6742 = vmatpush.msra.mxu0 0.0
        %6743 = vmatpush.msra.mxu0 0.0
        %6744 = vmatpush.msra.mxu0 0.0
        %6745 = vmatpush.msra.mxu0 0.0
        %6746 = vmatpush.msra.mxu0 0.0
        %6747 = vmatpush.msra.mxu0 0.0
        %6748 = vmatpush.msra.mxu0 0.0
        %6749 = vmatpush.msra.mxu0 0.0
        %6750 = vmatpush.msra.mxu0 0.0
        %6751 = vmatpush.msra.mxu0 0.0
        %6752 = vmatpush.msra.mxu0 0.0
        %6753 = vmatpush.msra.mxu0 0.0
        %6754 = vmatpush.msra.mxu0 0.0
        %6755 = vmatpush.msra.mxu0 %v6733
        %6756 = vmatmul.f32.gmra.mxu0 %v6738
        %v6757 = vpop.f32.mrf.mxu0
        %v6758 = vadd.f32 0.0, %v6757
        %6759 = vdwg.mxu0
        %v6760 = vadd.f32 %v6713, %v6758
        %6761 = vmatpush.msra.mxu0 0.0
        %6762 = vmatpush.msra.mxu0 0.0
        %6763 = vmatpush.msra.mxu0 0.0
        %6764 = vmatpush.msra.mxu0 0.0
        %6765 = vmatpush.msra.mxu0 0.0
        %6766 = vmatpush.msra.mxu0 0.0
        %6767 = vmatpush.msra.mxu0 0.0
        %6768 = vmatpush.msra.mxu0 0.0
        %6769 = vmatpush.msra.mxu0 %v3656
        %6770 = vmatpush.msra.mxu0 %v3655
        %6771 = vmatpush.msra.mxu0 %v3654
        %6772 = vmatpush.msra.mxu0 %v3653
        %6773 = vmatpush.msra.mxu0 %v3652
        %6774 = vmatpush.msra.mxu0 %v3651
        %6775 = vmatpush.msra.mxu0 %v3650
        %6776 = vmatpush.msra.mxu0 %v3649
        %6777 = vmatmul.f32.gmra.mxu0 %v6624
        %v6778 = vpop.f32.mrf.mxu0
        %v6779 = vadd.f32 0.0, %v6778
        %6780 = vdwg.mxu0
        %s6781 = scalar_lea.vmem %s65, 6
        %v6782 = vld [vmem:[%s6781] sm:$0x3]
        %v6784 = vsel %vm3526, %v6782, 0
        %6786 = vmatpush.msra.mxu0 0.0
        %6787 = vmatpush.msra.mxu0 0.0
        %6788 = vmatpush.msra.mxu0 0.0
        %6789 = vmatpush.msra.mxu0 0.0
        %6790 = vmatpush.msra.mxu0 0.0
        %6791 = vmatpush.msra.mxu0 0.0
        %6792 = vmatpush.msra.mxu0 0.0
        %6793 = vmatpush.msra.mxu0 0.0
        %6794 = vmatpush.msra.mxu0 0.0
        %6795 = vmatpush.msra.mxu0 0.0
        %6796 = vmatpush.msra.mxu0 0.0
        %6797 = vmatpush.msra.mxu0 0.0
        %6798 = vmatpush.msra.mxu0 0.0
        %6799 = vmatpush.msra.mxu0 0.0
        %6800 = vmatpush.msra.mxu0 0.0
        %6801 = vmatpush.msra.mxu0 %v6779
        %6802 = vmatmul.f32.gmra.mxu0 %v6784
        %v6803 = vpop.f32.mrf.mxu0
        %v6804 = vadd.f32 0.0, %v6803
        %6805 = vdwg.mxu0
        %v6806 = vadd.f32 %v6760, %v6804
        %6807 = vmatpush.msra.mxu0 0.0
        %6808 = vmatpush.msra.mxu0 0.0
        %6809 = vmatpush.msra.mxu0 0.0
        %6810 = vmatpush.msra.mxu0 0.0
        %6811 = vmatpush.msra.mxu0 0.0
        %6812 = vmatpush.msra.mxu0 0.0
        %6813 = vmatpush.msra.mxu0 0.0
        %6814 = vmatpush.msra.mxu0 0.0
        %6815 = vmatpush.msra.mxu0 %v3719
        %6816 = vmatpush.msra.mxu0 %v3718
        %6817 = vmatpush.msra.mxu0 %v3717
        %6818 = vmatpush.msra.mxu0 %v3716
        %6819 = vmatpush.msra.mxu0 %v3715
        %6820 = vmatpush.msra.mxu0 %v3714
        %6821 = vmatpush.msra.mxu0 %v3713
        %6822 = vmatpush.msra.mxu0 %v3712
        %6823 = vmatmul.f32.gmra.mxu0 %v6624
        %v6824 = vpop.f32.mrf.mxu0
        %v6825 = vadd.f32 0.0, %v6824
        %6826 = vdwg.mxu0
        %s6827 = scalar_lea.vmem %s65, 8
        %v6828 = vld [vmem:[%s6827] sm:$0x3]
        %v6830 = vsel %vm3526, %v6828, 0
        %6832 = vmatpush.msra.mxu0 0.0
        %6833 = vmatpush.msra.mxu0 0.0
        %6834 = vmatpush.msra.mxu0 0.0
        %6835 = vmatpush.msra.mxu0 0.0
        %6836 = vmatpush.msra.mxu0 0.0
        %6837 = vmatpush.msra.mxu0 0.0
        %6838 = vmatpush.msra.mxu0 0.0
        %6839 = vmatpush.msra.mxu0 0.0
        %6840 = vmatpush.msra.mxu0 0.0
        %6841 = vmatpush.msra.mxu0 0.0
        %6842 = vmatpush.msra.mxu0 0.0
        %6843 = vmatpush.msra.mxu0 0.0
        %6844 = vmatpush.msra.mxu0 0.0
        %6845 = vmatpush.msra.mxu0 0.0
        %6846 = vmatpush.msra.mxu0 0.0
        %6847 = vmatpush.msra.mxu0 %v6825
        %6848 = vmatmul.f32.gmra.mxu0 %v6830
        %v6849 = vpop.f32.mrf.mxu0
        %v6850 = vadd.f32 0.0, %v6849
        %6851 = vdwg.mxu0
        %v6852 = vadd.f32 %v6806, %v6850
        %6853 = vmatpush.msra.mxu0 0.0
        %6854 = vmatpush.msra.mxu0 0.0
        %6855 = vmatpush.msra.mxu0 0.0
        %6856 = vmatpush.msra.mxu0 0.0
        %6857 = vmatpush.msra.mxu0 0.0
        %6858 = vmatpush.msra.mxu0 0.0
        %6859 = vmatpush.msra.mxu0 0.0
        %6860 = vmatpush.msra.mxu0 0.0
        %6861 = vmatpush.msra.mxu0 %v3782
        %6862 = vmatpush.msra.mxu0 %v3781
        %6863 = vmatpush.msra.mxu0 %v3780
        %6864 = vmatpush.msra.mxu0 %v3779
        %6865 = vmatpush.msra.mxu0 %v3778
        %6866 = vmatpush.msra.mxu0 %v3777
        %6867 = vmatpush.msra.mxu0 %v3776
        %6868 = vmatpush.msra.mxu0 %v3775
        %6869 = vmatmul.f32.gmra.mxu0 %v6624
        %v6870 = vpop.f32.mrf.mxu0
        %v6871 = vadd.f32 0.0, %v6870
        %6872 = vdwg.mxu0
        %s6873 = scalar_lea.vmem %s65, 10
        %v6874 = vld [vmem:[%s6873] sm:$0x3]
        %v6876 = vsel %vm3526, %v6874, 0
        %6878 = vmatpush.msra.mxu0 0.0
        %6879 = vmatpush.msra.mxu0 0.0
        %6880 = vmatpush.msra.mxu0 0.0
        %6881 = vmatpush.msra.mxu0 0.0
        %6882 = vmatpush.msra.mxu0 0.0
        %6883 = vmatpush.msra.mxu0 0.0
        %6884 = vmatpush.msra.mxu0 0.0
        %6885 = vmatpush.msra.mxu0 0.0
        %6886 = vmatpush.msra.mxu0 0.0
        %6887 = vmatpush.msra.mxu0 0.0
        %6888 = vmatpush.msra.mxu0 0.0
        %6889 = vmatpush.msra.mxu0 0.0
        %6890 = vmatpush.msra.mxu0 0.0
        %6891 = vmatpush.msra.mxu0 0.0
        %6892 = vmatpush.msra.mxu0 0.0
        %6893 = vmatpush.msra.mxu0 %v6871
        %6894 = vmatmul.f32.gmra.mxu0 %v6876
        %v6895 = vpop.f32.mrf.mxu0
        %v6896 = vadd.f32 0.0, %v6895
        %6897 = vdwg.mxu0
        %v6898 = vadd.f32 %v6852, %v6896
        %6899 = vmatpush.msra.mxu0 0.0
        %6900 = vmatpush.msra.mxu0 0.0
        %6901 = vmatpush.msra.mxu0 0.0
        %6902 = vmatpush.msra.mxu0 0.0
        %6903 = vmatpush.msra.mxu0 0.0
        %6904 = vmatpush.msra.mxu0 0.0
        %6905 = vmatpush.msra.mxu0 0.0
        %6906 = vmatpush.msra.mxu0 0.0
        %6907 = vmatpush.msra.mxu0 %v3845
        %6908 = vmatpush.msra.mxu0 %v3844
        %6909 = vmatpush.msra.mxu0 %v3843
        %6910 = vmatpush.msra.mxu0 %v3842
        %6911 = vmatpush.msra.mxu0 %v3841
        %6912 = vmatpush.msra.mxu0 %v3840
        %6913 = vmatpush.msra.mxu0 %v3839
        %6914 = vmatpush.msra.mxu0 %v3838
        %6915 = vmatmul.f32.gmra.mxu0 %v6624
        %v6916 = vpop.f32.mrf.mxu0
        %v6917 = vadd.f32 0.0, %v6916
        %6918 = vdwg.mxu0
        %s6919 = scalar_lea.vmem %s65, 12
        %v6920 = vld [vmem:[%s6919] sm:$0x3]
        %v6922 = vsel %vm3526, %v6920, 0
        %6924 = vmatpush.msra.mxu0 0.0
        %6925 = vmatpush.msra.mxu0 0.0
        %6926 = vmatpush.msra.mxu0 0.0
        %6927 = vmatpush.msra.mxu0 0.0
        %6928 = vmatpush.msra.mxu0 0.0
        %6929 = vmatpush.msra.mxu0 0.0
        %6930 = vmatpush.msra.mxu0 0.0
        %6931 = vmatpush.msra.mxu0 0.0
        %6932 = vmatpush.msra.mxu0 0.0
        %6933 = vmatpush.msra.mxu0 0.0
        %6934 = vmatpush.msra.mxu0 0.0
        %6935 = vmatpush.msra.mxu0 0.0
        %6936 = vmatpush.msra.mxu0 0.0
        %6937 = vmatpush.msra.mxu0 0.0
        %6938 = vmatpush.msra.mxu0 0.0
        %6939 = vmatpush.msra.mxu0 %v6917
        %6940 = vmatmul.f32.gmra.mxu0 %v6922
        %v6941 = vpop.f32.mrf.mxu0
        %v6942 = vadd.f32 0.0, %v6941
        %6943 = vdwg.mxu0
        %v6944 = vadd.f32 %v6898, %v6942
        %6945 = vmatpush.msra.mxu0 0.0
        %6946 = vmatpush.msra.mxu0 0.0
        %6947 = vmatpush.msra.mxu0 0.0
        %6948 = vmatpush.msra.mxu0 0.0
        %6949 = vmatpush.msra.mxu0 0.0
        %6950 = vmatpush.msra.mxu0 0.0
        %6951 = vmatpush.msra.mxu0 0.0
        %6952 = vmatpush.msra.mxu0 0.0
        %6953 = vmatpush.msra.mxu0 %v3908
        %6954 = vmatpush.msra.mxu0 %v3907
        %6955 = vmatpush.msra.mxu0 %v3906
        %6956 = vmatpush.msra.mxu0 %v3905
        %6957 = vmatpush.msra.mxu0 %v3904
        %6958 = vmatpush.msra.mxu0 %v3903
        %6959 = vmatpush.msra.mxu0 %v3902
        %6960 = vmatpush.msra.mxu0 %v3901
        %6961 = vmatmul.f32.gmra.mxu0 %v6624
        %v6962 = vpop.f32.mrf.mxu0
        %v6963 = vadd.f32 0.0, %v6962
        %6964 = vdwg.mxu0
        %s6965 = scalar_lea.vmem %s65, 14
        %v6966 = vld [vmem:[%s6965] sm:$0x3]
        %v6968 = vsel %vm3526, %v6966, 0
        %6970 = vmatpush.msra.mxu0 0.0
        %6971 = vmatpush.msra.mxu0 0.0
        %6972 = vmatpush.msra.mxu0 0.0
        %6973 = vmatpush.msra.mxu0 0.0
        %6974 = vmatpush.msra.mxu0 0.0
        %6975 = vmatpush.msra.mxu0 0.0
        %6976 = vmatpush.msra.mxu0 0.0
        %6977 = vmatpush.msra.mxu0 0.0
        %6978 = vmatpush.msra.mxu0 0.0
        %6979 = vmatpush.msra.mxu0 0.0
        %6980 = vmatpush.msra.mxu0 0.0
        %6981 = vmatpush.msra.mxu0 0.0
        %6982 = vmatpush.msra.mxu0 0.0
        %6983 = vmatpush.msra.mxu0 0.0
        %6984 = vmatpush.msra.mxu0 0.0
        %6985 = vmatpush.msra.mxu0 %v6963
        %6986 = vmatmul.f32.gmra.mxu0 %v6968
        %v6987 = vpop.f32.mrf.mxu0
        %v6988 = vadd.f32 0.0, %v6987
        %6989 = vdwg.mxu0
        %v6990 = vadd.f32 %v6944, %v6988
        %6991 = vmatpush.msra.mxu0 0.0
        %6992 = vmatpush.msra.mxu0 0.0
        %6993 = vmatpush.msra.mxu0 0.0
        %6994 = vmatpush.msra.mxu0 0.0
        %6995 = vmatpush.msra.mxu0 0.0
        %6996 = vmatpush.msra.mxu0 0.0
        %6997 = vmatpush.msra.mxu0 0.0
        %6998 = vmatpush.msra.mxu0 0.0
        %6999 = vmatpush.msra.mxu0 %v3971
        %7000 = vmatpush.msra.mxu0 %v3970
        %7001 = vmatpush.msra.mxu0 %v3969
        %7002 = vmatpush.msra.mxu0 %v3968
        %7003 = vmatpush.msra.mxu0 %v3967
        %7004 = vmatpush.msra.mxu0 %v3966
        %7005 = vmatpush.msra.mxu0 %v3965
        %7006 = vmatpush.msra.mxu0 %v3964
        %7007 = vmatmul.f32.gmra.mxu0 %v6624
        %v7008 = vpop.f32.mrf.mxu0
        %v7009 = vadd.f32 0.0, %v7008
        %7010 = vdwg.mxu0
        %s7011 = scalar_lea.vmem %s65, 16
        %v7012 = vld [vmem:[%s7011] sm:$0x3]
        %v7014 = vsel %vm3526, %v7012, 0
        %7016 = vmatpush.msra.mxu0 0.0
        %7017 = vmatpush.msra.mxu0 0.0
        %7018 = vmatpush.msra.mxu0 0.0
        %7019 = vmatpush.msra.mxu0 0.0
        %7020 = vmatpush.msra.mxu0 0.0
        %7021 = vmatpush.msra.mxu0 0.0
        %7022 = vmatpush.msra.mxu0 0.0
        %7023 = vmatpush.msra.mxu0 0.0
        %7024 = vmatpush.msra.mxu0 0.0
        %7025 = vmatpush.msra.mxu0 0.0
        %7026 = vmatpush.msra.mxu0 0.0
        %7027 = vmatpush.msra.mxu0 0.0
        %7028 = vmatpush.msra.mxu0 0.0
        %7029 = vmatpush.msra.mxu0 0.0
        %7030 = vmatpush.msra.mxu0 0.0
        %7031 = vmatpush.msra.mxu0 %v7009
        %7032 = vmatmul.f32.gmra.mxu0 %v7014
        %v7033 = vpop.f32.mrf.mxu0
        %v7034 = vadd.f32 0.0, %v7033
        %7035 = vdwg.mxu0
        %v7036 = vadd.f32 %v6990, %v7034
        %v7037 = vld [vmem:[%s67] sm:$0x3]
        %7039 = vset.pattern.permute.xlu0 0
        %7040 = vperm.xlu0 %7039, %v7037
        %v7041 = vpop.permute.xlu0 %7040
        %v7043 = vadd.f32 %v7036, %v7041
        %v7044 = vld [vmem:[#allocation10] sm:$0xff]
        %v7045 = vld [vmem:[#allocation10 + $0x8] sm:$0xff]
        %v7046 = vld [vmem:[#allocation10 + $0x10] sm:$0xff]
        %v7047 = vld [vmem:[#allocation10 + $0x18] sm:$0xff]
        %v7048 = vld [vmem:[#allocation10 + $0x20] sm:$0xff]
        %v7049 = vld [vmem:[#allocation10 + $0x28] sm:$0xff]
        %v7050 = vld [vmem:[#allocation10 + $0x30] sm:$0xff]
        %v7051 = vld [vmem:[#allocation10 + $0x38] sm:$0xff]
        %v7052 = vld [vmem:[#allocation10 + $0x40] sm:$0xff]
        %v7053 = vld [vmem:[#allocation10 + $0x48] sm:$0xff]
        %v7054 = vld [vmem:[#allocation10 + $0x50] sm:$0xff]
        %v7055 = vld [vmem:[#allocation10 + $0x58] sm:$0xff]
        %v7056 = vld [vmem:[#allocation10 + $0x60] sm:$0xff]
        %v7057 = vld [vmem:[#allocation10 + $0x68] sm:$0xff]
        %v7058 = vld [vmem:[#allocation10 + $0x70] sm:$0xff]
        %v7059 = vld [vmem:[#allocation10 + $0x78] sm:$0xff]
        %v7061 = vsel %vm3468, %v7043, 0
        %7063 = vmatpush.msra.mxu0 0.0
        %7064 = vmatpush.msra.mxu0 0.0
        %7065 = vmatpush.msra.mxu0 0.0
        %7066 = vmatpush.msra.mxu0 0.0
        %7067 = vmatpush.msra.mxu0 0.0
        %7068 = vmatpush.msra.mxu0 0.0
        %7069 = vmatpush.msra.mxu0 0.0
        %7070 = vmatpush.msra.mxu0 0.0
        %7071 = vmatpush.msra.mxu0 %v7058
        %7072 = vmatpush.msra.mxu0 %v7056
        %7073 = vmatpush.msra.mxu0 %v7054
        %7074 = vmatpush.msra.mxu0 %v7052
        %7075 = vmatpush.msra.mxu0 %v7050
        %7076 = vmatpush.msra.mxu0 %v7048
        %7077 = vmatpush.msra.mxu0 %v7046
        %7078 = vmatpush.msra.mxu0 %v7044
        %7079 = vmatmul.f32.gmra.mxu0 %v7061
        %v7080 = vpop.f32.mrf.mxu0
        %v7081 = vadd.f32 0.0, %v7080
        %7082 = vdwg.mxu0
        %7083 = vmatpush.msra.mxu0 0.0
        %7084 = vmatpush.msra.mxu0 0.0
        %7085 = vmatpush.msra.mxu0 0.0
        %7086 = vmatpush.msra.mxu0 0.0
        %7087 = vmatpush.msra.mxu0 0.0
        %7088 = vmatpush.msra.mxu0 0.0
        %7089 = vmatpush.msra.mxu0 0.0
        %7090 = vmatpush.msra.mxu0 0.0
        %7091 = vmatpush.msra.mxu0 %v7059
        %7092 = vmatpush.msra.mxu0 %v7057
        %7093 = vmatpush.msra.mxu0 %v7055
        %7094 = vmatpush.msra.mxu0 %v7053
        %7095 = vmatpush.msra.mxu0 %v7051
        %7096 = vmatpush.msra.mxu0 %v7049
        %7097 = vmatpush.msra.mxu0 %v7047
        %7098 = vmatpush.msra.mxu0 %v7045
        %7099 = vmatmul.f32.gmra.mxu0 %v7061
        %v7100 = vpop.f32.mrf.mxu0
        %v7101 = vadd.f32 0.0, %v7100
        %7102 = vdwg.mxu0
        %v7105 = vrot.slane %v7101, 6
        %v7106 = vsel %vm1637, %v7081, %v7105
        %7108 = vst [vmem:[%s1328] sm:$0xf] %v7106
        %p7109 = scmp.lt.s32.totalorder %s90, 1
        %s7110 = scalar_select %p7109, %s90, 1
        %s7111 = smul.addr %s7110, 2
        %s7112 = smul.addr %s7111, 2
        %s7113 = scalar_lea.vmem %s69, %s7112
        // Predicated region
        $region229: #{radar_hybrid_autoencoder.1} parent=155 // pred_check
          %p7114 = pneg %p827
        $region230: #{radar_hybrid_autoencoder.1} parent=155 // pred_check_branch
          %7116 = sbr.rel (%p7114) target = $region232
        $region231: #{radar_hybrid_autoencoder.1} parent=155 // pred_region
          _
        $region232: #{radar_hybrid_autoencoder.1} parent=155 // pred_fallthru
          _
      $region156: #{radar_hybrid_autoencoder.1} parent=5 // pred_fallthru
        _
      %p7117 = scmp.le.s32.totalorder 2, %s85
      // Predicated region
      $region233: #{radar_hybrid_autoencoder.1} parent=5 // pred_check
        %p7118 = pneg %p7117
      $region234: #{radar_hybrid_autoencoder.1} parent=5 // pred_check_branch
        %7120 = sbr.rel (%p7118) target = $region236
      $region235: #{radar_hybrid_autoencoder.1} parent=5 // pred_region
        %s7121 = ssub.s32 %s85, 2
        // Predicated region
        $region237: #{radar_hybrid_autoencoder.1} parent=235 // pred_check
          %p7122 = pneg %p833
        $region238: #{radar_hybrid_autoencoder.1} parent=235 // pred_check_branch
          %7124 = sbr.rel (%p7122) target = $region240
        $region239: #{radar_hybrid_autoencoder.1} parent=235 // pred_region
          %p7125 = scmp.lt.s32.totalorder %s91, 1
          %s7126 = scalar_select %p7125, %s91, 1
          %s7127 = smul.addr %s7126, 2
          %s7128 = smul.addr %s7127, 2
          %s7129 = scalar_lea.vmem %s69, %s7128
        $region240: #{radar_hybrid_autoencoder.1} parent=235 // pred_fallthru
          _
      $region236: #{radar_hybrid_autoencoder.1} parent=5 // pred_fallthru
        _
    $region6: #{radar_hybrid_autoencoder.1} parent=1 // loop_footer
      %s89 = sadd.s32 1, %s85
    $region7: #{radar_hybrid_autoencoder.1} parent=1 // loop_footer_branch
      %84 = sbr.rel target = $region3
    $region8: #{radar_hybrid_autoencoder.1} parent=1 // loop_exit
      _
    %7130 = vsyncpa [#allocation3], 1
    %s7131 = scalar_lea.sflag [#allocation3], 1
    %7132 = vsyncpa %s7131, 1
    %7133 = vsyncpa [#allocation5], 1
    %7134 = vsyncpa [#allocation8], 1
    %7135 = vsyncpa [#allocation11], 1
    %7136 = vsyncpa [#allocation14], 1
    %7137 = vsyncpa [#allocation17], 1
    %7138 = vsyncpa [#allocation20], 1
    %7139 = vsyncpa [#allocation23], 1
    %7140 = vsyncpa [#allocation26], 1
    %7141 = vsyncpa [#allocation29], 1

</llo_original>
